<compile_context>
chip_gen: v5e
topology: v5e:2x2
jax: 0.10.0
libtpu: 0.0.40
codegen_flags: <defaults>
</compile_context>

<pallas_src>
import jax
import jax.numpy as jnp
from jax import lax
from jax.experimental import pallas as pl
from jax.experimental.pallas import tpu as pltpu


_VMEM = pl.BlockSpec(memory_space=pltpu.MemorySpace.VMEM)

# Packed per-channel parameter slab (width, _N_COL) column layout (wrapper and kernel
# must agree): [b1 | (gA,bA,alphaA,gB,bB) x 4 residual blocks | b10 | 25 conv1 taps]
_B1_COL = 0
_BLK_BASE = 1
_B10_COL = 21
_C1W_COL = 22
_N_COL = 47

_T3 = 9          # 3x3 taps
_T3_PAD = 10     # padded so each patch store is one full (16, 128) bf16 tile group
_T5 = 25         # 5x5 taps


def _tap_offsets(K, W):
    """Flat-index offsets of the K*K taps, tap order t = dy*K + dx."""
    p = K // 2
    return tuple((dy - p) * W + (dx - p) for dy in range(K) for dx in range(K))


def _border_masks(K, N, H, W):
    """(K*K, N*H*W) f32 {0,1}: 1 where tap (dy,dx) reads inside the image."""
    p = K // 2
    hh = jnp.arange(H).reshape(H, 1)
    ww = jnp.arange(W).reshape(1, W)
    rows = []
    for dy in range(K):
        for dx in range(K):
            ok = ((hh + dy - p >= 0) & (hh + dy - p < H) &
                  (ww + dx - p >= 0) & (ww + dx - p < W))
            m = ok.astype(jnp.float32).reshape(1, H * W)
            rows.append(jnp.tile(m, (1, N)))          # same mask for every image n
    return jnp.concatenate(rows, axis=0)


def _shift_lanes(a, off, R):
    """shifted[:, f] == a[:, (f + off) % R].

    pltpu.roll follows jnp.roll semantics (roll(x, s)[f] == x[(f - s) % R]), so the
    rotation amount is (-off) % R.  Hard-coded: the old runtime probe added a
    throwaway pallas_call and raised under jit.
    """
    s = (-off) % R
    if s == 0:
        return a
    return pltpu.roll(a, s, axis=1)


def _make_fused_kernel(width, N, H, W, eps=1e-5):
    R = N * H * W
    offs5 = _tap_offsets(5, W)
    offs3 = _tap_offsets(3, W)

    def kernel(x_ref, m5_ref, m3_ref, w_ref, pc_ref, out_ref, patch_ref):
        def col(c):                                      # per-channel (width, 1) column
            return pc_ref[:, c:c + 1]

        # ---- conv1 (Cin = 1): 25 broadcast outer-product FMAs on the VPU.
        # No im2col scratch, no masked single-row stores, no MXU needed at Cin = 1.
        x = x_ref[...]                                   # (1, R)
        act = jnp.zeros((width, R), jnp.float32)
        for t, off in enumerate(offs5):
            row = _shift_lanes(x, off, R) * m5_ref[t:t + 1, :]     # border-masked tap
            act = act + col(_C1W_COL + t) * row                     # (width,1)*(1,R)
        act = act + col(_B1_COL)

        # ---- 3x3 conv: masked-at-store bf16 im2col patch matrix + ONE MXU dot.
        def conv3x3(a, slab):
            def tap(t):
                if t >= _T3:                              # padded tap -> zeros
                    return jnp.zeros((width, R), jnp.float32)
                return _shift_lanes(a, offs3[t], R) * m3_ref[t:t + 1, :]
            # Two taps per store = 16 rows = one full bf16 sublane-tile group.
            for t in range(0, _T3_PAD, 2):
                pair = jnp.concatenate([tap(t), tap(t + 1)], axis=0)      # (16, R) f32
                patch_ref[t * width:(t + 2) * width, :] = pair.astype(jnp.bfloat16)
            return jnp.dot(w_ref[slab], patch_ref[...],
                           preferred_element_type=jnp.float32)            # (width, R)

        # ---- train-mode BatchNorm2d: one-pass sum / sum-of-squares batch stats.
        def batchnorm(y, g, b):
            mean = jnp.mean(y, axis=1, keepdims=True)
            msq = jnp.mean(y * y, axis=1, keepdims=True)
            inv = lax.rsqrt(msq - mean * mean + eps)
            return (y - mean) * (inv * g) + b

        # ---- four residual blocks: conv-BN-PReLU-conv-BN + skip.
        for i in range(4):
            base = _BLK_BASE + 5 * i
            gA, bA, aA, gB, bB = (col(base + j) for j in range(5))
            mid = batchnorm(conv3x3(act, 2 * i), gA, bA)
            mid = jnp.where(mid > 0, mid, aA * mid)       # per-channel PReLU
            act = act + batchnorm(conv3x3(mid, 2 * i + 1), gB, bB)

        # ---- conv10 (Cout = 1): weight slab 8 has conv10 in row 0, zeros elsewhere.
        y = conv3x3(act, 8)
        out_ref[...] = y[0:1, :] + pc_ref[0:1, _B10_COL:_B10_COL + 1]

    return kernel


def detection_resnet_bn(x_nchw, params):
    """Forward pass.  x_nchw: (N, 1, H, W) f32 -> (N, 1, H, W) f32."""
    N, cin, H, W = x_nchw.shape
    assert cin == 1
    width = params['conv1.w'].shape[0]
    R = N * H * W

    def wmat3(w):
        # (Cout, Cin, 3, 3) -> (Cout, _T3_PAD*Cin) bf16, row-major (tap, cin), with one
        # zero tap appended to match the tile-aligned (padded) patch matrix rows.
        co, ci, K, _ = w.shape
        m = jnp.transpose(w, (0, 2, 3, 1)).reshape(co, K * K * ci)
        m = jnp.pad(m, ((0, 0), (0, (_T3_PAD - K * K) * ci)))
        return m.astype(jnp.bfloat16)

    # One stacked bf16 weight slab (1 DMA): conv2..conv9, then conv10 padded to width rows.
    slabs = [wmat3(params[f'conv{i}.w']) for i in range(2, 10)]
    w10 = jnp.pad(wmat3(params['conv10.w']), ((0, width - 1), (0, 0)))
    w_slab = jnp.stack(slabs + [w10], axis=0)            # (9, width, _T3_PAD*width)

    # One packed per-channel f32 slab (1 DMA): biases, BN gamma/beta, PReLU alphas and
    # the 25 conv1 tap columns -- replaces ~30 sub-4KiB parameter DMAs.
    w1 = jnp.transpose(params['conv1.w'], (0, 2, 3, 1)).reshape(width, _T5)
    cols = [params['conv1.b']]
    for a, b in ((2, 3), (4, 5), (6, 7), (8, 9)):
        cols += [params[f'bn{a}.g'], params[f'bn{a}.b'], params[f'prelu{a}.a'],
                 params[f'bn{b}.g'], params[f'bn{b}.b']]
    cols += [jnp.broadcast_to(params['conv10.b'], (width,))]
    cols += [w1[:, t] for t in range(_T5)]
    pc = jnp.stack(cols, axis=1).astype(jnp.float32)     # (width, _N_COL)
    assert pc.shape[1] == _N_COL

    # De-duplicated border masks (tap-indexed only; broadcast over channels in-kernel).
    m5 = _border_masks(5, N, H, W)                       # (25, R)
    m3 = _border_masks(3, N, H, W)                       # (9, R)

    kernel = _make_fused_kernel(width, N, H, W)
    out = pl.pallas_call(
        kernel,
        in_specs=[_VMEM] * 5,
        out_specs=_VMEM,
        out_shape=jax.ShapeDtypeStruct((1, R), jnp.float32),
        scratch_shapes=[pltpu.VMEM((_T3_PAD * width, R), jnp.bfloat16)],  # im2col patches
        compiler_params=pltpu.CompilerParams(vmem_limit_bytes=32 * 1024 * 1024),
    )(x_nchw.reshape(1, R).astype(jnp.float32), m5, m3, w_slab, pc)
    return out.reshape(N, 1, H, W)


def init_params(width, key):
    keys = iter(jax.random.split(key, 32))
    p = {}

    def w_init(shape, k):
        fan_in = shape[1] * shape[2] * shape[3]
        return jax.random.normal(k, shape, jnp.float32) * (1.0 / fan_in) ** 0.5

    p['conv1.w'] = w_init((width, 1, 5, 5), next(keys))
    p['conv1.b'] = 0.1 * jax.random.normal(next(keys), (width,), jnp.float32)
    for i in range(2, 10):
        p[f'conv{i}.w'] = w_init((width, width, 3, 3), next(keys))
        p[f'bn{i}.g'] = 1.0 + 0.1 * jax.random.normal(next(keys), (width,), jnp.float32)
        p[f'bn{i}.b'] = 0.1 * jax.random.normal(next(keys), (width,), jnp.float32)
    for i in (2, 4, 6, 8):
        p[f'prelu{i}.a'] = jnp.full((width,), 0.25, jnp.float32)   # PyTorch default
    p['conv10.w'] = w_init((1, width, 3, 3), next(keys))
    p['conv10.b'] = 0.1 * jax.random.normal(next(keys), (1,), jnp.float32)
    return p


def _ref_forward(x_nchw, params, eps=1e-5):
    """Pure-JAX reference (NCHW, f32) of the PyTorch forward (train-mode BN)."""
    def conv(x, w, b=None):
        y = lax.conv_general_dilated(
            x, w, (1, 1), 'SAME',
            dimension_numbers=('NCHW', 'OIHW', 'NCHW'),
            precision=lax.Precision.HIGHEST)
        if b is not None:
            y = y + b.reshape(1, -1, 1, 1)
        return y

    def bn(x, g, b):
        m = jnp.mean(x, axis=(0, 2, 3), keepdims=True)
        v = jnp.mean((x - m) ** 2, axis=(0, 2, 3), keepdims=True)
        return (x - m) / jnp.sqrt(v + eps) * g.reshape(1, -1, 1, 1) + b.reshape(1, -1, 1, 1)

    def prelu(x, a):
        return jnp.where(x > 0, x, a.reshape(1, -1, 1, 1) * x)

    x = conv(x_nchw, params['conv1.w'], params['conv1.b'])
    for a_, b_ in ((2, 3), (4, 5), (6, 7), (8, 9)):
        t = prelu(bn(conv(x, params[f'conv{a_}.w']),
                     params[f'bn{a_}.g'], params[f'bn{a_}.b']),
                  params[f'prelu{a_}.a'])
        x = x + bn(conv(t, params[f'conv{b_}.w']),
                   params[f'bn{b_}.g'], params[f'bn{b_}.b'])
    return conv(x, params['conv10.w'], params['conv10.b'])


if __name__ == "__main__":
    key = jax.random.PRNGKey(0)
    kx, kp = jax.random.split(key)

    width = 8
    N, H, W = 2, 16, 16          # N*H*W = 512 -> lane-dense flat axis (4 lane tiles)
    x = jax.random.normal(kx, (N, 1, H, W), jnp.float32)
    params = init_params(width, kp)

    fwd = jax.jit(detection_resnet_bn)       # wrapper is jit-safe now (no roll probe)
    out = jax.block_until_ready(fwd(x, params))
    assert out.shape == (N, 1, H, W) and out.dtype == jnp.float32

    ref = jax.block_until_ready(_ref_forward(x, params))
    err = float(jnp.max(jnp.abs(out - ref)))
    scale = float(jnp.max(jnp.abs(ref)))
    # bf16 MXU operands (f32 accumulate) across 9 convs -> ~1% relative error budget.
    tol = 5e-2 + 2e-2 * scale
    assert err <= tol, f"mismatch vs reference: max abs err {err:.4g} (tol {tol:.4g})"

    print("KERNEL_OK")
</pallas_src>

<mosaic_0001>
module attributes {stable_mosaic.version = 11 : i64} {
  func.func @kernel(%arg0: memref<1x512xf32, #tpu.memory_space<vmem>>, %arg1: memref<25x512xf32, #tpu.memory_space<vmem>>, %arg2: memref<9x512xf32, #tpu.memory_space<vmem>>, %arg3: memref<9x8x80xbf16, #tpu.memory_space<vmem>>, %arg4: memref<8x47xf32, #tpu.memory_space<vmem>>, %arg5: memref<1x512xf32, #tpu.memory_space<vmem>>, %arg6: memref<80x512xbf16, #tpu.memory_space<vmem>>) attributes {dimension_semantics = [], scalar_prefetch = 0 : i64, scratch_operands = 1 : i64, tpu.core_type = #tpu.core_type<tc>} {
    %c0 = arith.constant 0 : index
    %c0_0 = arith.constant 0 : index
    %0 = vector.load %arg0[%c0, %c0_0] : memref<1x512xf32, #tpu.memory_space<vmem>>, vector<1x512xf32>
    %cst = arith.constant 0.000000e+00 : f32
    %1 = vector.broadcast %cst : f32 to vector<8x512xf32>
    %c34_i32 = arith.constant 34 : i32
    %2 = tpu.dynamic_rotate %0 by %c34_i32 dim 1 : vector<1x512xf32>, i32 -> vector<1x512xf32>
    %c0_1 = arith.constant 0 : index
    %c0_2 = arith.constant 0 : index
    %3 = vector.load %arg1[%c0_1, %c0_2] : memref<25x512xf32, #tpu.memory_space<vmem>>, vector<1x512xf32>
    %4 = arith.mulf %2, %3 : vector<1x512xf32>
    %c0_3 = arith.constant 0 : index
    %c22 = arith.constant 22 : index
    %5 = vector.load %arg4[%c0_3, %c22] : memref<8x47xf32, #tpu.memory_space<vmem>>, vector<8x1xf32>
    %6 = vector.broadcast %5 : vector<8x1xf32> to vector<8x512xf32>
    %7 = vector.broadcast %4 : vector<1x512xf32> to vector<8x512xf32>
    %8 = arith.mulf %6, %7 : vector<8x512xf32>
    %9 = arith.addf %1, %8 : vector<8x512xf32>
    %c33_i32 = arith.constant 33 : i32
    %10 = tpu.dynamic_rotate %0 by %c33_i32 dim 1 : vector<1x512xf32>, i32 -> vector<1x512xf32>
    %c1 = arith.constant 1 : index
    %c0_4 = arith.constant 0 : index
    %11 = vector.load %arg1[%c1, %c0_4] : memref<25x512xf32, #tpu.memory_space<vmem>>, vector<1x512xf32>
    %12 = arith.mulf %10, %11 : vector<1x512xf32>
    %c0_5 = arith.constant 0 : index
    %c23 = arith.constant 23 : index
    %13 = vector.load %arg4[%c0_5, %c23] : memref<8x47xf32, #tpu.memory_space<vmem>>, vector<8x1xf32>
    %14 = vector.broadcast %13 : vector<8x1xf32> to vector<8x512xf32>
    %15 = vector.broadcast %12 : vector<1x512xf32> to vector<8x512xf32>
    %16 = arith.mulf %14, %15 : vector<8x512xf32>
    %17 = arith.addf %9, %16 : vector<8x512xf32>
    %c32_i32 = arith.constant 32 : i32
    %18 = tpu.dynamic_rotate %0 by %c32_i32 dim 1 : vector<1x512xf32>, i32 -> vector<1x512xf32>
    %c2 = arith.constant 2 : index
    %c0_6 = arith.constant 0 : index
    %19 = vector.load %arg1[%c2, %c0_6] : memref<25x512xf32, #tpu.memory_space<vmem>>, vector<1x512xf32>
    %20 = arith.mulf %18, %19 : vector<1x512xf32>
    %c0_7 = arith.constant 0 : index
    %c24 = arith.constant 24 : index
    %21 = vector.load %arg4[%c0_7, %c24] : memref<8x47xf32, #tpu.memory_space<vmem>>, vector<8x1xf32>
    %22 = vector.broadcast %21 : vector<8x1xf32> to vector<8x512xf32>
    %23 = vector.broadcast %20 : vector<1x512xf32> to vector<8x512xf32>
    %24 = arith.mulf %22, %23 : vector<8x512xf32>
    %25 = arith.addf %17, %24 : vector<8x512xf32>
    %c31_i32 = arith.constant 31 : i32
    %26 = tpu.dynamic_rotate %0 by %c31_i32 dim 1 : vector<1x512xf32>, i32 -> vector<1x512xf32>
    %c3 = arith.constant 3 : index
    %c0_8 = arith.constant 0 : index
    %27 = vector.load %arg1[%c3, %c0_8] : memref<25x512xf32, #tpu.memory_space<vmem>>, vector<1x512xf32>
    %28 = arith.mulf %26, %27 : vector<1x512xf32>
    %c0_9 = arith.constant 0 : index
    %c25 = arith.constant 25 : index
    %29 = vector.load %arg4[%c0_9, %c25] : memref<8x47xf32, #tpu.memory_space<vmem>>, vector<8x1xf32>
    %30 = vector.broadcast %29 : vector<8x1xf32> to vector<8x512xf32>
    %31 = vector.broadcast %28 : vector<1x512xf32> to vector<8x512xf32>
    %32 = arith.mulf %30, %31 : vector<8x512xf32>
    %33 = arith.addf %25, %32 : vector<8x512xf32>
    %c30_i32 = arith.constant 30 : i32
    %34 = tpu.dynamic_rotate %0 by %c30_i32 dim 1 : vector<1x512xf32>, i32 -> vector<1x512xf32>
    %c4 = arith.constant 4 : index
    %c0_10 = arith.constant 0 : index
    %35 = vector.load %arg1[%c4, %c0_10] : memref<25x512xf32, #tpu.memory_space<vmem>>, vector<1x512xf32>
    %36 = arith.mulf %34, %35 : vector<1x512xf32>
    %c0_11 = arith.constant 0 : index
    %c26 = arith.constant 26 : index
    %37 = vector.load %arg4[%c0_11, %c26] : memref<8x47xf32, #tpu.memory_space<vmem>>, vector<8x1xf32>
    %38 = vector.broadcast %37 : vector<8x1xf32> to vector<8x512xf32>
    %39 = vector.broadcast %36 : vector<1x512xf32> to vector<8x512xf32>
    %40 = arith.mulf %38, %39 : vector<8x512xf32>
    %41 = arith.addf %33, %40 : vector<8x512xf32>
    %c18_i32 = arith.constant 18 : i32
    %42 = tpu.dynamic_rotate %0 by %c18_i32 dim 1 : vector<1x512xf32>, i32 -> vector<1x512xf32>
    %c5 = arith.constant 5 : index
    %c0_12 = arith.constant 0 : index
    %43 = vector.load %arg1[%c5, %c0_12] : memref<25x512xf32, #tpu.memory_space<vmem>>, vector<1x512xf32>
    %44 = arith.mulf %42, %43 : vector<1x512xf32>
    %c0_13 = arith.constant 0 : index
    %c27 = arith.constant 27 : index
    %45 = vector.load %arg4[%c0_13, %c27] : memref<8x47xf32, #tpu.memory_space<vmem>>, vector<8x1xf32>
    %46 = vector.broadcast %45 : vector<8x1xf32> to vector<8x512xf32>
    %47 = vector.broadcast %44 : vector<1x512xf32> to vector<8x512xf32>
    %48 = arith.mulf %46, %47 : vector<8x512xf32>
    %49 = arith.addf %41, %48 : vector<8x512xf32>
    %c17_i32 = arith.constant 17 : i32
    %50 = tpu.dynamic_rotate %0 by %c17_i32 dim 1 : vector<1x512xf32>, i32 -> vector<1x512xf32>
    %c6 = arith.constant 6 : index
    %c0_14 = arith.constant 0 : index
    %51 = vector.load %arg1[%c6, %c0_14] : memref<25x512xf32, #tpu.memory_space<vmem>>, vector<1x512xf32>
    %52 = arith.mulf %50, %51 : vector<1x512xf32>
    %c0_15 = arith.constant 0 : index
    %c28 = arith.constant 28 : index
    %53 = vector.load %arg4[%c0_15, %c28] : memref<8x47xf32, #tpu.memory_space<vmem>>, vector<8x1xf32>
    %54 = vector.broadcast %53 : vector<8x1xf32> to vector<8x512xf32>
    %55 = vector.broadcast %52 : vector<1x512xf32> to vector<8x512xf32>
    %56 = arith.mulf %54, %55 : vector<8x512xf32>
    %57 = arith.addf %49, %56 : vector<8x512xf32>
    %c16_i32 = arith.constant 16 : i32
    %58 = tpu.dynamic_rotate %0 by %c16_i32 dim 1 : vector<1x512xf32>, i32 -> vector<1x512xf32>
    %c7 = arith.constant 7 : index
    %c0_16 = arith.constant 0 : index
    %59 = vector.load %arg1[%c7, %c0_16] : memref<25x512xf32, #tpu.memory_space<vmem>>, vector<1x512xf32>
    %60 = arith.mulf %58, %59 : vector<1x512xf32>
    %c0_17 = arith.constant 0 : index
    %c29 = arith.constant 29 : index
    %61 = vector.load %arg4[%c0_17, %c29] : memref<8x47xf32, #tpu.memory_space<vmem>>, vector<8x1xf32>
    %62 = vector.broadcast %61 : vector<8x1xf32> to vector<8x512xf32>
    %63 = vector.broadcast %60 : vector<1x512xf32> to vector<8x512xf32>
    %64 = arith.mulf %62, %63 : vector<8x512xf32>
    %65 = arith.addf %57, %64 : vector<8x512xf32>
    %c15_i32 = arith.constant 15 : i32
    %66 = tpu.dynamic_rotate %0 by %c15_i32 dim 1 : vector<1x512xf32>, i32 -> vector<1x512xf32>
    %c8 = arith.constant 8 : index
    %c0_18 = arith.constant 0 : index
    %67 = vector.load %arg1[%c8, %c0_18] : memref<25x512xf32, #tpu.memory_space<vmem>>, vector<1x512xf32>
    %68 = arith.mulf %66, %67 : vector<1x512xf32>
    %c0_19 = arith.constant 0 : index
    %c30 = arith.constant 30 : index
    %69 = vector.load %arg4[%c0_19, %c30] : memref<8x47xf32, #tpu.memory_space<vmem>>, vector<8x1xf32>
    %70 = vector.broadcast %69 : vector<8x1xf32> to vector<8x512xf32>
    %71 = vector.broadcast %68 : vector<1x512xf32> to vector<8x512xf32>
    %72 = arith.mulf %70, %71 : vector<8x512xf32>
    %73 = arith.addf %65, %72 : vector<8x512xf32>
    %c14_i32 = arith.constant 14 : i32
    %74 = tpu.dynamic_rotate %0 by %c14_i32 dim 1 : vector<1x512xf32>, i32 -> vector<1x512xf32>
    %c9 = arith.constant 9 : index
    %c0_20 = arith.constant 0 : index
    %75 = vector.load %arg1[%c9, %c0_20] : memref<25x512xf32, #tpu.memory_space<vmem>>, vector<1x512xf32>
    %76 = arith.mulf %74, %75 : vector<1x512xf32>
    %c0_21 = arith.constant 0 : index
    %c31 = arith.constant 31 : index
    %77 = vector.load %arg4[%c0_21, %c31] : memref<8x47xf32, #tpu.memory_space<vmem>>, vector<8x1xf32>
    %78 = vector.broadcast %77 : vector<8x1xf32> to vector<8x512xf32>
    %79 = vector.broadcast %76 : vector<1x512xf32> to vector<8x512xf32>
    %80 = arith.mulf %78, %79 : vector<8x512xf32>
    %81 = arith.addf %73, %80 : vector<8x512xf32>
    %c2_i32 = arith.constant 2 : i32
    %82 = tpu.dynamic_rotate %0 by %c2_i32 dim 1 : vector<1x512xf32>, i32 -> vector<1x512xf32>
    %c10 = arith.constant 10 : index
    %c0_22 = arith.constant 0 : index
    %83 = vector.load %arg1[%c10, %c0_22] : memref<25x512xf32, #tpu.memory_space<vmem>>, vector<1x512xf32>
    %84 = arith.mulf %82, %83 : vector<1x512xf32>
    %c0_23 = arith.constant 0 : index
    %c32 = arith.constant 32 : index
    %85 = vector.load %arg4[%c0_23, %c32] : memref<8x47xf32, #tpu.memory_space<vmem>>, vector<8x1xf32>
    %86 = vector.broadcast %85 : vector<8x1xf32> to vector<8x512xf32>
    %87 = vector.broadcast %84 : vector<1x512xf32> to vector<8x512xf32>
    %88 = arith.mulf %86, %87 : vector<8x512xf32>
    %89 = arith.addf %81, %88 : vector<8x512xf32>
    %c1_i32 = arith.constant 1 : i32
    %90 = tpu.dynamic_rotate %0 by %c1_i32 dim 1 : vector<1x512xf32>, i32 -> vector<1x512xf32>
    %c11 = arith.constant 11 : index
    %c0_24 = arith.constant 0 : index
    %91 = vector.load %arg1[%c11, %c0_24] : memref<25x512xf32, #tpu.memory_space<vmem>>, vector<1x512xf32>
    %92 = arith.mulf %90, %91 : vector<1x512xf32>
    %c0_25 = arith.constant 0 : index
    %c33 = arith.constant 33 : index
    %93 = vector.load %arg4[%c0_25, %c33] : memref<8x47xf32, #tpu.memory_space<vmem>>, vector<8x1xf32>
    %94 = vector.broadcast %93 : vector<8x1xf32> to vector<8x512xf32>
    %95 = vector.broadcast %92 : vector<1x512xf32> to vector<8x512xf32>
    %96 = arith.mulf %94, %95 : vector<8x512xf32>
    %97 = arith.addf %89, %96 : vector<8x512xf32>
    %c12 = arith.constant 12 : index
    %c0_26 = arith.constant 0 : index
    %98 = vector.load %arg1[%c12, %c0_26] : memref<25x512xf32, #tpu.memory_space<vmem>>, vector<1x512xf32>
    %99 = arith.mulf %0, %98 : vector<1x512xf32>
    %c0_27 = arith.constant 0 : index
    %c34 = arith.constant 34 : index
    %100 = vector.load %arg4[%c0_27, %c34] : memref<8x47xf32, #tpu.memory_space<vmem>>, vector<8x1xf32>
    %101 = vector.broadcast %100 : vector<8x1xf32> to vector<8x512xf32>
    %102 = vector.broadcast %99 : vector<1x512xf32> to vector<8x512xf32>
    %103 = arith.mulf %101, %102 : vector<8x512xf32>
    %104 = arith.addf %97, %103 : vector<8x512xf32>
    %c511_i32 = arith.constant 511 : i32
    %105 = tpu.dynamic_rotate %0 by %c511_i32 dim 1 : vector<1x512xf32>, i32 -> vector<1x512xf32>
    %c13 = arith.constant 13 : index
    %c0_28 = arith.constant 0 : index
    %106 = vector.load %arg1[%c13, %c0_28] : memref<25x512xf32, #tpu.memory_space<vmem>>, vector<1x512xf32>
    %107 = arith.mulf %105, %106 : vector<1x512xf32>
    %c0_29 = arith.constant 0 : index
    %c35 = arith.constant 35 : index
    %108 = vector.load %arg4[%c0_29, %c35] : memref<8x47xf32, #tpu.memory_space<vmem>>, vector<8x1xf32>
    %109 = vector.broadcast %108 : vector<8x1xf32> to vector<8x512xf32>
    %110 = vector.broadcast %107 : vector<1x512xf32> to vector<8x512xf32>
    %111 = arith.mulf %109, %110 : vector<8x512xf32>
    %112 = arith.addf %104, %111 : vector<8x512xf32>
    %c510_i32 = arith.constant 510 : i32
    %113 = tpu.dynamic_rotate %0 by %c510_i32 dim 1 : vector<1x512xf32>, i32 -> vector<1x512xf32>
    %c14 = arith.constant 14 : index
    %c0_30 = arith.constant 0 : index
    %114 = vector.load %arg1[%c14, %c0_30] : memref<25x512xf32, #tpu.memory_space<vmem>>, vector<1x512xf32>
    %115 = arith.mulf %113, %114 : vector<1x512xf32>
    %c0_31 = arith.constant 0 : index
    %c36 = arith.constant 36 : index
    %116 = vector.load %arg4[%c0_31, %c36] : memref<8x47xf32, #tpu.memory_space<vmem>>, vector<8x1xf32>
    %117 = vector.broadcast %116 : vector<8x1xf32> to vector<8x512xf32>
    %118 = vector.broadcast %115 : vector<1x512xf32> to vector<8x512xf32>
    %119 = arith.mulf %117, %118 : vector<8x512xf32>
    %120 = arith.addf %112, %119 : vector<8x512xf32>
    %c498_i32 = arith.constant 498 : i32
    %121 = tpu.dynamic_rotate %0 by %c498_i32 dim 1 : vector<1x512xf32>, i32 -> vector<1x512xf32>
    %c15 = arith.constant 15 : index
    %c0_32 = arith.constant 0 : index
    %122 = vector.load %arg1[%c15, %c0_32] : memref<25x512xf32, #tpu.memory_space<vmem>>, vector<1x512xf32>
    %123 = arith.mulf %121, %122 : vector<1x512xf32>
    %c0_33 = arith.constant 0 : index
    %c37 = arith.constant 37 : index
    %124 = vector.load %arg4[%c0_33, %c37] : memref<8x47xf32, #tpu.memory_space<vmem>>, vector<8x1xf32>
    %125 = vector.broadcast %124 : vector<8x1xf32> to vector<8x512xf32>
    %126 = vector.broadcast %123 : vector<1x512xf32> to vector<8x512xf32>
    %127 = arith.mulf %125, %126 : vector<8x512xf32>
    %128 = arith.addf %120, %127 : vector<8x512xf32>
    %c497_i32 = arith.constant 497 : i32
    %129 = tpu.dynamic_rotate %0 by %c497_i32 dim 1 : vector<1x512xf32>, i32 -> vector<1x512xf32>
    %c16 = arith.constant 16 : index
    %c0_34 = arith.constant 0 : index
    %130 = vector.load %arg1[%c16, %c0_34] : memref<25x512xf32, #tpu.memory_space<vmem>>, vector<1x512xf32>
    %131 = arith.mulf %129, %130 : vector<1x512xf32>
    %c0_35 = arith.constant 0 : index
    %c38 = arith.constant 38 : index
    %132 = vector.load %arg4[%c0_35, %c38] : memref<8x47xf32, #tpu.memory_space<vmem>>, vector<8x1xf32>
    %133 = vector.broadcast %132 : vector<8x1xf32> to vector<8x512xf32>
    %134 = vector.broadcast %131 : vector<1x512xf32> to vector<8x512xf32>
    %135 = arith.mulf %133, %134 : vector<8x512xf32>
    %136 = arith.addf %128, %135 : vector<8x512xf32>
    %c496_i32 = arith.constant 496 : i32
    %137 = tpu.dynamic_rotate %0 by %c496_i32 dim 1 : vector<1x512xf32>, i32 -> vector<1x512xf32>
    %c17 = arith.constant 17 : index
    %c0_36 = arith.constant 0 : index
    %138 = vector.load %arg1[%c17, %c0_36] : memref<25x512xf32, #tpu.memory_space<vmem>>, vector<1x512xf32>
    %139 = arith.mulf %137, %138 : vector<1x512xf32>
    %c0_37 = arith.constant 0 : index
    %c39 = arith.constant 39 : index
    %140 = vector.load %arg4[%c0_37, %c39] : memref<8x47xf32, #tpu.memory_space<vmem>>, vector<8x1xf32>
    %141 = vector.broadcast %140 : vector<8x1xf32> to vector<8x512xf32>
    %142 = vector.broadcast %139 : vector<1x512xf32> to vector<8x512xf32>
    %143 = arith.mulf %141, %142 : vector<8x512xf32>
    %144 = arith.addf %136, %143 : vector<8x512xf32>
    %c495_i32 = arith.constant 495 : i32
    %145 = tpu.dynamic_rotate %0 by %c495_i32 dim 1 : vector<1x512xf32>, i32 -> vector<1x512xf32>
    %c18 = arith.constant 18 : index
    %c0_38 = arith.constant 0 : index
    %146 = vector.load %arg1[%c18, %c0_38] : memref<25x512xf32, #tpu.memory_space<vmem>>, vector<1x512xf32>
    %147 = arith.mulf %145, %146 : vector<1x512xf32>
    %c0_39 = arith.constant 0 : index
    %c40 = arith.constant 40 : index
    %148 = vector.load %arg4[%c0_39, %c40] : memref<8x47xf32, #tpu.memory_space<vmem>>, vector<8x1xf32>
    %149 = vector.broadcast %148 : vector<8x1xf32> to vector<8x512xf32>
    %150 = vector.broadcast %147 : vector<1x512xf32> to vector<8x512xf32>
    %151 = arith.mulf %149, %150 : vector<8x512xf32>
    %152 = arith.addf %144, %151 : vector<8x512xf32>
    %c494_i32 = arith.constant 494 : i32
    %153 = tpu.dynamic_rotate %0 by %c494_i32 dim 1 : vector<1x512xf32>, i32 -> vector<1x512xf32>
    %c19 = arith.constant 19 : index
    %c0_40 = arith.constant 0 : index
    %154 = vector.load %arg1[%c19, %c0_40] : memref<25x512xf32, #tpu.memory_space<vmem>>, vector<1x512xf32>
    %155 = arith.mulf %153, %154 : vector<1x512xf32>
    %c0_41 = arith.constant 0 : index
    %c41 = arith.constant 41 : index
    %156 = vector.load %arg4[%c0_41, %c41] : memref<8x47xf32, #tpu.memory_space<vmem>>, vector<8x1xf32>
    %157 = vector.broadcast %156 : vector<8x1xf32> to vector<8x512xf32>
    %158 = vector.broadcast %155 : vector<1x512xf32> to vector<8x512xf32>
    %159 = arith.mulf %157, %158 : vector<8x512xf32>
    %160 = arith.addf %152, %159 : vector<8x512xf32>
    %c482_i32 = arith.constant 482 : i32
    %161 = tpu.dynamic_rotate %0 by %c482_i32 dim 1 : vector<1x512xf32>, i32 -> vector<1x512xf32>
    %c20 = arith.constant 20 : index
    %c0_42 = arith.constant 0 : index
    %162 = vector.load %arg1[%c20, %c0_42] : memref<25x512xf32, #tpu.memory_space<vmem>>, vector<1x512xf32>
    %163 = arith.mulf %161, %162 : vector<1x512xf32>
    %c0_43 = arith.constant 0 : index
    %c42 = arith.constant 42 : index
    %164 = vector.load %arg4[%c0_43, %c42] : memref<8x47xf32, #tpu.memory_space<vmem>>, vector<8x1xf32>
    %165 = vector.broadcast %164 : vector<8x1xf32> to vector<8x512xf32>
    %166 = vector.broadcast %163 : vector<1x512xf32> to vector<8x512xf32>
    %167 = arith.mulf %165, %166 : vector<8x512xf32>
    %168 = arith.addf %160, %167 : vector<8x512xf32>
    %c481_i32 = arith.constant 481 : i32
    %169 = tpu.dynamic_rotate %0 by %c481_i32 dim 1 : vector<1x512xf32>, i32 -> vector<1x512xf32>
    %c21 = arith.constant 21 : index
    %c0_44 = arith.constant 0 : index
    %170 = vector.load %arg1[%c21, %c0_44] : memref<25x512xf32, #tpu.memory_space<vmem>>, vector<1x512xf32>
    %171 = arith.mulf %169, %170 : vector<1x512xf32>
    %c0_45 = arith.constant 0 : index
    %c43 = arith.constant 43 : index
    %172 = vector.load %arg4[%c0_45, %c43] : memref<8x47xf32, #tpu.memory_space<vmem>>, vector<8x1xf32>
    %173 = vector.broadcast %172 : vector<8x1xf32> to vector<8x512xf32>
    %174 = vector.broadcast %171 : vector<1x512xf32> to vector<8x512xf32>
    %175 = arith.mulf %173, %174 : vector<8x512xf32>
    %176 = arith.addf %168, %175 : vector<8x512xf32>
    %c480_i32 = arith.constant 480 : i32
    %177 = tpu.dynamic_rotate %0 by %c480_i32 dim 1 : vector<1x512xf32>, i32 -> vector<1x512xf32>
    %c22_46 = arith.constant 22 : index
    %c0_47 = arith.constant 0 : index
    %178 = vector.load %arg1[%c22_46, %c0_47] : memref<25x512xf32, #tpu.memory_space<vmem>>, vector<1x512xf32>
    %179 = arith.mulf %177, %178 : vector<1x512xf32>
    %c0_48 = arith.constant 0 : index
    %c44 = arith.constant 44 : index
    %180 = vector.load %arg4[%c0_48, %c44] : memref<8x47xf32, #tpu.memory_space<vmem>>, vector<8x1xf32>
    %181 = vector.broadcast %180 : vector<8x1xf32> to vector<8x512xf32>
    %182 = vector.broadcast %179 : vector<1x512xf32> to vector<8x512xf32>
    %183 = arith.mulf %181, %182 : vector<8x512xf32>
    %184 = arith.addf %176, %183 : vector<8x512xf32>
    %c479_i32 = arith.constant 479 : i32
    %185 = tpu.dynamic_rotate %0 by %c479_i32 dim 1 : vector<1x512xf32>, i32 -> vector<1x512xf32>
    %c23_49 = arith.constant 23 : index
    %c0_50 = arith.constant 0 : index
    %186 = vector.load %arg1[%c23_49, %c0_50] : memref<25x512xf32, #tpu.memory_space<vmem>>, vector<1x512xf32>
    %187 = arith.mulf %185, %186 : vector<1x512xf32>
    %c0_51 = arith.constant 0 : index
    %c45 = arith.constant 45 : index
    %188 = vector.load %arg4[%c0_51, %c45] : memref<8x47xf32, #tpu.memory_space<vmem>>, vector<8x1xf32>
    %189 = vector.broadcast %188 : vector<8x1xf32> to vector<8x512xf32>
    %190 = vector.broadcast %187 : vector<1x512xf32> to vector<8x512xf32>
    %191 = arith.mulf %189, %190 : vector<8x512xf32>
    %192 = arith.addf %184, %191 : vector<8x512xf32>
    %c478_i32 = arith.constant 478 : i32
    %193 = tpu.dynamic_rotate %0 by %c478_i32 dim 1 : vector<1x512xf32>, i32 -> vector<1x512xf32>
    %c24_52 = arith.constant 24 : index
    %c0_53 = arith.constant 0 : index
    %194 = vector.load %arg1[%c24_52, %c0_53] : memref<25x512xf32, #tpu.memory_space<vmem>>, vector<1x512xf32>
    %195 = arith.mulf %193, %194 : vector<1x512xf32>
    %c0_54 = arith.constant 0 : index
    %c46 = arith.constant 46 : index
    %196 = vector.load %arg4[%c0_54, %c46] : memref<8x47xf32, #tpu.memory_space<vmem>>, vector<8x1xf32>
    %197 = vector.broadcast %196 : vector<8x1xf32> to vector<8x512xf32>
    %198 = vector.broadcast %195 : vector<1x512xf32> to vector<8x512xf32>
    %199 = arith.mulf %197, %198 : vector<8x512xf32>
    %200 = arith.addf %192, %199 : vector<8x512xf32>
    %c0_55 = arith.constant 0 : index
    %c0_56 = arith.constant 0 : index
    %201 = vector.load %arg4[%c0_55, %c0_56] : memref<8x47xf32, #tpu.memory_space<vmem>>, vector<8x1xf32>
    %202 = vector.broadcast %201 : vector<8x1xf32> to vector<8x512xf32>
    %203 = arith.addf %200, %202 : vector<8x512xf32>
    %c0_57 = arith.constant 0 : index
    %c1_58 = arith.constant 1 : index
    %204 = vector.load %arg4[%c0_57, %c1_58] : memref<8x47xf32, #tpu.memory_space<vmem>>, vector<8x1xf32>
    %c0_59 = arith.constant 0 : index
    %c2_60 = arith.constant 2 : index
    %205 = vector.load %arg4[%c0_59, %c2_60] : memref<8x47xf32, #tpu.memory_space<vmem>>, vector<8x1xf32>
    %c0_61 = arith.constant 0 : index
    %c3_62 = arith.constant 3 : index
    %206 = vector.load %arg4[%c0_61, %c3_62] : memref<8x47xf32, #tpu.memory_space<vmem>>, vector<8x1xf32>
    %c0_63 = arith.constant 0 : index
    %c4_64 = arith.constant 4 : index
    %207 = vector.load %arg4[%c0_63, %c4_64] : memref<8x47xf32, #tpu.memory_space<vmem>>, vector<8x1xf32>
    %c0_65 = arith.constant 0 : index
    %c5_66 = arith.constant 5 : index
    %208 = vector.load %arg4[%c0_65, %c5_66] : memref<8x47xf32, #tpu.memory_space<vmem>>, vector<8x1xf32>
    %c17_i32_67 = arith.constant 17 : i32
    %209 = tpu.dynamic_rotate %203 by %c17_i32_67 dim 1 : vector<8x512xf32>, i32 -> vector<8x512xf32>
    %c0_68 = arith.constant 0 : index
    %c0_69 = arith.constant 0 : index
    %210 = vector.load %arg2[%c0_68, %c0_69] : memref<9x512xf32, #tpu.memory_space<vmem>>, vector<1x512xf32>
    %211 = vector.broadcast %210 : vector<1x512xf32> to vector<8x512xf32>
    %212 = arith.mulf %209, %211 : vector<8x512xf32>
    %c16_i32_70 = arith.constant 16 : i32
    %213 = tpu.dynamic_rotate %203 by %c16_i32_70 dim 1 : vector<8x512xf32>, i32 -> vector<8x512xf32>
    %c1_71 = arith.constant 1 : index
    %c0_72 = arith.constant 0 : index
    %214 = vector.load %arg2[%c1_71, %c0_72] : memref<9x512xf32, #tpu.memory_space<vmem>>, vector<1x512xf32>
    %215 = vector.broadcast %214 : vector<1x512xf32> to vector<8x512xf32>
    %216 = arith.mulf %213, %215 : vector<8x512xf32>
    %217 = tpu.concatenate %212, %216 in 0 : vector<8x512xf32>, vector<8x512xf32> -> vector<16x512xf32>
    %218 = arith.truncf %217 : vector<16x512xf32> to vector<16x512xbf16>
    %c0_73 = arith.constant 0 : index
    %c0_74 = arith.constant 0 : index
    %219 = vector.load %arg6[%c0_73, %c0_74] : memref<80x512xbf16, #tpu.memory_space<vmem>>, vector<16x512xbf16>
    tpu.vector_store %arg6[%c0_73, %c0_74], %218 {strides = array<i32>} : memref<80x512xbf16, #tpu.memory_space<vmem>>, vector<16x512xbf16>,
    %c15_i32_75 = arith.constant 15 : i32
    %220 = tpu.dynamic_rotate %203 by %c15_i32_75 dim 1 : vector<8x512xf32>, i32 -> vector<8x512xf32>
    %c2_76 = arith.constant 2 : index
    %c0_77 = arith.constant 0 : index
    %221 = vector.load %arg2[%c2_76, %c0_77] : memref<9x512xf32, #tpu.memory_space<vmem>>, vector<1x512xf32>
    %222 = vector.broadcast %221 : vector<1x512xf32> to vector<8x512xf32>
    %223 = arith.mulf %220, %222 : vector<8x512xf32>
    %c1_i32_78 = arith.constant 1 : i32
    %224 = tpu.dynamic_rotate %203 by %c1_i32_78 dim 1 : vector<8x512xf32>, i32 -> vector<8x512xf32>
    %c3_79 = arith.constant 3 : index
    %c0_80 = arith.constant 0 : index
    %225 = vector.load %arg2[%c3_79, %c0_80] : memref<9x512xf32, #tpu.memory_space<vmem>>, vector<1x512xf32>
    %226 = vector.broadcast %225 : vector<1x512xf32> to vector<8x512xf32>
    %227 = arith.mulf %224, %226 : vector<8x512xf32>
    %228 = tpu.concatenate %223, %227 in 0 : vector<8x512xf32>, vector<8x512xf32> -> vector<16x512xf32>
    %229 = arith.truncf %228 : vector<16x512xf32> to vector<16x512xbf16>
    %c16_81 = arith.constant 16 : index
    %c0_82 = arith.constant 0 : index
    %230 = vector.load %arg6[%c16_81, %c0_82] : memref<80x512xbf16, #tpu.memory_space<vmem>>, vector<16x512xbf16>
    tpu.vector_store %arg6[%c16_81, %c0_82], %229 {strides = array<i32>} : memref<80x512xbf16, #tpu.memory_space<vmem>>, vector<16x512xbf16>,
    %c4_83 = arith.constant 4 : index
    %c0_84 = arith.constant 0 : index
    %231 = vector.load %arg2[%c4_83, %c0_84] : memref<9x512xf32, #tpu.memory_space<vmem>>, vector<1x512xf32>
    %232 = vector.broadcast %231 : vector<1x512xf32> to vector<8x512xf32>
    %233 = arith.mulf %203, %232 : vector<8x512xf32>
    %c511_i32_85 = arith.constant 511 : i32
    %234 = tpu.dynamic_rotate %203 by %c511_i32_85 dim 1 : vector<8x512xf32>, i32 -> vector<8x512xf32>
    %c5_86 = arith.constant 5 : index
    %c0_87 = arith.constant 0 : index
    %235 = vector.load %arg2[%c5_86, %c0_87] : memref<9x512xf32, #tpu.memory_space<vmem>>, vector<1x512xf32>
    %236 = vector.broadcast %235 : vector<1x512xf32> to vector<8x512xf32>
    %237 = arith.mulf %234, %236 : vector<8x512xf32>
    %238 = tpu.concatenate %233, %237 in 0 : vector<8x512xf32>, vector<8x512xf32> -> vector<16x512xf32>
    %239 = arith.truncf %238 : vector<16x512xf32> to vector<16x512xbf16>
    %c32_88 = arith.constant 32 : index
    %c0_89 = arith.constant 0 : index
    %240 = vector.load %arg6[%c32_88, %c0_89] : memref<80x512xbf16, #tpu.memory_space<vmem>>, vector<16x512xbf16>
    tpu.vector_store %arg6[%c32_88, %c0_89], %239 {strides = array<i32>} : memref<80x512xbf16, #tpu.memory_space<vmem>>, vector<16x512xbf16>,
    %c497_i32_90 = arith.constant 497 : i32
    %241 = tpu.dynamic_rotate %203 by %c497_i32_90 dim 1 : vector<8x512xf32>, i32 -> vector<8x512xf32>
    %c6_91 = arith.constant 6 : index
    %c0_92 = arith.constant 0 : index
    %242 = vector.load %arg2[%c6_91, %c0_92] : memref<9x512xf32, #tpu.memory_space<vmem>>, vector<1x512xf32>
    %243 = vector.broadcast %242 : vector<1x512xf32> to vector<8x512xf32>
    %244 = arith.mulf %241, %243 : vector<8x512xf32>
    %c496_i32_93 = arith.constant 496 : i32
    %245 = tpu.dynamic_rotate %203 by %c496_i32_93 dim 1 : vector<8x512xf32>, i32 -> vector<8x512xf32>
    %c7_94 = arith.constant 7 : index
    %c0_95 = arith.constant 0 : index
    %246 = vector.load %arg2[%c7_94, %c0_95] : memref<9x512xf32, #tpu.memory_space<vmem>>, vector<1x512xf32>
    %247 = vector.broadcast %246 : vector<1x512xf32> to vector<8x512xf32>
    %248 = arith.mulf %245, %247 : vector<8x512xf32>
    %249 = tpu.concatenate %244, %248 in 0 : vector<8x512xf32>, vector<8x512xf32> -> vector<16x512xf32>
    %250 = arith.truncf %249 : vector<16x512xf32> to vector<16x512xbf16>
    %c48 = arith.constant 48 : index
    %c0_96 = arith.constant 0 : index
    %251 = vector.load %arg6[%c48, %c0_96] : memref<80x512xbf16, #tpu.memory_space<vmem>>, vector<16x512xbf16>
    tpu.vector_store %arg6[%c48, %c0_96], %250 {strides = array<i32>} : memref<80x512xbf16, #tpu.memory_space<vmem>>, vector<16x512xbf16>,
    %c495_i32_97 = arith.constant 495 : i32
    %252 = tpu.dynamic_rotate %203 by %c495_i32_97 dim 1 : vector<8x512xf32>, i32 -> vector<8x512xf32>
    %c8_98 = arith.constant 8 : index
    %c0_99 = arith.constant 0 : index
    %253 = vector.load %arg2[%c8_98, %c0_99] : memref<9x512xf32, #tpu.memory_space<vmem>>, vector<1x512xf32>
    %254 = vector.broadcast %253 : vector<1x512xf32> to vector<8x512xf32>
    %255 = arith.mulf %252, %254 : vector<8x512xf32>
    %cst_100 = arith.constant 0.000000e+00 : f32
    %256 = vector.broadcast %cst_100 : f32 to vector<8x512xf32>
    %257 = tpu.concatenate %255, %256 in 0 : vector<8x512xf32>, vector<8x512xf32> -> vector<16x512xf32>
    %258 = arith.truncf %257 : vector<16x512xf32> to vector<16x512xbf16>
    %c64 = arith.constant 64 : index
    %c0_101 = arith.constant 0 : index
    %259 = vector.load %arg6[%c64, %c0_101] : memref<80x512xbf16, #tpu.memory_space<vmem>>, vector<16x512xbf16>
    tpu.vector_store %arg6[%c64, %c0_101], %258 {strides = array<i32>} : memref<80x512xbf16, #tpu.memory_space<vmem>>, vector<16x512xbf16>,
    %c0_102 = arith.constant 0 : index
    %c0_103 = arith.constant 0 : index
    %c0_104 = arith.constant 0 : index
    %260 = vector.load %arg3[%c0_102, %c0_103, %c0_104] : memref<9x8x80xbf16, #tpu.memory_space<vmem>>, vector<1x8x80xbf16>
    %261 = vector.shape_cast %260 : vector<1x8x80xbf16> to vector<8x80xbf16>
    %c0_105 = arith.constant 0 : index
    %c0_106 = arith.constant 0 : index
    %262 = vector.load %arg6[%c0_105, %c0_106] : memref<80x512xbf16, #tpu.memory_space<vmem>>, vector<80x512xbf16>
    %cst_107 = arith.constant dense<0.000000e+00> : vector<8x512xf32>
    %263 = tpu.matmul %261, %262, %cst_107 {dimension_numbers = #tpu.dot_dimension_numbers<[1], [0], [0], [1], [0, 0, 1, 1], [], []>} : vector<8x80xbf16>, vector<80x512xbf16>, vector<8x512xf32> -> vector<8x512xf32>
    %cst_108 = arith.constant dense<0.000000e+00> : vector<8xf32>
    %264 = vector.multi_reduction <add>, %263, %cst_108 [1] : vector<8x512xf32> to vector<8xf32>
    %265 = vector.shape_cast %264 : vector<8xf32> to vector<8x1xf32>
    %cst_109 = arith.constant 5.120000e+02 : f32
    %266 = vector.broadcast %cst_109 : f32 to vector<8x1xf32>
    %267 = arith.divf %265, %266 : vector<8x1xf32>
    %268 = arith.mulf %263, %263 : vector<8x512xf32>
    %cst_110 = arith.constant dense<0.000000e+00> : vector<8xf32>
    %269 = vector.multi_reduction <add>, %268, %cst_110 [1] : vector<8x512xf32> to vector<8xf32>
    %270 = vector.shape_cast %269 : vector<8xf32> to vector<8x1xf32>
    %cst_111 = arith.constant 5.120000e+02 : f32
    %271 = vector.broadcast %cst_111 : f32 to vector<8x1xf32>
    %272 = arith.divf %270, %271 : vector<8x1xf32>
    %273 = arith.mulf %267, %267 : vector<8x1xf32>
    %274 = arith.subf %272, %273 : vector<8x1xf32>
    %cst_112 = arith.constant 9.99999974E-6 : f32
    %275 = vector.broadcast %cst_112 : f32 to vector<8x1xf32>
    %276 = arith.addf %274, %275 : vector<8x1xf32>
    %277 = math.rsqrt %276 : vector<8x1xf32>
    %278 = vector.broadcast %267 : vector<8x1xf32> to vector<8x512xf32>
    %279 = arith.subf %263, %278 : vector<8x512xf32>
    %280 = arith.mulf %277, %204 : vector<8x1xf32>
    %281 = vector.broadcast %280 : vector<8x1xf32> to vector<8x512xf32>
    %282 = arith.mulf %279, %281 : vector<8x512xf32>
    %283 = vector.broadcast %205 : vector<8x1xf32> to vector<8x512xf32>
    %284 = arith.addf %282, %283 : vector<8x512xf32>
    %cst_113 = arith.constant 0.000000e+00 : f32
    %285 = vector.broadcast %cst_113 : f32 to vector<8x512xf32>
    %286 = arith.cmpf ogt, %284, %285 : vector<8x512xf32>
    %287 = vector.broadcast %206 : vector<8x1xf32> to vector<8x512xf32>
    %288 = arith.mulf %287, %284 : vector<8x512xf32>
    %289 = arith.select %286, %284, %288 : vector<8x512xi1>, vector<8x512xf32>
    %c17_i32_114 = arith.constant 17 : i32
    %290 = tpu.dynamic_rotate %289 by %c17_i32_114 dim 1 : vector<8x512xf32>, i32 -> vector<8x512xf32>
    %c0_115 = arith.constant 0 : index
    %c0_116 = arith.constant 0 : index
    %291 = vector.load %arg2[%c0_115, %c0_116] : memref<9x512xf32, #tpu.memory_space<vmem>>, vector<1x512xf32>
    %292 = vector.broadcast %291 : vector<1x512xf32> to vector<8x512xf32>
    %293 = arith.mulf %290, %292 : vector<8x512xf32>
    %c16_i32_117 = arith.constant 16 : i32
    %294 = tpu.dynamic_rotate %289 by %c16_i32_117 dim 1 : vector<8x512xf32>, i32 -> vector<8x512xf32>
    %c1_118 = arith.constant 1 : index
    %c0_119 = arith.constant 0 : index
    %295 = vector.load %arg2[%c1_118, %c0_119] : memref<9x512xf32, #tpu.memory_space<vmem>>, vector<1x512xf32>
    %296 = vector.broadcast %295 : vector<1x512xf32> to vector<8x512xf32>
    %297 = arith.mulf %294, %296 : vector<8x512xf32>
    %298 = tpu.concatenate %293, %297 in 0 : vector<8x512xf32>, vector<8x512xf32> -> vector<16x512xf32>
    %299 = arith.truncf %298 : vector<16x512xf32> to vector<16x512xbf16>
    %c0_120 = arith.constant 0 : index
    %c0_121 = arith.constant 0 : index
    %300 = vector.load %arg6[%c0_120, %c0_121] : memref<80x512xbf16, #tpu.memory_space<vmem>>, vector<16x512xbf16>
    tpu.vector_store %arg6[%c0_120, %c0_121], %299 {strides = array<i32>} : memref<80x512xbf16, #tpu.memory_space<vmem>>, vector<16x512xbf16>,
    %c15_i32_122 = arith.constant 15 : i32
    %301 = tpu.dynamic_rotate %289 by %c15_i32_122 dim 1 : vector<8x512xf32>, i32 -> vector<8x512xf32>
    %c2_123 = arith.constant 2 : index
    %c0_124 = arith.constant 0 : index
    %302 = vector.load %arg2[%c2_123, %c0_124] : memref<9x512xf32, #tpu.memory_space<vmem>>, vector<1x512xf32>
    %303 = vector.broadcast %302 : vector<1x512xf32> to vector<8x512xf32>
    %304 = arith.mulf %301, %303 : vector<8x512xf32>
    %c1_i32_125 = arith.constant 1 : i32
    %305 = tpu.dynamic_rotate %289 by %c1_i32_125 dim 1 : vector<8x512xf32>, i32 -> vector<8x512xf32>
    %c3_126 = arith.constant 3 : index
    %c0_127 = arith.constant 0 : index
    %306 = vector.load %arg2[%c3_126, %c0_127] : memref<9x512xf32, #tpu.memory_space<vmem>>, vector<1x512xf32>
    %307 = vector.broadcast %306 : vector<1x512xf32> to vector<8x512xf32>
    %308 = arith.mulf %305, %307 : vector<8x512xf32>
    %309 = tpu.concatenate %304, %308 in 0 : vector<8x512xf32>, vector<8x512xf32> -> vector<16x512xf32>
    %310 = arith.truncf %309 : vector<16x512xf32> to vector<16x512xbf16>
    %c16_128 = arith.constant 16 : index
    %c0_129 = arith.constant 0 : index
    %311 = vector.load %arg6[%c16_128, %c0_129] : memref<80x512xbf16, #tpu.memory_space<vmem>>, vector<16x512xbf16>
    tpu.vector_store %arg6[%c16_128, %c0_129], %310 {strides = array<i32>} : memref<80x512xbf16, #tpu.memory_space<vmem>>, vector<16x512xbf16>,
    %c4_130 = arith.constant 4 : index
    %c0_131 = arith.constant 0 : index
    %312 = vector.load %arg2[%c4_130, %c0_131] : memref<9x512xf32, #tpu.memory_space<vmem>>, vector<1x512xf32>
    %313 = vector.broadcast %312 : vector<1x512xf32> to vector<8x512xf32>
    %314 = arith.mulf %289, %313 : vector<8x512xf32>
    %c511_i32_132 = arith.constant 511 : i32
    %315 = tpu.dynamic_rotate %289 by %c511_i32_132 dim 1 : vector<8x512xf32>, i32 -> vector<8x512xf32>
    %c5_133 = arith.constant 5 : index
    %c0_134 = arith.constant 0 : index
    %316 = vector.load %arg2[%c5_133, %c0_134] : memref<9x512xf32, #tpu.memory_space<vmem>>, vector<1x512xf32>
    %317 = vector.broadcast %316 : vector<1x512xf32> to vector<8x512xf32>
    %318 = arith.mulf %315, %317 : vector<8x512xf32>
    %319 = tpu.concatenate %314, %318 in 0 : vector<8x512xf32>, vector<8x512xf32> -> vector<16x512xf32>
    %320 = arith.truncf %319 : vector<16x512xf32> to vector<16x512xbf16>
    %c32_135 = arith.constant 32 : index
    %c0_136 = arith.constant 0 : index
    %321 = vector.load %arg6[%c32_135, %c0_136] : memref<80x512xbf16, #tpu.memory_space<vmem>>, vector<16x512xbf16>
    tpu.vector_store %arg6[%c32_135, %c0_136], %320 {strides = array<i32>} : memref<80x512xbf16, #tpu.memory_space<vmem>>, vector<16x512xbf16>,
    %c497_i32_137 = arith.constant 497 : i32
    %322 = tpu.dynamic_rotate %289 by %c497_i32_137 dim 1 : vector<8x512xf32>, i32 -> vector<8x512xf32>
    %c6_138 = arith.constant 6 : index
    %c0_139 = arith.constant 0 : index
    %323 = vector.load %arg2[%c6_138, %c0_139] : memref<9x512xf32, #tpu.memory_space<vmem>>, vector<1x512xf32>
    %324 = vector.broadcast %323 : vector<1x512xf32> to vector<8x512xf32>
    %325 = arith.mulf %322, %324 : vector<8x512xf32>
    %c496_i32_140 = arith.constant 496 : i32
    %326 = tpu.dynamic_rotate %289 by %c496_i32_140 dim 1 : vector<8x512xf32>, i32 -> vector<8x512xf32>
    %c7_141 = arith.constant 7 : index
    %c0_142 = arith.constant 0 : index
    %327 = vector.load %arg2[%c7_141, %c0_142] : memref<9x512xf32, #tpu.memory_space<vmem>>, vector<1x512xf32>
    %328 = vector.broadcast %327 : vector<1x512xf32> to vector<8x512xf32>
    %329 = arith.mulf %326, %328 : vector<8x512xf32>
    %330 = tpu.concatenate %325, %329 in 0 : vector<8x512xf32>, vector<8x512xf32> -> vector<16x512xf32>
    %331 = arith.truncf %330 : vector<16x512xf32> to vector<16x512xbf16>
    %c48_143 = arith.constant 48 : index
    %c0_144 = arith.constant 0 : index
    %332 = vector.load %arg6[%c48_143, %c0_144] : memref<80x512xbf16, #tpu.memory_space<vmem>>, vector<16x512xbf16>
    tpu.vector_store %arg6[%c48_143, %c0_144], %331 {strides = array<i32>} : memref<80x512xbf16, #tpu.memory_space<vmem>>, vector<16x512xbf16>,
    %c495_i32_145 = arith.constant 495 : i32
    %333 = tpu.dynamic_rotate %289 by %c495_i32_145 dim 1 : vector<8x512xf32>, i32 -> vector<8x512xf32>
    %c8_146 = arith.constant 8 : index
    %c0_147 = arith.constant 0 : index
    %334 = vector.load %arg2[%c8_146, %c0_147] : memref<9x512xf32, #tpu.memory_space<vmem>>, vector<1x512xf32>
    %335 = vector.broadcast %334 : vector<1x512xf32> to vector<8x512xf32>
    %336 = arith.mulf %333, %335 : vector<8x512xf32>
    %cst_148 = arith.constant 0.000000e+00 : f32
    %337 = vector.broadcast %cst_148 : f32 to vector<8x512xf32>
    %338 = tpu.concatenate %336, %337 in 0 : vector<8x512xf32>, vector<8x512xf32> -> vector<16x512xf32>
    %339 = arith.truncf %338 : vector<16x512xf32> to vector<16x512xbf16>
    %c64_149 = arith.constant 64 : index
    %c0_150 = arith.constant 0 : index
    %340 = vector.load %arg6[%c64_149, %c0_150] : memref<80x512xbf16, #tpu.memory_space<vmem>>, vector<16x512xbf16>
    tpu.vector_store %arg6[%c64_149, %c0_150], %339 {strides = array<i32>} : memref<80x512xbf16, #tpu.memory_space<vmem>>, vector<16x512xbf16>,
    %c1_151 = arith.constant 1 : index
    %c0_152 = arith.constant 0 : index
    %c0_153 = arith.constant 0 : index
    %341 = vector.load %arg3[%c1_151, %c0_152, %c0_153] : memref<9x8x80xbf16, #tpu.memory_space<vmem>>, vector<1x8x80xbf16>
    %342 = vector.shape_cast %341 : vector<1x8x80xbf16> to vector<8x80xbf16>
    %c0_154 = arith.constant 0 : index
    %c0_155 = arith.constant 0 : index
    %343 = vector.load %arg6[%c0_154, %c0_155] : memref<80x512xbf16, #tpu.memory_space<vmem>>, vector<80x512xbf16>
    %cst_156 = arith.constant dense<0.000000e+00> : vector<8x512xf32>
    %344 = tpu.matmul %342, %343, %cst_156 {dimension_numbers = #tpu.dot_dimension_numbers<[1], [0], [0], [1], [0, 0, 1, 1], [], []>} : vector<8x80xbf16>, vector<80x512xbf16>, vector<8x512xf32> -> vector<8x512xf32>
    %cst_157 = arith.constant dense<0.000000e+00> : vector<8xf32>
    %345 = vector.multi_reduction <add>, %344, %cst_157 [1] : vector<8x512xf32> to vector<8xf32>
    %346 = vector.shape_cast %345 : vector<8xf32> to vector<8x1xf32>
    %cst_158 = arith.constant 5.120000e+02 : f32
    %347 = vector.broadcast %cst_158 : f32 to vector<8x1xf32>
    %348 = arith.divf %346, %347 : vector<8x1xf32>
    %349 = arith.mulf %344, %344 : vector<8x512xf32>
    %cst_159 = arith.constant dense<0.000000e+00> : vector<8xf32>
    %350 = vector.multi_reduction <add>, %349, %cst_159 [1] : vector<8x512xf32> to vector<8xf32>
    %351 = vector.shape_cast %350 : vector<8xf32> to vector<8x1xf32>
    %cst_160 = arith.constant 5.120000e+02 : f32
    %352 = vector.broadcast %cst_160 : f32 to vector<8x1xf32>
    %353 = arith.divf %351, %352 : vector<8x1xf32>
    %354 = arith.mulf %348, %348 : vector<8x1xf32>
    %355 = arith.subf %353, %354 : vector<8x1xf32>
    %cst_161 = arith.constant 9.99999974E-6 : f32
    %356 = vector.broadcast %cst_161 : f32 to vector<8x1xf32>
    %357 = arith.addf %355, %356 : vector<8x1xf32>
    %358 = math.rsqrt %357 : vector<8x1xf32>
    %359 = vector.broadcast %348 : vector<8x1xf32> to vector<8x512xf32>
    %360 = arith.subf %344, %359 : vector<8x512xf32>
    %361 = arith.mulf %358, %207 : vector<8x1xf32>
    %362 = vector.broadcast %361 : vector<8x1xf32> to vector<8x512xf32>
    %363 = arith.mulf %360, %362 : vector<8x512xf32>
    %364 = vector.broadcast %208 : vector<8x1xf32> to vector<8x512xf32>
    %365 = arith.addf %363, %364 : vector<8x512xf32>
    %366 = arith.addf %203, %365 : vector<8x512xf32>
    %c0_162 = arith.constant 0 : index
    %c6_163 = arith.constant 6 : index
    %367 = vector.load %arg4[%c0_162, %c6_163] : memref<8x47xf32, #tpu.memory_space<vmem>>, vector<8x1xf32>
    %c0_164 = arith.constant 0 : index
    %c7_165 = arith.constant 7 : index
    %368 = vector.load %arg4[%c0_164, %c7_165] : memref<8x47xf32, #tpu.memory_space<vmem>>, vector<8x1xf32>
    %c0_166 = arith.constant 0 : index
    %c8_167 = arith.constant 8 : index
    %369 = vector.load %arg4[%c0_166, %c8_167] : memref<8x47xf32, #tpu.memory_space<vmem>>, vector<8x1xf32>
    %c0_168 = arith.constant 0 : index
    %c9_169 = arith.constant 9 : index
    %370 = vector.load %arg4[%c0_168, %c9_169] : memref<8x47xf32, #tpu.memory_space<vmem>>, vector<8x1xf32>
    %c0_170 = arith.constant 0 : index
    %c10_171 = arith.constant 10 : index
    %371 = vector.load %arg4[%c0_170, %c10_171] : memref<8x47xf32, #tpu.memory_space<vmem>>, vector<8x1xf32>
    %c17_i32_172 = arith.constant 17 : i32
    %372 = tpu.dynamic_rotate %366 by %c17_i32_172 dim 1 : vector<8x512xf32>, i32 -> vector<8x512xf32>
    %c0_173 = arith.constant 0 : index
    %c0_174 = arith.constant 0 : index
    %373 = vector.load %arg2[%c0_173, %c0_174] : memref<9x512xf32, #tpu.memory_space<vmem>>, vector<1x512xf32>
    %374 = vector.broadcast %373 : vector<1x512xf32> to vector<8x512xf32>
    %375 = arith.mulf %372, %374 : vector<8x512xf32>
    %c16_i32_175 = arith.constant 16 : i32
    %376 = tpu.dynamic_rotate %366 by %c16_i32_175 dim 1 : vector<8x512xf32>, i32 -> vector<8x512xf32>
    %c1_176 = arith.constant 1 : index
    %c0_177 = arith.constant 0 : index
    %377 = vector.load %arg2[%c1_176, %c0_177] : memref<9x512xf32, #tpu.memory_space<vmem>>, vector<1x512xf32>
    %378 = vector.broadcast %377 : vector<1x512xf32> to vector<8x512xf32>
    %379 = arith.mulf %376, %378 : vector<8x512xf32>
    %380 = tpu.concatenate %375, %379 in 0 : vector<8x512xf32>, vector<8x512xf32> -> vector<16x512xf32>
    %381 = arith.truncf %380 : vector<16x512xf32> to vector<16x512xbf16>
    %c0_178 = arith.constant 0 : index
    %c0_179 = arith.constant 0 : index
    %382 = vector.load %arg6[%c0_178, %c0_179] : memref<80x512xbf16, #tpu.memory_space<vmem>>, vector<16x512xbf16>
    tpu.vector_store %arg6[%c0_178, %c0_179], %381 {strides = array<i32>} : memref<80x512xbf16, #tpu.memory_space<vmem>>, vector<16x512xbf16>,
    %c15_i32_180 = arith.constant 15 : i32
    %383 = tpu.dynamic_rotate %366 by %c15_i32_180 dim 1 : vector<8x512xf32>, i32 -> vector<8x512xf32>
    %c2_181 = arith.constant 2 : index
    %c0_182 = arith.constant 0 : index
    %384 = vector.load %arg2[%c2_181, %c0_182] : memref<9x512xf32, #tpu.memory_space<vmem>>, vector<1x512xf32>
    %385 = vector.broadcast %384 : vector<1x512xf32> to vector<8x512xf32>
    %386 = arith.mulf %383, %385 : vector<8x512xf32>
    %c1_i32_183 = arith.constant 1 : i32
    %387 = tpu.dynamic_rotate %366 by %c1_i32_183 dim 1 : vector<8x512xf32>, i32 -> vector<8x512xf32>
    %c3_184 = arith.constant 3 : index
    %c0_185 = arith.constant 0 : index
    %388 = vector.load %arg2[%c3_184, %c0_185] : memref<9x512xf32, #tpu.memory_space<vmem>>, vector<1x512xf32>
    %389 = vector.broadcast %388 : vector<1x512xf32> to vector<8x512xf32>
    %390 = arith.mulf %387, %389 : vector<8x512xf32>
    %391 = tpu.concatenate %386, %390 in 0 : vector<8x512xf32>, vector<8x512xf32> -> vector<16x512xf32>
    %392 = arith.truncf %391 : vector<16x512xf32> to vector<16x512xbf16>
    %c16_186 = arith.constant 16 : index
    %c0_187 = arith.constant 0 : index
    %393 = vector.load %arg6[%c16_186, %c0_187] : memref<80x512xbf16, #tpu.memory_space<vmem>>, vector<16x512xbf16>
    tpu.vector_store %arg6[%c16_186, %c0_187], %392 {strides = array<i32>} : memref<80x512xbf16, #tpu.memory_space<vmem>>, vector<16x512xbf16>,
    %c4_188 = arith.constant 4 : index
    %c0_189 = arith.constant 0 : index
    %394 = vector.load %arg2[%c4_188, %c0_189] : memref<9x512xf32, #tpu.memory_space<vmem>>, vector<1x512xf32>
    %395 = vector.broadcast %394 : vector<1x512xf32> to vector<8x512xf32>
    %396 = arith.mulf %366, %395 : vector<8x512xf32>
    %c511_i32_190 = arith.constant 511 : i32
    %397 = tpu.dynamic_rotate %366 by %c511_i32_190 dim 1 : vector<8x512xf32>, i32 -> vector<8x512xf32>
    %c5_191 = arith.constant 5 : index
    %c0_192 = arith.constant 0 : index
    %398 = vector.load %arg2[%c5_191, %c0_192] : memref<9x512xf32, #tpu.memory_space<vmem>>, vector<1x512xf32>
    %399 = vector.broadcast %398 : vector<1x512xf32> to vector<8x512xf32>
    %400 = arith.mulf %397, %399 : vector<8x512xf32>
    %401 = tpu.concatenate %396, %400 in 0 : vector<8x512xf32>, vector<8x512xf32> -> vector<16x512xf32>
    %402 = arith.truncf %401 : vector<16x512xf32> to vector<16x512xbf16>
    %c32_193 = arith.constant 32 : index
    %c0_194 = arith.constant 0 : index
    %403 = vector.load %arg6[%c32_193, %c0_194] : memref<80x512xbf16, #tpu.memory_space<vmem>>, vector<16x512xbf16>
    tpu.vector_store %arg6[%c32_193, %c0_194], %402 {strides = array<i32>} : memref<80x512xbf16, #tpu.memory_space<vmem>>, vector<16x512xbf16>,
    %c497_i32_195 = arith.constant 497 : i32
    %404 = tpu.dynamic_rotate %366 by %c497_i32_195 dim 1 : vector<8x512xf32>, i32 -> vector<8x512xf32>
    %c6_196 = arith.constant 6 : index
    %c0_197 = arith.constant 0 : index
    %405 = vector.load %arg2[%c6_196, %c0_197] : memref<9x512xf32, #tpu.memory_space<vmem>>, vector<1x512xf32>
    %406 = vector.broadcast %405 : vector<1x512xf32> to vector<8x512xf32>
    %407 = arith.mulf %404, %406 : vector<8x512xf32>
    %c496_i32_198 = arith.constant 496 : i32
    %408 = tpu.dynamic_rotate %366 by %c496_i32_198 dim 1 : vector<8x512xf32>, i32 -> vector<8x512xf32>
    %c7_199 = arith.constant 7 : index
    %c0_200 = arith.constant 0 : index
    %409 = vector.load %arg2[%c7_199, %c0_200] : memref<9x512xf32, #tpu.memory_space<vmem>>, vector<1x512xf32>
    %410 = vector.broadcast %409 : vector<1x512xf32> to vector<8x512xf32>
    %411 = arith.mulf %408, %410 : vector<8x512xf32>
    %412 = tpu.concatenate %407, %411 in 0 : vector<8x512xf32>, vector<8x512xf32> -> vector<16x512xf32>
    %413 = arith.truncf %412 : vector<16x512xf32> to vector<16x512xbf16>
    %c48_201 = arith.constant 48 : index
    %c0_202 = arith.constant 0 : index
    %414 = vector.load %arg6[%c48_201, %c0_202] : memref<80x512xbf16, #tpu.memory_space<vmem>>, vector<16x512xbf16>
    tpu.vector_store %arg6[%c48_201, %c0_202], %413 {strides = array<i32>} : memref<80x512xbf16, #tpu.memory_space<vmem>>, vector<16x512xbf16>,
    %c495_i32_203 = arith.constant 495 : i32
    %415 = tpu.dynamic_rotate %366 by %c495_i32_203 dim 1 : vector<8x512xf32>, i32 -> vector<8x512xf32>
    %c8_204 = arith.constant 8 : index
    %c0_205 = arith.constant 0 : index
    %416 = vector.load %arg2[%c8_204, %c0_205] : memref<9x512xf32, #tpu.memory_space<vmem>>, vector<1x512xf32>
    %417 = vector.broadcast %416 : vector<1x512xf32> to vector<8x512xf32>
    %418 = arith.mulf %415, %417 : vector<8x512xf32>
    %cst_206 = arith.constant 0.000000e+00 : f32
    %419 = vector.broadcast %cst_206 : f32 to vector<8x512xf32>
    %420 = tpu.concatenate %418, %419 in 0 : vector<8x512xf32>, vector<8x512xf32> -> vector<16x512xf32>
    %421 = arith.truncf %420 : vector<16x512xf32> to vector<16x512xbf16>
    %c64_207 = arith.constant 64 : index
    %c0_208 = arith.constant 0 : index
    %422 = vector.load %arg6[%c64_207, %c0_208] : memref<80x512xbf16, #tpu.memory_space<vmem>>, vector<16x512xbf16>
    tpu.vector_store %arg6[%c64_207, %c0_208], %421 {strides = array<i32>} : memref<80x512xbf16, #tpu.memory_space<vmem>>, vector<16x512xbf16>,
    %c2_209 = arith.constant 2 : index
    %c0_210 = arith.constant 0 : index
    %c0_211 = arith.constant 0 : index
    %423 = vector.load %arg3[%c2_209, %c0_210, %c0_211] : memref<9x8x80xbf16, #tpu.memory_space<vmem>>, vector<1x8x80xbf16>
    %424 = vector.shape_cast %423 : vector<1x8x80xbf16> to vector<8x80xbf16>
    %c0_212 = arith.constant 0 : index
    %c0_213 = arith.constant 0 : index
    %425 = vector.load %arg6[%c0_212, %c0_213] : memref<80x512xbf16, #tpu.memory_space<vmem>>, vector<80x512xbf16>
    %cst_214 = arith.constant dense<0.000000e+00> : vector<8x512xf32>
    %426 = tpu.matmul %424, %425, %cst_214 {dimension_numbers = #tpu.dot_dimension_numbers<[1], [0], [0], [1], [0, 0, 1, 1], [], []>} : vector<8x80xbf16>, vector<80x512xbf16>, vector<8x512xf32> -> vector<8x512xf32>
    %cst_215 = arith.constant dense<0.000000e+00> : vector<8xf32>
    %427 = vector.multi_reduction <add>, %426, %cst_215 [1] : vector<8x512xf32> to vector<8xf32>
    %428 = vector.shape_cast %427 : vector<8xf32> to vector<8x1xf32>
    %cst_216 = arith.constant 5.120000e+02 : f32
    %429 = vector.broadcast %cst_216 : f32 to vector<8x1xf32>
    %430 = arith.divf %428, %429 : vector<8x1xf32>
    %431 = arith.mulf %426, %426 : vector<8x512xf32>
    %cst_217 = arith.constant dense<0.000000e+00> : vector<8xf32>
    %432 = vector.multi_reduction <add>, %431, %cst_217 [1] : vector<8x512xf32> to vector<8xf32>
    %433 = vector.shape_cast %432 : vector<8xf32> to vector<8x1xf32>
    %cst_218 = arith.constant 5.120000e+02 : f32
    %434 = vector.broadcast %cst_218 : f32 to vector<8x1xf32>
    %435 = arith.divf %433, %434 : vector<8x1xf32>
    %436 = arith.mulf %430, %430 : vector<8x1xf32>
    %437 = arith.subf %435, %436 : vector<8x1xf32>
    %cst_219 = arith.constant 9.99999974E-6 : f32
    %438 = vector.broadcast %cst_219 : f32 to vector<8x1xf32>
    %439 = arith.addf %437, %438 : vector<8x1xf32>
    %440 = math.rsqrt %439 : vector<8x1xf32>
    %441 = vector.broadcast %430 : vector<8x1xf32> to vector<8x512xf32>
    %442 = arith.subf %426, %441 : vector<8x512xf32>
    %443 = arith.mulf %440, %367 : vector<8x1xf32>
    %444 = vector.broadcast %443 : vector<8x1xf32> to vector<8x512xf32>
    %445 = arith.mulf %442, %444 : vector<8x512xf32>
    %446 = vector.broadcast %368 : vector<8x1xf32> to vector<8x512xf32>
    %447 = arith.addf %445, %446 : vector<8x512xf32>
    %cst_220 = arith.constant 0.000000e+00 : f32
    %448 = vector.broadcast %cst_220 : f32 to vector<8x512xf32>
    %449 = arith.cmpf ogt, %447, %448 : vector<8x512xf32>
    %450 = vector.broadcast %369 : vector<8x1xf32> to vector<8x512xf32>
    %451 = arith.mulf %450, %447 : vector<8x512xf32>
    %452 = arith.select %449, %447, %451 : vector<8x512xi1>, vector<8x512xf32>
    %c17_i32_221 = arith.constant 17 : i32
    %453 = tpu.dynamic_rotate %452 by %c17_i32_221 dim 1 : vector<8x512xf32>, i32 -> vector<8x512xf32>
    %c0_222 = arith.constant 0 : index
    %c0_223 = arith.constant 0 : index
    %454 = vector.load %arg2[%c0_222, %c0_223] : memref<9x512xf32, #tpu.memory_space<vmem>>, vector<1x512xf32>
    %455 = vector.broadcast %454 : vector<1x512xf32> to vector<8x512xf32>
    %456 = arith.mulf %453, %455 : vector<8x512xf32>
    %c16_i32_224 = arith.constant 16 : i32
    %457 = tpu.dynamic_rotate %452 by %c16_i32_224 dim 1 : vector<8x512xf32>, i32 -> vector<8x512xf32>
    %c1_225 = arith.constant 1 : index
    %c0_226 = arith.constant 0 : index
    %458 = vector.load %arg2[%c1_225, %c0_226] : memref<9x512xf32, #tpu.memory_space<vmem>>, vector<1x512xf32>
    %459 = vector.broadcast %458 : vector<1x512xf32> to vector<8x512xf32>
    %460 = arith.mulf %457, %459 : vector<8x512xf32>
    %461 = tpu.concatenate %456, %460 in 0 : vector<8x512xf32>, vector<8x512xf32> -> vector<16x512xf32>
    %462 = arith.truncf %461 : vector<16x512xf32> to vector<16x512xbf16>
    %c0_227 = arith.constant 0 : index
    %c0_228 = arith.constant 0 : index
    %463 = vector.load %arg6[%c0_227, %c0_228] : memref<80x512xbf16, #tpu.memory_space<vmem>>, vector<16x512xbf16>
    tpu.vector_store %arg6[%c0_227, %c0_228], %462 {strides = array<i32>} : memref<80x512xbf16, #tpu.memory_space<vmem>>, vector<16x512xbf16>,
    %c15_i32_229 = arith.constant 15 : i32
    %464 = tpu.dynamic_rotate %452 by %c15_i32_229 dim 1 : vector<8x512xf32>, i32 -> vector<8x512xf32>
    %c2_230 = arith.constant 2 : index
    %c0_231 = arith.constant 0 : index
    %465 = vector.load %arg2[%c2_230, %c0_231] : memref<9x512xf32, #tpu.memory_space<vmem>>, vector<1x512xf32>
    %466 = vector.broadcast %465 : vector<1x512xf32> to vector<8x512xf32>
    %467 = arith.mulf %464, %466 : vector<8x512xf32>
    %c1_i32_232 = arith.constant 1 : i32
    %468 = tpu.dynamic_rotate %452 by %c1_i32_232 dim 1 : vector<8x512xf32>, i32 -> vector<8x512xf32>
    %c3_233 = arith.constant 3 : index
    %c0_234 = arith.constant 0 : index
    %469 = vector.load %arg2[%c3_233, %c0_234] : memref<9x512xf32, #tpu.memory_space<vmem>>, vector<1x512xf32>
    %470 = vector.broadcast %469 : vector<1x512xf32> to vector<8x512xf32>
    %471 = arith.mulf %468, %470 : vector<8x512xf32>
    %472 = tpu.concatenate %467, %471 in 0 : vector<8x512xf32>, vector<8x512xf32> -> vector<16x512xf32>
    %473 = arith.truncf %472 : vector<16x512xf32> to vector<16x512xbf16>
    %c16_235 = arith.constant 16 : index
    %c0_236 = arith.constant 0 : index
    %474 = vector.load %arg6[%c16_235, %c0_236] : memref<80x512xbf16, #tpu.memory_space<vmem>>, vector<16x512xbf16>
    tpu.vector_store %arg6[%c16_235, %c0_236], %473 {strides = array<i32>} : memref<80x512xbf16, #tpu.memory_space<vmem>>, vector<16x512xbf16>,
    %c4_237 = arith.constant 4 : index
    %c0_238 = arith.constant 0 : index
    %475 = vector.load %arg2[%c4_237, %c0_238] : memref<9x512xf32, #tpu.memory_space<vmem>>, vector<1x512xf32>
    %476 = vector.broadcast %475 : vector<1x512xf32> to vector<8x512xf32>
    %477 = arith.mulf %452, %476 : vector<8x512xf32>
    %c511_i32_239 = arith.constant 511 : i32
    %478 = tpu.dynamic_rotate %452 by %c511_i32_239 dim 1 : vector<8x512xf32>, i32 -> vector<8x512xf32>
    %c5_240 = arith.constant 5 : index
    %c0_241 = arith.constant 0 : index
    %479 = vector.load %arg2[%c5_240, %c0_241] : memref<9x512xf32, #tpu.memory_space<vmem>>, vector<1x512xf32>
    %480 = vector.broadcast %479 : vector<1x512xf32> to vector<8x512xf32>
    %481 = arith.mulf %478, %480 : vector<8x512xf32>
    %482 = tpu.concatenate %477, %481 in 0 : vector<8x512xf32>, vector<8x512xf32> -> vector<16x512xf32>
    %483 = arith.truncf %482 : vector<16x512xf32> to vector<16x512xbf16>
    %c32_242 = arith.constant 32 : index
    %c0_243 = arith.constant 0 : index
    %484 = vector.load %arg6[%c32_242, %c0_243] : memref<80x512xbf16, #tpu.memory_space<vmem>>, vector<16x512xbf16>
    tpu.vector_store %arg6[%c32_242, %c0_243], %483 {strides = array<i32>} : memref<80x512xbf16, #tpu.memory_space<vmem>>, vector<16x512xbf16>,
    %c497_i32_244 = arith.constant 497 : i32
    %485 = tpu.dynamic_rotate %452 by %c497_i32_244 dim 1 : vector<8x512xf32>, i32 -> vector<8x512xf32>
    %c6_245 = arith.constant 6 : index
    %c0_246 = arith.constant 0 : index
    %486 = vector.load %arg2[%c6_245, %c0_246] : memref<9x512xf32, #tpu.memory_space<vmem>>, vector<1x512xf32>
    %487 = vector.broadcast %486 : vector<1x512xf32> to vector<8x512xf32>
    %488 = arith.mulf %485, %487 : vector<8x512xf32>
    %c496_i32_247 = arith.constant 496 : i32
    %489 = tpu.dynamic_rotate %452 by %c496_i32_247 dim 1 : vector<8x512xf32>, i32 -> vector<8x512xf32>
    %c7_248 = arith.constant 7 : index
    %c0_249 = arith.constant 0 : index
    %490 = vector.load %arg2[%c7_248, %c0_249] : memref<9x512xf32, #tpu.memory_space<vmem>>, vector<1x512xf32>
    %491 = vector.broadcast %490 : vector<1x512xf32> to vector<8x512xf32>
    %492 = arith.mulf %489, %491 : vector<8x512xf32>
    %493 = tpu.concatenate %488, %492 in 0 : vector<8x512xf32>, vector<8x512xf32> -> vector<16x512xf32>
    %494 = arith.truncf %493 : vector<16x512xf32> to vector<16x512xbf16>
    %c48_250 = arith.constant 48 : index
    %c0_251 = arith.constant 0 : index
    %495 = vector.load %arg6[%c48_250, %c0_251] : memref<80x512xbf16, #tpu.memory_space<vmem>>, vector<16x512xbf16>
    tpu.vector_store %arg6[%c48_250, %c0_251], %494 {strides = array<i32>} : memref<80x512xbf16, #tpu.memory_space<vmem>>, vector<16x512xbf16>,
    %c495_i32_252 = arith.constant 495 : i32
    %496 = tpu.dynamic_rotate %452 by %c495_i32_252 dim 1 : vector<8x512xf32>, i32 -> vector<8x512xf32>
    %c8_253 = arith.constant 8 : index
    %c0_254 = arith.constant 0 : index
    %497 = vector.load %arg2[%c8_253, %c0_254] : memref<9x512xf32, #tpu.memory_space<vmem>>, vector<1x512xf32>
    %498 = vector.broadcast %497 : vector<1x512xf32> to vector<8x512xf32>
    %499 = arith.mulf %496, %498 : vector<8x512xf32>
    %cst_255 = arith.constant 0.000000e+00 : f32
    %500 = vector.broadcast %cst_255 : f32 to vector<8x512xf32>
    %501 = tpu.concatenate %499, %500 in 0 : vector<8x512xf32>, vector<8x512xf32> -> vector<16x512xf32>
    %502 = arith.truncf %501 : vector<16x512xf32> to vector<16x512xbf16>
    %c64_256 = arith.constant 64 : index
    %c0_257 = arith.constant 0 : index
    %503 = vector.load %arg6[%c64_256, %c0_257] : memref<80x512xbf16, #tpu.memory_space<vmem>>, vector<16x512xbf16>
    tpu.vector_store %arg6[%c64_256, %c0_257], %502 {strides = array<i32>} : memref<80x512xbf16, #tpu.memory_space<vmem>>, vector<16x512xbf16>,
    %c3_258 = arith.constant 3 : index
    %c0_259 = arith.constant 0 : index
    %c0_260 = arith.constant 0 : index
    %504 = vector.load %arg3[%c3_258, %c0_259, %c0_260] : memref<9x8x80xbf16, #tpu.memory_space<vmem>>, vector<1x8x80xbf16>
    %505 = vector.shape_cast %504 : vector<1x8x80xbf16> to vector<8x80xbf16>
    %c0_261 = arith.constant 0 : index
    %c0_262 = arith.constant 0 : index
    %506 = vector.load %arg6[%c0_261, %c0_262] : memref<80x512xbf16, #tpu.memory_space<vmem>>, vector<80x512xbf16>
    %cst_263 = arith.constant dense<0.000000e+00> : vector<8x512xf32>
    %507 = tpu.matmul %505, %506, %cst_263 {dimension_numbers = #tpu.dot_dimension_numbers<[1], [0], [0], [1], [0, 0, 1, 1], [], []>} : vector<8x80xbf16>, vector<80x512xbf16>, vector<8x512xf32> -> vector<8x512xf32>
    %cst_264 = arith.constant dense<0.000000e+00> : vector<8xf32>
    %508 = vector.multi_reduction <add>, %507, %cst_264 [1] : vector<8x512xf32> to vector<8xf32>
    %509 = vector.shape_cast %508 : vector<8xf32> to vector<8x1xf32>
    %cst_265 = arith.constant 5.120000e+02 : f32
    %510 = vector.broadcast %cst_265 : f32 to vector<8x1xf32>
    %511 = arith.divf %509, %510 : vector<8x1xf32>
    %512 = arith.mulf %507, %507 : vector<8x512xf32>
    %cst_266 = arith.constant dense<0.000000e+00> : vector<8xf32>
    %513 = vector.multi_reduction <add>, %512, %cst_266 [1] : vector<8x512xf32> to vector<8xf32>
    %514 = vector.shape_cast %513 : vector<8xf32> to vector<8x1xf32>
    %cst_267 = arith.constant 5.120000e+02 : f32
    %515 = vector.broadcast %cst_267 : f32 to vector<8x1xf32>
    %516 = arith.divf %514, %515 : vector<8x1xf32>
    %517 = arith.mulf %511, %511 : vector<8x1xf32>
    %518 = arith.subf %516, %517 : vector<8x1xf32>
    %cst_268 = arith.constant 9.99999974E-6 : f32
    %519 = vector.broadcast %cst_268 : f32 to vector<8x1xf32>
    %520 = arith.addf %518, %519 : vector<8x1xf32>
    %521 = math.rsqrt %520 : vector<8x1xf32>
    %522 = vector.broadcast %511 : vector<8x1xf32> to vector<8x512xf32>
    %523 = arith.subf %507, %522 : vector<8x512xf32>
    %524 = arith.mulf %521, %370 : vector<8x1xf32>
    %525 = vector.broadcast %524 : vector<8x1xf32> to vector<8x512xf32>
    %526 = arith.mulf %523, %525 : vector<8x512xf32>
    %527 = vector.broadcast %371 : vector<8x1xf32> to vector<8x512xf32>
    %528 = arith.addf %526, %527 : vector<8x512xf32>
    %529 = arith.addf %366, %528 : vector<8x512xf32>
    %c0_269 = arith.constant 0 : index
    %c11_270 = arith.constant 11 : index
    %530 = vector.load %arg4[%c0_269, %c11_270] : memref<8x47xf32, #tpu.memory_space<vmem>>, vector<8x1xf32>
    %c0_271 = arith.constant 0 : index
    %c12_272 = arith.constant 12 : index
    %531 = vector.load %arg4[%c0_271, %c12_272] : memref<8x47xf32, #tpu.memory_space<vmem>>, vector<8x1xf32>
    %c0_273 = arith.constant 0 : index
    %c13_274 = arith.constant 13 : index
    %532 = vector.load %arg4[%c0_273, %c13_274] : memref<8x47xf32, #tpu.memory_space<vmem>>, vector<8x1xf32>
    %c0_275 = arith.constant 0 : index
    %c14_276 = arith.constant 14 : index
    %533 = vector.load %arg4[%c0_275, %c14_276] : memref<8x47xf32, #tpu.memory_space<vmem>>, vector<8x1xf32>
    %c0_277 = arith.constant 0 : index
    %c15_278 = arith.constant 15 : index
    %534 = vector.load %arg4[%c0_277, %c15_278] : memref<8x47xf32, #tpu.memory_space<vmem>>, vector<8x1xf32>
    %c17_i32_279 = arith.constant 17 : i32
    %535 = tpu.dynamic_rotate %529 by %c17_i32_279 dim 1 : vector<8x512xf32>, i32 -> vector<8x512xf32>
    %c0_280 = arith.constant 0 : index
    %c0_281 = arith.constant 0 : index
    %536 = vector.load %arg2[%c0_280, %c0_281] : memref<9x512xf32, #tpu.memory_space<vmem>>, vector<1x512xf32>
    %537 = vector.broadcast %536 : vector<1x512xf32> to vector<8x512xf32>
    %538 = arith.mulf %535, %537 : vector<8x512xf32>
    %c16_i32_282 = arith.constant 16 : i32
    %539 = tpu.dynamic_rotate %529 by %c16_i32_282 dim 1 : vector<8x512xf32>, i32 -> vector<8x512xf32>
    %c1_283 = arith.constant 1 : index
    %c0_284 = arith.constant 0 : index
    %540 = vector.load %arg2[%c1_283, %c0_284] : memref<9x512xf32, #tpu.memory_space<vmem>>, vector<1x512xf32>
    %541 = vector.broadcast %540 : vector<1x512xf32> to vector<8x512xf32>
    %542 = arith.mulf %539, %541 : vector<8x512xf32>
    %543 = tpu.concatenate %538, %542 in 0 : vector<8x512xf32>, vector<8x512xf32> -> vector<16x512xf32>
    %544 = arith.truncf %543 : vector<16x512xf32> to vector<16x512xbf16>
    %c0_285 = arith.constant 0 : index
    %c0_286 = arith.constant 0 : index
    %545 = vector.load %arg6[%c0_285, %c0_286] : memref<80x512xbf16, #tpu.memory_space<vmem>>, vector<16x512xbf16>
    tpu.vector_store %arg6[%c0_285, %c0_286], %544 {strides = array<i32>} : memref<80x512xbf16, #tpu.memory_space<vmem>>, vector<16x512xbf16>,
    %c15_i32_287 = arith.constant 15 : i32
    %546 = tpu.dynamic_rotate %529 by %c15_i32_287 dim 1 : vector<8x512xf32>, i32 -> vector<8x512xf32>
    %c2_288 = arith.constant 2 : index
    %c0_289 = arith.constant 0 : index
    %547 = vector.load %arg2[%c2_288, %c0_289] : memref<9x512xf32, #tpu.memory_space<vmem>>, vector<1x512xf32>
    %548 = vector.broadcast %547 : vector<1x512xf32> to vector<8x512xf32>
    %549 = arith.mulf %546, %548 : vector<8x512xf32>
    %c1_i32_290 = arith.constant 1 : i32
    %550 = tpu.dynamic_rotate %529 by %c1_i32_290 dim 1 : vector<8x512xf32>, i32 -> vector<8x512xf32>
    %c3_291 = arith.constant 3 : index
    %c0_292 = arith.constant 0 : index
    %551 = vector.load %arg2[%c3_291, %c0_292] : memref<9x512xf32, #tpu.memory_space<vmem>>, vector<1x512xf32>
    %552 = vector.broadcast %551 : vector<1x512xf32> to vector<8x512xf32>
    %553 = arith.mulf %550, %552 : vector<8x512xf32>
    %554 = tpu.concatenate %549, %553 in 0 : vector<8x512xf32>, vector<8x512xf32> -> vector<16x512xf32>
    %555 = arith.truncf %554 : vector<16x512xf32> to vector<16x512xbf16>
    %c16_293 = arith.constant 16 : index
    %c0_294 = arith.constant 0 : index
    %556 = vector.load %arg6[%c16_293, %c0_294] : memref<80x512xbf16, #tpu.memory_space<vmem>>, vector<16x512xbf16>
    tpu.vector_store %arg6[%c16_293, %c0_294], %555 {strides = array<i32>} : memref<80x512xbf16, #tpu.memory_space<vmem>>, vector<16x512xbf16>,
    %c4_295 = arith.constant 4 : index
    %c0_296 = arith.constant 0 : index
    %557 = vector.load %arg2[%c4_295, %c0_296] : memref<9x512xf32, #tpu.memory_space<vmem>>, vector<1x512xf32>
    %558 = vector.broadcast %557 : vector<1x512xf32> to vector<8x512xf32>
    %559 = arith.mulf %529, %558 : vector<8x512xf32>
    %c511_i32_297 = arith.constant 511 : i32
    %560 = tpu.dynamic_rotate %529 by %c511_i32_297 dim 1 : vector<8x512xf32>, i32 -> vector<8x512xf32>
    %c5_298 = arith.constant 5 : index
    %c0_299 = arith.constant 0 : index
    %561 = vector.load %arg2[%c5_298, %c0_299] : memref<9x512xf32, #tpu.memory_space<vmem>>, vector<1x512xf32>
    %562 = vector.broadcast %561 : vector<1x512xf32> to vector<8x512xf32>
    %563 = arith.mulf %560, %562 : vector<8x512xf32>
    %564 = tpu.concatenate %559, %563 in 0 : vector<8x512xf32>, vector<8x512xf32> -> vector<16x512xf32>
    %565 = arith.truncf %564 : vector<16x512xf32> to vector<16x512xbf16>
    %c32_300 = arith.constant 32 : index
    %c0_301 = arith.constant 0 : index
    %566 = vector.load %arg6[%c32_300, %c0_301] : memref<80x512xbf16, #tpu.memory_space<vmem>>, vector<16x512xbf16>
    tpu.vector_store %arg6[%c32_300, %c0_301], %565 {strides = array<i32>} : memref<80x512xbf16, #tpu.memory_space<vmem>>, vector<16x512xbf16>,
    %c497_i32_302 = arith.constant 497 : i32
    %567 = tpu.dynamic_rotate %529 by %c497_i32_302 dim 1 : vector<8x512xf32>, i32 -> vector<8x512xf32>
    %c6_303 = arith.constant 6 : index
    %c0_304 = arith.constant 0 : index
    %568 = vector.load %arg2[%c6_303, %c0_304] : memref<9x512xf32, #tpu.memory_space<vmem>>, vector<1x512xf32>
    %569 = vector.broadcast %568 : vector<1x512xf32> to vector<8x512xf32>
    %570 = arith.mulf %567, %569 : vector<8x512xf32>
    %c496_i32_305 = arith.constant 496 : i32
    %571 = tpu.dynamic_rotate %529 by %c496_i32_305 dim 1 : vector<8x512xf32>, i32 -> vector<8x512xf32>
    %c7_306 = arith.constant 7 : index
    %c0_307 = arith.constant 0 : index
    %572 = vector.load %arg2[%c7_306, %c0_307] : memref<9x512xf32, #tpu.memory_space<vmem>>, vector<1x512xf32>
    %573 = vector.broadcast %572 : vector<1x512xf32> to vector<8x512xf32>
    %574 = arith.mulf %571, %573 : vector<8x512xf32>
    %575 = tpu.concatenate %570, %574 in 0 : vector<8x512xf32>, vector<8x512xf32> -> vector<16x512xf32>
    %576 = arith.truncf %575 : vector<16x512xf32> to vector<16x512xbf16>
    %c48_308 = arith.constant 48 : index
    %c0_309 = arith.constant 0 : index
    %577 = vector.load %arg6[%c48_308, %c0_309] : memref<80x512xbf16, #tpu.memory_space<vmem>>, vector<16x512xbf16>
    tpu.vector_store %arg6[%c48_308, %c0_309], %576 {strides = array<i32>} : memref<80x512xbf16, #tpu.memory_space<vmem>>, vector<16x512xbf16>,
    %c495_i32_310 = arith.constant 495 : i32
    %578 = tpu.dynamic_rotate %529 by %c495_i32_310 dim 1 : vector<8x512xf32>, i32 -> vector<8x512xf32>
    %c8_311 = arith.constant 8 : index
    %c0_312 = arith.constant 0 : index
    %579 = vector.load %arg2[%c8_311, %c0_312] : memref<9x512xf32, #tpu.memory_space<vmem>>, vector<1x512xf32>
    %580 = vector.broadcast %579 : vector<1x512xf32> to vector<8x512xf32>
    %581 = arith.mulf %578, %580 : vector<8x512xf32>
    %cst_313 = arith.constant 0.000000e+00 : f32
    %582 = vector.broadcast %cst_313 : f32 to vector<8x512xf32>
    %583 = tpu.concatenate %581, %582 in 0 : vector<8x512xf32>, vector<8x512xf32> -> vector<16x512xf32>
    %584 = arith.truncf %583 : vector<16x512xf32> to vector<16x512xbf16>
    %c64_314 = arith.constant 64 : index
    %c0_315 = arith.constant 0 : index
    %585 = vector.load %arg6[%c64_314, %c0_315] : memref<80x512xbf16, #tpu.memory_space<vmem>>, vector<16x512xbf16>
    tpu.vector_store %arg6[%c64_314, %c0_315], %584 {strides = array<i32>} : memref<80x512xbf16, #tpu.memory_space<vmem>>, vector<16x512xbf16>,
    %c4_316 = arith.constant 4 : index
    %c0_317 = arith.constant 0 : index
    %c0_318 = arith.constant 0 : index
    %586 = vector.load %arg3[%c4_316, %c0_317, %c0_318] : memref<9x8x80xbf16, #tpu.memory_space<vmem>>, vector<1x8x80xbf16>
    %587 = vector.shape_cast %586 : vector<1x8x80xbf16> to vector<8x80xbf16>
    %c0_319 = arith.constant 0 : index
    %c0_320 = arith.constant 0 : index
    %588 = vector.load %arg6[%c0_319, %c0_320] : memref<80x512xbf16, #tpu.memory_space<vmem>>, vector<80x512xbf16>
    %cst_321 = arith.constant dense<0.000000e+00> : vector<8x512xf32>
    %589 = tpu.matmul %587, %588, %cst_321 {dimension_numbers = #tpu.dot_dimension_numbers<[1], [0], [0], [1], [0, 0, 1, 1], [], []>} : vector<8x80xbf16>, vector<80x512xbf16>, vector<8x512xf32> -> vector<8x512xf32>
    %cst_322 = arith.constant dense<0.000000e+00> : vector<8xf32>
    %590 = vector.multi_reduction <add>, %589, %cst_322 [1] : vector<8x512xf32> to vector<8xf32>
    %591 = vector.shape_cast %590 : vector<8xf32> to vector<8x1xf32>
    %cst_323 = arith.constant 5.120000e+02 : f32
    %592 = vector.broadcast %cst_323 : f32 to vector<8x1xf32>
    %593 = arith.divf %591, %592 : vector<8x1xf32>
    %594 = arith.mulf %589, %589 : vector<8x512xf32>
    %cst_324 = arith.constant dense<0.000000e+00> : vector<8xf32>
    %595 = vector.multi_reduction <add>, %594, %cst_324 [1] : vector<8x512xf32> to vector<8xf32>
    %596 = vector.shape_cast %595 : vector<8xf32> to vector<8x1xf32>
    %cst_325 = arith.constant 5.120000e+02 : f32
    %597 = vector.broadcast %cst_325 : f32 to vector<8x1xf32>
    %598 = arith.divf %596, %597 : vector<8x1xf32>
    %599 = arith.mulf %593, %593 : vector<8x1xf32>
    %600 = arith.subf %598, %599 : vector<8x1xf32>
    %cst_326 = arith.constant 9.99999974E-6 : f32
    %601 = vector.broadcast %cst_326 : f32 to vector<8x1xf32>
    %602 = arith.addf %600, %601 : vector<8x1xf32>
    %603 = math.rsqrt %602 : vector<8x1xf32>
    %604 = vector.broadcast %593 : vector<8x1xf32> to vector<8x512xf32>
    %605 = arith.subf %589, %604 : vector<8x512xf32>
    %606 = arith.mulf %603, %530 : vector<8x1xf32>
    %607 = vector.broadcast %606 : vector<8x1xf32> to vector<8x512xf32>
    %608 = arith.mulf %605, %607 : vector<8x512xf32>
    %609 = vector.broadcast %531 : vector<8x1xf32> to vector<8x512xf32>
    %610 = arith.addf %608, %609 : vector<8x512xf32>
    %cst_327 = arith.constant 0.000000e+00 : f32
    %611 = vector.broadcast %cst_327 : f32 to vector<8x512xf32>
    %612 = arith.cmpf ogt, %610, %611 : vector<8x512xf32>
    %613 = vector.broadcast %532 : vector<8x1xf32> to vector<8x512xf32>
    %614 = arith.mulf %613, %610 : vector<8x512xf32>
    %615 = arith.select %612, %610, %614 : vector<8x512xi1>, vector<8x512xf32>
    %c17_i32_328 = arith.constant 17 : i32
    %616 = tpu.dynamic_rotate %615 by %c17_i32_328 dim 1 : vector<8x512xf32>, i32 -> vector<8x512xf32>
    %c0_329 = arith.constant 0 : index
    %c0_330 = arith.constant 0 : index
    %617 = vector.load %arg2[%c0_329, %c0_330] : memref<9x512xf32, #tpu.memory_space<vmem>>, vector<1x512xf32>
    %618 = vector.broadcast %617 : vector<1x512xf32> to vector<8x512xf32>
    %619 = arith.mulf %616, %618 : vector<8x512xf32>
    %c16_i32_331 = arith.constant 16 : i32
    %620 = tpu.dynamic_rotate %615 by %c16_i32_331 dim 1 : vector<8x512xf32>, i32 -> vector<8x512xf32>
    %c1_332 = arith.constant 1 : index
    %c0_333 = arith.constant 0 : index
    %621 = vector.load %arg2[%c1_332, %c0_333] : memref<9x512xf32, #tpu.memory_space<vmem>>, vector<1x512xf32>
    %622 = vector.broadcast %621 : vector<1x512xf32> to vector<8x512xf32>
    %623 = arith.mulf %620, %622 : vector<8x512xf32>
    %624 = tpu.concatenate %619, %623 in 0 : vector<8x512xf32>, vector<8x512xf32> -> vector<16x512xf32>
    %625 = arith.truncf %624 : vector<16x512xf32> to vector<16x512xbf16>
    %c0_334 = arith.constant 0 : index
    %c0_335 = arith.constant 0 : index
    %626 = vector.load %arg6[%c0_334, %c0_335] : memref<80x512xbf16, #tpu.memory_space<vmem>>, vector<16x512xbf16>
    tpu.vector_store %arg6[%c0_334, %c0_335], %625 {strides = array<i32>} : memref<80x512xbf16, #tpu.memory_space<vmem>>, vector<16x512xbf16>,
    %c15_i32_336 = arith.constant 15 : i32
    %627 = tpu.dynamic_rotate %615 by %c15_i32_336 dim 1 : vector<8x512xf32>, i32 -> vector<8x512xf32>
    %c2_337 = arith.constant 2 : index
    %c0_338 = arith.constant 0 : index
    %628 = vector.load %arg2[%c2_337, %c0_338] : memref<9x512xf32, #tpu.memory_space<vmem>>, vector<1x512xf32>
    %629 = vector.broadcast %628 : vector<1x512xf32> to vector<8x512xf32>
    %630 = arith.mulf %627, %629 : vector<8x512xf32>
    %c1_i32_339 = arith.constant 1 : i32
    %631 = tpu.dynamic_rotate %615 by %c1_i32_339 dim 1 : vector<8x512xf32>, i32 -> vector<8x512xf32>
    %c3_340 = arith.constant 3 : index
    %c0_341 = arith.constant 0 : index
    %632 = vector.load %arg2[%c3_340, %c0_341] : memref<9x512xf32, #tpu.memory_space<vmem>>, vector<1x512xf32>
    %633 = vector.broadcast %632 : vector<1x512xf32> to vector<8x512xf32>
    %634 = arith.mulf %631, %633 : vector<8x512xf32>
    %635 = tpu.concatenate %630, %634 in 0 : vector<8x512xf32>, vector<8x512xf32> -> vector<16x512xf32>
    %636 = arith.truncf %635 : vector<16x512xf32> to vector<16x512xbf16>
    %c16_342 = arith.constant 16 : index
    %c0_343 = arith.constant 0 : index
    %637 = vector.load %arg6[%c16_342, %c0_343] : memref<80x512xbf16, #tpu.memory_space<vmem>>, vector<16x512xbf16>
    tpu.vector_store %arg6[%c16_342, %c0_343], %636 {strides = array<i32>} : memref<80x512xbf16, #tpu.memory_space<vmem>>, vector<16x512xbf16>,
    %c4_344 = arith.constant 4 : index
    %c0_345 = arith.constant 0 : index
    %638 = vector.load %arg2[%c4_344, %c0_345] : memref<9x512xf32, #tpu.memory_space<vmem>>, vector<1x512xf32>
    %639 = vector.broadcast %638 : vector<1x512xf32> to vector<8x512xf32>
    %640 = arith.mulf %615, %639 : vector<8x512xf32>
    %c511_i32_346 = arith.constant 511 : i32
    %641 = tpu.dynamic_rotate %615 by %c511_i32_346 dim 1 : vector<8x512xf32>, i32 -> vector<8x512xf32>
    %c5_347 = arith.constant 5 : index
    %c0_348 = arith.constant 0 : index
    %642 = vector.load %arg2[%c5_347, %c0_348] : memref<9x512xf32, #tpu.memory_space<vmem>>, vector<1x512xf32>
    %643 = vector.broadcast %642 : vector<1x512xf32> to vector<8x512xf32>
    %644 = arith.mulf %641, %643 : vector<8x512xf32>
    %645 = tpu.concatenate %640, %644 in 0 : vector<8x512xf32>, vector<8x512xf32> -> vector<16x512xf32>
    %646 = arith.truncf %645 : vector<16x512xf32> to vector<16x512xbf16>
    %c32_349 = arith.constant 32 : index
    %c0_350 = arith.constant 0 : index
    %647 = vector.load %arg6[%c32_349, %c0_350] : memref<80x512xbf16, #tpu.memory_space<vmem>>, vector<16x512xbf16>
    tpu.vector_store %arg6[%c32_349, %c0_350], %646 {strides = array<i32>} : memref<80x512xbf16, #tpu.memory_space<vmem>>, vector<16x512xbf16>,
    %c497_i32_351 = arith.constant 497 : i32
    %648 = tpu.dynamic_rotate %615 by %c497_i32_351 dim 1 : vector<8x512xf32>, i32 -> vector<8x512xf32>
    %c6_352 = arith.constant 6 : index
    %c0_353 = arith.constant 0 : index
    %649 = vector.load %arg2[%c6_352, %c0_353] : memref<9x512xf32, #tpu.memory_space<vmem>>, vector<1x512xf32>
    %650 = vector.broadcast %649 : vector<1x512xf32> to vector<8x512xf32>
    %651 = arith.mulf %648, %650 : vector<8x512xf32>
    %c496_i32_354 = arith.constant 496 : i32
    %652 = tpu.dynamic_rotate %615 by %c496_i32_354 dim 1 : vector<8x512xf32>, i32 -> vector<8x512xf32>
    %c7_355 = arith.constant 7 : index
    %c0_356 = arith.constant 0 : index
    %653 = vector.load %arg2[%c7_355, %c0_356] : memref<9x512xf32, #tpu.memory_space<vmem>>, vector<1x512xf32>
    %654 = vector.broadcast %653 : vector<1x512xf32> to vector<8x512xf32>
    %655 = arith.mulf %652, %654 : vector<8x512xf32>
    %656 = tpu.concatenate %651, %655 in 0 : vector<8x512xf32>, vector<8x512xf32> -> vector<16x512xf32>
    %657 = arith.truncf %656 : vector<16x512xf32> to vector<16x512xbf16>
    %c48_357 = arith.constant 48 : index
    %c0_358 = arith.constant 0 : index
    %658 = vector.load %arg6[%c48_357, %c0_358] : memref<80x512xbf16, #tpu.memory_space<vmem>>, vector<16x512xbf16>
    tpu.vector_store %arg6[%c48_357, %c0_358], %657 {strides = array<i32>} : memref<80x512xbf16, #tpu.memory_space<vmem>>, vector<16x512xbf16>,
    %c495_i32_359 = arith.constant 495 : i32
    %659 = tpu.dynamic_rotate %615 by %c495_i32_359 dim 1 : vector<8x512xf32>, i32 -> vector<8x512xf32>
    %c8_360 = arith.constant 8 : index
    %c0_361 = arith.constant 0 : index
    %660 = vector.load %arg2[%c8_360, %c0_361] : memref<9x512xf32, #tpu.memory_space<vmem>>, vector<1x512xf32>
    %661 = vector.broadcast %660 : vector<1x512xf32> to vector<8x512xf32>
    %662 = arith.mulf %659, %661 : vector<8x512xf32>
    %cst_362 = arith.constant 0.000000e+00 : f32
    %663 = vector.broadcast %cst_362 : f32 to vector<8x512xf32>
    %664 = tpu.concatenate %662, %663 in 0 : vector<8x512xf32>, vector<8x512xf32> -> vector<16x512xf32>
    %665 = arith.truncf %664 : vector<16x512xf32> to vector<16x512xbf16>
    %c64_363 = arith.constant 64 : index
    %c0_364 = arith.constant 0 : index
    %666 = vector.load %arg6[%c64_363, %c0_364] : memref<80x512xbf16, #tpu.memory_space<vmem>>, vector<16x512xbf16>
    tpu.vector_store %arg6[%c64_363, %c0_364], %665 {strides = array<i32>} : memref<80x512xbf16, #tpu.memory_space<vmem>>, vector<16x512xbf16>,
    %c5_365 = arith.constant 5 : index
    %c0_366 = arith.constant 0 : index
    %c0_367 = arith.constant 0 : index
    %667 = vector.load %arg3[%c5_365, %c0_366, %c0_367] : memref<9x8x80xbf16, #tpu.memory_space<vmem>>, vector<1x8x80xbf16>
    %668 = vector.shape_cast %667 : vector<1x8x80xbf16> to vector<8x80xbf16>
    %c0_368 = arith.constant 0 : index
    %c0_369 = arith.constant 0 : index
    %669 = vector.load %arg6[%c0_368, %c0_369] : memref<80x512xbf16, #tpu.memory_space<vmem>>, vector<80x512xbf16>
    %cst_370 = arith.constant dense<0.000000e+00> : vector<8x512xf32>
    %670 = tpu.matmul %668, %669, %cst_370 {dimension_numbers = #tpu.dot_dimension_numbers<[1], [0], [0], [1], [0, 0, 1, 1], [], []>} : vector<8x80xbf16>, vector<80x512xbf16>, vector<8x512xf32> -> vector<8x512xf32>
    %cst_371 = arith.constant dense<0.000000e+00> : vector<8xf32>
    %671 = vector.multi_reduction <add>, %670, %cst_371 [1] : vector<8x512xf32> to vector<8xf32>
    %672 = vector.shape_cast %671 : vector<8xf32> to vector<8x1xf32>
    %cst_372 = arith.constant 5.120000e+02 : f32
    %673 = vector.broadcast %cst_372 : f32 to vector<8x1xf32>
    %674 = arith.divf %672, %673 : vector<8x1xf32>
    %675 = arith.mulf %670, %670 : vector<8x512xf32>
    %cst_373 = arith.constant dense<0.000000e+00> : vector<8xf32>
    %676 = vector.multi_reduction <add>, %675, %cst_373 [1] : vector<8x512xf32> to vector<8xf32>
    %677 = vector.shape_cast %676 : vector<8xf32> to vector<8x1xf32>
    %cst_374 = arith.constant 5.120000e+02 : f32
    %678 = vector.broadcast %cst_374 : f32 to vector<8x1xf32>
    %679 = arith.divf %677, %678 : vector<8x1xf32>
    %680 = arith.mulf %674, %674 : vector<8x1xf32>
    %681 = arith.subf %679, %680 : vector<8x1xf32>
    %cst_375 = arith.constant 9.99999974E-6 : f32
    %682 = vector.broadcast %cst_375 : f32 to vector<8x1xf32>
    %683 = arith.addf %681, %682 : vector<8x1xf32>
    %684 = math.rsqrt %683 : vector<8x1xf32>
    %685 = vector.broadcast %674 : vector<8x1xf32> to vector<8x512xf32>
    %686 = arith.subf %670, %685 : vector<8x512xf32>
    %687 = arith.mulf %684, %533 : vector<8x1xf32>
    %688 = vector.broadcast %687 : vector<8x1xf32> to vector<8x512xf32>
    %689 = arith.mulf %686, %688 : vector<8x512xf32>
    %690 = vector.broadcast %534 : vector<8x1xf32> to vector<8x512xf32>
    %691 = arith.addf %689, %690 : vector<8x512xf32>
    %692 = arith.addf %529, %691 : vector<8x512xf32>
    %c0_376 = arith.constant 0 : index
    %c16_377 = arith.constant 16 : index
    %693 = vector.load %arg4[%c0_376, %c16_377] : memref<8x47xf32, #tpu.memory_space<vmem>>, vector<8x1xf32>
    %c0_378 = arith.constant 0 : index
    %c17_379 = arith.constant 17 : index
    %694 = vector.load %arg4[%c0_378, %c17_379] : memref<8x47xf32, #tpu.memory_space<vmem>>, vector<8x1xf32>
    %c0_380 = arith.constant 0 : index
    %c18_381 = arith.constant 18 : index
    %695 = vector.load %arg4[%c0_380, %c18_381] : memref<8x47xf32, #tpu.memory_space<vmem>>, vector<8x1xf32>
    %c0_382 = arith.constant 0 : index
    %c19_383 = arith.constant 19 : index
    %696 = vector.load %arg4[%c0_382, %c19_383] : memref<8x47xf32, #tpu.memory_space<vmem>>, vector<8x1xf32>
    %c0_384 = arith.constant 0 : index
    %c20_385 = arith.constant 20 : index
    %697 = vector.load %arg4[%c0_384, %c20_385] : memref<8x47xf32, #tpu.memory_space<vmem>>, vector<8x1xf32>
    %c17_i32_386 = arith.constant 17 : i32
    %698 = tpu.dynamic_rotate %692 by %c17_i32_386 dim 1 : vector<8x512xf32>, i32 -> vector<8x512xf32>
    %c0_387 = arith.constant 0 : index
    %c0_388 = arith.constant 0 : index
    %699 = vector.load %arg2[%c0_387, %c0_388] : memref<9x512xf32, #tpu.memory_space<vmem>>, vector<1x512xf32>
    %700 = vector.broadcast %699 : vector<1x512xf32> to vector<8x512xf32>
    %701 = arith.mulf %698, %700 : vector<8x512xf32>
    %c16_i32_389 = arith.constant 16 : i32
    %702 = tpu.dynamic_rotate %692 by %c16_i32_389 dim 1 : vector<8x512xf32>, i32 -> vector<8x512xf32>
    %c1_390 = arith.constant 1 : index
    %c0_391 = arith.constant 0 : index
    %703 = vector.load %arg2[%c1_390, %c0_391] : memref<9x512xf32, #tpu.memory_space<vmem>>, vector<1x512xf32>
    %704 = vector.broadcast %703 : vector<1x512xf32> to vector<8x512xf32>
    %705 = arith.mulf %702, %704 : vector<8x512xf32>
    %706 = tpu.concatenate %701, %705 in 0 : vector<8x512xf32>, vector<8x512xf32> -> vector<16x512xf32>
    %707 = arith.truncf %706 : vector<16x512xf32> to vector<16x512xbf16>
    %c0_392 = arith.constant 0 : index
    %c0_393 = arith.constant 0 : index
    %708 = vector.load %arg6[%c0_392, %c0_393] : memref<80x512xbf16, #tpu.memory_space<vmem>>, vector<16x512xbf16>
    tpu.vector_store %arg6[%c0_392, %c0_393], %707 {strides = array<i32>} : memref<80x512xbf16, #tpu.memory_space<vmem>>, vector<16x512xbf16>,
    %c15_i32_394 = arith.constant 15 : i32
    %709 = tpu.dynamic_rotate %692 by %c15_i32_394 dim 1 : vector<8x512xf32>, i32 -> vector<8x512xf32>
    %c2_395 = arith.constant 2 : index
    %c0_396 = arith.constant 0 : index
    %710 = vector.load %arg2[%c2_395, %c0_396] : memref<9x512xf32, #tpu.memory_space<vmem>>, vector<1x512xf32>
    %711 = vector.broadcast %710 : vector<1x512xf32> to vector<8x512xf32>
    %712 = arith.mulf %709, %711 : vector<8x512xf32>
    %c1_i32_397 = arith.constant 1 : i32
    %713 = tpu.dynamic_rotate %692 by %c1_i32_397 dim 1 : vector<8x512xf32>, i32 -> vector<8x512xf32>
    %c3_398 = arith.constant 3 : index
    %c0_399 = arith.constant 0 : index
    %714 = vector.load %arg2[%c3_398, %c0_399] : memref<9x512xf32, #tpu.memory_space<vmem>>, vector<1x512xf32>
    %715 = vector.broadcast %714 : vector<1x512xf32> to vector<8x512xf32>
    %716 = arith.mulf %713, %715 : vector<8x512xf32>
    %717 = tpu.concatenate %712, %716 in 0 : vector<8x512xf32>, vector<8x512xf32> -> vector<16x512xf32>
    %718 = arith.truncf %717 : vector<16x512xf32> to vector<16x512xbf16>
    %c16_400 = arith.constant 16 : index
    %c0_401 = arith.constant 0 : index
    %719 = vector.load %arg6[%c16_400, %c0_401] : memref<80x512xbf16, #tpu.memory_space<vmem>>, vector<16x512xbf16>
    tpu.vector_store %arg6[%c16_400, %c0_401], %718 {strides = array<i32>} : memref<80x512xbf16, #tpu.memory_space<vmem>>, vector<16x512xbf16>,
    %c4_402 = arith.constant 4 : index
    %c0_403 = arith.constant 0 : index
    %720 = vector.load %arg2[%c4_402, %c0_403] : memref<9x512xf32, #tpu.memory_space<vmem>>, vector<1x512xf32>
    %721 = vector.broadcast %720 : vector<1x512xf32> to vector<8x512xf32>
    %722 = arith.mulf %692, %721 : vector<8x512xf32>
    %c511_i32_404 = arith.constant 511 : i32
    %723 = tpu.dynamic_rotate %692 by %c511_i32_404 dim 1 : vector<8x512xf32>, i32 -> vector<8x512xf32>
    %c5_405 = arith.constant 5 : index
    %c0_406 = arith.constant 0 : index
    %724 = vector.load %arg2[%c5_405, %c0_406] : memref<9x512xf32, #tpu.memory_space<vmem>>, vector<1x512xf32>
    %725 = vector.broadcast %724 : vector<1x512xf32> to vector<8x512xf32>
    %726 = arith.mulf %723, %725 : vector<8x512xf32>
    %727 = tpu.concatenate %722, %726 in 0 : vector<8x512xf32>, vector<8x512xf32> -> vector<16x512xf32>
    %728 = arith.truncf %727 : vector<16x512xf32> to vector<16x512xbf16>
    %c32_407 = arith.constant 32 : index
    %c0_408 = arith.constant 0 : index
    %729 = vector.load %arg6[%c32_407, %c0_408] : memref<80x512xbf16, #tpu.memory_space<vmem>>, vector<16x512xbf16>
    tpu.vector_store %arg6[%c32_407, %c0_408], %728 {strides = array<i32>} : memref<80x512xbf16, #tpu.memory_space<vmem>>, vector<16x512xbf16>,
    %c497_i32_409 = arith.constant 497 : i32
    %730 = tpu.dynamic_rotate %692 by %c497_i32_409 dim 1 : vector<8x512xf32>, i32 -> vector<8x512xf32>
    %c6_410 = arith.constant 6 : index
    %c0_411 = arith.constant 0 : index
    %731 = vector.load %arg2[%c6_410, %c0_411] : memref<9x512xf32, #tpu.memory_space<vmem>>, vector<1x512xf32>
    %732 = vector.broadcast %731 : vector<1x512xf32> to vector<8x512xf32>
    %733 = arith.mulf %730, %732 : vector<8x512xf32>
    %c496_i32_412 = arith.constant 496 : i32
    %734 = tpu.dynamic_rotate %692 by %c496_i32_412 dim 1 : vector<8x512xf32>, i32 -> vector<8x512xf32>
    %c7_413 = arith.constant 7 : index
    %c0_414 = arith.constant 0 : index
    %735 = vector.load %arg2[%c7_413, %c0_414] : memref<9x512xf32, #tpu.memory_space<vmem>>, vector<1x512xf32>
    %736 = vector.broadcast %735 : vector<1x512xf32> to vector<8x512xf32>
    %737 = arith.mulf %734, %736 : vector<8x512xf32>
    %738 = tpu.concatenate %733, %737 in 0 : vector<8x512xf32>, vector<8x512xf32> -> vector<16x512xf32>
    %739 = arith.truncf %738 : vector<16x512xf32> to vector<16x512xbf16>
    %c48_415 = arith.constant 48 : index
    %c0_416 = arith.constant 0 : index
    %740 = vector.load %arg6[%c48_415, %c0_416] : memref<80x512xbf16, #tpu.memory_space<vmem>>, vector<16x512xbf16>
    tpu.vector_store %arg6[%c48_415, %c0_416], %739 {strides = array<i32>} : memref<80x512xbf16, #tpu.memory_space<vmem>>, vector<16x512xbf16>,
    %c495_i32_417 = arith.constant 495 : i32
    %741 = tpu.dynamic_rotate %692 by %c495_i32_417 dim 1 : vector<8x512xf32>, i32 -> vector<8x512xf32>
    %c8_418 = arith.constant 8 : index
    %c0_419 = arith.constant 0 : index
    %742 = vector.load %arg2[%c8_418, %c0_419] : memref<9x512xf32, #tpu.memory_space<vmem>>, vector<1x512xf32>
    %743 = vector.broadcast %742 : vector<1x512xf32> to vector<8x512xf32>
    %744 = arith.mulf %741, %743 : vector<8x512xf32>
    %cst_420 = arith.constant 0.000000e+00 : f32
    %745 = vector.broadcast %cst_420 : f32 to vector<8x512xf32>
    %746 = tpu.concatenate %744, %745 in 0 : vector<8x512xf32>, vector<8x512xf32> -> vector<16x512xf32>
    %747 = arith.truncf %746 : vector<16x512xf32> to vector<16x512xbf16>
    %c64_421 = arith.constant 64 : index
    %c0_422 = arith.constant 0 : index
    %748 = vector.load %arg6[%c64_421, %c0_422] : memref<80x512xbf16, #tpu.memory_space<vmem>>, vector<16x512xbf16>
    tpu.vector_store %arg6[%c64_421, %c0_422], %747 {strides = array<i32>} : memref<80x512xbf16, #tpu.memory_space<vmem>>, vector<16x512xbf16>,
    %c6_423 = arith.constant 6 : index
    %c0_424 = arith.constant 0 : index
    %c0_425 = arith.constant 0 : index
    %749 = vector.load %arg3[%c6_423, %c0_424, %c0_425] : memref<9x8x80xbf16, #tpu.memory_space<vmem>>, vector<1x8x80xbf16>
    %750 = vector.shape_cast %749 : vector<1x8x80xbf16> to vector<8x80xbf16>
    %c0_426 = arith.constant 0 : index
    %c0_427 = arith.constant 0 : index
    %751 = vector.load %arg6[%c0_426, %c0_427] : memref<80x512xbf16, #tpu.memory_space<vmem>>, vector<80x512xbf16>
    %cst_428 = arith.constant dense<0.000000e+00> : vector<8x512xf32>
    %752 = tpu.matmul %750, %751, %cst_428 {dimension_numbers = #tpu.dot_dimension_numbers<[1], [0], [0], [1], [0, 0, 1, 1], [], []>} : vector<8x80xbf16>, vector<80x512xbf16>, vector<8x512xf32> -> vector<8x512xf32>
    %cst_429 = arith.constant dense<0.000000e+00> : vector<8xf32>
    %753 = vector.multi_reduction <add>, %752, %cst_429 [1] : vector<8x512xf32> to vector<8xf32>
    %754 = vector.shape_cast %753 : vector<8xf32> to vector<8x1xf32>
    %cst_430 = arith.constant 5.120000e+02 : f32
    %755 = vector.broadcast %cst_430 : f32 to vector<8x1xf32>
    %756 = arith.divf %754, %755 : vector<8x1xf32>
    %757 = arith.mulf %752, %752 : vector<8x512xf32>
    %cst_431 = arith.constant dense<0.000000e+00> : vector<8xf32>
    %758 = vector.multi_reduction <add>, %757, %cst_431 [1] : vector<8x512xf32> to vector<8xf32>
    %759 = vector.shape_cast %758 : vector<8xf32> to vector<8x1xf32>
    %cst_432 = arith.constant 5.120000e+02 : f32
    %760 = vector.broadcast %cst_432 : f32 to vector<8x1xf32>
    %761 = arith.divf %759, %760 : vector<8x1xf32>
    %762 = arith.mulf %756, %756 : vector<8x1xf32>
    %763 = arith.subf %761, %762 : vector<8x1xf32>
    %cst_433 = arith.constant 9.99999974E-6 : f32
    %764 = vector.broadcast %cst_433 : f32 to vector<8x1xf32>
    %765 = arith.addf %763, %764 : vector<8x1xf32>
    %766 = math.rsqrt %765 : vector<8x1xf32>
    %767 = vector.broadcast %756 : vector<8x1xf32> to vector<8x512xf32>
    %768 = arith.subf %752, %767 : vector<8x512xf32>
    %769 = arith.mulf %766, %693 : vector<8x1xf32>
    %770 = vector.broadcast %769 : vector<8x1xf32> to vector<8x512xf32>
    %771 = arith.mulf %768, %770 : vector<8x512xf32>
    %772 = vector.broadcast %694 : vector<8x1xf32> to vector<8x512xf32>
    %773 = arith.addf %771, %772 : vector<8x512xf32>
    %cst_434 = arith.constant 0.000000e+00 : f32
    %774 = vector.broadcast %cst_434 : f32 to vector<8x512xf32>
    %775 = arith.cmpf ogt, %773, %774 : vector<8x512xf32>
    %776 = vector.broadcast %695 : vector<8x1xf32> to vector<8x512xf32>
    %777 = arith.mulf %776, %773 : vector<8x512xf32>
    %778 = arith.select %775, %773, %777 : vector<8x512xi1>, vector<8x512xf32>
    %c17_i32_435 = arith.constant 17 : i32
    %779 = tpu.dynamic_rotate %778 by %c17_i32_435 dim 1 : vector<8x512xf32>, i32 -> vector<8x512xf32>
    %c0_436 = arith.constant 0 : index
    %c0_437 = arith.constant 0 : index
    %780 = vector.load %arg2[%c0_436, %c0_437] : memref<9x512xf32, #tpu.memory_space<vmem>>, vector<1x512xf32>
    %781 = vector.broadcast %780 : vector<1x512xf32> to vector<8x512xf32>
    %782 = arith.mulf %779, %781 : vector<8x512xf32>
    %c16_i32_438 = arith.constant 16 : i32
    %783 = tpu.dynamic_rotate %778 by %c16_i32_438 dim 1 : vector<8x512xf32>, i32 -> vector<8x512xf32>
    %c1_439 = arith.constant 1 : index
    %c0_440 = arith.constant 0 : index
    %784 = vector.load %arg2[%c1_439, %c0_440] : memref<9x512xf32, #tpu.memory_space<vmem>>, vector<1x512xf32>
    %785 = vector.broadcast %784 : vector<1x512xf32> to vector<8x512xf32>
    %786 = arith.mulf %783, %785 : vector<8x512xf32>
    %787 = tpu.concatenate %782, %786 in 0 : vector<8x512xf32>, vector<8x512xf32> -> vector<16x512xf32>
    %788 = arith.truncf %787 : vector<16x512xf32> to vector<16x512xbf16>
    %c0_441 = arith.constant 0 : index
    %c0_442 = arith.constant 0 : index
    %789 = vector.load %arg6[%c0_441, %c0_442] : memref<80x512xbf16, #tpu.memory_space<vmem>>, vector<16x512xbf16>
    tpu.vector_store %arg6[%c0_441, %c0_442], %788 {strides = array<i32>} : memref<80x512xbf16, #tpu.memory_space<vmem>>, vector<16x512xbf16>,
    %c15_i32_443 = arith.constant 15 : i32
    %790 = tpu.dynamic_rotate %778 by %c15_i32_443 dim 1 : vector<8x512xf32>, i32 -> vector<8x512xf32>
    %c2_444 = arith.constant 2 : index
    %c0_445 = arith.constant 0 : index
    %791 = vector.load %arg2[%c2_444, %c0_445] : memref<9x512xf32, #tpu.memory_space<vmem>>, vector<1x512xf32>
    %792 = vector.broadcast %791 : vector<1x512xf32> to vector<8x512xf32>
    %793 = arith.mulf %790, %792 : vector<8x512xf32>
    %c1_i32_446 = arith.constant 1 : i32
    %794 = tpu.dynamic_rotate %778 by %c1_i32_446 dim 1 : vector<8x512xf32>, i32 -> vector<8x512xf32>
    %c3_447 = arith.constant 3 : index
    %c0_448 = arith.constant 0 : index
    %795 = vector.load %arg2[%c3_447, %c0_448] : memref<9x512xf32, #tpu.memory_space<vmem>>, vector<1x512xf32>
    %796 = vector.broadcast %795 : vector<1x512xf32> to vector<8x512xf32>
    %797 = arith.mulf %794, %796 : vector<8x512xf32>
    %798 = tpu.concatenate %793, %797 in 0 : vector<8x512xf32>, vector<8x512xf32> -> vector<16x512xf32>
    %799 = arith.truncf %798 : vector<16x512xf32> to vector<16x512xbf16>
    %c16_449 = arith.constant 16 : index
    %c0_450 = arith.constant 0 : index
    %800 = vector.load %arg6[%c16_449, %c0_450] : memref<80x512xbf16, #tpu.memory_space<vmem>>, vector<16x512xbf16>
    tpu.vector_store %arg6[%c16_449, %c0_450], %799 {strides = array<i32>} : memref<80x512xbf16, #tpu.memory_space<vmem>>, vector<16x512xbf16>,
    %c4_451 = arith.constant 4 : index
    %c0_452 = arith.constant 0 : index
    %801 = vector.load %arg2[%c4_451, %c0_452] : memref<9x512xf32, #tpu.memory_space<vmem>>, vector<1x512xf32>
    %802 = vector.broadcast %801 : vector<1x512xf32> to vector<8x512xf32>
    %803 = arith.mulf %778, %802 : vector<8x512xf32>
    %c511_i32_453 = arith.constant 511 : i32
    %804 = tpu.dynamic_rotate %778 by %c511_i32_453 dim 1 : vector<8x512xf32>, i32 -> vector<8x512xf32>
    %c5_454 = arith.constant 5 : index
    %c0_455 = arith.constant 0 : index
    %805 = vector.load %arg2[%c5_454, %c0_455] : memref<9x512xf32, #tpu.memory_space<vmem>>, vector<1x512xf32>
    %806 = vector.broadcast %805 : vector<1x512xf32> to vector<8x512xf32>
    %807 = arith.mulf %804, %806 : vector<8x512xf32>
    %808 = tpu.concatenate %803, %807 in 0 : vector<8x512xf32>, vector<8x512xf32> -> vector<16x512xf32>
    %809 = arith.truncf %808 : vector<16x512xf32> to vector<16x512xbf16>
    %c32_456 = arith.constant 32 : index
    %c0_457 = arith.constant 0 : index
    %810 = vector.load %arg6[%c32_456, %c0_457] : memref<80x512xbf16, #tpu.memory_space<vmem>>, vector<16x512xbf16>
    tpu.vector_store %arg6[%c32_456, %c0_457], %809 {strides = array<i32>} : memref<80x512xbf16, #tpu.memory_space<vmem>>, vector<16x512xbf16>,
    %c497_i32_458 = arith.constant 497 : i32
    %811 = tpu.dynamic_rotate %778 by %c497_i32_458 dim 1 : vector<8x512xf32>, i32 -> vector<8x512xf32>
    %c6_459 = arith.constant 6 : index
    %c0_460 = arith.constant 0 : index
    %812 = vector.load %arg2[%c6_459, %c0_460] : memref<9x512xf32, #tpu.memory_space<vmem>>, vector<1x512xf32>
    %813 = vector.broadcast %812 : vector<1x512xf32> to vector<8x512xf32>
    %814 = arith.mulf %811, %813 : vector<8x512xf32>
    %c496_i32_461 = arith.constant 496 : i32
    %815 = tpu.dynamic_rotate %778 by %c496_i32_461 dim 1 : vector<8x512xf32>, i32 -> vector<8x512xf32>
    %c7_462 = arith.constant 7 : index
    %c0_463 = arith.constant 0 : index
    %816 = vector.load %arg2[%c7_462, %c0_463] : memref<9x512xf32, #tpu.memory_space<vmem>>, vector<1x512xf32>
    %817 = vector.broadcast %816 : vector<1x512xf32> to vector<8x512xf32>
    %818 = arith.mulf %815, %817 : vector<8x512xf32>
    %819 = tpu.concatenate %814, %818 in 0 : vector<8x512xf32>, vector<8x512xf32> -> vector<16x512xf32>
    %820 = arith.truncf %819 : vector<16x512xf32> to vector<16x512xbf16>
    %c48_464 = arith.constant 48 : index
    %c0_465 = arith.constant 0 : index
    %821 = vector.load %arg6[%c48_464, %c0_465] : memref<80x512xbf16, #tpu.memory_space<vmem>>, vector<16x512xbf16>
    tpu.vector_store %arg6[%c48_464, %c0_465], %820 {strides = array<i32>} : memref<80x512xbf16, #tpu.memory_space<vmem>>, vector<16x512xbf16>,
    %c495_i32_466 = arith.constant 495 : i32
    %822 = tpu.dynamic_rotate %778 by %c495_i32_466 dim 1 : vector<8x512xf32>, i32 -> vector<8x512xf32>
    %c8_467 = arith.constant 8 : index
    %c0_468 = arith.constant 0 : index
    %823 = vector.load %arg2[%c8_467, %c0_468] : memref<9x512xf32, #tpu.memory_space<vmem>>, vector<1x512xf32>
    %824 = vector.broadcast %823 : vector<1x512xf32> to vector<8x512xf32>
    %825 = arith.mulf %822, %824 : vector<8x512xf32>
    %cst_469 = arith.constant 0.000000e+00 : f32
    %826 = vector.broadcast %cst_469 : f32 to vector<8x512xf32>
    %827 = tpu.concatenate %825, %826 in 0 : vector<8x512xf32>, vector<8x512xf32> -> vector<16x512xf32>
    %828 = arith.truncf %827 : vector<16x512xf32> to vector<16x512xbf16>
    %c64_470 = arith.constant 64 : index
    %c0_471 = arith.constant 0 : index
    %829 = vector.load %arg6[%c64_470, %c0_471] : memref<80x512xbf16, #tpu.memory_space<vmem>>, vector<16x512xbf16>
    tpu.vector_store %arg6[%c64_470, %c0_471], %828 {strides = array<i32>} : memref<80x512xbf16, #tpu.memory_space<vmem>>, vector<16x512xbf16>,
    %c7_472 = arith.constant 7 : index
    %c0_473 = arith.constant 0 : index
    %c0_474 = arith.constant 0 : index
    %830 = vector.load %arg3[%c7_472, %c0_473, %c0_474] : memref<9x8x80xbf16, #tpu.memory_space<vmem>>, vector<1x8x80xbf16>
    %831 = vector.shape_cast %830 : vector<1x8x80xbf16> to vector<8x80xbf16>
    %c0_475 = arith.constant 0 : index
    %c0_476 = arith.constant 0 : index
    %832 = vector.load %arg6[%c0_475, %c0_476] : memref<80x512xbf16, #tpu.memory_space<vmem>>, vector<80x512xbf16>
    %cst_477 = arith.constant dense<0.000000e+00> : vector<8x512xf32>
    %833 = tpu.matmul %831, %832, %cst_477 {dimension_numbers = #tpu.dot_dimension_numbers<[1], [0], [0], [1], [0, 0, 1, 1], [], []>} : vector<8x80xbf16>, vector<80x512xbf16>, vector<8x512xf32> -> vector<8x512xf32>
    %cst_478 = arith.constant dense<0.000000e+00> : vector<8xf32>
    %834 = vector.multi_reduction <add>, %833, %cst_478 [1] : vector<8x512xf32> to vector<8xf32>
    %835 = vector.shape_cast %834 : vector<8xf32> to vector<8x1xf32>
    %cst_479 = arith.constant 5.120000e+02 : f32
    %836 = vector.broadcast %cst_479 : f32 to vector<8x1xf32>
    %837 = arith.divf %835, %836 : vector<8x1xf32>
    %838 = arith.mulf %833, %833 : vector<8x512xf32>
    %cst_480 = arith.constant dense<0.000000e+00> : vector<8xf32>
    %839 = vector.multi_reduction <add>, %838, %cst_480 [1] : vector<8x512xf32> to vector<8xf32>
    %840 = vector.shape_cast %839 : vector<8xf32> to vector<8x1xf32>
    %cst_481 = arith.constant 5.120000e+02 : f32
    %841 = vector.broadcast %cst_481 : f32 to vector<8x1xf32>
    %842 = arith.divf %840, %841 : vector<8x1xf32>
    %843 = arith.mulf %837, %837 : vector<8x1xf32>
    %844 = arith.subf %842, %843 : vector<8x1xf32>
    %cst_482 = arith.constant 9.99999974E-6 : f32
    %845 = vector.broadcast %cst_482 : f32 to vector<8x1xf32>
    %846 = arith.addf %844, %845 : vector<8x1xf32>
    %847 = math.rsqrt %846 : vector<8x1xf32>
    %848 = vector.broadcast %837 : vector<8x1xf32> to vector<8x512xf32>
    %849 = arith.subf %833, %848 : vector<8x512xf32>
    %850 = arith.mulf %847, %696 : vector<8x1xf32>
    %851 = vector.broadcast %850 : vector<8x1xf32> to vector<8x512xf32>
    %852 = arith.mulf %849, %851 : vector<8x512xf32>
    %853 = vector.broadcast %697 : vector<8x1xf32> to vector<8x512xf32>
    %854 = arith.addf %852, %853 : vector<8x512xf32>
    %855 = arith.addf %692, %854 : vector<8x512xf32>
    %c17_i32_483 = arith.constant 17 : i32
    %856 = tpu.dynamic_rotate %855 by %c17_i32_483 dim 1 : vector<8x512xf32>, i32 -> vector<8x512xf32>
    %c0_484 = arith.constant 0 : index
    %c0_485 = arith.constant 0 : index
    %857 = vector.load %arg2[%c0_484, %c0_485] : memref<9x512xf32, #tpu.memory_space<vmem>>, vector<1x512xf32>
    %858 = vector.broadcast %857 : vector<1x512xf32> to vector<8x512xf32>
    %859 = arith.mulf %856, %858 : vector<8x512xf32>
    %c16_i32_486 = arith.constant 16 : i32
    %860 = tpu.dynamic_rotate %855 by %c16_i32_486 dim 1 : vector<8x512xf32>, i32 -> vector<8x512xf32>
    %c1_487 = arith.constant 1 : index
    %c0_488 = arith.constant 0 : index
    %861 = vector.load %arg2[%c1_487, %c0_488] : memref<9x512xf32, #tpu.memory_space<vmem>>, vector<1x512xf32>
    %862 = vector.broadcast %861 : vector<1x512xf32> to vector<8x512xf32>
    %863 = arith.mulf %860, %862 : vector<8x512xf32>
    %864 = tpu.concatenate %859, %863 in 0 : vector<8x512xf32>, vector<8x512xf32> -> vector<16x512xf32>
    %865 = arith.truncf %864 : vector<16x512xf32> to vector<16x512xbf16>
    %c0_489 = arith.constant 0 : index
    %c0_490 = arith.constant 0 : index
    %866 = vector.load %arg6[%c0_489, %c0_490] : memref<80x512xbf16, #tpu.memory_space<vmem>>, vector<16x512xbf16>
    tpu.vector_store %arg6[%c0_489, %c0_490], %865 {strides = array<i32>} : memref<80x512xbf16, #tpu.memory_space<vmem>>, vector<16x512xbf16>,
    %c15_i32_491 = arith.constant 15 : i32
    %867 = tpu.dynamic_rotate %855 by %c15_i32_491 dim 1 : vector<8x512xf32>, i32 -> vector<8x512xf32>
    %c2_492 = arith.constant 2 : index
    %c0_493 = arith.constant 0 : index
    %868 = vector.load %arg2[%c2_492, %c0_493] : memref<9x512xf32, #tpu.memory_space<vmem>>, vector<1x512xf32>
    %869 = vector.broadcast %868 : vector<1x512xf32> to vector<8x512xf32>
    %870 = arith.mulf %867, %869 : vector<8x512xf32>
    %c1_i32_494 = arith.constant 1 : i32
    %871 = tpu.dynamic_rotate %855 by %c1_i32_494 dim 1 : vector<8x512xf32>, i32 -> vector<8x512xf32>
    %c3_495 = arith.constant 3 : index
    %c0_496 = arith.constant 0 : index
    %872 = vector.load %arg2[%c3_495, %c0_496] : memref<9x512xf32, #tpu.memory_space<vmem>>, vector<1x512xf32>
    %873 = vector.broadcast %872 : vector<1x512xf32> to vector<8x512xf32>
    %874 = arith.mulf %871, %873 : vector<8x512xf32>
    %875 = tpu.concatenate %870, %874 in 0 : vector<8x512xf32>, vector<8x512xf32> -> vector<16x512xf32>
    %876 = arith.truncf %875 : vector<16x512xf32> to vector<16x512xbf16>
    %c16_497 = arith.constant 16 : index
    %c0_498 = arith.constant 0 : index
    %877 = vector.load %arg6[%c16_497, %c0_498] : memref<80x512xbf16, #tpu.memory_space<vmem>>, vector<16x512xbf16>
    tpu.vector_store %arg6[%c16_497, %c0_498], %876 {strides = array<i32>} : memref<80x512xbf16, #tpu.memory_space<vmem>>, vector<16x512xbf16>,
    %c4_499 = arith.constant 4 : index
    %c0_500 = arith.constant 0 : index
    %878 = vector.load %arg2[%c4_499, %c0_500] : memref<9x512xf32, #tpu.memory_space<vmem>>, vector<1x512xf32>
    %879 = vector.broadcast %878 : vector<1x512xf32> to vector<8x512xf32>
    %880 = arith.mulf %855, %879 : vector<8x512xf32>
    %c511_i32_501 = arith.constant 511 : i32
    %881 = tpu.dynamic_rotate %855 by %c511_i32_501 dim 1 : vector<8x512xf32>, i32 -> vector<8x512xf32>
    %c5_502 = arith.constant 5 : index
    %c0_503 = arith.constant 0 : index
    %882 = vector.load %arg2[%c5_502, %c0_503] : memref<9x512xf32, #tpu.memory_space<vmem>>, vector<1x512xf32>
    %883 = vector.broadcast %882 : vector<1x512xf32> to vector<8x512xf32>
    %884 = arith.mulf %881, %883 : vector<8x512xf32>
    %885 = tpu.concatenate %880, %884 in 0 : vector<8x512xf32>, vector<8x512xf32> -> vector<16x512xf32>
    %886 = arith.truncf %885 : vector<16x512xf32> to vector<16x512xbf16>
    %c32_504 = arith.constant 32 : index
    %c0_505 = arith.constant 0 : index
    %887 = vector.load %arg6[%c32_504, %c0_505] : memref<80x512xbf16, #tpu.memory_space<vmem>>, vector<16x512xbf16>
    tpu.vector_store %arg6[%c32_504, %c0_505], %886 {strides = array<i32>} : memref<80x512xbf16, #tpu.memory_space<vmem>>, vector<16x512xbf16>,
    %c497_i32_506 = arith.constant 497 : i32
    %888 = tpu.dynamic_rotate %855 by %c497_i32_506 dim 1 : vector<8x512xf32>, i32 -> vector<8x512xf32>
    %c6_507 = arith.constant 6 : index
    %c0_508 = arith.constant 0 : index
    %889 = vector.load %arg2[%c6_507, %c0_508] : memref<9x512xf32, #tpu.memory_space<vmem>>, vector<1x512xf32>
    %890 = vector.broadcast %889 : vector<1x512xf32> to vector<8x512xf32>
    %891 = arith.mulf %888, %890 : vector<8x512xf32>
    %c496_i32_509 = arith.constant 496 : i32
    %892 = tpu.dynamic_rotate %855 by %c496_i32_509 dim 1 : vector<8x512xf32>, i32 -> vector<8x512xf32>
    %c7_510 = arith.constant 7 : index
    %c0_511 = arith.constant 0 : index
    %893 = vector.load %arg2[%c7_510, %c0_511] : memref<9x512xf32, #tpu.memory_space<vmem>>, vector<1x512xf32>
    %894 = vector.broadcast %893 : vector<1x512xf32> to vector<8x512xf32>
    %895 = arith.mulf %892, %894 : vector<8x512xf32>
    %896 = tpu.concatenate %891, %895 in 0 : vector<8x512xf32>, vector<8x512xf32> -> vector<16x512xf32>
    %897 = arith.truncf %896 : vector<16x512xf32> to vector<16x512xbf16>
    %c48_512 = arith.constant 48 : index
    %c0_513 = arith.constant 0 : index
    %898 = vector.load %arg6[%c48_512, %c0_513] : memref<80x512xbf16, #tpu.memory_space<vmem>>, vector<16x512xbf16>
    tpu.vector_store %arg6[%c48_512, %c0_513], %897 {strides = array<i32>} : memref<80x512xbf16, #tpu.memory_space<vmem>>, vector<16x512xbf16>,
    %c495_i32_514 = arith.constant 495 : i32
    %899 = tpu.dynamic_rotate %855 by %c495_i32_514 dim 1 : vector<8x512xf32>, i32 -> vector<8x512xf32>
    %c8_515 = arith.constant 8 : index
    %c0_516 = arith.constant 0 : index
    %900 = vector.load %arg2[%c8_515, %c0_516] : memref<9x512xf32, #tpu.memory_space<vmem>>, vector<1x512xf32>
    %901 = vector.broadcast %900 : vector<1x512xf32> to vector<8x512xf32>
    %902 = arith.mulf %899, %901 : vector<8x512xf32>
    %cst_517 = arith.constant 0.000000e+00 : f32
    %903 = vector.broadcast %cst_517 : f32 to vector<8x512xf32>
    %904 = tpu.concatenate %902, %903 in 0 : vector<8x512xf32>, vector<8x512xf32> -> vector<16x512xf32>
    %905 = arith.truncf %904 : vector<16x512xf32> to vector<16x512xbf16>
    %c64_518 = arith.constant 64 : index
    %c0_519 = arith.constant 0 : index
    %906 = vector.load %arg6[%c64_518, %c0_519] : memref<80x512xbf16, #tpu.memory_space<vmem>>, vector<16x512xbf16>
    tpu.vector_store %arg6[%c64_518, %c0_519], %905 {strides = array<i32>} : memref<80x512xbf16, #tpu.memory_space<vmem>>, vector<16x512xbf16>,
    %c8_520 = arith.constant 8 : index
    %c0_521 = arith.constant 0 : index
    %c0_522 = arith.constant 0 : index
    %907 = vector.load %arg3[%c8_520, %c0_521, %c0_522] : memref<9x8x80xbf16, #tpu.memory_space<vmem>>, vector<1x8x80xbf16>
    %908 = vector.shape_cast %907 : vector<1x8x80xbf16> to vector<8x80xbf16>
    %c0_523 = arith.constant 0 : index
    %c0_524 = arith.constant 0 : index
    %909 = vector.load %arg6[%c0_523, %c0_524] : memref<80x512xbf16, #tpu.memory_space<vmem>>, vector<80x512xbf16>
    %cst_525 = arith.constant dense<0.000000e+00> : vector<8x512xf32>
    %910 = tpu.matmul %908, %909, %cst_525 {dimension_numbers = #tpu.dot_dimension_numbers<[1], [0], [0], [1], [0, 0, 1, 1], [], []>} : vector<8x80xbf16>, vector<80x512xbf16>, vector<8x512xf32> -> vector<8x512xf32>
    %911 = vector.extract_strided_slice %910 {offsets = [0, 0], sizes = [1, 512], strides = [1, 1]} : vector<8x512xf32> to vector<1x512xf32>
    %c0_526 = arith.constant 0 : index
    %c21_527 = arith.constant 21 : index
    %912 = vector.load %arg4[%c0_526, %c21_527] : memref<8x47xf32, #tpu.memory_space<vmem>>, vector<1x1xf32>
    %913 = vector.broadcast %912 : vector<1x1xf32> to vector<1x512xf32>
    %914 = arith.addf %911, %913 : vector<1x512xf32>
    %c0_528 = arith.constant 0 : index
    %c0_529 = arith.constant 0 : index
    %915 = vector.load %arg5[%c0_528, %c0_529] : memref<1x512xf32, #tpu.memory_space<vmem>>, vector<1x512xf32>
    tpu.vector_store %arg5[%c0_528, %c0_529], %914 {strides = array<i32>} : memref<1x512xf32, #tpu.memory_space<vmem>>, vector<1x512xf32>,
    return
  }
}

</mosaic_0001>

<llo_original>
// kernel: detection_resnet_bn.1
$region0: #{detection_resnet_bn.1}
  #allocation0 [shape = 'u32[]', space=smem, size = 0x4, offset = 0x4, fixed_abs, tag = 'smem constant byte address 0x4 - core index']
  #allocation1 [shape = 'u32[72,128]{1,0:T(1,128)}', space=vmem, size = 0x9000, scoped, tag = 'internal scratch']
  #allocation2 [shape = 'bf16[80,512]{1,0:T(8,128)(2,1)}', space=vmem, size = 0x14000, scoped, tag = 'scratch operand']
  %s0 = inlined_call_operand.vmem [shape: f32[1,512], index: 0, kind: input, shape index: {}]
  %s1 = inlined_call_operand.vmem [shape: f32[25,512], index: 1, kind: input, shape index: {}]
  %s2 = inlined_call_operand.vmem [shape: f32[9,512], index: 2, kind: input, shape index: {}]
  %s3 = inlined_call_operand.vmem [shape: bf16[9,8,80], index: 3, kind: input, shape index: {}]
  %s4 = inlined_call_operand.vmem [shape: f32[8,47], index: 4, kind: input, shape index: {}]
  %s5 = inlined_call_operand.vmem [shape: f32[1,512], index: 5, kind: output, shape index: {}]
  %s6 = sld [smem:[#allocation0]]
  $region30: #{detection_resnet_bn.1} parent=0
    _
  %s8 = ssub.s32 1, %s6
  %s9 = scalar_select 0, %s8, %s6
  // Predicated region
  $region2: #{detection_resnet_bn.1} parent=0 // pred_check
    _
  $region3: #{detection_resnet_bn.1} parent=0 // pred_check_branch
    %11 = sbr.rel (0) target = $region5
  $region4: #{detection_resnet_bn.1} parent=0 // pred_region
    _
  $region5: #{detection_resnet_bn.1} parent=0 // pred_fallthru
    _
  // Predicated region
  $region6: #{detection_resnet_bn.1} parent=0 // pred_check
    _
  $region7: #{detection_resnet_bn.1} parent=0 // pred_check_branch
    %13 = sbr.rel (0) target = $region9
  $region8: #{detection_resnet_bn.1} parent=0 // pred_region
    _
  $region9: #{detection_resnet_bn.1} parent=0 // pred_fallthru
    _
  // Predicated region
  $region10: #{detection_resnet_bn.1} parent=0 // pred_check
    _
  $region11: #{detection_resnet_bn.1} parent=0 // pred_check_branch
    %15 = sbr.rel (0) target = $region13
  $region12: #{detection_resnet_bn.1} parent=0 // pred_region
    _
  $region13: #{detection_resnet_bn.1} parent=0 // pred_fallthru
    _
  // Predicated region
  $region14: #{detection_resnet_bn.1} parent=0 // pred_check
    _
  $region15: #{detection_resnet_bn.1} parent=0 // pred_check_branch
    %17 = sbr.rel (0) target = $region17
  $region16: #{detection_resnet_bn.1} parent=0 // pred_region
    _
  $region17: #{detection_resnet_bn.1} parent=0 // pred_fallthru
    _
  // Predicated region
  $region18: #{detection_resnet_bn.1} parent=0 // pred_check
    _
  $region19: #{detection_resnet_bn.1} parent=0 // pred_check_branch
    %19 = sbr.rel (0) target = $region21
  $region20: #{detection_resnet_bn.1} parent=0 // pred_region
    _
  $region21: #{detection_resnet_bn.1} parent=0 // pred_fallthru
    _
  %v21 = vld [vmem:[%s0] sm:$0xf]
  %v23 = vperm.slane %v21, 0
  %v24 = vperm.slane %v21, 1
  %v25 = vperm.slane %v21, 2
  %v26 = vperm.slane %v21, 3
  %31 = vrot.lane.b32.xlu0 %v23, 34
  %v32 = vpop.permute.xlu0 %31
  %33 = vrot.lane.b32.xlu0 %v24, 34
  %v34 = vpop.permute.xlu0 %33
  %35 = vrot.lane.b32.xlu0 %v25, 34
  %v36 = vpop.permute.xlu0 %35
  %37 = vrot.lane.b32.xlu0 %v26, 34
  %v38 = vpop.permute.xlu0 %37
  %v39 = vlaneseq
  %v40 = vand.u32 %v39, 127
  %vm41 = vcmp.lt.s32.totalorder %v40, 34
  %v42 = vsel %vm41, %v36, %v38
  %v43 = vsel %vm41, %v34, %v36
  %v44 = vsel %vm41, %v32, %v34
  %v45 = vsel %vm41, %v38, %v32
  %v46 = vld [vmem:[%s1] ss:$8 sm:$0xf]
  %v48 = vperm.slane %v46, 0
  %v49 = vperm.slane %v46, 1
  %v50 = vperm.slane %v46, 2
  %v51 = vperm.slane %v46, 3
  %v56 = vmul.f32 %v45, %v48
  %v57 = vmul.f32 %v44, %v49
  %v58 = vmul.f32 %v43, %v50
  %v59 = vmul.f32 %v42, %v51
  %v60 = vld [vmem:[%s4] sm:$0xff]
  %62 = vset.pattern.permute.xlu0 22
  %63 = vperm.xlu0 %62, %v60
  %v64 = vpop.permute.xlu0 %63
  %v66 = vperm.slane %v56, 0
  %v67 = vperm.slane %v57, 0
  %v68 = vperm.slane %v58, 0
  %v69 = vperm.slane %v59, 0
  %v70 = vmul.f32 %v64, %v66
  %v71 = vmul.f32 %v64, %v67
  %v72 = vmul.f32 %v64, %v68
  %v73 = vmul.f32 %v64, %v69
  %v74 = vadd.f32 %v70, 0.0
  %v75 = vadd.f32 %v71, 0.0
  %v76 = vadd.f32 %v72, 0.0
  %v77 = vadd.f32 %v73, 0.0
  %78 = vrot.lane.b32.xlu0 %v23, 33
  %v79 = vpop.permute.xlu0 %78
  %80 = vrot.lane.b32.xlu0 %v24, 33
  %v81 = vpop.permute.xlu0 %80
  %82 = vrot.lane.b32.xlu0 %v25, 33
  %v83 = vpop.permute.xlu0 %82
  %84 = vrot.lane.b32.xlu0 %v26, 33
  %v85 = vpop.permute.xlu0 %84
  %vm86 = vcmp.lt.s32.totalorder %v40, 33
  %v87 = vsel %vm86, %v83, %v85
  %v88 = vsel %vm86, %v81, %v83
  %v89 = vsel %vm86, %v79, %v81
  %v90 = vsel %vm86, %v85, %v79
  %s91 = scalar_lea.vmem %s1, 1
  %v92 = vld [vmem:[%s91] ss:$8 sm:$0xf]
  %v94 = vperm.slane %v92, 0
  %v95 = vperm.slane %v92, 1
  %v96 = vperm.slane %v92, 2
  %v97 = vperm.slane %v92, 3
  %v102 = vmul.f32 %v90, %v94
  %v103 = vmul.f32 %v89, %v95
  %v104 = vmul.f32 %v88, %v96
  %v105 = vmul.f32 %v87, %v97
  %106 = vset.pattern.permute.xlu0 23
  %107 = vperm.xlu0 %106, %v60
  %v108 = vpop.permute.xlu0 %107
  %v110 = vperm.slane %v102, 0
  %v111 = vperm.slane %v103, 0
  %v112 = vperm.slane %v104, 0
  %v113 = vperm.slane %v105, 0
  %v114 = vmul.f32 %v108, %v110
  %v115 = vmul.f32 %v108, %v111
  %v116 = vmul.f32 %v108, %v112
  %v117 = vmul.f32 %v108, %v113
  %v118 = vadd.f32 %v74, %v114
  %v119 = vadd.f32 %v75, %v115
  %v120 = vadd.f32 %v76, %v116
  %v121 = vadd.f32 %v77, %v117
  %122 = vrot.lane.b32.xlu0 %v23, 32
  %v123 = vpop.permute.xlu0 %122
  %124 = vrot.lane.b32.xlu0 %v24, 32
  %v125 = vpop.permute.xlu0 %124
  %126 = vrot.lane.b32.xlu0 %v25, 32
  %v127 = vpop.permute.xlu0 %126
  %128 = vrot.lane.b32.xlu0 %v26, 32
  %v129 = vpop.permute.xlu0 %128
  %vm130 = vcmp.lt.s32.totalorder %v40, 32
  %v131 = vsel %vm130, %v127, %v129
  %v132 = vsel %vm130, %v125, %v127
  %v133 = vsel %vm130, %v123, %v125
  %v134 = vsel %vm130, %v129, %v123
  %s135 = scalar_lea.vmem %s1, 2
  %v136 = vld [vmem:[%s135] ss:$8 sm:$0xf]
  %v138 = vperm.slane %v136, 0
  %v139 = vperm.slane %v136, 1
  %v140 = vperm.slane %v136, 2
  %v141 = vperm.slane %v136, 3
  %v146 = vmul.f32 %v134, %v138
  %v147 = vmul.f32 %v133, %v139
  %v148 = vmul.f32 %v132, %v140
  %v149 = vmul.f32 %v131, %v141
  %150 = vset.pattern.permute.xlu0 24
  %151 = vperm.xlu0 %150, %v60
  %v152 = vpop.permute.xlu0 %151
  %v154 = vperm.slane %v146, 0
  %v155 = vperm.slane %v147, 0
  %v156 = vperm.slane %v148, 0
  %v157 = vperm.slane %v149, 0
  %v158 = vmul.f32 %v152, %v154
  %v159 = vmul.f32 %v152, %v155
  %v160 = vmul.f32 %v152, %v156
  %v161 = vmul.f32 %v152, %v157
  %v162 = vadd.f32 %v118, %v158
  %v163 = vadd.f32 %v119, %v159
  %v164 = vadd.f32 %v120, %v160
  %v165 = vadd.f32 %v121, %v161
  %166 = vrot.lane.b32.xlu0 %v23, 31
  %v167 = vpop.permute.xlu0 %166
  %168 = vrot.lane.b32.xlu0 %v24, 31
  %v169 = vpop.permute.xlu0 %168
  %170 = vrot.lane.b32.xlu0 %v25, 31
  %v171 = vpop.permute.xlu0 %170
  %172 = vrot.lane.b32.xlu0 %v26, 31
  %v173 = vpop.permute.xlu0 %172
  %vm174 = vcmp.lt.s32.totalorder %v40, 31
  %v175 = vsel %vm174, %v171, %v173
  %v176 = vsel %vm174, %v169, %v171
  %v177 = vsel %vm174, %v167, %v169
  %v178 = vsel %vm174, %v173, %v167
  %s179 = scalar_lea.vmem %s1, 3
  %v180 = vld [vmem:[%s179] ss:$8 sm:$0xf]
  %v182 = vperm.slane %v180, 0
  %v183 = vperm.slane %v180, 1
  %v184 = vperm.slane %v180, 2
  %v185 = vperm.slane %v180, 3
  %v190 = vmul.f32 %v178, %v182
  %v191 = vmul.f32 %v177, %v183
  %v192 = vmul.f32 %v176, %v184
  %v193 = vmul.f32 %v175, %v185
  %194 = vset.pattern.permute.xlu0 25
  %195 = vperm.xlu0 %194, %v60
  %v196 = vpop.permute.xlu0 %195
  %v198 = vperm.slane %v190, 0
  %v199 = vperm.slane %v191, 0
  %v200 = vperm.slane %v192, 0
  %v201 = vperm.slane %v193, 0
  %v202 = vmul.f32 %v196, %v198
  %v203 = vmul.f32 %v196, %v199
  %v204 = vmul.f32 %v196, %v200
  %v205 = vmul.f32 %v196, %v201
  %v206 = vadd.f32 %v162, %v202
  %v207 = vadd.f32 %v163, %v203
  %v208 = vadd.f32 %v164, %v204
  %v209 = vadd.f32 %v165, %v205
  %210 = vrot.lane.b32.xlu0 %v23, 30
  %v211 = vpop.permute.xlu0 %210
  %212 = vrot.lane.b32.xlu0 %v24, 30
  %v213 = vpop.permute.xlu0 %212
  %214 = vrot.lane.b32.xlu0 %v25, 30
  %v215 = vpop.permute.xlu0 %214
  %216 = vrot.lane.b32.xlu0 %v26, 30
  %v217 = vpop.permute.xlu0 %216
  %vm218 = vcmp.lt.s32.totalorder %v40, 30
  %v219 = vsel %vm218, %v215, %v217
  %v220 = vsel %vm218, %v213, %v215
  %v221 = vsel %vm218, %v211, %v213
  %v222 = vsel %vm218, %v217, %v211
  %s223 = scalar_lea.vmem %s1, 4
  %v224 = vld [vmem:[%s223] ss:$8 sm:$0xf]
  %v226 = vperm.slane %v224, 0
  %v227 = vperm.slane %v224, 1
  %v228 = vperm.slane %v224, 2
  %v229 = vperm.slane %v224, 3
  %v234 = vmul.f32 %v222, %v226
  %v235 = vmul.f32 %v221, %v227
  %v236 = vmul.f32 %v220, %v228
  %v237 = vmul.f32 %v219, %v229
  %238 = vset.pattern.permute.xlu0 26
  %239 = vperm.xlu0 %238, %v60
  %v240 = vpop.permute.xlu0 %239
  %v242 = vperm.slane %v234, 0
  %v243 = vperm.slane %v235, 0
  %v244 = vperm.slane %v236, 0
  %v245 = vperm.slane %v237, 0
  %v246 = vmul.f32 %v240, %v242
  %v247 = vmul.f32 %v240, %v243
  %v248 = vmul.f32 %v240, %v244
  %v249 = vmul.f32 %v240, %v245
  %v250 = vadd.f32 %v206, %v246
  %v251 = vadd.f32 %v207, %v247
  %v252 = vadd.f32 %v208, %v248
  %v253 = vadd.f32 %v209, %v249
  %254 = vrot.lane.b32.xlu0 %v23, 18
  %v255 = vpop.permute.xlu0 %254
  %256 = vrot.lane.b32.xlu0 %v24, 18
  %v257 = vpop.permute.xlu0 %256
  %258 = vrot.lane.b32.xlu0 %v25, 18
  %v259 = vpop.permute.xlu0 %258
  %260 = vrot.lane.b32.xlu0 %v26, 18
  %v261 = vpop.permute.xlu0 %260
  %vm262 = vcmp.lt.s32.totalorder %v40, 18
  %v263 = vsel %vm262, %v259, %v261
  %v264 = vsel %vm262, %v257, %v259
  %v265 = vsel %vm262, %v255, %v257
  %v266 = vsel %vm262, %v261, %v255
  %s267 = scalar_lea.vmem %s1, 5
  %v268 = vld [vmem:[%s267] ss:$8 sm:$0xf]
  %v270 = vperm.slane %v268, 0
  %v271 = vperm.slane %v268, 1
  %v272 = vperm.slane %v268, 2
  %v273 = vperm.slane %v268, 3
  %v278 = vmul.f32 %v266, %v270
  %v279 = vmul.f32 %v265, %v271
  %v280 = vmul.f32 %v264, %v272
  %v281 = vmul.f32 %v263, %v273
  %282 = vset.pattern.permute.xlu0 27
  %283 = vperm.xlu0 %282, %v60
  %v284 = vpop.permute.xlu0 %283
  %v286 = vperm.slane %v278, 0
  %v287 = vperm.slane %v279, 0
  %v288 = vperm.slane %v280, 0
  %v289 = vperm.slane %v281, 0
  %v290 = vmul.f32 %v284, %v286
  %v291 = vmul.f32 %v284, %v287
  %v292 = vmul.f32 %v284, %v288
  %v293 = vmul.f32 %v284, %v289
  %v294 = vadd.f32 %v250, %v290
  %v295 = vadd.f32 %v251, %v291
  %v296 = vadd.f32 %v252, %v292
  %v297 = vadd.f32 %v253, %v293
  %298 = vrot.lane.b32.xlu0 %v23, 17
  %v299 = vpop.permute.xlu0 %298
  %300 = vrot.lane.b32.xlu0 %v24, 17
  %v301 = vpop.permute.xlu0 %300
  %302 = vrot.lane.b32.xlu0 %v25, 17
  %v303 = vpop.permute.xlu0 %302
  %304 = vrot.lane.b32.xlu0 %v26, 17
  %v305 = vpop.permute.xlu0 %304
  %vm306 = vcmp.lt.s32.totalorder %v40, 17
  %v307 = vsel %vm306, %v303, %v305
  %v308 = vsel %vm306, %v301, %v303
  %v309 = vsel %vm306, %v299, %v301
  %v310 = vsel %vm306, %v305, %v299
  %s311 = scalar_lea.vmem %s1, 6
  %v312 = vld [vmem:[%s311] ss:$8 sm:$0xf]
  %v314 = vperm.slane %v312, 0
  %v315 = vperm.slane %v312, 1
  %v316 = vperm.slane %v312, 2
  %v317 = vperm.slane %v312, 3
  %v322 = vmul.f32 %v310, %v314
  %v323 = vmul.f32 %v309, %v315
  %v324 = vmul.f32 %v308, %v316
  %v325 = vmul.f32 %v307, %v317
  %326 = vset.pattern.permute.xlu0 28
  %327 = vperm.xlu0 %326, %v60
  %v328 = vpop.permute.xlu0 %327
  %v330 = vperm.slane %v322, 0
  %v331 = vperm.slane %v323, 0
  %v332 = vperm.slane %v324, 0
  %v333 = vperm.slane %v325, 0
  %v334 = vmul.f32 %v328, %v330
  %v335 = vmul.f32 %v328, %v331
  %v336 = vmul.f32 %v328, %v332
  %v337 = vmul.f32 %v328, %v333
  %v338 = vadd.f32 %v294, %v334
  %v339 = vadd.f32 %v295, %v335
  %v340 = vadd.f32 %v296, %v336
  %v341 = vadd.f32 %v297, %v337
  %342 = vrot.lane.b32.xlu0 %v23, 16
  %v343 = vpop.permute.xlu0 %342
  %344 = vrot.lane.b32.xlu0 %v24, 16
  %v345 = vpop.permute.xlu0 %344
  %346 = vrot.lane.b32.xlu0 %v25, 16
  %v347 = vpop.permute.xlu0 %346
  %348 = vrot.lane.b32.xlu0 %v26, 16
  %v349 = vpop.permute.xlu0 %348
  %vm350 = vcmp.lt.s32.totalorder %v40, 16
  %v351 = vsel %vm350, %v347, %v349
  %v352 = vsel %vm350, %v345, %v347
  %v353 = vsel %vm350, %v343, %v345
  %v354 = vsel %vm350, %v349, %v343
  %s355 = scalar_lea.vmem %s1, 7
  %v356 = vld [vmem:[%s355] ss:$8 sm:$0xf]
  %v358 = vperm.slane %v356, 0
  %v359 = vperm.slane %v356, 1
  %v360 = vperm.slane %v356, 2
  %v361 = vperm.slane %v356, 3
  %v366 = vmul.f32 %v354, %v358
  %v367 = vmul.f32 %v353, %v359
  %v368 = vmul.f32 %v352, %v360
  %v369 = vmul.f32 %v351, %v361
  %370 = vset.pattern.permute.xlu0 29
  %371 = vperm.xlu0 %370, %v60
  %v372 = vpop.permute.xlu0 %371
  %v374 = vperm.slane %v366, 0
  %v375 = vperm.slane %v367, 0
  %v376 = vperm.slane %v368, 0
  %v377 = vperm.slane %v369, 0
  %v378 = vmul.f32 %v372, %v374
  %v379 = vmul.f32 %v372, %v375
  %v380 = vmul.f32 %v372, %v376
  %v381 = vmul.f32 %v372, %v377
  %v382 = vadd.f32 %v338, %v378
  %v383 = vadd.f32 %v339, %v379
  %v384 = vadd.f32 %v340, %v380
  %v385 = vadd.f32 %v341, %v381
  %386 = vrot.lane.b32.xlu0 %v23, 15
  %v387 = vpop.permute.xlu0 %386
  %388 = vrot.lane.b32.xlu0 %v24, 15
  %v389 = vpop.permute.xlu0 %388
  %390 = vrot.lane.b32.xlu0 %v25, 15
  %v391 = vpop.permute.xlu0 %390
  %392 = vrot.lane.b32.xlu0 %v26, 15
  %v393 = vpop.permute.xlu0 %392
  %vm394 = vcmp.lt.s32.totalorder %v40, 15
  %v395 = vsel %vm394, %v391, %v393
  %v396 = vsel %vm394, %v389, %v391
  %v397 = vsel %vm394, %v387, %v389
  %v398 = vsel %vm394, %v393, %v387
  %s399 = scalar_lea.vmem %s1, 32
  %v400 = vld [vmem:[%s399] ss:$8 sm:$0xf]
  %v402 = vperm.slane %v400, 0
  %v403 = vperm.slane %v400, 1
  %v404 = vperm.slane %v400, 2
  %v405 = vperm.slane %v400, 3
  %v410 = vmul.f32 %v398, %v402
  %v411 = vmul.f32 %v397, %v403
  %v412 = vmul.f32 %v396, %v404
  %v413 = vmul.f32 %v395, %v405
  %414 = vset.pattern.permute.xlu0 30
  %415 = vperm.xlu0 %414, %v60
  %v416 = vpop.permute.xlu0 %415
  %v418 = vperm.slane %v410, 0
  %v419 = vperm.slane %v411, 0
  %v420 = vperm.slane %v412, 0
  %v421 = vperm.slane %v413, 0
  %v422 = vmul.f32 %v416, %v418
  %v423 = vmul.f32 %v416, %v419
  %v424 = vmul.f32 %v416, %v420
  %v425 = vmul.f32 %v416, %v421
  %v426 = vadd.f32 %v382, %v422
  %v427 = vadd.f32 %v383, %v423
  %v428 = vadd.f32 %v384, %v424
  %v429 = vadd.f32 %v385, %v425
  %430 = vrot.lane.b32.xlu0 %v23, 14
  %v431 = vpop.permute.xlu0 %430
  %432 = vrot.lane.b32.xlu0 %v24, 14
  %v433 = vpop.permute.xlu0 %432
  %434 = vrot.lane.b32.xlu0 %v25, 14
  %v435 = vpop.permute.xlu0 %434
  %436 = vrot.lane.b32.xlu0 %v26, 14
  %v437 = vpop.permute.xlu0 %436
  %vm438 = vcmp.lt.s32.totalorder %v40, 14
  %v439 = vsel %vm438, %v435, %v437
  %v440 = vsel %vm438, %v433, %v435
  %v441 = vsel %vm438, %v431, %v433
  %v442 = vsel %vm438, %v437, %v431
  %s443 = scalar_lea.vmem %s1, 33
  %v444 = vld [vmem:[%s443] ss:$8 sm:$0xf]
  %v446 = vperm.slane %v444, 0
  %v447 = vperm.slane %v444, 1
  %v448 = vperm.slane %v444, 2
  %v449 = vperm.slane %v444, 3
  %v454 = vmul.f32 %v442, %v446
  %v455 = vmul.f32 %v441, %v447
  %v456 = vmul.f32 %v440, %v448
  %v457 = vmul.f32 %v439, %v449
  %458 = vset.pattern.permute.xlu0 31
  %459 = vperm.xlu0 %458, %v60
  %v460 = vpop.permute.xlu0 %459
  %v462 = vperm.slane %v454, 0
  %v463 = vperm.slane %v455, 0
  %v464 = vperm.slane %v456, 0
  %v465 = vperm.slane %v457, 0
  %v466 = vmul.f32 %v460, %v462
  %v467 = vmul.f32 %v460, %v463
  %v468 = vmul.f32 %v460, %v464
  %v469 = vmul.f32 %v460, %v465
  %v470 = vadd.f32 %v426, %v466
  %v471 = vadd.f32 %v427, %v467
  %v472 = vadd.f32 %v428, %v468
  %v473 = vadd.f32 %v429, %v469
  %474 = vrot.lane.b32.xlu0 %v23, 2
  %v475 = vpop.permute.xlu0 %474
  %476 = vrot.lane.b32.xlu0 %v24, 2
  %v477 = vpop.permute.xlu0 %476
  %478 = vrot.lane.b32.xlu0 %v25, 2
  %v479 = vpop.permute.xlu0 %478
  %480 = vrot.lane.b32.xlu0 %v26, 2
  %v481 = vpop.permute.xlu0 %480
  %vm482 = vcmp.lt.s32.totalorder %v40, 2
  %v483 = vsel %vm482, %v479, %v481
  %v484 = vsel %vm482, %v477, %v479
  %v485 = vsel %vm482, %v475, %v477
  %v486 = vsel %vm482, %v481, %v475
  %s487 = scalar_lea.vmem %s1, 34
  %v488 = vld [vmem:[%s487] ss:$8 sm:$0xf]
  %v490 = vperm.slane %v488, 0
  %v491 = vperm.slane %v488, 1
  %v492 = vperm.slane %v488, 2
  %v493 = vperm.slane %v488, 3
  %v498 = vmul.f32 %v486, %v490
  %v499 = vmul.f32 %v485, %v491
  %v500 = vmul.f32 %v484, %v492
  %v501 = vmul.f32 %v483, %v493
  %502 = vset.pattern.permute.xlu0 32
  %503 = vperm.xlu0 %502, %v60
  %v504 = vpop.permute.xlu0 %503
  %v506 = vperm.slane %v498, 0
  %v507 = vperm.slane %v499, 0
  %v508 = vperm.slane %v500, 0
  %v509 = vperm.slane %v501, 0
  %v510 = vmul.f32 %v504, %v506
  %v511 = vmul.f32 %v504, %v507
  %v512 = vmul.f32 %v504, %v508
  %v513 = vmul.f32 %v504, %v509
  %v514 = vadd.f32 %v470, %v510
  %v515 = vadd.f32 %v471, %v511
  %v516 = vadd.f32 %v472, %v512
  %v517 = vadd.f32 %v473, %v513
  %518 = vrot.lane.b32.xlu0 %v23, 1
  %v519 = vpop.permute.xlu0 %518
  %520 = vrot.lane.b32.xlu0 %v24, 1
  %v521 = vpop.permute.xlu0 %520
  %522 = vrot.lane.b32.xlu0 %v25, 1
  %v523 = vpop.permute.xlu0 %522
  %524 = vrot.lane.b32.xlu0 %v26, 1
  %v525 = vpop.permute.xlu0 %524
  %vm526 = vcmp.lt.s32.totalorder %v40, 1
  %v527 = vsel %vm526, %v523, %v525
  %v528 = vsel %vm526, %v521, %v523
  %v529 = vsel %vm526, %v519, %v521
  %v530 = vsel %vm526, %v525, %v519
  %s531 = scalar_lea.vmem %s1, 35
  %v532 = vld [vmem:[%s531] ss:$8 sm:$0xf]
  %v534 = vperm.slane %v532, 0
  %v535 = vperm.slane %v532, 1
  %v536 = vperm.slane %v532, 2
  %v537 = vperm.slane %v532, 3
  %v542 = vmul.f32 %v530, %v534
  %v543 = vmul.f32 %v529, %v535
  %v544 = vmul.f32 %v528, %v536
  %v545 = vmul.f32 %v527, %v537
  %546 = vset.pattern.permute.xlu0 33
  %547 = vperm.xlu0 %546, %v60
  %v548 = vpop.permute.xlu0 %547
  %v550 = vperm.slane %v542, 0
  %v551 = vperm.slane %v543, 0
  %v552 = vperm.slane %v544, 0
  %v553 = vperm.slane %v545, 0
  %v554 = vmul.f32 %v548, %v550
  %v555 = vmul.f32 %v548, %v551
  %v556 = vmul.f32 %v548, %v552
  %v557 = vmul.f32 %v548, %v553
  %v558 = vadd.f32 %v514, %v554
  %v559 = vadd.f32 %v515, %v555
  %v560 = vadd.f32 %v516, %v556
  %v561 = vadd.f32 %v517, %v557
  %s562 = scalar_lea.vmem %s1, 36
  %v563 = vld [vmem:[%s562] ss:$8 sm:$0xf]
  %v564 = vmul.f32 %v21, %v563
  %565 = vset.pattern.permute.xlu0 34
  %566 = vperm.xlu0 %565, %v60
  %v567 = vpop.permute.xlu0 %566
  %v570 = vperm.slane %v564, 0
  %v571 = vperm.slane %v564, 1
  %v572 = vperm.slane %v564, 2
  %v573 = vperm.slane %v564, 3
  %v578 = vmul.f32 %v567, %v570
  %v579 = vmul.f32 %v567, %v571
  %v580 = vmul.f32 %v567, %v572
  %v581 = vmul.f32 %v567, %v573
  %v582 = vadd.f32 %v558, %v578
  %v583 = vadd.f32 %v559, %v579
  %v584 = vadd.f32 %v560, %v580
  %v585 = vadd.f32 %v561, %v581
  %586 = vrot.lane.b32.xlu0 %v23, 127
  %v587 = vpop.permute.xlu0 %586
  %588 = vrot.lane.b32.xlu0 %v24, 127
  %v589 = vpop.permute.xlu0 %588
  %590 = vrot.lane.b32.xlu0 %v25, 127
  %v591 = vpop.permute.xlu0 %590
  %592 = vrot.lane.b32.xlu0 %v26, 127
  %v593 = vpop.permute.xlu0 %592
  %vm594 = vcmp.lt.s32.totalorder %v40, 127
  %v595 = vsel %vm594, %v591, %v593
  %v596 = vsel %vm594, %v589, %v591
  %v597 = vsel %vm594, %v587, %v589
  %v598 = vsel %vm594, %v593, %v587
  %s599 = scalar_lea.vmem %s1, 37
  %v600 = vld [vmem:[%s599] ss:$8 sm:$0xf]
  %v602 = vperm.slane %v600, 0
  %v603 = vperm.slane %v600, 1
  %v604 = vperm.slane %v600, 2
  %v605 = vperm.slane %v600, 3
  %v610 = vmul.f32 %v597, %v602
  %v611 = vmul.f32 %v596, %v603
  %v612 = vmul.f32 %v595, %v604
  %v613 = vmul.f32 %v598, %v605
  %614 = vset.pattern.permute.xlu0 35
  %615 = vperm.xlu0 %614, %v60
  %v616 = vpop.permute.xlu0 %615
  %v618 = vperm.slane %v610, 0
  %v619 = vperm.slane %v611, 0
  %v620 = vperm.slane %v612, 0
  %v621 = vperm.slane %v613, 0
  %v622 = vmul.f32 %v616, %v618
  %v623 = vmul.f32 %v616, %v619
  %v624 = vmul.f32 %v616, %v620
  %v625 = vmul.f32 %v616, %v621
  %v626 = vadd.f32 %v582, %v622
  %v627 = vadd.f32 %v583, %v623
  %v628 = vadd.f32 %v584, %v624
  %v629 = vadd.f32 %v585, %v625
  %630 = vrot.lane.b32.xlu0 %v23, 126
  %v631 = vpop.permute.xlu0 %630
  %632 = vrot.lane.b32.xlu0 %v24, 126
  %v633 = vpop.permute.xlu0 %632
  %634 = vrot.lane.b32.xlu0 %v25, 126
  %v635 = vpop.permute.xlu0 %634
  %636 = vrot.lane.b32.xlu0 %v26, 126
  %v637 = vpop.permute.xlu0 %636
  %vm638 = vcmp.lt.s32.totalorder %v40, 126
  %v639 = vsel %vm638, %v635, %v637
  %v640 = vsel %vm638, %v633, %v635
  %v641 = vsel %vm638, %v631, %v633
  %v642 = vsel %vm638, %v637, %v631
  %s643 = scalar_lea.vmem %s1, 38
  %v644 = vld [vmem:[%s643] ss:$8 sm:$0xf]
  %v646 = vperm.slane %v644, 0
  %v647 = vperm.slane %v644, 1
  %v648 = vperm.slane %v644, 2
  %v649 = vperm.slane %v644, 3
  %v654 = vmul.f32 %v641, %v646
  %v655 = vmul.f32 %v640, %v647
  %v656 = vmul.f32 %v639, %v648
  %v657 = vmul.f32 %v642, %v649
  %658 = vset.pattern.permute.xlu0 36
  %659 = vperm.xlu0 %658, %v60
  %v660 = vpop.permute.xlu0 %659
  %v662 = vperm.slane %v654, 0
  %v663 = vperm.slane %v655, 0
  %v664 = vperm.slane %v656, 0
  %v665 = vperm.slane %v657, 0
  %v666 = vmul.f32 %v660, %v662
  %v667 = vmul.f32 %v660, %v663
  %v668 = vmul.f32 %v660, %v664
  %v669 = vmul.f32 %v660, %v665
  %v670 = vadd.f32 %v626, %v666
  %v671 = vadd.f32 %v627, %v667
  %v672 = vadd.f32 %v628, %v668
  %v673 = vadd.f32 %v629, %v669
  %674 = vrot.lane.b32.xlu0 %v23, 114
  %v675 = vpop.permute.xlu0 %674
  %676 = vrot.lane.b32.xlu0 %v24, 114
  %v677 = vpop.permute.xlu0 %676
  %678 = vrot.lane.b32.xlu0 %v25, 114
  %v679 = vpop.permute.xlu0 %678
  %680 = vrot.lane.b32.xlu0 %v26, 114
  %v681 = vpop.permute.xlu0 %680
  %vm682 = vcmp.lt.s32.totalorder %v40, 114
  %v683 = vsel %vm682, %v679, %v681
  %v684 = vsel %vm682, %v677, %v679
  %v685 = vsel %vm682, %v675, %v677
  %v686 = vsel %vm682, %v681, %v675
  %s687 = scalar_lea.vmem %s1, 39
  %v688 = vld [vmem:[%s687] ss:$8 sm:$0xf]
  %v690 = vperm.slane %v688, 0
  %v691 = vperm.slane %v688, 1
  %v692 = vperm.slane %v688, 2
  %v693 = vperm.slane %v688, 3
  %v698 = vmul.f32 %v685, %v690
  %v699 = vmul.f32 %v684, %v691
  %v700 = vmul.f32 %v683, %v692
  %v701 = vmul.f32 %v686, %v693
  %702 = vset.pattern.permute.xlu0 37
  %703 = vperm.xlu0 %702, %v60
  %v704 = vpop.permute.xlu0 %703
  %v706 = vperm.slane %v698, 0
  %v707 = vperm.slane %v699, 0
  %v708 = vperm.slane %v700, 0
  %v709 = vperm.slane %v701, 0
  %v710 = vmul.f32 %v704, %v706
  %v711 = vmul.f32 %v704, %v707
  %v712 = vmul.f32 %v704, %v708
  %v713 = vmul.f32 %v704, %v709
  %v714 = vadd.f32 %v670, %v710
  %v715 = vadd.f32 %v671, %v711
  %v716 = vadd.f32 %v672, %v712
  %v717 = vadd.f32 %v673, %v713
  %718 = vrot.lane.b32.xlu0 %v23, 113
  %v719 = vpop.permute.xlu0 %718
  %720 = vrot.lane.b32.xlu0 %v24, 113
  %v721 = vpop.permute.xlu0 %720
  %722 = vrot.lane.b32.xlu0 %v25, 113
  %v723 = vpop.permute.xlu0 %722
  %724 = vrot.lane.b32.xlu0 %v26, 113
  %v725 = vpop.permute.xlu0 %724
  %vm726 = vcmp.lt.s32.totalorder %v40, 113
  %v727 = vsel %vm726, %v723, %v725
  %v728 = vsel %vm726, %v721, %v723
  %v729 = vsel %vm726, %v719, %v721
  %v730 = vsel %vm726, %v725, %v719
  %s731 = scalar_lea.vmem %s1, 64
  %v732 = vld [vmem:[%s731] ss:$8 sm:$0xf]
  %v734 = vperm.slane %v732, 0
  %v735 = vperm.slane %v732, 1
  %v736 = vperm.slane %v732, 2
  %v737 = vperm.slane %v732, 3
  %v742 = vmul.f32 %v729, %v734
  %v743 = vmul.f32 %v728, %v735
  %v744 = vmul.f32 %v727, %v736
  %v745 = vmul.f32 %v730, %v737
  %746 = vset.pattern.permute.xlu0 38
  %747 = vperm.xlu0 %746, %v60
  %v748 = vpop.permute.xlu0 %747
  %v750 = vperm.slane %v742, 0
  %v751 = vperm.slane %v743, 0
  %v752 = vperm.slane %v744, 0
  %v753 = vperm.slane %v745, 0
  %v754 = vmul.f32 %v748, %v750
  %v755 = vmul.f32 %v748, %v751
  %v756 = vmul.f32 %v748, %v752
  %v757 = vmul.f32 %v748, %v753
  %v758 = vadd.f32 %v714, %v754
  %v759 = vadd.f32 %v715, %v755
  %v760 = vadd.f32 %v716, %v756
  %v761 = vadd.f32 %v717, %v757
  %762 = vrot.lane.b32.xlu0 %v23, 112
  %v763 = vpop.permute.xlu0 %762
  %764 = vrot.lane.b32.xlu0 %v24, 112
  %v765 = vpop.permute.xlu0 %764
  %766 = vrot.lane.b32.xlu0 %v25, 112
  %v767 = vpop.permute.xlu0 %766
  %768 = vrot.lane.b32.xlu0 %v26, 112
  %v769 = vpop.permute.xlu0 %768
  %vm770 = vcmp.lt.s32.totalorder %v40, 112
  %v771 = vsel %vm770, %v767, %v769
  %v772 = vsel %vm770, %v765, %v767
  %v773 = vsel %vm770, %v763, %v765
  %v774 = vsel %vm770, %v769, %v763
  %s775 = scalar_lea.vmem %s1, 65
  %v776 = vld [vmem:[%s775] ss:$8 sm:$0xf]
  %v778 = vperm.slane %v776, 0
  %v779 = vperm.slane %v776, 1
  %v780 = vperm.slane %v776, 2
  %v781 = vperm.slane %v776, 3
  %v786 = vmul.f32 %v773, %v778
  %v787 = vmul.f32 %v772, %v779
  %v788 = vmul.f32 %v771, %v780
  %v789 = vmul.f32 %v774, %v781
  %790 = vset.pattern.permute.xlu0 39
  %791 = vperm.xlu0 %790, %v60
  %v792 = vpop.permute.xlu0 %791
  %v794 = vperm.slane %v786, 0
  %v795 = vperm.slane %v787, 0
  %v796 = vperm.slane %v788, 0
  %v797 = vperm.slane %v789, 0
  %v798 = vmul.f32 %v792, %v794
  %v799 = vmul.f32 %v792, %v795
  %v800 = vmul.f32 %v792, %v796
  %v801 = vmul.f32 %v792, %v797
  %v802 = vadd.f32 %v758, %v798
  %v803 = vadd.f32 %v759, %v799
  %v804 = vadd.f32 %v760, %v800
  %v805 = vadd.f32 %v761, %v801
  %806 = vrot.lane.b32.xlu0 %v23, 111
  %v807 = vpop.permute.xlu0 %806
  %808 = vrot.lane.b32.xlu0 %v24, 111
  %v809 = vpop.permute.xlu0 %808
  %810 = vrot.lane.b32.xlu0 %v25, 111
  %v811 = vpop.permute.xlu0 %810
  %812 = vrot.lane.b32.xlu0 %v26, 111
  %v813 = vpop.permute.xlu0 %812
  %vm814 = vcmp.lt.s32.totalorder %v40, 111
  %v815 = vsel %vm814, %v811, %v813
  %v816 = vsel %vm814, %v809, %v811
  %v817 = vsel %vm814, %v807, %v809
  %v818 = vsel %vm814, %v813, %v807
  %s819 = scalar_lea.vmem %s1, 66
  %v820 = vld [vmem:[%s819] ss:$8 sm:$0xf]
  %v822 = vperm.slane %v820, 0
  %v823 = vperm.slane %v820, 1
  %v824 = vperm.slane %v820, 2
  %v825 = vperm.slane %v820, 3
  %v830 = vmul.f32 %v817, %v822
  %v831 = vmul.f32 %v816, %v823
  %v832 = vmul.f32 %v815, %v824
  %v833 = vmul.f32 %v818, %v825
  %834 = vset.pattern.permute.xlu0 40
  %835 = vperm.xlu0 %834, %v60
  %v836 = vpop.permute.xlu0 %835
  %v838 = vperm.slane %v830, 0
  %v839 = vperm.slane %v831, 0
  %v840 = vperm.slane %v832, 0
  %v841 = vperm.slane %v833, 0
  %v842 = vmul.f32 %v836, %v838
  %v843 = vmul.f32 %v836, %v839
  %v844 = vmul.f32 %v836, %v840
  %v845 = vmul.f32 %v836, %v841
  %v846 = vadd.f32 %v802, %v842
  %v847 = vadd.f32 %v803, %v843
  %v848 = vadd.f32 %v804, %v844
  %v849 = vadd.f32 %v805, %v845
  %850 = vrot.lane.b32.xlu0 %v23, 110
  %v851 = vpop.permute.xlu0 %850
  %852 = vrot.lane.b32.xlu0 %v24, 110
  %v853 = vpop.permute.xlu0 %852
  %854 = vrot.lane.b32.xlu0 %v25, 110
  %v855 = vpop.permute.xlu0 %854
  %856 = vrot.lane.b32.xlu0 %v26, 110
  %v857 = vpop.permute.xlu0 %856
  %vm858 = vcmp.lt.s32.totalorder %v40, 110
  %v859 = vsel %vm858, %v855, %v857
  %v860 = vsel %vm858, %v853, %v855
  %v861 = vsel %vm858, %v851, %v853
  %v862 = vsel %vm858, %v857, %v851
  %s863 = scalar_lea.vmem %s1, 67
  %v864 = vld [vmem:[%s863] ss:$8 sm:$0xf]
  %v866 = vperm.slane %v864, 0
  %v867 = vperm.slane %v864, 1
  %v868 = vperm.slane %v864, 2
  %v869 = vperm.slane %v864, 3
  %v874 = vmul.f32 %v861, %v866
  %v875 = vmul.f32 %v860, %v867
  %v876 = vmul.f32 %v859, %v868
  %v877 = vmul.f32 %v862, %v869
  %878 = vset.pattern.permute.xlu0 41
  %879 = vperm.xlu0 %878, %v60
  %v880 = vpop.permute.xlu0 %879
  %v882 = vperm.slane %v874, 0
  %v883 = vperm.slane %v875, 0
  %v884 = vperm.slane %v876, 0
  %v885 = vperm.slane %v877, 0
  %v886 = vmul.f32 %v880, %v882
  %v887 = vmul.f32 %v880, %v883
  %v888 = vmul.f32 %v880, %v884
  %v889 = vmul.f32 %v880, %v885
  %v890 = vadd.f32 %v846, %v886
  %v891 = vadd.f32 %v847, %v887
  %v892 = vadd.f32 %v848, %v888
  %v893 = vadd.f32 %v849, %v889
  %894 = vrot.lane.b32.xlu0 %v23, 98
  %v895 = vpop.permute.xlu0 %894
  %896 = vrot.lane.b32.xlu0 %v24, 98
  %v897 = vpop.permute.xlu0 %896
  %898 = vrot.lane.b32.xlu0 %v25, 98
  %v899 = vpop.permute.xlu0 %898
  %900 = vrot.lane.b32.xlu0 %v26, 98
  %v901 = vpop.permute.xlu0 %900
  %vm902 = vcmp.lt.s32.totalorder %v40, 98
  %v903 = vsel %vm902, %v899, %v901
  %v904 = vsel %vm902, %v897, %v899
  %v905 = vsel %vm902, %v895, %v897
  %v906 = vsel %vm902, %v901, %v895
  %s907 = scalar_lea.vmem %s1, 68
  %v908 = vld [vmem:[%s907] ss:$8 sm:$0xf]
  %v910 = vperm.slane %v908, 0
  %v911 = vperm.slane %v908, 1
  %v912 = vperm.slane %v908, 2
  %v913 = vperm.slane %v908, 3
  %v918 = vmul.f32 %v905, %v910
  %v919 = vmul.f32 %v904, %v911
  %v920 = vmul.f32 %v903, %v912
  %v921 = vmul.f32 %v906, %v913
  %922 = vset.pattern.permute.xlu0 42
  %923 = vperm.xlu0 %922, %v60
  %v924 = vpop.permute.xlu0 %923
  %v926 = vperm.slane %v918, 0
  %v927 = vperm.slane %v919, 0
  %v928 = vperm.slane %v920, 0
  %v929 = vperm.slane %v921, 0
  %v930 = vmul.f32 %v924, %v926
  %v931 = vmul.f32 %v924, %v927
  %v932 = vmul.f32 %v924, %v928
  %v933 = vmul.f32 %v924, %v929
  %v934 = vadd.f32 %v890, %v930
  %v935 = vadd.f32 %v891, %v931
  %v936 = vadd.f32 %v892, %v932
  %v937 = vadd.f32 %v893, %v933
  %938 = vrot.lane.b32.xlu0 %v23, 97
  %v939 = vpop.permute.xlu0 %938
  %940 = vrot.lane.b32.xlu0 %v24, 97
  %v941 = vpop.permute.xlu0 %940
  %942 = vrot.lane.b32.xlu0 %v25, 97
  %v943 = vpop.permute.xlu0 %942
  %944 = vrot.lane.b32.xlu0 %v26, 97
  %v945 = vpop.permute.xlu0 %944
  %vm946 = vcmp.lt.s32.totalorder %v40, 97
  %v947 = vsel %vm946, %v943, %v945
  %v948 = vsel %vm946, %v941, %v943
  %v949 = vsel %vm946, %v939, %v941
  %v950 = vsel %vm946, %v945, %v939
  %s951 = scalar_lea.vmem %s1, 69
  %v952 = vld [vmem:[%s951] ss:$8 sm:$0xf]
  %v954 = vperm.slane %v952, 0
  %v955 = vperm.slane %v952, 1
  %v956 = vperm.slane %v952, 2
  %v957 = vperm.slane %v952, 3
  %v962 = vmul.f32 %v949, %v954
  %v963 = vmul.f32 %v948, %v955
  %v964 = vmul.f32 %v947, %v956
  %v965 = vmul.f32 %v950, %v957
  %966 = vset.pattern.permute.xlu0 43
  %967 = vperm.xlu0 %966, %v60
  %v968 = vpop.permute.xlu0 %967
  %v970 = vperm.slane %v962, 0
  %v971 = vperm.slane %v963, 0
  %v972 = vperm.slane %v964, 0
  %v973 = vperm.slane %v965, 0
  %v974 = vmul.f32 %v968, %v970
  %v975 = vmul.f32 %v968, %v971
  %v976 = vmul.f32 %v968, %v972
  %v977 = vmul.f32 %v968, %v973
  %v978 = vadd.f32 %v934, %v974
  %v979 = vadd.f32 %v935, %v975
  %v980 = vadd.f32 %v936, %v976
  %v981 = vadd.f32 %v937, %v977
  %982 = vrot.lane.b32.xlu0 %v23, 96
  %v983 = vpop.permute.xlu0 %982
  %984 = vrot.lane.b32.xlu0 %v24, 96
  %v985 = vpop.permute.xlu0 %984
  %986 = vrot.lane.b32.xlu0 %v25, 96
  %v987 = vpop.permute.xlu0 %986
  %988 = vrot.lane.b32.xlu0 %v26, 96
  %v989 = vpop.permute.xlu0 %988
  %vm990 = vcmp.lt.s32.totalorder %v40, 96
  %v991 = vsel %vm990, %v987, %v989
  %v992 = vsel %vm990, %v985, %v987
  %v993 = vsel %vm990, %v983, %v985
  %v994 = vsel %vm990, %v989, %v983
  %s995 = scalar_lea.vmem %s1, 70
  %v996 = vld [vmem:[%s995] ss:$8 sm:$0xf]
  %v998 = vperm.slane %v996, 0
  %v999 = vperm.slane %v996, 1
  %v1000 = vperm.slane %v996, 2
  %v1001 = vperm.slane %v996, 3
  %v1006 = vmul.f32 %v993, %v998
  %v1007 = vmul.f32 %v992, %v999
  %v1008 = vmul.f32 %v991, %v1000
  %v1009 = vmul.f32 %v994, %v1001
  %1010 = vset.pattern.permute.xlu0 44
  %1011 = vperm.xlu0 %1010, %v60
  %v1012 = vpop.permute.xlu0 %1011
  %v1014 = vperm.slane %v1006, 0
  %v1015 = vperm.slane %v1007, 0
  %v1016 = vperm.slane %v1008, 0
  %v1017 = vperm.slane %v1009, 0
  %v1018 = vmul.f32 %v1012, %v1014
  %v1019 = vmul.f32 %v1012, %v1015
  %v1020 = vmul.f32 %v1012, %v1016
  %v1021 = vmul.f32 %v1012, %v1017
  %v1022 = vadd.f32 %v978, %v1018
  %v1023 = vadd.f32 %v979, %v1019
  %v1024 = vadd.f32 %v980, %v1020
  %v1025 = vadd.f32 %v981, %v1021
  %1026 = vrot.lane.b32.xlu0 %v23, 95
  %v1027 = vpop.permute.xlu0 %1026
  %1028 = vrot.lane.b32.xlu0 %v24, 95
  %v1029 = vpop.permute.xlu0 %1028
  %1030 = vrot.lane.b32.xlu0 %v25, 95
  %v1031 = vpop.permute.xlu0 %1030
  %1032 = vrot.lane.b32.xlu0 %v26, 95
  %v1033 = vpop.permute.xlu0 %1032
  %vm1034 = vcmp.lt.s32.totalorder %v40, 95
  %v1035 = vsel %vm1034, %v1031, %v1033
  %v1036 = vsel %vm1034, %v1029, %v1031
  %v1037 = vsel %vm1034, %v1027, %v1029
  %v1038 = vsel %vm1034, %v1033, %v1027
  %s1039 = scalar_lea.vmem %s1, 71
  %v1040 = vld [vmem:[%s1039] ss:$8 sm:$0xf]
  %v1042 = vperm.slane %v1040, 0
  %v1043 = vperm.slane %v1040, 1
  %v1044 = vperm.slane %v1040, 2
  %v1045 = vperm.slane %v1040, 3
  %v1050 = vmul.f32 %v1037, %v1042
  %v1051 = vmul.f32 %v1036, %v1043
  %v1052 = vmul.f32 %v1035, %v1044
  %v1053 = vmul.f32 %v1038, %v1045
  %1054 = vset.pattern.permute.xlu0 45
  %1055 = vperm.xlu0 %1054, %v60
  %v1056 = vpop.permute.xlu0 %1055
  %v1058 = vperm.slane %v1050, 0
  %v1059 = vperm.slane %v1051, 0
  %v1060 = vperm.slane %v1052, 0
  %v1061 = vperm.slane %v1053, 0
  %v1062 = vmul.f32 %v1056, %v1058
  %v1063 = vmul.f32 %v1056, %v1059
  %v1064 = vmul.f32 %v1056, %v1060
  %v1065 = vmul.f32 %v1056, %v1061
  %v1066 = vadd.f32 %v1022, %v1062
  %v1067 = vadd.f32 %v1023, %v1063
  %v1068 = vadd.f32 %v1024, %v1064
  %v1069 = vadd.f32 %v1025, %v1065
  %1070 = vrot.lane.b32.xlu0 %v23, 94
  %v1071 = vpop.permute.xlu0 %1070
  %1072 = vrot.lane.b32.xlu0 %v24, 94
  %v1073 = vpop.permute.xlu0 %1072
  %1074 = vrot.lane.b32.xlu0 %v25, 94
  %v1075 = vpop.permute.xlu0 %1074
  %1076 = vrot.lane.b32.xlu0 %v26, 94
  %v1077 = vpop.permute.xlu0 %1076
  %vm1078 = vcmp.lt.s32.totalorder %v40, 94
  %v1079 = vsel %vm1078, %v1075, %v1077
  %v1080 = vsel %vm1078, %v1073, %v1075
  %v1081 = vsel %vm1078, %v1071, %v1073
  %v1082 = vsel %vm1078, %v1077, %v1071
  %s1083 = scalar_lea.vmem %s1, 96
  %v1084 = vld [vmem:[%s1083] ss:$8 sm:$0xf]
  %v1086 = vperm.slane %v1084, 0
  %v1087 = vperm.slane %v1084, 1
  %v1088 = vperm.slane %v1084, 2
  %v1089 = vperm.slane %v1084, 3
  %v1094 = vmul.f32 %v1081, %v1086
  %v1095 = vmul.f32 %v1080, %v1087
  %v1096 = vmul.f32 %v1079, %v1088
  %v1097 = vmul.f32 %v1082, %v1089
  %1098 = vset.pattern.permute.xlu0 46
  %1099 = vperm.xlu0 %1098, %v60
  %v1100 = vpop.permute.xlu0 %1099
  %v1102 = vperm.slane %v1094, 0
  %v1103 = vperm.slane %v1095, 0
  %v1104 = vperm.slane %v1096, 0
  %v1105 = vperm.slane %v1097, 0
  %v1106 = vmul.f32 %v1100, %v1102
  %v1107 = vmul.f32 %v1100, %v1103
  %v1108 = vmul.f32 %v1100, %v1104
  %v1109 = vmul.f32 %v1100, %v1105
  %v1110 = vadd.f32 %v1066, %v1106
  %v1111 = vadd.f32 %v1067, %v1107
  %v1112 = vadd.f32 %v1068, %v1108
  %v1113 = vadd.f32 %v1069, %v1109
  %1114 = vset.pattern.permute.xlu0 0
  %1115 = vperm.xlu0 %1114, %v60
  %v1116 = vpop.permute.xlu0 %1115
  %v1118 = vadd.f32 %v1110, %v1116
  %v1119 = vadd.f32 %v1111, %v1116
  %v1120 = vadd.f32 %v1112, %v1116
  %v1121 = vadd.f32 %v1113, %v1116
  %1122 = vrot.lane.b32.xlu0 %v1118, 17
  %v1123 = vpop.permute.xlu0 %1122
  %1124 = vrot.lane.b32.xlu0 %v1119, 17
  %v1125 = vpop.permute.xlu0 %1124
  %1126 = vrot.lane.b32.xlu0 %v1120, 17
  %v1127 = vpop.permute.xlu0 %1126
  %1128 = vrot.lane.b32.xlu0 %v1121, 17
  %v1129 = vpop.permute.xlu0 %1128
  %v1130 = vsel %vm306, %v1127, %v1129
  %v1131 = vsel %vm306, %v1125, %v1127
  %v1132 = vsel %vm306, %v1123, %v1125
  %v1133 = vsel %vm306, %v1129, %v1123
  %v1134 = vld [vmem:[%s2] ss:$8 sm:$0xf]
  %v1136 = vperm.slane %v1134, 0
  %v1137 = vperm.slane %v1134, 1
  %v1138 = vperm.slane %v1134, 2
  %v1139 = vperm.slane %v1134, 3
  %v1144 = vmul.f32 %v1133, %v1136
  %v1145 = vmul.f32 %v1132, %v1137
  %v1146 = vmul.f32 %v1131, %v1138
  %v1147 = vmul.f32 %v1130, %v1139
  %1148 = vrot.lane.b32.xlu0 %v1118, 16
  %v1149 = vpop.permute.xlu0 %1148
  %1150 = vrot.lane.b32.xlu0 %v1119, 16
  %v1151 = vpop.permute.xlu0 %1150
  %1152 = vrot.lane.b32.xlu0 %v1120, 16
  %v1153 = vpop.permute.xlu0 %1152
  %1154 = vrot.lane.b32.xlu0 %v1121, 16
  %v1155 = vpop.permute.xlu0 %1154
  %v1156 = vsel %vm350, %v1153, %v1155
  %v1157 = vsel %vm350, %v1151, %v1153
  %v1158 = vsel %vm350, %v1149, %v1151
  %v1159 = vsel %vm350, %v1155, %v1149
  %s1160 = scalar_lea.vmem %s2, 1
  %v1161 = vld [vmem:[%s1160] ss:$8 sm:$0xf]
  %v1163 = vperm.slane %v1161, 0
  %v1164 = vperm.slane %v1161, 1
  %v1165 = vperm.slane %v1161, 2
  %v1166 = vperm.slane %v1161, 3
  %v1171 = vmul.f32 %v1159, %v1163
  %v1172 = vmul.f32 %v1158, %v1164
  %v1173 = vmul.f32 %v1157, %v1165
  %v1174 = vmul.f32 %v1156, %v1166
  %v1175 = vpack.c.bf16 %v1145, %v1144
  %v1176 = vpack.c.bf16 %v1147, %v1146
  %v1177 = vpack.c.bf16 %v1172, %v1171
  %v1178 = vpack.c.bf16 %v1174, %v1173
  %1179 = vst [vmem:[#allocation2] sm:$0xff] %v1175
  %1180 = vst [vmem:[#allocation2 + $0x8] sm:$0xff] %v1176
  %1181 = vst [vmem:[#allocation2 + $0x10] sm:$0xff] %v1177
  %1182 = vst [vmem:[#allocation2 + $0x18] sm:$0xff] %v1178
  %1183 = vrot.lane.b32.xlu0 %v1118, 15
  %v1184 = vpop.permute.xlu0 %1183
  %1185 = vrot.lane.b32.xlu0 %v1119, 15
  %v1186 = vpop.permute.xlu0 %1185
  %1187 = vrot.lane.b32.xlu0 %v1120, 15
  %v1188 = vpop.permute.xlu0 %1187
  %1189 = vrot.lane.b32.xlu0 %v1121, 15
  %v1190 = vpop.permute.xlu0 %1189
  %v1191 = vsel %vm394, %v1188, %v1190
  %v1192 = vsel %vm394, %v1186, %v1188
  %v1193 = vsel %vm394, %v1184, %v1186
  %v1194 = vsel %vm394, %v1190, %v1184
  %s1195 = scalar_lea.vmem %s2, 2
  %v1196 = vld [vmem:[%s1195] ss:$8 sm:$0xf]
  %v1198 = vperm.slane %v1196, 0
  %v1199 = vperm.slane %v1196, 1
  %v1200 = vperm.slane %v1196, 2
  %v1201 = vperm.slane %v1196, 3
  %v1206 = vmul.f32 %v1194, %v1198
  %v1207 = vmul.f32 %v1193, %v1199
  %v1208 = vmul.f32 %v1192, %v1200
  %v1209 = vmul.f32 %v1191, %v1201
  %1210 = vrot.lane.b32.xlu0 %v1118, 1
  %v1211 = vpop.permute.xlu0 %1210
  %1212 = vrot.lane.b32.xlu0 %v1119, 1
  %v1213 = vpop.permute.xlu0 %1212
  %1214 = vrot.lane.b32.xlu0 %v1120, 1
  %v1215 = vpop.permute.xlu0 %1214
  %1216 = vrot.lane.b32.xlu0 %v1121, 1
  %v1217 = vpop.permute.xlu0 %1216
  %v1218 = vsel %vm526, %v1215, %v1217
  %v1219 = vsel %vm526, %v1213, %v1215
  %v1220 = vsel %vm526, %v1211, %v1213
  %v1221 = vsel %vm526, %v1217, %v1211
  %s1222 = scalar_lea.vmem %s2, 3
  %v1223 = vld [vmem:[%s1222] ss:$8 sm:$0xf]
  %v1225 = vperm.slane %v1223, 0
  %v1226 = vperm.slane %v1223, 1
  %v1227 = vperm.slane %v1223, 2
  %v1228 = vperm.slane %v1223, 3
  %v1233 = vmul.f32 %v1221, %v1225
  %v1234 = vmul.f32 %v1220, %v1226
  %v1235 = vmul.f32 %v1219, %v1227
  %v1236 = vmul.f32 %v1218, %v1228
  %v1237 = vpack.c.bf16 %v1207, %v1206
  %v1238 = vpack.c.bf16 %v1209, %v1208
  %v1239 = vpack.c.bf16 %v1234, %v1233
  %v1240 = vpack.c.bf16 %v1236, %v1235
  %1241 = vst [vmem:[#allocation2 + $0x20] sm:$0xff] %v1237
  %1242 = vst [vmem:[#allocation2 + $0x28] sm:$0xff] %v1238
  %1243 = vst [vmem:[#allocation2 + $0x30] sm:$0xff] %v1239
  %1244 = vst [vmem:[#allocation2 + $0x38] sm:$0xff] %v1240
  %s1245 = scalar_lea.vmem %s2, 4
  %v1246 = vld [vmem:[%s1245] ss:$8 sm:$0xf]
  %v1248 = vperm.slane %v1246, 0
  %v1249 = vperm.slane %v1246, 1
  %v1250 = vperm.slane %v1246, 2
  %v1251 = vperm.slane %v1246, 3
  %v1256 = vmul.f32 %v1118, %v1248
  %v1257 = vmul.f32 %v1119, %v1249
  %v1258 = vmul.f32 %v1120, %v1250
  %v1259 = vmul.f32 %v1121, %v1251
  %1260 = vrot.lane.b32.xlu0 %v1118, 127
  %v1261 = vpop.permute.xlu0 %1260
  %1262 = vrot.lane.b32.xlu0 %v1119, 127
  %v1263 = vpop.permute.xlu0 %1262
  %1264 = vrot.lane.b32.xlu0 %v1120, 127
  %v1265 = vpop.permute.xlu0 %1264
  %1266 = vrot.lane.b32.xlu0 %v1121, 127
  %v1267 = vpop.permute.xlu0 %1266
  %v1268 = vsel %vm594, %v1265, %v1267
  %v1269 = vsel %vm594, %v1263, %v1265
  %v1270 = vsel %vm594, %v1261, %v1263
  %v1271 = vsel %vm594, %v1267, %v1261
  %s1272 = scalar_lea.vmem %s2, 5
  %v1273 = vld [vmem:[%s1272] ss:$8 sm:$0xf]
  %v1275 = vperm.slane %v1273, 0
  %v1276 = vperm.slane %v1273, 1
  %v1277 = vperm.slane %v1273, 2
  %v1278 = vperm.slane %v1273, 3
  %v1283 = vmul.f32 %v1270, %v1275
  %v1284 = vmul.f32 %v1269, %v1276
  %v1285 = vmul.f32 %v1268, %v1277
  %v1286 = vmul.f32 %v1271, %v1278
  %v1287 = vpack.c.bf16 %v1257, %v1256
  %v1288 = vpack.c.bf16 %v1259, %v1258
  %v1289 = vpack.c.bf16 %v1284, %v1283
  %v1290 = vpack.c.bf16 %v1286, %v1285
  %1291 = vst [vmem:[#allocation2 + $0x40] sm:$0xff] %v1287
  %1292 = vst [vmem:[#allocation2 + $0x48] sm:$0xff] %v1288
  %1293 = vst [vmem:[#allocation2 + $0x50] sm:$0xff] %v1289
  %1294 = vst [vmem:[#allocation2 + $0x58] sm:$0xff] %v1290
  %1295 = vrot.lane.b32.xlu0 %v1118, 113
  %v1296 = vpop.permute.xlu0 %1295
  %1297 = vrot.lane.b32.xlu0 %v1119, 113
  %v1298 = vpop.permute.xlu0 %1297
  %1299 = vrot.lane.b32.xlu0 %v1120, 113
  %v1300 = vpop.permute.xlu0 %1299
  %1301 = vrot.lane.b32.xlu0 %v1121, 113
  %v1302 = vpop.permute.xlu0 %1301
  %v1303 = vsel %vm726, %v1300, %v1302
  %v1304 = vsel %vm726, %v1298, %v1300
  %v1305 = vsel %vm726, %v1296, %v1298
  %v1306 = vsel %vm726, %v1302, %v1296
  %s1307 = scalar_lea.vmem %s2, 6
  %v1308 = vld [vmem:[%s1307] ss:$8 sm:$0xf]
  %v1310 = vperm.slane %v1308, 0
  %v1311 = vperm.slane %v1308, 1
  %v1312 = vperm.slane %v1308, 2
  %v1313 = vperm.slane %v1308, 3
  %v1318 = vmul.f32 %v1305, %v1310
  %v1319 = vmul.f32 %v1304, %v1311
  %v1320 = vmul.f32 %v1303, %v1312
  %v1321 = vmul.f32 %v1306, %v1313
  %1322 = vrot.lane.b32.xlu0 %v1118, 112
  %v1323 = vpop.permute.xlu0 %1322
  %1324 = vrot.lane.b32.xlu0 %v1119, 112
  %v1325 = vpop.permute.xlu0 %1324
  %1326 = vrot.lane.b32.xlu0 %v1120, 112
  %v1327 = vpop.permute.xlu0 %1326
  %1328 = vrot.lane.b32.xlu0 %v1121, 112
  %v1329 = vpop.permute.xlu0 %1328
  %v1330 = vsel %vm770, %v1327, %v1329
  %v1331 = vsel %vm770, %v1325, %v1327
  %v1332 = vsel %vm770, %v1323, %v1325
  %v1333 = vsel %vm770, %v1329, %v1323
  %s1334 = scalar_lea.vmem %s2, 7
  %v1335 = vld [vmem:[%s1334] ss:$8 sm:$0xf]
  %v1337 = vperm.slane %v1335, 0
  %v1338 = vperm.slane %v1335, 1
  %v1339 = vperm.slane %v1335, 2
  %v1340 = vperm.slane %v1335, 3
  %v1345 = vmul.f32 %v1332, %v1337
  %v1346 = vmul.f32 %v1331, %v1338
  %v1347 = vmul.f32 %v1330, %v1339
  %v1348 = vmul.f32 %v1333, %v1340
  %v1349 = vpack.c.bf16 %v1319, %v1318
  %v1350 = vpack.c.bf16 %v1321, %v1320
  %v1351 = vpack.c.bf16 %v1346, %v1345
  %v1352 = vpack.c.bf16 %v1348, %v1347
  %1353 = vst [vmem:[#allocation2 + $0x60] sm:$0xff] %v1349
  %1354 = vst [vmem:[#allocation2 + $0x68] sm:$0xff] %v1350
  %1355 = vst [vmem:[#allocation2 + $0x70] sm:$0xff] %v1351
  %1356 = vst [vmem:[#allocation2 + $0x78] sm:$0xff] %v1352
  %1357 = vrot.lane.b32.xlu0 %v1118, 111
  %v1358 = vpop.permute.xlu0 %1357
  %1359 = vrot.lane.b32.xlu0 %v1119, 111
  %v1360 = vpop.permute.xlu0 %1359
  %1361 = vrot.lane.b32.xlu0 %v1120, 111
  %v1362 = vpop.permute.xlu0 %1361
  %1363 = vrot.lane.b32.xlu0 %v1121, 111
  %v1364 = vpop.permute.xlu0 %1363
  %v1365 = vsel %vm814, %v1362, %v1364
  %v1366 = vsel %vm814, %v1360, %v1362
  %v1367 = vsel %vm814, %v1358, %v1360
  %v1368 = vsel %vm814, %v1364, %v1358
  %s1369 = scalar_lea.vmem %s2, 32
  %v1370 = vld [vmem:[%s1369] ss:$8 sm:$0xf]
  %v1372 = vperm.slane %v1370, 0
  %v1373 = vperm.slane %v1370, 1
  %v1374 = vperm.slane %v1370, 2
  %v1375 = vperm.slane %v1370, 3
  %v1380 = vmul.f32 %v1367, %v1372
  %v1381 = vmul.f32 %v1366, %v1373
  %v1382 = vmul.f32 %v1365, %v1374
  %v1383 = vmul.f32 %v1368, %v1375
  %v1384 = vpack.c.bf16 %v1381, %v1380
  %v1385 = vpack.c.bf16 %v1383, %v1382
  %v1386 = vpack.c.bf16 0.0, 0.0
  %1387 = vst [vmem:[#allocation2 + $0x80] sm:$0xff] %v1384
  %1388 = vst [vmem:[#allocation2 + $0x88] sm:$0xff] %v1385
  %1389 = vst [vmem:[#allocation2 + $0x90] sm:$0xff] %v1386
  %1390 = vst [vmem:[#allocation2 + $0x98] sm:$0xff] %v1386
  %v1391 = vld [vmem:[%s3] sm:$0xf]
  %v1392 = vld [vmem:[#allocation2] sm:$0xff]
  %v1393 = vld [vmem:[#allocation2 + $0x8] sm:$0xff]
  %v1394 = vld [vmem:[#allocation2 + $0x10] sm:$0xff]
  %v1395 = vld [vmem:[#allocation2 + $0x18] sm:$0xff]
  %v1396 = vld [vmem:[#allocation2 + $0x20] sm:$0xff]
  %v1397 = vld [vmem:[#allocation2 + $0x28] sm:$0xff]
  %v1398 = vld [vmem:[#allocation2 + $0x30] sm:$0xff]
  %v1399 = vld [vmem:[#allocation2 + $0x38] sm:$0xff]
  %v1400 = vld [vmem:[#allocation2 + $0x40] sm:$0xff]
  %v1401 = vld [vmem:[#allocation2 + $0x48] sm:$0xff]
  %v1402 = vld [vmem:[#allocation2 + $0x50] sm:$0xff]
  %v1403 = vld [vmem:[#allocation2 + $0x58] sm:$0xff]
  %v1404 = vld [vmem:[#allocation2 + $0x60] sm:$0xff]
  %v1405 = vld [vmem:[#allocation2 + $0x68] sm:$0xff]
  %v1406 = vld [vmem:[#allocation2 + $0x70] sm:$0xff]
  %v1407 = vld [vmem:[#allocation2 + $0x78] sm:$0xff]
  %v1408 = vld [vmem:[#allocation2 + $0x80] sm:$0xff]
  %v1409 = vld [vmem:[#allocation2 + $0x88] sm:$0xff]
  %v1410 = vld [vmem:[#allocation2 + $0x90] sm:$0xff]
  %v1411 = vld [vmem:[#allocation2 + $0x98] sm:$0xff]
  %v1432 = vunpack.c.l.b16 %v1392
  %v1433 = vunpack.c.h.b16 %v1392
  %v1434 = vunpack.c.l.b16 %v1393
  %v1435 = vunpack.c.h.b16 %v1393
  %v1436 = vunpack.c.l.b16 %v1394
  %v1437 = vunpack.c.h.b16 %v1394
  %v1438 = vunpack.c.l.b16 %v1395
  %v1439 = vunpack.c.h.b16 %v1395
  %v1440 = vunpack.c.l.b16 %v1396
  %v1441 = vunpack.c.h.b16 %v1396
  %v1442 = vunpack.c.l.b16 %v1397
  %v1443 = vunpack.c.h.b16 %v1397
  %v1444 = vunpack.c.l.b16 %v1398
  %v1445 = vunpack.c.h.b16 %v1398
  %v1446 = vunpack.c.l.b16 %v1399
  %v1447 = vunpack.c.h.b16 %v1399
  %v1448 = vunpack.c.l.b16 %v1400
  %v1449 = vunpack.c.h.b16 %v1400
  %v1450 = vunpack.c.l.b16 %v1401
  %v1451 = vunpack.c.h.b16 %v1401
  %v1452 = vunpack.c.l.b16 %v1402
  %v1453 = vunpack.c.h.b16 %v1402
  %v1454 = vunpack.c.l.b16 %v1403
  %v1455 = vunpack.c.h.b16 %v1403
  %v1456 = vunpack.c.l.b16 %v1404
  %v1457 = vunpack.c.h.b16 %v1404
  %v1458 = vunpack.c.l.b16 %v1405
  %v1459 = vunpack.c.h.b16 %v1405
  %v1460 = vunpack.c.l.b16 %v1406
  %v1461 = vunpack.c.h.b16 %v1406
  %v1462 = vunpack.c.l.b16 %v1407
  %v1463 = vunpack.c.h.b16 %v1407
  %v1464 = vunpack.c.l.b16 %v1408
  %v1465 = vunpack.c.h.b16 %v1408
  %v1466 = vunpack.c.l.b16 %v1409
  %v1467 = vunpack.c.h.b16 %v1409
  %v1468 = vunpack.c.l.b16 %v1410
  %v1469 = vunpack.c.h.b16 %v1410
  %v1470 = vunpack.c.l.b16 %v1411
  %v1471 = vunpack.c.h.b16 %v1411
  %v1472 = vpack.c.b16 %v1436, %v1432
  %v1473 = vpack.c.b16 %v1437, %v1433
  %v1474 = vpack.c.b16 %v1438, %v1434
  %v1475 = vpack.c.b16 %v1439, %v1435
  %v1476 = vpack.c.b16 %v1444, %v1440
  %v1477 = vpack.c.b16 %v1445, %v1441
  %v1478 = vpack.c.b16 %v1446, %v1442
  %v1479 = vpack.c.b16 %v1447, %v1443
  %v1480 = vpack.c.b16 %v1452, %v1448
  %v1481 = vpack.c.b16 %v1453, %v1449
  %v1482 = vpack.c.b16 %v1454, %v1450
  %v1483 = vpack.c.b16 %v1455, %v1451
  %v1484 = vpack.c.b16 %v1460, %v1456
  %v1485 = vpack.c.b16 %v1461, %v1457
  %v1486 = vpack.c.b16 %v1462, %v1458
  %v1487 = vpack.c.b16 %v1463, %v1459
  %v1488 = vpack.c.b16 %v1468, %v1464
  %v1489 = vpack.c.b16 %v1469, %v1465
  %v1490 = vpack.c.b16 %v1470, %v1466
  %v1491 = vpack.c.b16 %v1471, %v1467
  %vm1512 = vcmask 654336
  %v1514 = vsel %vm1512, %v1391, 0
  %1516 = vmatpush.bf16.msra.mxu0 0
  %1517 = vmatpush.bf16.msra.mxu0 0
  %1518 = vmatpush.bf16.msra.mxu0 0
  %1519 = vmatpush.bf16.msra.mxu0 %v1488
  %1520 = vmatpush.bf16.msra.mxu0 %v1484
  %1521 = vmatpush.bf16.msra.mxu0 %v1480
  %1522 = vmatpush.bf16.msra.mxu0 %v1476
  %1523 = vmatpush.bf16.msra.mxu0 %v1472
  %1524 = vmatmul.bf16.gmra.mxu0 %v1514
  %v1525 = vpop.f32.mrf.mxu0
  %v1526 = vadd.f32 0.0, %v1525
  %v1527 = vpop.f32.mrf.mxu0
  %1528 = vdwg.mxu0
  %1529 = vmatpush.bf16.msra.mxu0 0
  %1530 = vmatpush.bf16.msra.mxu0 0
  %1531 = vmatpush.bf16.msra.mxu0 0
  %1532 = vmatpush.bf16.msra.mxu0 %v1489
  %1533 = vmatpush.bf16.msra.mxu0 %v1485
  %1534 = vmatpush.bf16.msra.mxu0 %v1481
  %1535 = vmatpush.bf16.msra.mxu0 %v1477
  %1536 = vmatpush.bf16.msra.mxu0 %v1473
  %1537 = vmatmul.bf16.gmra.mxu0 %v1514
  %v1538 = vpop.f32.mrf.mxu0
  %v1539 = vadd.f32 0.0, %v1538
  %v1540 = vpop.f32.mrf.mxu0
  %1541 = vdwg.mxu0
  %1542 = vmatpush.bf16.msra.mxu0 0
  %1543 = vmatpush.bf16.msra.mxu0 0
  %1544 = vmatpush.bf16.msra.mxu0 0
  %1545 = vmatpush.bf16.msra.mxu0 %v1490
  %1546 = vmatpush.bf16.msra.mxu0 %v1486
  %1547 = vmatpush.bf16.msra.mxu0 %v1482
  %1548 = vmatpush.bf16.msra.mxu0 %v1478
  %1549 = vmatpush.bf16.msra.mxu0 %v1474
  %1550 = vmatmul.bf16.gmra.mxu0 %v1514
  %v1551 = vpop.f32.mrf.mxu0
  %v1552 = vadd.f32 0.0, %v1551
  %v1553 = vpop.f32.mrf.mxu0
  %1554 = vdwg.mxu0
  %1555 = vmatpush.bf16.msra.mxu0 0
  %1556 = vmatpush.bf16.msra.mxu0 0
  %1557 = vmatpush.bf16.msra.mxu0 0
  %1558 = vmatpush.bf16.msra.mxu0 %v1491
  %1559 = vmatpush.bf16.msra.mxu0 %v1487
  %1560 = vmatpush.bf16.msra.mxu0 %v1483
  %1561 = vmatpush.bf16.msra.mxu0 %v1479
  %1562 = vmatpush.bf16.msra.mxu0 %v1475
  %1563 = vmatmul.bf16.gmra.mxu0 %v1514
  %v1564 = vpop.f32.mrf.mxu0
  %v1565 = vadd.f32 0.0, %v1564
  %v1566 = vpop.f32.mrf.mxu0
  %1567 = vdwg.mxu0
  %v1568 = vadd.f32 %v1526, %v1539
  %v1569 = vadd.f32 %v1568, %v1552
  %v1570 = vadd.f32 %v1569, %v1565
  %1571 = vadd.xlane.f32.xlu0 %v1570
  %v1572 = vpop.xlane.xlu0 %1571
  %v1573 = vrcp.pop 512.0
  %v1574 = vmul.f32 512.0, %v1573
  %v1575 = vsub.f32 1.0, %v1574
  %v1576 = vmul.f32 %v1573, %v1575
  %v1577 = vadd.f32 %v1573, %v1576
  %vm1578 = vweird.f32 %v1573
  %v1579 = vsel %vm1578, %v1573, %v1577
  %v1580 = vmul.f32 %v1572, %v1579
  %v1581 = vmul.f32 %v1526, %v1526
  %v1582 = vmul.f32 %v1539, %v1539
  %v1583 = vmul.f32 %v1552, %v1552
  %v1584 = vmul.f32 %v1565, %v1565
  %v1585 = vadd.f32 %v1581, %v1582
  %v1586 = vadd.f32 %v1585, %v1583
  %v1587 = vadd.f32 %v1586, %v1584
  %1588 = vadd.xlane.f32.xlu0 %v1587
  %v1589 = vpop.xlane.xlu0 %1588
  %v1590 = vmul.f32 %v1589, %v1579
  %v1591 = vmul.f32 %v1580, %v1580
  %v1592 = vsub.f32 %v1590, %v1591
  %v1593 = vadd.f32 %v1592, 1e-05
  %v1594 = vrsqrt.pop %v1593
  %v1595 = vmul.f32 %v1594, %v1593
  %v1596 = vmul.f32 %v1595, %v1594
  %v1597 = vmul.f32 0.5, %v1596
  %v1598 = vsub.f32 1.5, %v1597
  %v1599 = vmul.f32 %v1594, %v1598
  %vm1600 = vweird.f32 %v1593
  %vm1601 = vweird.f32 %v1594
  %vm1602 = vmor %vm1600, %vm1601
  %v1603 = vsel %vm1602, %v1594, %v1599
  %v1604 = vsub.f32 %v1526, %v1580
  %v1605 = vsub.f32 %v1539, %v1580
  %v1606 = vsub.f32 %v1552, %v1580
  %v1607 = vsub.f32 %v1565, %v1580
  %v1608 = vmul.f32 %v1603, %v60
  %1610 = vset.pattern.permute.xlu0 1
  %1611 = vperm.xlu0 %1610, %v1608
  %v1612 = vpop.permute.xlu0 %1611
  %v1614 = vmul.f32 %v1604, %v1612
  %v1615 = vmul.f32 %v1605, %v1612
  %v1616 = vmul.f32 %v1606, %v1612
  %v1617 = vmul.f32 %v1607, %v1612
  %1618 = vset.pattern.permute.xlu0 2
  %1619 = vperm.xlu0 %1618, %v60
  %v1620 = vpop.permute.xlu0 %1619
  %v1622 = vadd.f32 %v1614, %v1620
  %v1623 = vadd.f32 %v1615, %v1620
  %v1624 = vadd.f32 %v1616, %v1620
  %v1625 = vadd.f32 %v1617, %v1620
  %vm1626 = vcmp.gt.f32.partialorder %v1622, 0.0
  %vm1627 = vcmp.gt.f32.partialorder %v1623, 0.0
  %vm1628 = vcmp.gt.f32.partialorder %v1624, 0.0
  %vm1629 = vcmp.gt.f32.partialorder %v1625, 0.0
  %1630 = vset.pattern.permute.xlu0 3
  %1631 = vperm.xlu0 %1630, %v60
  %v1632 = vpop.permute.xlu0 %1631
  %v1634 = vmul.f32 %v1632, %v1622
  %v1635 = vmul.f32 %v1632, %v1623
  %v1636 = vmul.f32 %v1632, %v1624
  %v1637 = vmul.f32 %v1632, %v1625
  %v1638 = vsel %vm1626, %v1622, %v1634
  %v1639 = vsel %vm1627, %v1623, %v1635
  %v1640 = vsel %vm1628, %v1624, %v1636
  %v1641 = vsel %vm1629, %v1625, %v1637
  %1642 = vrot.lane.b32.xlu0 %v1638, 17
  %v1643 = vpop.permute.xlu0 %1642
  %1644 = vrot.lane.b32.xlu0 %v1639, 17
  %v1645 = vpop.permute.xlu0 %1644
  %1646 = vrot.lane.b32.xlu0 %v1640, 17
  %v1647 = vpop.permute.xlu0 %1646
  %1648 = vrot.lane.b32.xlu0 %v1641, 17
  %v1649 = vpop.permute.xlu0 %1648
  %v1650 = vsel %vm306, %v1647, %v1649
  %v1651 = vsel %vm306, %v1645, %v1647
  %v1652 = vsel %vm306, %v1643, %v1645
  %v1653 = vsel %vm306, %v1649, %v1643
  %v1654 = vld [vmem:[%s2] ss:$8 sm:$0xf]
  %v1656 = vperm.slane %v1654, 0
  %v1657 = vperm.slane %v1654, 1
  %v1658 = vperm.slane %v1654, 2
  %v1659 = vperm.slane %v1654, 3
  %v1664 = vmul.f32 %v1653, %v1656
  %v1665 = vmul.f32 %v1652, %v1657
  %v1666 = vmul.f32 %v1651, %v1658
  %v1667 = vmul.f32 %v1650, %v1659
  %1668 = vrot.lane.b32.xlu0 %v1638, 16
  %v1669 = vpop.permute.xlu0 %1668
  %1670 = vrot.lane.b32.xlu0 %v1639, 16
  %v1671 = vpop.permute.xlu0 %1670
  %1672 = vrot.lane.b32.xlu0 %v1640, 16
  %v1673 = vpop.permute.xlu0 %1672
  %1674 = vrot.lane.b32.xlu0 %v1641, 16
  %v1675 = vpop.permute.xlu0 %1674
  %v1676 = vsel %vm350, %v1673, %v1675
  %v1677 = vsel %vm350, %v1671, %v1673
  %v1678 = vsel %vm350, %v1669, %v1671
  %v1679 = vsel %vm350, %v1675, %v1669
  %v1680 = vld [vmem:[%s1160] ss:$8 sm:$0xf]
  %v1682 = vperm.slane %v1680, 0
  %v1683 = vperm.slane %v1680, 1
  %v1684 = vperm.slane %v1680, 2
  %v1685 = vperm.slane %v1680, 3
  %v1690 = vmul.f32 %v1679, %v1682
  %v1691 = vmul.f32 %v1678, %v1683
  %v1692 = vmul.f32 %v1677, %v1684
  %v1693 = vmul.f32 %v1676, %v1685
  %v1694 = vpack.c.bf16 %v1665, %v1664
  %v1695 = vpack.c.bf16 %v1667, %v1666
  %v1696 = vpack.c.bf16 %v1691, %v1690
  %v1697 = vpack.c.bf16 %v1693, %v1692
  %1698 = vst [vmem:[#allocation2] sm:$0xff] %v1694
  %1699 = vst [vmem:[#allocation2 + $0x8] sm:$0xff] %v1695
  %1700 = vst [vmem:[#allocation2 + $0x10] sm:$0xff] %v1696
  %1701 = vst [vmem:[#allocation2 + $0x18] sm:$0xff] %v1697
  %1702 = vrot.lane.b32.xlu0 %v1638, 15
  %v1703 = vpop.permute.xlu0 %1702
  %1704 = vrot.lane.b32.xlu0 %v1639, 15
  %v1705 = vpop.permute.xlu0 %1704
  %1706 = vrot.lane.b32.xlu0 %v1640, 15
  %v1707 = vpop.permute.xlu0 %1706
  %1708 = vrot.lane.b32.xlu0 %v1641, 15
  %v1709 = vpop.permute.xlu0 %1708
  %v1710 = vsel %vm394, %v1707, %v1709
  %v1711 = vsel %vm394, %v1705, %v1707
  %v1712 = vsel %vm394, %v1703, %v1705
  %v1713 = vsel %vm394, %v1709, %v1703
  %v1714 = vld [vmem:[%s1195] ss:$8 sm:$0xf]
  %v1716 = vperm.slane %v1714, 0
  %v1717 = vperm.slane %v1714, 1
  %v1718 = vperm.slane %v1714, 2
  %v1719 = vperm.slane %v1714, 3
  %v1724 = vmul.f32 %v1713, %v1716
  %v1725 = vmul.f32 %v1712, %v1717
  %v1726 = vmul.f32 %v1711, %v1718
  %v1727 = vmul.f32 %v1710, %v1719
  %1728 = vrot.lane.b32.xlu0 %v1638, 1
  %v1729 = vpop.permute.xlu0 %1728
  %1730 = vrot.lane.b32.xlu0 %v1639, 1
  %v1731 = vpop.permute.xlu0 %1730
  %1732 = vrot.lane.b32.xlu0 %v1640, 1
  %v1733 = vpop.permute.xlu0 %1732
  %1734 = vrot.lane.b32.xlu0 %v1641, 1
  %v1735 = vpop.permute.xlu0 %1734
  %v1736 = vsel %vm526, %v1733, %v1735
  %v1737 = vsel %vm526, %v1731, %v1733
  %v1738 = vsel %vm526, %v1729, %v1731
  %v1739 = vsel %vm526, %v1735, %v1729
  %v1740 = vld [vmem:[%s1222] ss:$8 sm:$0xf]
  %v1742 = vperm.slane %v1740, 0
  %v1743 = vperm.slane %v1740, 1
  %v1744 = vperm.slane %v1740, 2
  %v1745 = vperm.slane %v1740, 3
  %v1750 = vmul.f32 %v1739, %v1742
  %v1751 = vmul.f32 %v1738, %v1743
  %v1752 = vmul.f32 %v1737, %v1744
  %v1753 = vmul.f32 %v1736, %v1745
  %v1754 = vpack.c.bf16 %v1725, %v1724
  %v1755 = vpack.c.bf16 %v1727, %v1726
  %v1756 = vpack.c.bf16 %v1751, %v1750
  %v1757 = vpack.c.bf16 %v1753, %v1752
  %1758 = vst [vmem:[#allocation2 + $0x20] sm:$0xff] %v1754
  %1759 = vst [vmem:[#allocation2 + $0x28] sm:$0xff] %v1755
  %1760 = vst [vmem:[#allocation2 + $0x30] sm:$0xff] %v1756
  %1761 = vst [vmem:[#allocation2 + $0x38] sm:$0xff] %v1757
  %v1762 = vld [vmem:[%s1245] ss:$8 sm:$0xf]
  %v1764 = vperm.slane %v1762, 0
  %v1765 = vperm.slane %v1762, 1
  %v1766 = vperm.slane %v1762, 2
  %v1767 = vperm.slane %v1762, 3
  %v1772 = vmul.f32 %v1638, %v1764
  %v1773 = vmul.f32 %v1639, %v1765
  %v1774 = vmul.f32 %v1640, %v1766
  %v1775 = vmul.f32 %v1641, %v1767
  %1776 = vrot.lane.b32.xlu0 %v1638, 127
  %v1777 = vpop.permute.xlu0 %1776
  %1778 = vrot.lane.b32.xlu0 %v1639, 127
  %v1779 = vpop.permute.xlu0 %1778
  %1780 = vrot.lane.b32.xlu0 %v1640, 127
  %v1781 = vpop.permute.xlu0 %1780
  %1782 = vrot.lane.b32.xlu0 %v1641, 127
  %v1783 = vpop.permute.xlu0 %1782
  %v1784 = vsel %vm594, %v1781, %v1783
  %v1785 = vsel %vm594, %v1779, %v1781
  %v1786 = vsel %vm594, %v1777, %v1779
  %v1787 = vsel %vm594, %v1783, %v1777
  %v1788 = vld [vmem:[%s1272] ss:$8 sm:$0xf]
  %v1790 = vperm.slane %v1788, 0
  %v1791 = vperm.slane %v1788, 1
  %v1792 = vperm.slane %v1788, 2
  %v1793 = vperm.slane %v1788, 3
  %v1798 = vmul.f32 %v1786, %v1790
  %v1799 = vmul.f32 %v1785, %v1791
  %v1800 = vmul.f32 %v1784, %v1792
  %v1801 = vmul.f32 %v1787, %v1793
  %v1802 = vpack.c.bf16 %v1773, %v1772
  %v1803 = vpack.c.bf16 %v1775, %v1774
  %v1804 = vpack.c.bf16 %v1799, %v1798
  %v1805 = vpack.c.bf16 %v1801, %v1800
  %1806 = vst [vmem:[#allocation2 + $0x40] sm:$0xff] %v1802
  %1807 = vst [vmem:[#allocation2 + $0x48] sm:$0xff] %v1803
  %1808 = vst [vmem:[#allocation2 + $0x50] sm:$0xff] %v1804
  %1809 = vst [vmem:[#allocation2 + $0x58] sm:$0xff] %v1805
  %1810 = vrot.lane.b32.xlu0 %v1638, 113
  %v1811 = vpop.permute.xlu0 %1810
  %1812 = vrot.lane.b32.xlu0 %v1639, 113
  %v1813 = vpop.permute.xlu0 %1812
  %1814 = vrot.lane.b32.xlu0 %v1640, 113
  %v1815 = vpop.permute.xlu0 %1814
  %1816 = vrot.lane.b32.xlu0 %v1641, 113
  %v1817 = vpop.permute.xlu0 %1816
  %v1818 = vsel %vm726, %v1815, %v1817
  %v1819 = vsel %vm726, %v1813, %v1815
  %v1820 = vsel %vm726, %v1811, %v1813
  %v1821 = vsel %vm726, %v1817, %v1811
  %v1822 = vld [vmem:[%s1307] ss:$8 sm:$0xf]
  %v1824 = vperm.slane %v1822, 0
  %v1825 = vperm.slane %v1822, 1
  %v1826 = vperm.slane %v1822, 2
  %v1827 = vperm.slane %v1822, 3
  %v1832 = vmul.f32 %v1820, %v1824
  %v1833 = vmul.f32 %v1819, %v1825
  %v1834 = vmul.f32 %v1818, %v1826
  %v1835 = vmul.f32 %v1821, %v1827
  %1836 = vrot.lane.b32.xlu0 %v1638, 112
  %v1837 = vpop.permute.xlu0 %1836
  %1838 = vrot.lane.b32.xlu0 %v1639, 112
  %v1839 = vpop.permute.xlu0 %1838
  %1840 = vrot.lane.b32.xlu0 %v1640, 112
  %v1841 = vpop.permute.xlu0 %1840
  %1842 = vrot.lane.b32.xlu0 %v1641, 112
  %v1843 = vpop.permute.xlu0 %1842
  %v1844 = vsel %vm770, %v1841, %v1843
  %v1845 = vsel %vm770, %v1839, %v1841
  %v1846 = vsel %vm770, %v1837, %v1839
  %v1847 = vsel %vm770, %v1843, %v1837
  %v1848 = vld [vmem:[%s1334] ss:$8 sm:$0xf]
  %v1850 = vperm.slane %v1848, 0
  %v1851 = vperm.slane %v1848, 1
  %v1852 = vperm.slane %v1848, 2
  %v1853 = vperm.slane %v1848, 3
  %v1858 = vmul.f32 %v1846, %v1850
  %v1859 = vmul.f32 %v1845, %v1851
  %v1860 = vmul.f32 %v1844, %v1852
  %v1861 = vmul.f32 %v1847, %v1853
  %v1862 = vpack.c.bf16 %v1833, %v1832
  %v1863 = vpack.c.bf16 %v1835, %v1834
  %v1864 = vpack.c.bf16 %v1859, %v1858
  %v1865 = vpack.c.bf16 %v1861, %v1860
  %1866 = vst [vmem:[#allocation2 + $0x60] sm:$0xff] %v1862
  %1867 = vst [vmem:[#allocation2 + $0x68] sm:$0xff] %v1863
  %1868 = vst [vmem:[#allocation2 + $0x70] sm:$0xff] %v1864
  %1869 = vst [vmem:[#allocation2 + $0x78] sm:$0xff] %v1865
  %1870 = vrot.lane.b32.xlu0 %v1638, 111
  %v1871 = vpop.permute.xlu0 %1870
  %1872 = vrot.lane.b32.xlu0 %v1639, 111
  %v1873 = vpop.permute.xlu0 %1872
  %1874 = vrot.lane.b32.xlu0 %v1640, 111
  %v1875 = vpop.permute.xlu0 %1874
  %1876 = vrot.lane.b32.xlu0 %v1641, 111
  %v1877 = vpop.permute.xlu0 %1876
  %v1878 = vsel %vm814, %v1875, %v1877
  %v1879 = vsel %vm814, %v1873, %v1875
  %v1880 = vsel %vm814, %v1871, %v1873
  %v1881 = vsel %vm814, %v1877, %v1871
  %v1882 = vld [vmem:[%s1369] ss:$8 sm:$0xf]
  %v1884 = vperm.slane %v1882, 0
  %v1885 = vperm.slane %v1882, 1
  %v1886 = vperm.slane %v1882, 2
  %v1887 = vperm.slane %v1882, 3
  %v1892 = vmul.f32 %v1880, %v1884
  %v1893 = vmul.f32 %v1879, %v1885
  %v1894 = vmul.f32 %v1878, %v1886
  %v1895 = vmul.f32 %v1881, %v1887
  %v1896 = vpack.c.bf16 %v1893, %v1892
  %v1897 = vpack.c.bf16 %v1895, %v1894
  %1898 = vst [vmem:[#allocation2 + $0x80] sm:$0xff] %v1896
  %1899 = vst [vmem:[#allocation2 + $0x88] sm:$0xff] %v1897
  %1900 = vst [vmem:[#allocation2 + $0x90] sm:$0xff] %v1386
  %1901 = vst [vmem:[#allocation2 + $0x98] sm:$0xff] %v1386
  %s1902 = scalar_lea.vmem %s3, 4
  %v1903 = vld [vmem:[%s1902] sm:$0xf]
  %v1904 = vld [vmem:[#allocation2] sm:$0xff]
  %v1905 = vld [vmem:[#allocation2 + $0x8] sm:$0xff]
  %v1906 = vld [vmem:[#allocation2 + $0x10] sm:$0xff]
  %v1907 = vld [vmem:[#allocation2 + $0x18] sm:$0xff]
  %v1908 = vld [vmem:[#allocation2 + $0x20] sm:$0xff]
  %v1909 = vld [vmem:[#allocation2 + $0x28] sm:$0xff]
  %v1910 = vld [vmem:[#allocation2 + $0x30] sm:$0xff]
  %v1911 = vld [vmem:[#allocation2 + $0x38] sm:$0xff]
  %v1912 = vld [vmem:[#allocation2 + $0x40] sm:$0xff]
  %v1913 = vld [vmem:[#allocation2 + $0x48] sm:$0xff]
  %v1914 = vld [vmem:[#allocation2 + $0x50] sm:$0xff]
  %v1915 = vld [vmem:[#allocation2 + $0x58] sm:$0xff]
  %v1916 = vld [vmem:[#allocation2 + $0x60] sm:$0xff]
  %v1917 = vld [vmem:[#allocation2 + $0x68] sm:$0xff]
  %v1918 = vld [vmem:[#allocation2 + $0x70] sm:$0xff]
  %v1919 = vld [vmem:[#allocation2 + $0x78] sm:$0xff]
  %v1920 = vld [vmem:[#allocation2 + $0x80] sm:$0xff]
  %v1921 = vld [vmem:[#allocation2 + $0x88] sm:$0xff]
  %v1922 = vld [vmem:[#allocation2 + $0x90] sm:$0xff]
  %v1923 = vld [vmem:[#allocation2 + $0x98] sm:$0xff]
  %v1944 = vunpack.c.l.b16 %v1904
  %v1945 = vunpack.c.h.b16 %v1904
  %v1946 = vunpack.c.l.b16 %v1905
  %v1947 = vunpack.c.h.b16 %v1905
  %v1948 = vunpack.c.l.b16 %v1906
  %v1949 = vunpack.c.h.b16 %v1906
  %v1950 = vunpack.c.l.b16 %v1907
  %v1951 = vunpack.c.h.b16 %v1907
  %v1952 = vunpack.c.l.b16 %v1908
  %v1953 = vunpack.c.h.b16 %v1908
  %v1954 = vunpack.c.l.b16 %v1909
  %v1955 = vunpack.c.h.b16 %v1909
  %v1956 = vunpack.c.l.b16 %v1910
  %v1957 = vunpack.c.h.b16 %v1910
  %v1958 = vunpack.c.l.b16 %v1911
  %v1959 = vunpack.c.h.b16 %v1911
  %v1960 = vunpack.c.l.b16 %v1912
  %v1961 = vunpack.c.h.b16 %v1912
  %v1962 = vunpack.c.l.b16 %v1913
  %v1963 = vunpack.c.h.b16 %v1913
  %v1964 = vunpack.c.l.b16 %v1914
  %v1965 = vunpack.c.h.b16 %v1914
  %v1966 = vunpack.c.l.b16 %v1915
  %v1967 = vunpack.c.h.b16 %v1915
  %v1968 = vunpack.c.l.b16 %v1916
  %v1969 = vunpack.c.h.b16 %v1916
  %v1970 = vunpack.c.l.b16 %v1917
  %v1971 = vunpack.c.h.b16 %v1917
  %v1972 = vunpack.c.l.b16 %v1918
  %v1973 = vunpack.c.h.b16 %v1918
  %v1974 = vunpack.c.l.b16 %v1919
  %v1975 = vunpack.c.h.b16 %v1919
  %v1976 = vunpack.c.l.b16 %v1920
  %v1977 = vunpack.c.h.b16 %v1920
  %v1978 = vunpack.c.l.b16 %v1921
  %v1979 = vunpack.c.h.b16 %v1921
  %v1980 = vunpack.c.l.b16 %v1922
  %v1981 = vunpack.c.h.b16 %v1922
  %v1982 = vunpack.c.l.b16 %v1923
  %v1983 = vunpack.c.h.b16 %v1923
  %v1984 = vpack.c.b16 %v1948, %v1944
  %v1985 = vpack.c.b16 %v1949, %v1945
  %v1986 = vpack.c.b16 %v1950, %v1946
  %v1987 = vpack.c.b16 %v1951, %v1947
  %v1988 = vpack.c.b16 %v1956, %v1952
  %v1989 = vpack.c.b16 %v1957, %v1953
  %v1990 = vpack.c.b16 %v1958, %v1954
  %v1991 = vpack.c.b16 %v1959, %v1955
  %v1992 = vpack.c.b16 %v1964, %v1960
  %v1993 = vpack.c.b16 %v1965, %v1961
  %v1994 = vpack.c.b16 %v1966, %v1962
  %v1995 = vpack.c.b16 %v1967, %v1963
  %v1996 = vpack.c.b16 %v1972, %v1968
  %v1997 = vpack.c.b16 %v1973, %v1969
  %v1998 = vpack.c.b16 %v1974, %v1970
  %v1999 = vpack.c.b16 %v1975, %v1971
  %v2000 = vpack.c.b16 %v1980, %v1976
  %v2001 = vpack.c.b16 %v1981, %v1977
  %v2002 = vpack.c.b16 %v1982, %v1978
  %v2003 = vpack.c.b16 %v1983, %v1979
  %v2025 = vsel %vm1512, %v1903, 0
  %2027 = vmatpush.bf16.msra.mxu0 0
  %2028 = vmatpush.bf16.msra.mxu0 0
  %2029 = vmatpush.bf16.msra.mxu0 0
  %2030 = vmatpush.bf16.msra.mxu0 %v2000
  %2031 = vmatpush.bf16.msra.mxu0 %v1996
  %2032 = vmatpush.bf16.msra.mxu0 %v1992
  %2033 = vmatpush.bf16.msra.mxu0 %v1988
  %2034 = vmatpush.bf16.msra.mxu0 %v1984
  %2035 = vmatmul.bf16.gmra.mxu0 %v2025
  %v2036 = vpop.f32.mrf.mxu0
  %v2037 = vadd.f32 0.0, %v2036
  %v2038 = vpop.f32.mrf.mxu0
  %2039 = vdwg.mxu0
  %2040 = vmatpush.bf16.msra.mxu0 0
  %2041 = vmatpush.bf16.msra.mxu0 0
  %2042 = vmatpush.bf16.msra.mxu0 0
  %2043 = vmatpush.bf16.msra.mxu0 %v2001
  %2044 = vmatpush.bf16.msra.mxu0 %v1997
  %2045 = vmatpush.bf16.msra.mxu0 %v1993
  %2046 = vmatpush.bf16.msra.mxu0 %v1989
  %2047 = vmatpush.bf16.msra.mxu0 %v1985
  %2048 = vmatmul.bf16.gmra.mxu0 %v2025
  %v2049 = vpop.f32.mrf.mxu0
  %v2050 = vadd.f32 0.0, %v2049
  %v2051 = vpop.f32.mrf.mxu0
  %2052 = vdwg.mxu0
  %2053 = vmatpush.bf16.msra.mxu0 0
  %2054 = vmatpush.bf16.msra.mxu0 0
  %2055 = vmatpush.bf16.msra.mxu0 0
  %2056 = vmatpush.bf16.msra.mxu0 %v2002
  %2057 = vmatpush.bf16.msra.mxu0 %v1998
  %2058 = vmatpush.bf16.msra.mxu0 %v1994
  %2059 = vmatpush.bf16.msra.mxu0 %v1990
  %2060 = vmatpush.bf16.msra.mxu0 %v1986
  %2061 = vmatmul.bf16.gmra.mxu0 %v2025
  %v2062 = vpop.f32.mrf.mxu0
  %v2063 = vadd.f32 0.0, %v2062
  %v2064 = vpop.f32.mrf.mxu0
  %2065 = vdwg.mxu0
  %2066 = vmatpush.bf16.msra.mxu0 0
  %2067 = vmatpush.bf16.msra.mxu0 0
  %2068 = vmatpush.bf16.msra.mxu0 0
  %2069 = vmatpush.bf16.msra.mxu0 %v2003
  %2070 = vmatpush.bf16.msra.mxu0 %v1999
  %2071 = vmatpush.bf16.msra.mxu0 %v1995
  %2072 = vmatpush.bf16.msra.mxu0 %v1991
  %2073 = vmatpush.bf16.msra.mxu0 %v1987
  %2074 = vmatmul.bf16.gmra.mxu0 %v2025
  %v2075 = vpop.f32.mrf.mxu0
  %v2076 = vadd.f32 0.0, %v2075
  %v2077 = vpop.f32.mrf.mxu0
  %2078 = vdwg.mxu0
  %v2079 = vadd.f32 %v2037, %v2050
  %v2080 = vadd.f32 %v2079, %v2063
  %v2081 = vadd.f32 %v2080, %v2076
  %2082 = vadd.xlane.f32.xlu0 %v2081
  %v2083 = vpop.xlane.xlu0 %2082
  %v2084 = vmul.f32 %v2083, %v1579
  %v2085 = vmul.f32 %v2037, %v2037
  %v2086 = vmul.f32 %v2050, %v2050
  %v2087 = vmul.f32 %v2063, %v2063
  %v2088 = vmul.f32 %v2076, %v2076
  %v2089 = vadd.f32 %v2085, %v2086
  %v2090 = vadd.f32 %v2089, %v2087
  %v2091 = vadd.f32 %v2090, %v2088
  %2092 = vadd.xlane.f32.xlu0 %v2091
  %v2093 = vpop.xlane.xlu0 %2092
  %v2094 = vmul.f32 %v2093, %v1579
  %v2095 = vmul.f32 %v2084, %v2084
  %v2096 = vsub.f32 %v2094, %v2095
  %v2097 = vadd.f32 %v2096, 1e-05
  %v2098 = vrsqrt.pop %v2097
  %v2099 = vmul.f32 %v2098, %v2097
  %v2100 = vmul.f32 %v2099, %v2098
  %v2101 = vmul.f32 0.5, %v2100
  %v2102 = vsub.f32 1.5, %v2101
  %v2103 = vmul.f32 %v2098, %v2102
  %vm2104 = vweird.f32 %v2097
  %vm2105 = vweird.f32 %v2098
  %vm2106 = vmor %vm2104, %vm2105
  %v2107 = vsel %vm2106, %v2098, %v2103
  %v2108 = vsub.f32 %v2037, %v2084
  %v2109 = vsub.f32 %v2050, %v2084
  %v2110 = vsub.f32 %v2063, %v2084
  %v2111 = vsub.f32 %v2076, %v2084
  %v2112 = vmul.f32 %v2107, %v60
  %2114 = vset.pattern.permute.xlu0 4
  %2115 = vperm.xlu0 %2114, %v2112
  %v2116 = vpop.permute.xlu0 %2115
  %v2118 = vmul.f32 %v2108, %v2116
  %v2119 = vmul.f32 %v2109, %v2116
  %v2120 = vmul.f32 %v2110, %v2116
  %v2121 = vmul.f32 %v2111, %v2116
  %2122 = vset.pattern.permute.xlu0 5
  %2123 = vperm.xlu0 %2122, %v60
  %v2124 = vpop.permute.xlu0 %2123
  %v2126 = vadd.f32 %v2118, %v2124
  %v2127 = vadd.f32 %v2119, %v2124
  %v2128 = vadd.f32 %v2120, %v2124
  %v2129 = vadd.f32 %v2121, %v2124
  %v2130 = vadd.f32 %v1118, %v2126
  %v2131 = vadd.f32 %v1119, %v2127
  %v2132 = vadd.f32 %v1120, %v2128
  %v2133 = vadd.f32 %v1121, %v2129
  %v2134 = vld [vmem:[%s4] sm:$0xff]
  %2135 = vrot.lane.b32.xlu0 %v2130, 17
  %v2136 = vpop.permute.xlu0 %2135
  %2137 = vrot.lane.b32.xlu0 %v2131, 17
  %v2138 = vpop.permute.xlu0 %2137
  %2139 = vrot.lane.b32.xlu0 %v2132, 17
  %v2140 = vpop.permute.xlu0 %2139
  %2141 = vrot.lane.b32.xlu0 %v2133, 17
  %v2142 = vpop.permute.xlu0 %2141
  %v2143 = vsel %vm306, %v2140, %v2142
  %v2144 = vsel %vm306, %v2138, %v2140
  %v2145 = vsel %vm306, %v2136, %v2138
  %v2146 = vsel %vm306, %v2142, %v2136
  %v2147 = vld [vmem:[%s2] ss:$8 sm:$0xf]
  %v2149 = vperm.slane %v2147, 0
  %v2150 = vperm.slane %v2147, 1
  %v2151 = vperm.slane %v2147, 2
  %v2152 = vperm.slane %v2147, 3
  %v2157 = vmul.f32 %v2146, %v2149
  %v2158 = vmul.f32 %v2145, %v2150
  %v2159 = vmul.f32 %v2144, %v2151
  %v2160 = vmul.f32 %v2143, %v2152
  %2161 = vrot.lane.b32.xlu0 %v2130, 16
  %v2162 = vpop.permute.xlu0 %2161
  %2163 = vrot.lane.b32.xlu0 %v2131, 16
  %v2164 = vpop.permute.xlu0 %2163
  %2165 = vrot.lane.b32.xlu0 %v2132, 16
  %v2166 = vpop.permute.xlu0 %2165
  %2167 = vrot.lane.b32.xlu0 %v2133, 16
  %v2168 = vpop.permute.xlu0 %2167
  %v2169 = vsel %vm350, %v2166, %v2168
  %v2170 = vsel %vm350, %v2164, %v2166
  %v2171 = vsel %vm350, %v2162, %v2164
  %v2172 = vsel %vm350, %v2168, %v2162
  %v2173 = vld [vmem:[%s1160] ss:$8 sm:$0xf]
  %v2175 = vperm.slane %v2173, 0
  %v2176 = vperm.slane %v2173, 1
  %v2177 = vperm.slane %v2173, 2
  %v2178 = vperm.slane %v2173, 3
  %v2183 = vmul.f32 %v2172, %v2175
  %v2184 = vmul.f32 %v2171, %v2176
  %v2185 = vmul.f32 %v2170, %v2177
  %v2186 = vmul.f32 %v2169, %v2178
  %v2187 = vpack.c.bf16 %v2158, %v2157
  %v2188 = vpack.c.bf16 %v2160, %v2159
  %v2189 = vpack.c.bf16 %v2184, %v2183
  %v2190 = vpack.c.bf16 %v2186, %v2185
  %2191 = vst [vmem:[#allocation2] sm:$0xff] %v2187
  %2192 = vst [vmem:[#allocation2 + $0x8] sm:$0xff] %v2188
  %2193 = vst [vmem:[#allocation2 + $0x10] sm:$0xff] %v2189
  %2194 = vst [vmem:[#allocation2 + $0x18] sm:$0xff] %v2190
  %2195 = vrot.lane.b32.xlu0 %v2130, 15
  %v2196 = vpop.permute.xlu0 %2195
  %2197 = vrot.lane.b32.xlu0 %v2131, 15
  %v2198 = vpop.permute.xlu0 %2197
  %2199 = vrot.lane.b32.xlu0 %v2132, 15
  %v2200 = vpop.permute.xlu0 %2199
  %2201 = vrot.lane.b32.xlu0 %v2133, 15
  %v2202 = vpop.permute.xlu0 %2201
  %v2203 = vsel %vm394, %v2200, %v2202
  %v2204 = vsel %vm394, %v2198, %v2200
  %v2205 = vsel %vm394, %v2196, %v2198
  %v2206 = vsel %vm394, %v2202, %v2196
  %v2207 = vld [vmem:[%s1195] ss:$8 sm:$0xf]
  %v2209 = vperm.slane %v2207, 0
  %v2210 = vperm.slane %v2207, 1
  %v2211 = vperm.slane %v2207, 2
  %v2212 = vperm.slane %v2207, 3
  %v2217 = vmul.f32 %v2206, %v2209
  %v2218 = vmul.f32 %v2205, %v2210
  %v2219 = vmul.f32 %v2204, %v2211
  %v2220 = vmul.f32 %v2203, %v2212
  %2221 = vrot.lane.b32.xlu0 %v2130, 1
  %v2222 = vpop.permute.xlu0 %2221
  %2223 = vrot.lane.b32.xlu0 %v2131, 1
  %v2224 = vpop.permute.xlu0 %2223
  %2225 = vrot.lane.b32.xlu0 %v2132, 1
  %v2226 = vpop.permute.xlu0 %2225
  %2227 = vrot.lane.b32.xlu0 %v2133, 1
  %v2228 = vpop.permute.xlu0 %2227
  %v2229 = vsel %vm526, %v2226, %v2228
  %v2230 = vsel %vm526, %v2224, %v2226
  %v2231 = vsel %vm526, %v2222, %v2224
  %v2232 = vsel %vm526, %v2228, %v2222
  %v2233 = vld [vmem:[%s1222] ss:$8 sm:$0xf]
  %v2235 = vperm.slane %v2233, 0
  %v2236 = vperm.slane %v2233, 1
  %v2237 = vperm.slane %v2233, 2
  %v2238 = vperm.slane %v2233, 3
  %v2243 = vmul.f32 %v2232, %v2235
  %v2244 = vmul.f32 %v2231, %v2236
  %v2245 = vmul.f32 %v2230, %v2237
  %v2246 = vmul.f32 %v2229, %v2238
  %v2247 = vpack.c.bf16 %v2218, %v2217
  %v2248 = vpack.c.bf16 %v2220, %v2219
  %v2249 = vpack.c.bf16 %v2244, %v2243
  %v2250 = vpack.c.bf16 %v2246, %v2245
  %2251 = vst [vmem:[#allocation2 + $0x20] sm:$0xff] %v2247
  %2252 = vst [vmem:[#allocation2 + $0x28] sm:$0xff] %v2248
  %2253 = vst [vmem:[#allocation2 + $0x30] sm:$0xff] %v2249
  %2254 = vst [vmem:[#allocation2 + $0x38] sm:$0xff] %v2250
  %v2255 = vld [vmem:[%s1245] ss:$8 sm:$0xf]
  %v2257 = vperm.slane %v2255, 0
  %v2258 = vperm.slane %v2255, 1
  %v2259 = vperm.slane %v2255, 2
  %v2260 = vperm.slane %v2255, 3
  %v2265 = vmul.f32 %v2130, %v2257
  %v2266 = vmul.f32 %v2131, %v2258
  %v2267 = vmul.f32 %v2132, %v2259
  %v2268 = vmul.f32 %v2133, %v2260
  %2269 = vrot.lane.b32.xlu0 %v2130, 127
  %v2270 = vpop.permute.xlu0 %2269
  %2271 = vrot.lane.b32.xlu0 %v2131, 127
  %v2272 = vpop.permute.xlu0 %2271
  %2273 = vrot.lane.b32.xlu0 %v2132, 127
  %v2274 = vpop.permute.xlu0 %2273
  %2275 = vrot.lane.b32.xlu0 %v2133, 127
  %v2276 = vpop.permute.xlu0 %2275
  %v2277 = vsel %vm594, %v2274, %v2276
  %v2278 = vsel %vm594, %v2272, %v2274
  %v2279 = vsel %vm594, %v2270, %v2272
  %v2280 = vsel %vm594, %v2276, %v2270
  %v2281 = vld [vmem:[%s1272] ss:$8 sm:$0xf]
  %v2283 = vperm.slane %v2281, 0
  %v2284 = vperm.slane %v2281, 1
  %v2285 = vperm.slane %v2281, 2
  %v2286 = vperm.slane %v2281, 3
  %v2291 = vmul.f32 %v2279, %v2283
  %v2292 = vmul.f32 %v2278, %v2284
  %v2293 = vmul.f32 %v2277, %v2285
  %v2294 = vmul.f32 %v2280, %v2286
  %v2295 = vpack.c.bf16 %v2266, %v2265
  %v2296 = vpack.c.bf16 %v2268, %v2267
  %v2297 = vpack.c.bf16 %v2292, %v2291
  %v2298 = vpack.c.bf16 %v2294, %v2293
  %2299 = vst [vmem:[#allocation2 + $0x40] sm:$0xff] %v2295
  %2300 = vst [vmem:[#allocation2 + $0x48] sm:$0xff] %v2296
  %2301 = vst [vmem:[#allocation2 + $0x50] sm:$0xff] %v2297
  %2302 = vst [vmem:[#allocation2 + $0x58] sm:$0xff] %v2298
  %2303 = vrot.lane.b32.xlu0 %v2130, 113
  %v2304 = vpop.permute.xlu0 %2303
  %2305 = vrot.lane.b32.xlu0 %v2131, 113
  %v2306 = vpop.permute.xlu0 %2305
  %2307 = vrot.lane.b32.xlu0 %v2132, 113
  %v2308 = vpop.permute.xlu0 %2307
  %2309 = vrot.lane.b32.xlu0 %v2133, 113
  %v2310 = vpop.permute.xlu0 %2309
  %v2311 = vsel %vm726, %v2308, %v2310
  %v2312 = vsel %vm726, %v2306, %v2308
  %v2313 = vsel %vm726, %v2304, %v2306
  %v2314 = vsel %vm726, %v2310, %v2304
  %v2315 = vld [vmem:[%s1307] ss:$8 sm:$0xf]
  %v2317 = vperm.slane %v2315, 0
  %v2318 = vperm.slane %v2315, 1
  %v2319 = vperm.slane %v2315, 2
  %v2320 = vperm.slane %v2315, 3
  %v2325 = vmul.f32 %v2313, %v2317
  %v2326 = vmul.f32 %v2312, %v2318
  %v2327 = vmul.f32 %v2311, %v2319
  %v2328 = vmul.f32 %v2314, %v2320
  %2329 = vrot.lane.b32.xlu0 %v2130, 112
  %v2330 = vpop.permute.xlu0 %2329
  %2331 = vrot.lane.b32.xlu0 %v2131, 112
  %v2332 = vpop.permute.xlu0 %2331
  %2333 = vrot.lane.b32.xlu0 %v2132, 112
  %v2334 = vpop.permute.xlu0 %2333
  %2335 = vrot.lane.b32.xlu0 %v2133, 112
  %v2336 = vpop.permute.xlu0 %2335
  %v2337 = vsel %vm770, %v2334, %v2336
  %v2338 = vsel %vm770, %v2332, %v2334
  %v2339 = vsel %vm770, %v2330, %v2332
  %v2340 = vsel %vm770, %v2336, %v2330
  %v2341 = vld [vmem:[%s1334] ss:$8 sm:$0xf]
  %v2343 = vperm.slane %v2341, 0
  %v2344 = vperm.slane %v2341, 1
  %v2345 = vperm.slane %v2341, 2
  %v2346 = vperm.slane %v2341, 3
  %v2351 = vmul.f32 %v2339, %v2343
  %v2352 = vmul.f32 %v2338, %v2344
  %v2353 = vmul.f32 %v2337, %v2345
  %v2354 = vmul.f32 %v2340, %v2346
  %v2355 = vpack.c.bf16 %v2326, %v2325
  %v2356 = vpack.c.bf16 %v2328, %v2327
  %v2357 = vpack.c.bf16 %v2352, %v2351
  %v2358 = vpack.c.bf16 %v2354, %v2353
  %2359 = vst [vmem:[#allocation2 + $0x60] sm:$0xff] %v2355
  %2360 = vst [vmem:[#allocation2 + $0x68] sm:$0xff] %v2356
  %2361 = vst [vmem:[#allocation2 + $0x70] sm:$0xff] %v2357
  %2362 = vst [vmem:[#allocation2 + $0x78] sm:$0xff] %v2358
  %2363 = vrot.lane.b32.xlu0 %v2130, 111
  %v2364 = vpop.permute.xlu0 %2363
  %2365 = vrot.lane.b32.xlu0 %v2131, 111
  %v2366 = vpop.permute.xlu0 %2365
  %2367 = vrot.lane.b32.xlu0 %v2132, 111
  %v2368 = vpop.permute.xlu0 %2367
  %2369 = vrot.lane.b32.xlu0 %v2133, 111
  %v2370 = vpop.permute.xlu0 %2369
  %v2371 = vsel %vm814, %v2368, %v2370
  %v2372 = vsel %vm814, %v2366, %v2368
  %v2373 = vsel %vm814, %v2364, %v2366
  %v2374 = vsel %vm814, %v2370, %v2364
  %v2375 = vld [vmem:[%s1369] ss:$8 sm:$0xf]
  %v2377 = vperm.slane %v2375, 0
  %v2378 = vperm.slane %v2375, 1
  %v2379 = vperm.slane %v2375, 2
  %v2380 = vperm.slane %v2375, 3
  %v2385 = vmul.f32 %v2373, %v2377
  %v2386 = vmul.f32 %v2372, %v2378
  %v2387 = vmul.f32 %v2371, %v2379
  %v2388 = vmul.f32 %v2374, %v2380
  %v2389 = vpack.c.bf16 %v2386, %v2385
  %v2390 = vpack.c.bf16 %v2388, %v2387
  %2391 = vst [vmem:[#allocation2 + $0x80] sm:$0xff] %v2389
  %2392 = vst [vmem:[#allocation2 + $0x88] sm:$0xff] %v2390
  %2393 = vst [vmem:[#allocation2 + $0x90] sm:$0xff] %v1386
  %2394 = vst [vmem:[#allocation2 + $0x98] sm:$0xff] %v1386
  %s2395 = scalar_lea.vmem %s3, 8
  %v2396 = vld [vmem:[%s2395] sm:$0xf]
  %v2397 = vld [vmem:[#allocation2] sm:$0xff]
  %v2398 = vld [vmem:[#allocation2 + $0x8] sm:$0xff]
  %v2399 = vld [vmem:[#allocation2 + $0x10] sm:$0xff]
  %v2400 = vld [vmem:[#allocation2 + $0x18] sm:$0xff]
  %v2401 = vld [vmem:[#allocation2 + $0x20] sm:$0xff]
  %v2402 = vld [vmem:[#allocation2 + $0x28] sm:$0xff]
  %v2403 = vld [vmem:[#allocation2 + $0x30] sm:$0xff]
  %v2404 = vld [vmem:[#allocation2 + $0x38] sm:$0xff]
  %v2405 = vld [vmem:[#allocation2 + $0x40] sm:$0xff]
  %v2406 = vld [vmem:[#allocation2 + $0x48] sm:$0xff]
  %v2407 = vld [vmem:[#allocation2 + $0x50] sm:$0xff]
  %v2408 = vld [vmem:[#allocation2 + $0x58] sm:$0xff]
  %v2409 = vld [vmem:[#allocation2 + $0x60] sm:$0xff]
  %v2410 = vld [vmem:[#allocation2 + $0x68] sm:$0xff]
  %v2411 = vld [vmem:[#allocation2 + $0x70] sm:$0xff]
  %v2412 = vld [vmem:[#allocation2 + $0x78] sm:$0xff]
  %v2413 = vld [vmem:[#allocation2 + $0x80] sm:$0xff]
  %v2414 = vld [vmem:[#allocation2 + $0x88] sm:$0xff]
  %v2415 = vld [vmem:[#allocation2 + $0x90] sm:$0xff]
  %v2416 = vld [vmem:[#allocation2 + $0x98] sm:$0xff]
  %v2437 = vunpack.c.l.b16 %v2397
  %v2438 = vunpack.c.h.b16 %v2397
  %v2439 = vunpack.c.l.b16 %v2398
  %v2440 = vunpack.c.h.b16 %v2398
  %v2441 = vunpack.c.l.b16 %v2399
  %v2442 = vunpack.c.h.b16 %v2399
  %v2443 = vunpack.c.l.b16 %v2400
  %v2444 = vunpack.c.h.b16 %v2400
  %v2445 = vunpack.c.l.b16 %v2401
  %v2446 = vunpack.c.h.b16 %v2401
  %v2447 = vunpack.c.l.b16 %v2402
  %v2448 = vunpack.c.h.b16 %v2402
  %v2449 = vunpack.c.l.b16 %v2403
  %v2450 = vunpack.c.h.b16 %v2403
  %v2451 = vunpack.c.l.b16 %v2404
  %v2452 = vunpack.c.h.b16 %v2404
  %v2453 = vunpack.c.l.b16 %v2405
  %v2454 = vunpack.c.h.b16 %v2405
  %v2455 = vunpack.c.l.b16 %v2406
  %v2456 = vunpack.c.h.b16 %v2406
  %v2457 = vunpack.c.l.b16 %v2407
  %v2458 = vunpack.c.h.b16 %v2407
  %v2459 = vunpack.c.l.b16 %v2408
  %v2460 = vunpack.c.h.b16 %v2408
  %v2461 = vunpack.c.l.b16 %v2409
  %v2462 = vunpack.c.h.b16 %v2409
  %v2463 = vunpack.c.l.b16 %v2410
  %v2464 = vunpack.c.h.b16 %v2410
  %v2465 = vunpack.c.l.b16 %v2411
  %v2466 = vunpack.c.h.b16 %v2411
  %v2467 = vunpack.c.l.b16 %v2412
  %v2468 = vunpack.c.h.b16 %v2412
  %v2469 = vunpack.c.l.b16 %v2413
  %v2470 = vunpack.c.h.b16 %v2413
  %v2471 = vunpack.c.l.b16 %v2414
  %v2472 = vunpack.c.h.b16 %v2414
  %v2473 = vunpack.c.l.b16 %v2415
  %v2474 = vunpack.c.h.b16 %v2415
  %v2475 = vunpack.c.l.b16 %v2416
  %v2476 = vunpack.c.h.b16 %v2416
  %v2477 = vpack.c.b16 %v2441, %v2437
  %v2478 = vpack.c.b16 %v2442, %v2438
  %v2479 = vpack.c.b16 %v2443, %v2439
  %v2480 = vpack.c.b16 %v2444, %v2440
  %v2481 = vpack.c.b16 %v2449, %v2445
  %v2482 = vpack.c.b16 %v2450, %v2446
  %v2483 = vpack.c.b16 %v2451, %v2447
  %v2484 = vpack.c.b16 %v2452, %v2448
  %v2485 = vpack.c.b16 %v2457, %v2453
  %v2486 = vpack.c.b16 %v2458, %v2454
  %v2487 = vpack.c.b16 %v2459, %v2455
  %v2488 = vpack.c.b16 %v2460, %v2456
  %v2489 = vpack.c.b16 %v2465, %v2461
  %v2490 = vpack.c.b16 %v2466, %v2462
  %v2491 = vpack.c.b16 %v2467, %v2463
  %v2492 = vpack.c.b16 %v2468, %v2464
  %v2493 = vpack.c.b16 %v2473, %v2469
  %v2494 = vpack.c.b16 %v2474, %v2470
  %v2495 = vpack.c.b16 %v2475, %v2471
  %v2496 = vpack.c.b16 %v2476, %v2472
  %v2518 = vsel %vm1512, %v2396, 0
  %2520 = vmatpush.bf16.msra.mxu0 0
  %2521 = vmatpush.bf16.msra.mxu0 0
  %2522 = vmatpush.bf16.msra.mxu0 0
  %2523 = vmatpush.bf16.msra.mxu0 %v2493
  %2524 = vmatpush.bf16.msra.mxu0 %v2489
  %2525 = vmatpush.bf16.msra.mxu0 %v2485
  %2526 = vmatpush.bf16.msra.mxu0 %v2481
  %2527 = vmatpush.bf16.msra.mxu0 %v2477
  %2528 = vmatmul.bf16.gmra.mxu0 %v2518
  %v2529 = vpop.f32.mrf.mxu0
  %v2530 = vadd.f32 0.0, %v2529
  %v2531 = vpop.f32.mrf.mxu0
  %2532 = vdwg.mxu0
  %2533 = vmatpush.bf16.msra.mxu0 0
  %2534 = vmatpush.bf16.msra.mxu0 0
  %2535 = vmatpush.bf16.msra.mxu0 0
  %2536 = vmatpush.bf16.msra.mxu0 %v2494
  %2537 = vmatpush.bf16.msra.mxu0 %v2490
  %2538 = vmatpush.bf16.msra.mxu0 %v2486
  %2539 = vmatpush.bf16.msra.mxu0 %v2482
  %2540 = vmatpush.bf16.msra.mxu0 %v2478
  %2541 = vmatmul.bf16.gmra.mxu0 %v2518
  %v2542 = vpop.f32.mrf.mxu0
  %v2543 = vadd.f32 0.0, %v2542
  %v2544 = vpop.f32.mrf.mxu0
  %2545 = vdwg.mxu0
  %2546 = vmatpush.bf16.msra.mxu0 0
  %2547 = vmatpush.bf16.msra.mxu0 0
  %2548 = vmatpush.bf16.msra.mxu0 0
  %2549 = vmatpush.bf16.msra.mxu0 %v2495
  %2550 = vmatpush.bf16.msra.mxu0 %v2491
  %2551 = vmatpush.bf16.msra.mxu0 %v2487
  %2552 = vmatpush.bf16.msra.mxu0 %v2483
  %2553 = vmatpush.bf16.msra.mxu0 %v2479
  %2554 = vmatmul.bf16.gmra.mxu0 %v2518
  %v2555 = vpop.f32.mrf.mxu0
  %v2556 = vadd.f32 0.0, %v2555
  %v2557 = vpop.f32.mrf.mxu0
  %2558 = vdwg.mxu0
  %2559 = vmatpush.bf16.msra.mxu0 0
  %2560 = vmatpush.bf16.msra.mxu0 0
  %2561 = vmatpush.bf16.msra.mxu0 0
  %2562 = vmatpush.bf16.msra.mxu0 %v2496
  %2563 = vmatpush.bf16.msra.mxu0 %v2492
  %2564 = vmatpush.bf16.msra.mxu0 %v2488
  %2565 = vmatpush.bf16.msra.mxu0 %v2484
  %2566 = vmatpush.bf16.msra.mxu0 %v2480
  %2567 = vmatmul.bf16.gmra.mxu0 %v2518
  %v2568 = vpop.f32.mrf.mxu0
  %v2569 = vadd.f32 0.0, %v2568
  %v2570 = vpop.f32.mrf.mxu0
  %2571 = vdwg.mxu0
  %v2572 = vadd.f32 %v2530, %v2543
  %v2573 = vadd.f32 %v2572, %v2556
  %v2574 = vadd.f32 %v2573, %v2569
  %2575 = vadd.xlane.f32.xlu0 %v2574
  %v2576 = vpop.xlane.xlu0 %2575
  %v2577 = vmul.f32 %v2576, %v1579
  %v2578 = vmul.f32 %v2530, %v2530
  %v2579 = vmul.f32 %v2543, %v2543
  %v2580 = vmul.f32 %v2556, %v2556
  %v2581 = vmul.f32 %v2569, %v2569
  %v2582 = vadd.f32 %v2578, %v2579
  %v2583 = vadd.f32 %v2582, %v2580
  %v2584 = vadd.f32 %v2583, %v2581
  %2585 = vadd.xlane.f32.xlu0 %v2584
  %v2586 = vpop.xlane.xlu0 %2585
  %v2587 = vmul.f32 %v2586, %v1579
  %v2588 = vmul.f32 %v2577, %v2577
  %v2589 = vsub.f32 %v2587, %v2588
  %v2590 = vadd.f32 %v2589, 1e-05
  %v2591 = vrsqrt.pop %v2590
  %v2592 = vmul.f32 %v2591, %v2590
  %v2593 = vmul.f32 %v2592, %v2591
  %v2594 = vmul.f32 0.5, %v2593
  %v2595 = vsub.f32 1.5, %v2594
  %v2596 = vmul.f32 %v2591, %v2595
  %vm2597 = vweird.f32 %v2590
  %vm2598 = vweird.f32 %v2591
  %vm2599 = vmor %vm2597, %vm2598
  %v2600 = vsel %vm2599, %v2591, %v2596
  %v2601 = vsub.f32 %v2530, %v2577
  %v2602 = vsub.f32 %v2543, %v2577
  %v2603 = vsub.f32 %v2556, %v2577
  %v2604 = vsub.f32 %v2569, %v2577
  %v2605 = vmul.f32 %v2600, %v2134
  %2607 = vset.pattern.permute.xlu0 6
  %2608 = vperm.xlu0 %2607, %v2605
  %v2609 = vpop.permute.xlu0 %2608
  %v2611 = vmul.f32 %v2601, %v2609
  %v2612 = vmul.f32 %v2602, %v2609
  %v2613 = vmul.f32 %v2603, %v2609
  %v2614 = vmul.f32 %v2604, %v2609
  %2616 = vset.pattern.permute.xlu0 7
  %2617 = vperm.xlu0 %2616, %v2134
  %v2618 = vpop.permute.xlu0 %2617
  %v2620 = vadd.f32 %v2611, %v2618
  %v2621 = vadd.f32 %v2612, %v2618
  %v2622 = vadd.f32 %v2613, %v2618
  %v2623 = vadd.f32 %v2614, %v2618
  %vm2624 = vcmp.gt.f32.partialorder %v2620, 0.0
  %vm2625 = vcmp.gt.f32.partialorder %v2621, 0.0
  %vm2626 = vcmp.gt.f32.partialorder %v2622, 0.0
  %vm2627 = vcmp.gt.f32.partialorder %v2623, 0.0
  %2628 = vset.pattern.permute.xlu0 8
  %2629 = vperm.xlu0 %2628, %v2134
  %v2630 = vpop.permute.xlu0 %2629
  %v2632 = vmul.f32 %v2630, %v2620
  %v2633 = vmul.f32 %v2630, %v2621
  %v2634 = vmul.f32 %v2630, %v2622
  %v2635 = vmul.f32 %v2630, %v2623
  %v2636 = vsel %vm2624, %v2620, %v2632
  %v2637 = vsel %vm2625, %v2621, %v2633
  %v2638 = vsel %vm2626, %v2622, %v2634
  %v2639 = vsel %vm2627, %v2623, %v2635
  %2640 = vrot.lane.b32.xlu0 %v2636, 17
  %v2641 = vpop.permute.xlu0 %2640
  %2642 = vrot.lane.b32.xlu0 %v2637, 17
  %v2643 = vpop.permute.xlu0 %2642
  %2644 = vrot.lane.b32.xlu0 %v2638, 17
  %v2645 = vpop.permute.xlu0 %2644
  %2646 = vrot.lane.b32.xlu0 %v2639, 17
  %v2647 = vpop.permute.xlu0 %2646
  %v2648 = vsel %vm306, %v2645, %v2647
  %v2649 = vsel %vm306, %v2643, %v2645
  %v2650 = vsel %vm306, %v2641, %v2643
  %v2651 = vsel %vm306, %v2647, %v2641
  %v2652 = vld [vmem:[%s2] ss:$8 sm:$0xf]
  %v2654 = vperm.slane %v2652, 0
  %v2655 = vperm.slane %v2652, 1
  %v2656 = vperm.slane %v2652, 2
  %v2657 = vperm.slane %v2652, 3
  %v2662 = vmul.f32 %v2651, %v2654
  %v2663 = vmul.f32 %v2650, %v2655
  %v2664 = vmul.f32 %v2649, %v2656
  %v2665 = vmul.f32 %v2648, %v2657
  %2666 = vrot.lane.b32.xlu0 %v2636, 16
  %v2667 = vpop.permute.xlu0 %2666
  %2668 = vrot.lane.b32.xlu0 %v2637, 16
  %v2669 = vpop.permute.xlu0 %2668
  %2670 = vrot.lane.b32.xlu0 %v2638, 16
  %v2671 = vpop.permute.xlu0 %2670
  %2672 = vrot.lane.b32.xlu0 %v2639, 16
  %v2673 = vpop.permute.xlu0 %2672
  %v2674 = vsel %vm350, %v2671, %v2673
  %v2675 = vsel %vm350, %v2669, %v2671
  %v2676 = vsel %vm350, %v2667, %v2669
  %v2677 = vsel %vm350, %v2673, %v2667
  %v2678 = vld [vmem:[%s1160] ss:$8 sm:$0xf]
  %v2680 = vperm.slane %v2678, 0
  %v2681 = vperm.slane %v2678, 1
  %v2682 = vperm.slane %v2678, 2
  %v2683 = vperm.slane %v2678, 3
  %v2688 = vmul.f32 %v2677, %v2680
  %v2689 = vmul.f32 %v2676, %v2681
  %v2690 = vmul.f32 %v2675, %v2682
  %v2691 = vmul.f32 %v2674, %v2683
  %v2692 = vpack.c.bf16 %v2663, %v2662
  %v2693 = vpack.c.bf16 %v2665, %v2664
  %v2694 = vpack.c.bf16 %v2689, %v2688
  %v2695 = vpack.c.bf16 %v2691, %v2690
  %2696 = vst [vmem:[#allocation2] sm:$0xff] %v2692
  %2697 = vst [vmem:[#allocation2 + $0x8] sm:$0xff] %v2693
  %2698 = vst [vmem:[#allocation2 + $0x10] sm:$0xff] %v2694
  %2699 = vst [vmem:[#allocation2 + $0x18] sm:$0xff] %v2695
  %2700 = vrot.lane.b32.xlu0 %v2636, 15
  %v2701 = vpop.permute.xlu0 %2700
  %2702 = vrot.lane.b32.xlu0 %v2637, 15
  %v2703 = vpop.permute.xlu0 %2702
  %2704 = vrot.lane.b32.xlu0 %v2638, 15
  %v2705 = vpop.permute.xlu0 %2704
  %2706 = vrot.lane.b32.xlu0 %v2639, 15
  %v2707 = vpop.permute.xlu0 %2706
  %v2708 = vsel %vm394, %v2705, %v2707
  %v2709 = vsel %vm394, %v2703, %v2705
  %v2710 = vsel %vm394, %v2701, %v2703
  %v2711 = vsel %vm394, %v2707, %v2701
  %v2712 = vld [vmem:[%s1195] ss:$8 sm:$0xf]
  %v2714 = vperm.slane %v2712, 0
  %v2715 = vperm.slane %v2712, 1
  %v2716 = vperm.slane %v2712, 2
  %v2717 = vperm.slane %v2712, 3
  %v2722 = vmul.f32 %v2711, %v2714
  %v2723 = vmul.f32 %v2710, %v2715
  %v2724 = vmul.f32 %v2709, %v2716
  %v2725 = vmul.f32 %v2708, %v2717
  %2726 = vrot.lane.b32.xlu0 %v2636, 1
  %v2727 = vpop.permute.xlu0 %2726
  %2728 = vrot.lane.b32.xlu0 %v2637, 1
  %v2729 = vpop.permute.xlu0 %2728
  %2730 = vrot.lane.b32.xlu0 %v2638, 1
  %v2731 = vpop.permute.xlu0 %2730
  %2732 = vrot.lane.b32.xlu0 %v2639, 1
  %v2733 = vpop.permute.xlu0 %2732
  %v2734 = vsel %vm526, %v2731, %v2733
  %v2735 = vsel %vm526, %v2729, %v2731
  %v2736 = vsel %vm526, %v2727, %v2729
  %v2737 = vsel %vm526, %v2733, %v2727
  %v2738 = vld [vmem:[%s1222] ss:$8 sm:$0xf]
  %v2740 = vperm.slane %v2738, 0
  %v2741 = vperm.slane %v2738, 1
  %v2742 = vperm.slane %v2738, 2
  %v2743 = vperm.slane %v2738, 3
  %v2748 = vmul.f32 %v2737, %v2740
  %v2749 = vmul.f32 %v2736, %v2741
  %v2750 = vmul.f32 %v2735, %v2742
  %v2751 = vmul.f32 %v2734, %v2743
  %v2752 = vpack.c.bf16 %v2723, %v2722
  %v2753 = vpack.c.bf16 %v2725, %v2724
  %v2754 = vpack.c.bf16 %v2749, %v2748
  %v2755 = vpack.c.bf16 %v2751, %v2750
  %2756 = vst [vmem:[#allocation2 + $0x20] sm:$0xff] %v2752
  %2757 = vst [vmem:[#allocation2 + $0x28] sm:$0xff] %v2753
  %2758 = vst [vmem:[#allocation2 + $0x30] sm:$0xff] %v2754
  %2759 = vst [vmem:[#allocation2 + $0x38] sm:$0xff] %v2755
  %v2760 = vld [vmem:[%s1245] ss:$8 sm:$0xf]
  %v2762 = vperm.slane %v2760, 0
  %v2763 = vperm.slane %v2760, 1
  %v2764 = vperm.slane %v2760, 2
  %v2765 = vperm.slane %v2760, 3
  %v2770 = vmul.f32 %v2636, %v2762
  %v2771 = vmul.f32 %v2637, %v2763
  %v2772 = vmul.f32 %v2638, %v2764
  %v2773 = vmul.f32 %v2639, %v2765
  %2774 = vrot.lane.b32.xlu0 %v2636, 127
  %v2775 = vpop.permute.xlu0 %2774
  %2776 = vrot.lane.b32.xlu0 %v2637, 127
  %v2777 = vpop.permute.xlu0 %2776
  %2778 = vrot.lane.b32.xlu0 %v2638, 127
  %v2779 = vpop.permute.xlu0 %2778
  %2780 = vrot.lane.b32.xlu0 %v2639, 127
  %v2781 = vpop.permute.xlu0 %2780
  %v2782 = vsel %vm594, %v2779, %v2781
  %v2783 = vsel %vm594, %v2777, %v2779
  %v2784 = vsel %vm594, %v2775, %v2777
  %v2785 = vsel %vm594, %v2781, %v2775
  %v2786 = vld [vmem:[%s1272] ss:$8 sm:$0xf]
  %v2788 = vperm.slane %v2786, 0
  %v2789 = vperm.slane %v2786, 1
  %v2790 = vperm.slane %v2786, 2
  %v2791 = vperm.slane %v2786, 3
  %v2796 = vmul.f32 %v2784, %v2788
  %v2797 = vmul.f32 %v2783, %v2789
  %v2798 = vmul.f32 %v2782, %v2790
  %v2799 = vmul.f32 %v2785, %v2791
  %v2800 = vpack.c.bf16 %v2771, %v2770
  %v2801 = vpack.c.bf16 %v2773, %v2772
  %v2802 = vpack.c.bf16 %v2797, %v2796
  %v2803 = vpack.c.bf16 %v2799, %v2798
  %2804 = vst [vmem:[#allocation2 + $0x40] sm:$0xff] %v2800
  %2805 = vst [vmem:[#allocation2 + $0x48] sm:$0xff] %v2801
  %2806 = vst [vmem:[#allocation2 + $0x50] sm:$0xff] %v2802
  %2807 = vst [vmem:[#allocation2 + $0x58] sm:$0xff] %v2803
  %2808 = vrot.lane.b32.xlu0 %v2636, 113
  %v2809 = vpop.permute.xlu0 %2808
  %2810 = vrot.lane.b32.xlu0 %v2637, 113
  %v2811 = vpop.permute.xlu0 %2810
  %2812 = vrot.lane.b32.xlu0 %v2638, 113
  %v2813 = vpop.permute.xlu0 %2812
  %2814 = vrot.lane.b32.xlu0 %v2639, 113
  %v2815 = vpop.permute.xlu0 %2814
  %v2816 = vsel %vm726, %v2813, %v2815
  %v2817 = vsel %vm726, %v2811, %v2813
  %v2818 = vsel %vm726, %v2809, %v2811
  %v2819 = vsel %vm726, %v2815, %v2809
  %v2820 = vld [vmem:[%s1307] ss:$8 sm:$0xf]
  %v2822 = vperm.slane %v2820, 0
  %v2823 = vperm.slane %v2820, 1
  %v2824 = vperm.slane %v2820, 2
  %v2825 = vperm.slane %v2820, 3
  %v2830 = vmul.f32 %v2818, %v2822
  %v2831 = vmul.f32 %v2817, %v2823
  %v2832 = vmul.f32 %v2816, %v2824
  %v2833 = vmul.f32 %v2819, %v2825
  %2834 = vrot.lane.b32.xlu0 %v2636, 112
  %v2835 = vpop.permute.xlu0 %2834
  %2836 = vrot.lane.b32.xlu0 %v2637, 112
  %v2837 = vpop.permute.xlu0 %2836
  %2838 = vrot.lane.b32.xlu0 %v2638, 112
  %v2839 = vpop.permute.xlu0 %2838
  %2840 = vrot.lane.b32.xlu0 %v2639, 112
  %v2841 = vpop.permute.xlu0 %2840
  %v2842 = vsel %vm770, %v2839, %v2841
  %v2843 = vsel %vm770, %v2837, %v2839
  %v2844 = vsel %vm770, %v2835, %v2837
  %v2845 = vsel %vm770, %v2841, %v2835
  %v2846 = vld [vmem:[%s1334] ss:$8 sm:$0xf]
  %v2848 = vperm.slane %v2846, 0
  %v2849 = vperm.slane %v2846, 1
  %v2850 = vperm.slane %v2846, 2
  %v2851 = vperm.slane %v2846, 3
  %v2856 = vmul.f32 %v2844, %v2848
  %v2857 = vmul.f32 %v2843, %v2849
  %v2858 = vmul.f32 %v2842, %v2850
  %v2859 = vmul.f32 %v2845, %v2851
  %v2860 = vpack.c.bf16 %v2831, %v2830
  %v2861 = vpack.c.bf16 %v2833, %v2832
  %v2862 = vpack.c.bf16 %v2857, %v2856
  %v2863 = vpack.c.bf16 %v2859, %v2858
  %2864 = vst [vmem:[#allocation2 + $0x60] sm:$0xff] %v2860
  %2865 = vst [vmem:[#allocation2 + $0x68] sm:$0xff] %v2861
  %2866 = vst [vmem:[#allocation2 + $0x70] sm:$0xff] %v2862
  %2867 = vst [vmem:[#allocation2 + $0x78] sm:$0xff] %v2863
  %2868 = vrot.lane.b32.xlu0 %v2636, 111
  %v2869 = vpop.permute.xlu0 %2868
  %2870 = vrot.lane.b32.xlu0 %v2637, 111
  %v2871 = vpop.permute.xlu0 %2870
  %2872 = vrot.lane.b32.xlu0 %v2638, 111
  %v2873 = vpop.permute.xlu0 %2872
  %2874 = vrot.lane.b32.xlu0 %v2639, 111
  %v2875 = vpop.permute.xlu0 %2874
  %v2876 = vsel %vm814, %v2873, %v2875
  %v2877 = vsel %vm814, %v2871, %v2873
  %v2878 = vsel %vm814, %v2869, %v2871
  %v2879 = vsel %vm814, %v2875, %v2869
  %v2880 = vld [vmem:[%s1369] ss:$8 sm:$0xf]
  %v2882 = vperm.slane %v2880, 0
  %v2883 = vperm.slane %v2880, 1
  %v2884 = vperm.slane %v2880, 2
  %v2885 = vperm.slane %v2880, 3
  %v2890 = vmul.f32 %v2878, %v2882
  %v2891 = vmul.f32 %v2877, %v2883
  %v2892 = vmul.f32 %v2876, %v2884
  %v2893 = vmul.f32 %v2879, %v2885
  %v2894 = vpack.c.bf16 %v2891, %v2890
  %v2895 = vpack.c.bf16 %v2893, %v2892
  %2896 = vst [vmem:[#allocation2 + $0x80] sm:$0xff] %v2894
  %2897 = vst [vmem:[#allocation2 + $0x88] sm:$0xff] %v2895
  %2898 = vst [vmem:[#allocation2 + $0x90] sm:$0xff] %v1386
  %2899 = vst [vmem:[#allocation2 + $0x98] sm:$0xff] %v1386
  %s2900 = scalar_lea.vmem %s3, 12
  %v2901 = vld [vmem:[%s2900] sm:$0xf]
  %v2902 = vld [vmem:[#allocation2] sm:$0xff]
  %v2903 = vld [vmem:[#allocation2 + $0x8] sm:$0xff]
  %v2904 = vld [vmem:[#allocation2 + $0x10] sm:$0xff]
  %v2905 = vld [vmem:[#allocation2 + $0x18] sm:$0xff]
  %v2906 = vld [vmem:[#allocation2 + $0x20] sm:$0xff]
  %v2907 = vld [vmem:[#allocation2 + $0x28] sm:$0xff]
  %v2908 = vld [vmem:[#allocation2 + $0x30] sm:$0xff]
  %v2909 = vld [vmem:[#allocation2 + $0x38] sm:$0xff]
  %v2910 = vld [vmem:[#allocation2 + $0x40] sm:$0xff]
  %v2911 = vld [vmem:[#allocation2 + $0x48] sm:$0xff]
  %v2912 = vld [vmem:[#allocation2 + $0x50] sm:$0xff]
  %v2913 = vld [vmem:[#allocation2 + $0x58] sm:$0xff]
  %v2914 = vld [vmem:[#allocation2 + $0x60] sm:$0xff]
  %v2915 = vld [vmem:[#allocation2 + $0x68] sm:$0xff]
  %v2916 = vld [vmem:[#allocation2 + $0x70] sm:$0xff]
  %v2917 = vld [vmem:[#allocation2 + $0x78] sm:$0xff]
  %v2918 = vld [vmem:[#allocation2 + $0x80] sm:$0xff]
  %v2919 = vld [vmem:[#allocation2 + $0x88] sm:$0xff]
  %v2920 = vld [vmem:[#allocation2 + $0x90] sm:$0xff]
  %v2921 = vld [vmem:[#allocation2 + $0x98] sm:$0xff]
  %v2942 = vunpack.c.l.b16 %v2902
  %v2943 = vunpack.c.h.b16 %v2902
  %v2944 = vunpack.c.l.b16 %v2903
  %v2945 = vunpack.c.h.b16 %v2903
  %v2946 = vunpack.c.l.b16 %v2904
  %v2947 = vunpack.c.h.b16 %v2904
  %v2948 = vunpack.c.l.b16 %v2905
  %v2949 = vunpack.c.h.b16 %v2905
  %v2950 = vunpack.c.l.b16 %v2906
  %v2951 = vunpack.c.h.b16 %v2906
  %v2952 = vunpack.c.l.b16 %v2907
  %v2953 = vunpack.c.h.b16 %v2907
  %v2954 = vunpack.c.l.b16 %v2908
  %v2955 = vunpack.c.h.b16 %v2908
  %v2956 = vunpack.c.l.b16 %v2909
  %v2957 = vunpack.c.h.b16 %v2909
  %v2958 = vunpack.c.l.b16 %v2910
  %v2959 = vunpack.c.h.b16 %v2910
  %v2960 = vunpack.c.l.b16 %v2911
  %v2961 = vunpack.c.h.b16 %v2911
  %v2962 = vunpack.c.l.b16 %v2912
  %v2963 = vunpack.c.h.b16 %v2912
  %v2964 = vunpack.c.l.b16 %v2913
  %v2965 = vunpack.c.h.b16 %v2913
  %v2966 = vunpack.c.l.b16 %v2914
  %v2967 = vunpack.c.h.b16 %v2914
  %v2968 = vunpack.c.l.b16 %v2915
  %v2969 = vunpack.c.h.b16 %v2915
  %v2970 = vunpack.c.l.b16 %v2916
  %v2971 = vunpack.c.h.b16 %v2916
  %v2972 = vunpack.c.l.b16 %v2917
  %v2973 = vunpack.c.h.b16 %v2917
  %v2974 = vunpack.c.l.b16 %v2918
  %v2975 = vunpack.c.h.b16 %v2918
  %v2976 = vunpack.c.l.b16 %v2919
  %v2977 = vunpack.c.h.b16 %v2919
  %v2978 = vunpack.c.l.b16 %v2920
  %v2979 = vunpack.c.h.b16 %v2920
  %v2980 = vunpack.c.l.b16 %v2921
  %v2981 = vunpack.c.h.b16 %v2921
  %v2982 = vpack.c.b16 %v2946, %v2942
  %v2983 = vpack.c.b16 %v2947, %v2943
  %v2984 = vpack.c.b16 %v2948, %v2944
  %v2985 = vpack.c.b16 %v2949, %v2945
  %v2986 = vpack.c.b16 %v2954, %v2950
  %v2987 = vpack.c.b16 %v2955, %v2951
  %v2988 = vpack.c.b16 %v2956, %v2952
  %v2989 = vpack.c.b16 %v2957, %v2953
  %v2990 = vpack.c.b16 %v2962, %v2958
  %v2991 = vpack.c.b16 %v2963, %v2959
  %v2992 = vpack.c.b16 %v2964, %v2960
  %v2993 = vpack.c.b16 %v2965, %v2961
  %v2994 = vpack.c.b16 %v2970, %v2966
  %v2995 = vpack.c.b16 %v2971, %v2967
  %v2996 = vpack.c.b16 %v2972, %v2968
  %v2997 = vpack.c.b16 %v2973, %v2969
  %v2998 = vpack.c.b16 %v2978, %v2974
  %v2999 = vpack.c.b16 %v2979, %v2975
  %v3000 = vpack.c.b16 %v2980, %v2976
  %v3001 = vpack.c.b16 %v2981, %v2977
  %v3023 = vsel %vm1512, %v2901, 0
  %3025 = vmatpush.bf16.msra.mxu0 0
  %3026 = vmatpush.bf16.msra.mxu0 0
  %3027 = vmatpush.bf16.msra.mxu0 0
  %3028 = vmatpush.bf16.msra.mxu0 %v2998
  %3029 = vmatpush.bf16.msra.mxu0 %v2994
  %3030 = vmatpush.bf16.msra.mxu0 %v2990
  %3031 = vmatpush.bf16.msra.mxu0 %v2986
  %3032 = vmatpush.bf16.msra.mxu0 %v2982
  %3033 = vmatmul.bf16.gmra.mxu0 %v3023
  %v3034 = vpop.f32.mrf.mxu0
  %v3035 = vadd.f32 0.0, %v3034
  %v3036 = vpop.f32.mrf.mxu0
  %3037 = vdwg.mxu0
  %3038 = vmatpush.bf16.msra.mxu0 0
  %3039 = vmatpush.bf16.msra.mxu0 0
  %3040 = vmatpush.bf16.msra.mxu0 0
  %3041 = vmatpush.bf16.msra.mxu0 %v2999
  %3042 = vmatpush.bf16.msra.mxu0 %v2995
  %3043 = vmatpush.bf16.msra.mxu0 %v2991
  %3044 = vmatpush.bf16.msra.mxu0 %v2987
  %3045 = vmatpush.bf16.msra.mxu0 %v2983
  %3046 = vmatmul.bf16.gmra.mxu0 %v3023
  %v3047 = vpop.f32.mrf.mxu0
  %v3048 = vadd.f32 0.0, %v3047
  %v3049 = vpop.f32.mrf.mxu0
  %3050 = vdwg.mxu0
  %3051 = vmatpush.bf16.msra.mxu0 0
  %3052 = vmatpush.bf16.msra.mxu0 0
  %3053 = vmatpush.bf16.msra.mxu0 0
  %3054 = vmatpush.bf16.msra.mxu0 %v3000
  %3055 = vmatpush.bf16.msra.mxu0 %v2996
  %3056 = vmatpush.bf16.msra.mxu0 %v2992
  %3057 = vmatpush.bf16.msra.mxu0 %v2988
  %3058 = vmatpush.bf16.msra.mxu0 %v2984
  %3059 = vmatmul.bf16.gmra.mxu0 %v3023
  %v3060 = vpop.f32.mrf.mxu0
  %v3061 = vadd.f32 0.0, %v3060
  %v3062 = vpop.f32.mrf.mxu0
  %3063 = vdwg.mxu0
  %3064 = vmatpush.bf16.msra.mxu0 0
  %3065 = vmatpush.bf16.msra.mxu0 0
  %3066 = vmatpush.bf16.msra.mxu0 0
  %3067 = vmatpush.bf16.msra.mxu0 %v3001
  %3068 = vmatpush.bf16.msra.mxu0 %v2997
  %3069 = vmatpush.bf16.msra.mxu0 %v2993
  %3070 = vmatpush.bf16.msra.mxu0 %v2989
  %3071 = vmatpush.bf16.msra.mxu0 %v2985
  %3072 = vmatmul.bf16.gmra.mxu0 %v3023
  %v3073 = vpop.f32.mrf.mxu0
  %v3074 = vadd.f32 0.0, %v3073
  %v3075 = vpop.f32.mrf.mxu0
  %3076 = vdwg.mxu0
  %v3077 = vadd.f32 %v3035, %v3048
  %v3078 = vadd.f32 %v3077, %v3061
  %v3079 = vadd.f32 %v3078, %v3074
  %3080 = vadd.xlane.f32.xlu0 %v3079
  %v3081 = vpop.xlane.xlu0 %3080
  %v3082 = vmul.f32 %v3081, %v1579
  %v3083 = vmul.f32 %v3035, %v3035
  %v3084 = vmul.f32 %v3048, %v3048
  %v3085 = vmul.f32 %v3061, %v3061
  %v3086 = vmul.f32 %v3074, %v3074
  %v3087 = vadd.f32 %v3083, %v3084
  %v3088 = vadd.f32 %v3087, %v3085
  %v3089 = vadd.f32 %v3088, %v3086
  %3090 = vadd.xlane.f32.xlu0 %v3089
  %v3091 = vpop.xlane.xlu0 %3090
  %v3092 = vmul.f32 %v3091, %v1579
  %v3093 = vmul.f32 %v3082, %v3082
  %v3094 = vsub.f32 %v3092, %v3093
  %v3095 = vadd.f32 %v3094, 1e-05
  %v3096 = vrsqrt.pop %v3095
  %v3097 = vmul.f32 %v3096, %v3095
  %v3098 = vmul.f32 %v3097, %v3096
  %v3099 = vmul.f32 0.5, %v3098
  %v3100 = vsub.f32 1.5, %v3099
  %v3101 = vmul.f32 %v3096, %v3100
  %vm3102 = vweird.f32 %v3095
  %vm3103 = vweird.f32 %v3096
  %vm3104 = vmor %vm3102, %vm3103
  %v3105 = vsel %vm3104, %v3096, %v3101
  %v3106 = vsub.f32 %v3035, %v3082
  %v3107 = vsub.f32 %v3048, %v3082
  %v3108 = vsub.f32 %v3061, %v3082
  %v3109 = vsub.f32 %v3074, %v3082
  %v3110 = vmul.f32 %v3105, %v2134
  %3112 = vset.pattern.permute.xlu0 9
  %3113 = vperm.xlu0 %3112, %v3110
  %v3114 = vpop.permute.xlu0 %3113
  %v3116 = vmul.f32 %v3106, %v3114
  %v3117 = vmul.f32 %v3107, %v3114
  %v3118 = vmul.f32 %v3108, %v3114
  %v3119 = vmul.f32 %v3109, %v3114
  %3120 = vset.pattern.permute.xlu0 10
  %3121 = vperm.xlu0 %3120, %v2134
  %v3122 = vpop.permute.xlu0 %3121
  %v3124 = vadd.f32 %v3116, %v3122
  %v3125 = vadd.f32 %v3117, %v3122
  %v3126 = vadd.f32 %v3118, %v3122
  %v3127 = vadd.f32 %v3119, %v3122
  %v3128 = vadd.f32 %v2130, %v3124
  %v3129 = vadd.f32 %v2131, %v3125
  %v3130 = vadd.f32 %v2132, %v3126
  %v3131 = vadd.f32 %v2133, %v3127
  %v3132 = vld [vmem:[%s4] sm:$0xff]
  %3133 = vrot.lane.b32.xlu0 %v3128, 17
  %v3134 = vpop.permute.xlu0 %3133
  %3135 = vrot.lane.b32.xlu0 %v3129, 17
  %v3136 = vpop.permute.xlu0 %3135
  %3137 = vrot.lane.b32.xlu0 %v3130, 17
  %v3138 = vpop.permute.xlu0 %3137
  %3139 = vrot.lane.b32.xlu0 %v3131, 17
  %v3140 = vpop.permute.xlu0 %3139
  %v3141 = vsel %vm306, %v3138, %v3140
  %v3142 = vsel %vm306, %v3136, %v3138
  %v3143 = vsel %vm306, %v3134, %v3136
  %v3144 = vsel %vm306, %v3140, %v3134
  %v3145 = vld [vmem:[%s2] ss:$8 sm:$0xf]
  %v3147 = vperm.slane %v3145, 0
  %v3148 = vperm.slane %v3145, 1
  %v3149 = vperm.slane %v3145, 2
  %v3150 = vperm.slane %v3145, 3
  %v3155 = vmul.f32 %v3144, %v3147
  %v3156 = vmul.f32 %v3143, %v3148
  %v3157 = vmul.f32 %v3142, %v3149
  %v3158 = vmul.f32 %v3141, %v3150
  %3159 = vrot.lane.b32.xlu0 %v3128, 16
  %v3160 = vpop.permute.xlu0 %3159
  %3161 = vrot.lane.b32.xlu0 %v3129, 16
  %v3162 = vpop.permute.xlu0 %3161
  %3163 = vrot.lane.b32.xlu0 %v3130, 16
  %v3164 = vpop.permute.xlu0 %3163
  %3165 = vrot.lane.b32.xlu0 %v3131, 16
  %v3166 = vpop.permute.xlu0 %3165
  %v3167 = vsel %vm350, %v3164, %v3166
  %v3168 = vsel %vm350, %v3162, %v3164
  %v3169 = vsel %vm350, %v3160, %v3162
  %v3170 = vsel %vm350, %v3166, %v3160
  %v3171 = vld [vmem:[%s1160] ss:$8 sm:$0xf]
  %v3173 = vperm.slane %v3171, 0
  %v3174 = vperm.slane %v3171, 1
  %v3175 = vperm.slane %v3171, 2
  %v3176 = vperm.slane %v3171, 3
  %v3181 = vmul.f32 %v3170, %v3173
  %v3182 = vmul.f32 %v3169, %v3174
  %v3183 = vmul.f32 %v3168, %v3175
  %v3184 = vmul.f32 %v3167, %v3176
  %v3185 = vpack.c.bf16 %v3156, %v3155
  %v3186 = vpack.c.bf16 %v3158, %v3157
  %v3187 = vpack.c.bf16 %v3182, %v3181
  %v3188 = vpack.c.bf16 %v3184, %v3183
  %3189 = vst [vmem:[#allocation2] sm:$0xff] %v3185
  %3190 = vst [vmem:[#allocation2 + $0x8] sm:$0xff] %v3186
  %3191 = vst [vmem:[#allocation2 + $0x10] sm:$0xff] %v3187
  %3192 = vst [vmem:[#allocation2 + $0x18] sm:$0xff] %v3188
  %3193 = vrot.lane.b32.xlu0 %v3128, 15
  %v3194 = vpop.permute.xlu0 %3193
  %3195 = vrot.lane.b32.xlu0 %v3129, 15
  %v3196 = vpop.permute.xlu0 %3195
  %3197 = vrot.lane.b32.xlu0 %v3130, 15
  %v3198 = vpop.permute.xlu0 %3197
  %3199 = vrot.lane.b32.xlu0 %v3131, 15
  %v3200 = vpop.permute.xlu0 %3199
  %v3201 = vsel %vm394, %v3198, %v3200
  %v3202 = vsel %vm394, %v3196, %v3198
  %v3203 = vsel %vm394, %v3194, %v3196
  %v3204 = vsel %vm394, %v3200, %v3194
  %v3205 = vld [vmem:[%s1195] ss:$8 sm:$0xf]
  %v3207 = vperm.slane %v3205, 0
  %v3208 = vperm.slane %v3205, 1
  %v3209 = vperm.slane %v3205, 2
  %v3210 = vperm.slane %v3205, 3
  %v3215 = vmul.f32 %v3204, %v3207
  %v3216 = vmul.f32 %v3203, %v3208
  %v3217 = vmul.f32 %v3202, %v3209
  %v3218 = vmul.f32 %v3201, %v3210
  %3219 = vrot.lane.b32.xlu0 %v3128, 1
  %v3220 = vpop.permute.xlu0 %3219
  %3221 = vrot.lane.b32.xlu0 %v3129, 1
  %v3222 = vpop.permute.xlu0 %3221
  %3223 = vrot.lane.b32.xlu0 %v3130, 1
  %v3224 = vpop.permute.xlu0 %3223
  %3225 = vrot.lane.b32.xlu0 %v3131, 1
  %v3226 = vpop.permute.xlu0 %3225
  %v3227 = vsel %vm526, %v3224, %v3226
  %v3228 = vsel %vm526, %v3222, %v3224
  %v3229 = vsel %vm526, %v3220, %v3222
  %v3230 = vsel %vm526, %v3226, %v3220
  %v3231 = vld [vmem:[%s1222] ss:$8 sm:$0xf]
  %v3233 = vperm.slane %v3231, 0
  %v3234 = vperm.slane %v3231, 1
  %v3235 = vperm.slane %v3231, 2
  %v3236 = vperm.slane %v3231, 3
  %v3241 = vmul.f32 %v3230, %v3233
  %v3242 = vmul.f32 %v3229, %v3234
  %v3243 = vmul.f32 %v3228, %v3235
  %v3244 = vmul.f32 %v3227, %v3236
  %v3245 = vpack.c.bf16 %v3216, %v3215
  %v3246 = vpack.c.bf16 %v3218, %v3217
  %v3247 = vpack.c.bf16 %v3242, %v3241
  %v3248 = vpack.c.bf16 %v3244, %v3243
  %3249 = vst [vmem:[#allocation2 + $0x20] sm:$0xff] %v3245
  %3250 = vst [vmem:[#allocation2 + $0x28] sm:$0xff] %v3246
  %3251 = vst [vmem:[#allocation2 + $0x30] sm:$0xff] %v3247
  %3252 = vst [vmem:[#allocation2 + $0x38] sm:$0xff] %v3248
  %v3253 = vld [vmem:[%s1245] ss:$8 sm:$0xf]
  %v3255 = vperm.slane %v3253, 0
  %v3256 = vperm.slane %v3253, 1
  %v3257 = vperm.slane %v3253, 2
  %v3258 = vperm.slane %v3253, 3
  %v3263 = vmul.f32 %v3128, %v3255
  %v3264 = vmul.f32 %v3129, %v3256
  %v3265 = vmul.f32 %v3130, %v3257
  %v3266 = vmul.f32 %v3131, %v3258
  %3267 = vrot.lane.b32.xlu0 %v3128, 127
  %v3268 = vpop.permute.xlu0 %3267
  %3269 = vrot.lane.b32.xlu0 %v3129, 127
  %v3270 = vpop.permute.xlu0 %3269
  %3271 = vrot.lane.b32.xlu0 %v3130, 127
  %v3272 = vpop.permute.xlu0 %3271
  %3273 = vrot.lane.b32.xlu0 %v3131, 127
  %v3274 = vpop.permute.xlu0 %3273
  %v3275 = vsel %vm594, %v3272, %v3274
  %v3276 = vsel %vm594, %v3270, %v3272
  %v3277 = vsel %vm594, %v3268, %v3270
  %v3278 = vsel %vm594, %v3274, %v3268
  %v3279 = vld [vmem:[%s1272] ss:$8 sm:$0xf]
  %v3281 = vperm.slane %v3279, 0
  %v3282 = vperm.slane %v3279, 1
  %v3283 = vperm.slane %v3279, 2
  %v3284 = vperm.slane %v3279, 3
  %v3289 = vmul.f32 %v3277, %v3281
  %v3290 = vmul.f32 %v3276, %v3282
  %v3291 = vmul.f32 %v3275, %v3283
  %v3292 = vmul.f32 %v3278, %v3284
  %v3293 = vpack.c.bf16 %v3264, %v3263
  %v3294 = vpack.c.bf16 %v3266, %v3265
  %v3295 = vpack.c.bf16 %v3290, %v3289
  %v3296 = vpack.c.bf16 %v3292, %v3291
  %3297 = vst [vmem:[#allocation2 + $0x40] sm:$0xff] %v3293
  %3298 = vst [vmem:[#allocation2 + $0x48] sm:$0xff] %v3294
  %3299 = vst [vmem:[#allocation2 + $0x50] sm:$0xff] %v3295
  %3300 = vst [vmem:[#allocation2 + $0x58] sm:$0xff] %v3296
  %3301 = vrot.lane.b32.xlu0 %v3128, 113
  %v3302 = vpop.permute.xlu0 %3301
  %3303 = vrot.lane.b32.xlu0 %v3129, 113
  %v3304 = vpop.permute.xlu0 %3303
  %3305 = vrot.lane.b32.xlu0 %v3130, 113
  %v3306 = vpop.permute.xlu0 %3305
  %3307 = vrot.lane.b32.xlu0 %v3131, 113
  %v3308 = vpop.permute.xlu0 %3307
  %v3309 = vsel %vm726, %v3306, %v3308
  %v3310 = vsel %vm726, %v3304, %v3306
  %v3311 = vsel %vm726, %v3302, %v3304
  %v3312 = vsel %vm726, %v3308, %v3302
  %v3313 = vld [vmem:[%s1307] ss:$8 sm:$0xf]
  %v3315 = vperm.slane %v3313, 0
  %v3316 = vperm.slane %v3313, 1
  %v3317 = vperm.slane %v3313, 2
  %v3318 = vperm.slane %v3313, 3
  %v3323 = vmul.f32 %v3311, %v3315
  %v3324 = vmul.f32 %v3310, %v3316
  %v3325 = vmul.f32 %v3309, %v3317
  %v3326 = vmul.f32 %v3312, %v3318
  %3327 = vrot.lane.b32.xlu0 %v3128, 112
  %v3328 = vpop.permute.xlu0 %3327
  %3329 = vrot.lane.b32.xlu0 %v3129, 112
  %v3330 = vpop.permute.xlu0 %3329
  %3331 = vrot.lane.b32.xlu0 %v3130, 112
  %v3332 = vpop.permute.xlu0 %3331
  %3333 = vrot.lane.b32.xlu0 %v3131, 112
  %v3334 = vpop.permute.xlu0 %3333
  %v3335 = vsel %vm770, %v3332, %v3334
  %v3336 = vsel %vm770, %v3330, %v3332
  %v3337 = vsel %vm770, %v3328, %v3330
  %v3338 = vsel %vm770, %v3334, %v3328
  %v3339 = vld [vmem:[%s1334] ss:$8 sm:$0xf]
  %v3341 = vperm.slane %v3339, 0
  %v3342 = vperm.slane %v3339, 1
  %v3343 = vperm.slane %v3339, 2
  %v3344 = vperm.slane %v3339, 3
  %v3349 = vmul.f32 %v3337, %v3341
  %v3350 = vmul.f32 %v3336, %v3342
  %v3351 = vmul.f32 %v3335, %v3343
  %v3352 = vmul.f32 %v3338, %v3344
  %v3353 = vpack.c.bf16 %v3324, %v3323
  %v3354 = vpack.c.bf16 %v3326, %v3325
  %v3355 = vpack.c.bf16 %v3350, %v3349
  %v3356 = vpack.c.bf16 %v3352, %v3351
  %3357 = vst [vmem:[#allocation2 + $0x60] sm:$0xff] %v3353
  %3358 = vst [vmem:[#allocation2 + $0x68] sm:$0xff] %v3354
  %3359 = vst [vmem:[#allocation2 + $0x70] sm:$0xff] %v3355
  %3360 = vst [vmem:[#allocation2 + $0x78] sm:$0xff] %v3356
  %3361 = vrot.lane.b32.xlu0 %v3128, 111
  %v3362 = vpop.permute.xlu0 %3361
  %3363 = vrot.lane.b32.xlu0 %v3129, 111
  %v3364 = vpop.permute.xlu0 %3363
  %3365 = vrot.lane.b32.xlu0 %v3130, 111
  %v3366 = vpop.permute.xlu0 %3365
  %3367 = vrot.lane.b32.xlu0 %v3131, 111
  %v3368 = vpop.permute.xlu0 %3367
  %v3369 = vsel %vm814, %v3366, %v3368
  %v3370 = vsel %vm814, %v3364, %v3366
  %v3371 = vsel %vm814, %v3362, %v3364
  %v3372 = vsel %vm814, %v3368, %v3362
  %v3373 = vld [vmem:[%s1369] ss:$8 sm:$0xf]
  %v3375 = vperm.slane %v3373, 0
  %v3376 = vperm.slane %v3373, 1
  %v3377 = vperm.slane %v3373, 2
  %v3378 = vperm.slane %v3373, 3
  %v3383 = vmul.f32 %v3371, %v3375
  %v3384 = vmul.f32 %v3370, %v3376
  %v3385 = vmul.f32 %v3369, %v3377
  %v3386 = vmul.f32 %v3372, %v3378
  %v3387 = vpack.c.bf16 %v3384, %v3383
  %v3388 = vpack.c.bf16 %v3386, %v3385
  %3389 = vst [vmem:[#allocation2 + $0x80] sm:$0xff] %v3387
  %3390 = vst [vmem:[#allocation2 + $0x88] sm:$0xff] %v3388
  %3391 = vst [vmem:[#allocation2 + $0x90] sm:$0xff] %v1386
  %3392 = vst [vmem:[#allocation2 + $0x98] sm:$0xff] %v1386
  %s3393 = scalar_lea.vmem %s3, 16
  %v3394 = vld [vmem:[%s3393] sm:$0xf]
  %v3395 = vld [vmem:[#allocation2] sm:$0xff]
  %v3396 = vld [vmem:[#allocation2 + $0x8] sm:$0xff]
  %v3397 = vld [vmem:[#allocation2 + $0x10] sm:$0xff]
  %v3398 = vld [vmem:[#allocation2 + $0x18] sm:$0xff]
  %v3399 = vld [vmem:[#allocation2 + $0x20] sm:$0xff]
  %v3400 = vld [vmem:[#allocation2 + $0x28] sm:$0xff]
  %v3401 = vld [vmem:[#allocation2 + $0x30] sm:$0xff]
  %v3402 = vld [vmem:[#allocation2 + $0x38] sm:$0xff]
  %v3403 = vld [vmem:[#allocation2 + $0x40] sm:$0xff]
  %v3404 = vld [vmem:[#allocation2 + $0x48] sm:$0xff]
  %v3405 = vld [vmem:[#allocation2 + $0x50] sm:$0xff]
  %v3406 = vld [vmem:[#allocation2 + $0x58] sm:$0xff]
  %v3407 = vld [vmem:[#allocation2 + $0x60] sm:$0xff]
  %v3408 = vld [vmem:[#allocation2 + $0x68] sm:$0xff]
  %v3409 = vld [vmem:[#allocation2 + $0x70] sm:$0xff]
  %v3410 = vld [vmem:[#allocation2 + $0x78] sm:$0xff]
  %v3411 = vld [vmem:[#allocation2 + $0x80] sm:$0xff]
  %v3412 = vld [vmem:[#allocation2 + $0x88] sm:$0xff]
  %v3413 = vld [vmem:[#allocation2 + $0x90] sm:$0xff]
  %v3414 = vld [vmem:[#allocation2 + $0x98] sm:$0xff]
  %v3435 = vunpack.c.l.b16 %v3395
  %v3436 = vunpack.c.h.b16 %v3395
  %v3437 = vunpack.c.l.b16 %v3396
  %v3438 = vunpack.c.h.b16 %v3396
  %v3439 = vunpack.c.l.b16 %v3397
  %v3440 = vunpack.c.h.b16 %v3397
  %v3441 = vunpack.c.l.b16 %v3398
  %v3442 = vunpack.c.h.b16 %v3398
  %v3443 = vunpack.c.l.b16 %v3399
  %v3444 = vunpack.c.h.b16 %v3399
  %v3445 = vunpack.c.l.b16 %v3400
  %v3446 = vunpack.c.h.b16 %v3400
  %v3447 = vunpack.c.l.b16 %v3401
  %v3448 = vunpack.c.h.b16 %v3401
  %v3449 = vunpack.c.l.b16 %v3402
  %v3450 = vunpack.c.h.b16 %v3402
  %v3451 = vunpack.c.l.b16 %v3403
  %v3452 = vunpack.c.h.b16 %v3403
  %v3453 = vunpack.c.l.b16 %v3404
  %v3454 = vunpack.c.h.b16 %v3404
  %v3455 = vunpack.c.l.b16 %v3405
  %v3456 = vunpack.c.h.b16 %v3405
  %v3457 = vunpack.c.l.b16 %v3406
  %v3458 = vunpack.c.h.b16 %v3406
  %v3459 = vunpack.c.l.b16 %v3407
  %v3460 = vunpack.c.h.b16 %v3407
  %v3461 = vunpack.c.l.b16 %v3408
  %v3462 = vunpack.c.h.b16 %v3408
  %v3463 = vunpack.c.l.b16 %v3409
  %v3464 = vunpack.c.h.b16 %v3409
  %v3465 = vunpack.c.l.b16 %v3410
  %v3466 = vunpack.c.h.b16 %v3410
  %v3467 = vunpack.c.l.b16 %v3411
  %v3468 = vunpack.c.h.b16 %v3411
  %v3469 = vunpack.c.l.b16 %v3412
  %v3470 = vunpack.c.h.b16 %v3412
  %v3471 = vunpack.c.l.b16 %v3413
  %v3472 = vunpack.c.h.b16 %v3413
  %v3473 = vunpack.c.l.b16 %v3414
  %v3474 = vunpack.c.h.b16 %v3414
  %v3475 = vpack.c.b16 %v3439, %v3435
  %v3476 = vpack.c.b16 %v3440, %v3436
  %v3477 = vpack.c.b16 %v3441, %v3437
  %v3478 = vpack.c.b16 %v3442, %v3438
  %v3479 = vpack.c.b16 %v3447, %v3443
  %v3480 = vpack.c.b16 %v3448, %v3444
  %v3481 = vpack.c.b16 %v3449, %v3445
  %v3482 = vpack.c.b16 %v3450, %v3446
  %v3483 = vpack.c.b16 %v3455, %v3451
  %v3484 = vpack.c.b16 %v3456, %v3452
  %v3485 = vpack.c.b16 %v3457, %v3453
  %v3486 = vpack.c.b16 %v3458, %v3454
  %v3487 = vpack.c.b16 %v3463, %v3459
  %v3488 = vpack.c.b16 %v3464, %v3460
  %v3489 = vpack.c.b16 %v3465, %v3461
  %v3490 = vpack.c.b16 %v3466, %v3462
  %v3491 = vpack.c.b16 %v3471, %v3467
  %v3492 = vpack.c.b16 %v3472, %v3468
  %v3493 = vpack.c.b16 %v3473, %v3469
  %v3494 = vpack.c.b16 %v3474, %v3470
  %v3516 = vsel %vm1512, %v3394, 0
  %3518 = vmatpush.bf16.msra.mxu0 0
  %3519 = vmatpush.bf16.msra.mxu0 0
  %3520 = vmatpush.bf16.msra.mxu0 0
  %3521 = vmatpush.bf16.msra.mxu0 %v3491
  %3522 = vmatpush.bf16.msra.mxu0 %v3487
  %3523 = vmatpush.bf16.msra.mxu0 %v3483
  %3524 = vmatpush.bf16.msra.mxu0 %v3479
  %3525 = vmatpush.bf16.msra.mxu0 %v3475
  %3526 = vmatmul.bf16.gmra.mxu0 %v3516
  %v3527 = vpop.f32.mrf.mxu0
  %v3528 = vadd.f32 0.0, %v3527
  %v3529 = vpop.f32.mrf.mxu0
  %3530 = vdwg.mxu0
  %3531 = vmatpush.bf16.msra.mxu0 0
  %3532 = vmatpush.bf16.msra.mxu0 0
  %3533 = vmatpush.bf16.msra.mxu0 0
  %3534 = vmatpush.bf16.msra.mxu0 %v3492
  %3535 = vmatpush.bf16.msra.mxu0 %v3488
  %3536 = vmatpush.bf16.msra.mxu0 %v3484
  %3537 = vmatpush.bf16.msra.mxu0 %v3480
  %3538 = vmatpush.bf16.msra.mxu0 %v3476
  %3539 = vmatmul.bf16.gmra.mxu0 %v3516
  %v3540 = vpop.f32.mrf.mxu0
  %v3541 = vadd.f32 0.0, %v3540
  %v3542 = vpop.f32.mrf.mxu0
  %3543 = vdwg.mxu0
  %3544 = vmatpush.bf16.msra.mxu0 0
  %3545 = vmatpush.bf16.msra.mxu0 0
  %3546 = vmatpush.bf16.msra.mxu0 0
  %3547 = vmatpush.bf16.msra.mxu0 %v3493
  %3548 = vmatpush.bf16.msra.mxu0 %v3489
  %3549 = vmatpush.bf16.msra.mxu0 %v3485
  %3550 = vmatpush.bf16.msra.mxu0 %v3481
  %3551 = vmatpush.bf16.msra.mxu0 %v3477
  %3552 = vmatmul.bf16.gmra.mxu0 %v3516
  %v3553 = vpop.f32.mrf.mxu0
  %v3554 = vadd.f32 0.0, %v3553
  %v3555 = vpop.f32.mrf.mxu0
  %3556 = vdwg.mxu0
  %3557 = vmatpush.bf16.msra.mxu0 0
  %3558 = vmatpush.bf16.msra.mxu0 0
  %3559 = vmatpush.bf16.msra.mxu0 0
  %3560 = vmatpush.bf16.msra.mxu0 %v3494
  %3561 = vmatpush.bf16.msra.mxu0 %v3490
  %3562 = vmatpush.bf16.msra.mxu0 %v3486
  %3563 = vmatpush.bf16.msra.mxu0 %v3482
  %3564 = vmatpush.bf16.msra.mxu0 %v3478
  %3565 = vmatmul.bf16.gmra.mxu0 %v3516
  %v3566 = vpop.f32.mrf.mxu0
  %v3567 = vadd.f32 0.0, %v3566
  %v3568 = vpop.f32.mrf.mxu0
  %3569 = vdwg.mxu0
  %v3570 = vadd.f32 %v3528, %v3541
  %v3571 = vadd.f32 %v3570, %v3554
  %v3572 = vadd.f32 %v3571, %v3567
  %3573 = vadd.xlane.f32.xlu0 %v3572
  %v3574 = vpop.xlane.xlu0 %3573
  %v3575 = vmul.f32 %v3574, %v1579
  %v3576 = vmul.f32 %v3528, %v3528
  %v3577 = vmul.f32 %v3541, %v3541
  %v3578 = vmul.f32 %v3554, %v3554
  %v3579 = vmul.f32 %v3567, %v3567
  %v3580 = vadd.f32 %v3576, %v3577
  %v3581 = vadd.f32 %v3580, %v3578
  %v3582 = vadd.f32 %v3581, %v3579
  %3583 = vadd.xlane.f32.xlu0 %v3582
  %v3584 = vpop.xlane.xlu0 %3583
  %v3585 = vmul.f32 %v3584, %v1579
  %v3586 = vmul.f32 %v3575, %v3575
  %v3587 = vsub.f32 %v3585, %v3586
  %v3588 = vadd.f32 %v3587, 1e-05
  %v3589 = vrsqrt.pop %v3588
  %v3590 = vmul.f32 %v3589, %v3588
  %v3591 = vmul.f32 %v3590, %v3589
  %v3592 = vmul.f32 0.5, %v3591
  %v3593 = vsub.f32 1.5, %v3592
  %v3594 = vmul.f32 %v3589, %v3593
  %vm3595 = vweird.f32 %v3588
  %vm3596 = vweird.f32 %v3589
  %vm3597 = vmor %vm3595, %vm3596
  %v3598 = vsel %vm3597, %v3589, %v3594
  %v3599 = vsub.f32 %v3528, %v3575
  %v3600 = vsub.f32 %v3541, %v3575
  %v3601 = vsub.f32 %v3554, %v3575
  %v3602 = vsub.f32 %v3567, %v3575
  %v3603 = vmul.f32 %v3598, %v3132
  %3605 = vset.pattern.permute.xlu0 11
  %3606 = vperm.xlu0 %3605, %v3603
  %v3607 = vpop.permute.xlu0 %3606
  %v3609 = vmul.f32 %v3599, %v3607
  %v3610 = vmul.f32 %v3600, %v3607
  %v3611 = vmul.f32 %v3601, %v3607
  %v3612 = vmul.f32 %v3602, %v3607
  %3614 = vset.pattern.permute.xlu0 12
  %3615 = vperm.xlu0 %3614, %v3132
  %v3616 = vpop.permute.xlu0 %3615
  %v3618 = vadd.f32 %v3609, %v3616
  %v3619 = vadd.f32 %v3610, %v3616
  %v3620 = vadd.f32 %v3611, %v3616
  %v3621 = vadd.f32 %v3612, %v3616
  %vm3622 = vcmp.gt.f32.partialorder %v3618, 0.0
  %vm3623 = vcmp.gt.f32.partialorder %v3619, 0.0
  %vm3624 = vcmp.gt.f32.partialorder %v3620, 0.0
  %vm3625 = vcmp.gt.f32.partialorder %v3621, 0.0
  %3626 = vset.pattern.permute.xlu0 13
  %3627 = vperm.xlu0 %3626, %v3132
  %v3628 = vpop.permute.xlu0 %3627
  %v3630 = vmul.f32 %v3628, %v3618
  %v3631 = vmul.f32 %v3628, %v3619
  %v3632 = vmul.f32 %v3628, %v3620
  %v3633 = vmul.f32 %v3628, %v3621
  %v3634 = vsel %vm3622, %v3618, %v3630
  %v3635 = vsel %vm3623, %v3619, %v3631
  %v3636 = vsel %vm3624, %v3620, %v3632
  %v3637 = vsel %vm3625, %v3621, %v3633
  %3638 = vrot.lane.b32.xlu0 %v3634, 17
  %v3639 = vpop.permute.xlu0 %3638
  %3640 = vrot.lane.b32.xlu0 %v3635, 17
  %v3641 = vpop.permute.xlu0 %3640
  %3642 = vrot.lane.b32.xlu0 %v3636, 17
  %v3643 = vpop.permute.xlu0 %3642
  %3644 = vrot.lane.b32.xlu0 %v3637, 17
  %v3645 = vpop.permute.xlu0 %3644
  %v3646 = vsel %vm306, %v3643, %v3645
  %v3647 = vsel %vm306, %v3641, %v3643
  %v3648 = vsel %vm306, %v3639, %v3641
  %v3649 = vsel %vm306, %v3645, %v3639
  %v3650 = vld [vmem:[%s2] ss:$8 sm:$0xf]
  %v3652 = vperm.slane %v3650, 0
  %v3653 = vperm.slane %v3650, 1
  %v3654 = vperm.slane %v3650, 2
  %v3655 = vperm.slane %v3650, 3
  %v3660 = vmul.f32 %v3649, %v3652
  %v3661 = vmul.f32 %v3648, %v3653
  %v3662 = vmul.f32 %v3647, %v3654
  %v3663 = vmul.f32 %v3646, %v3655
  %3664 = vrot.lane.b32.xlu0 %v3634, 16
  %v3665 = vpop.permute.xlu0 %3664
  %3666 = vrot.lane.b32.xlu0 %v3635, 16
  %v3667 = vpop.permute.xlu0 %3666
  %3668 = vrot.lane.b32.xlu0 %v3636, 16
  %v3669 = vpop.permute.xlu0 %3668
  %3670 = vrot.lane.b32.xlu0 %v3637, 16
  %v3671 = vpop.permute.xlu0 %3670
  %v3672 = vsel %vm350, %v3669, %v3671
  %v3673 = vsel %vm350, %v3667, %v3669
  %v3674 = vsel %vm350, %v3665, %v3667
  %v3675 = vsel %vm350, %v3671, %v3665
  %v3676 = vld [vmem:[%s1160] ss:$8 sm:$0xf]
  %v3678 = vperm.slane %v3676, 0
  %v3679 = vperm.slane %v3676, 1
  %v3680 = vperm.slane %v3676, 2
  %v3681 = vperm.slane %v3676, 3
  %v3686 = vmul.f32 %v3675, %v3678
  %v3687 = vmul.f32 %v3674, %v3679
  %v3688 = vmul.f32 %v3673, %v3680
  %v3689 = vmul.f32 %v3672, %v3681
  %v3690 = vpack.c.bf16 %v3661, %v3660
  %v3691 = vpack.c.bf16 %v3663, %v3662
  %v3692 = vpack.c.bf16 %v3687, %v3686
  %v3693 = vpack.c.bf16 %v3689, %v3688
  %3694 = vst [vmem:[#allocation2] sm:$0xff] %v3690
  %3695 = vst [vmem:[#allocation2 + $0x8] sm:$0xff] %v3691
  %3696 = vst [vmem:[#allocation2 + $0x10] sm:$0xff] %v3692
  %3697 = vst [vmem:[#allocation2 + $0x18] sm:$0xff] %v3693
  %3698 = vrot.lane.b32.xlu0 %v3634, 15
  %v3699 = vpop.permute.xlu0 %3698
  %3700 = vrot.lane.b32.xlu0 %v3635, 15
  %v3701 = vpop.permute.xlu0 %3700
  %3702 = vrot.lane.b32.xlu0 %v3636, 15
  %v3703 = vpop.permute.xlu0 %3702
  %3704 = vrot.lane.b32.xlu0 %v3637, 15
  %v3705 = vpop.permute.xlu0 %3704
  %v3706 = vsel %vm394, %v3703, %v3705
  %v3707 = vsel %vm394, %v3701, %v3703
  %v3708 = vsel %vm394, %v3699, %v3701
  %v3709 = vsel %vm394, %v3705, %v3699
  %v3710 = vld [vmem:[%s1195] ss:$8 sm:$0xf]
  %v3712 = vperm.slane %v3710, 0
  %v3713 = vperm.slane %v3710, 1
  %v3714 = vperm.slane %v3710, 2
  %v3715 = vperm.slane %v3710, 3
  %v3720 = vmul.f32 %v3709, %v3712
  %v3721 = vmul.f32 %v3708, %v3713
  %v3722 = vmul.f32 %v3707, %v3714
  %v3723 = vmul.f32 %v3706, %v3715
  %3724 = vrot.lane.b32.xlu0 %v3634, 1
  %v3725 = vpop.permute.xlu0 %3724
  %3726 = vrot.lane.b32.xlu0 %v3635, 1
  %v3727 = vpop.permute.xlu0 %3726
  %3728 = vrot.lane.b32.xlu0 %v3636, 1
  %v3729 = vpop.permute.xlu0 %3728
  %3730 = vrot.lane.b32.xlu0 %v3637, 1
  %v3731 = vpop.permute.xlu0 %3730
  %v3732 = vsel %vm526, %v3729, %v3731
  %v3733 = vsel %vm526, %v3727, %v3729
  %v3734 = vsel %vm526, %v3725, %v3727
  %v3735 = vsel %vm526, %v3731, %v3725
  %v3736 = vld [vmem:[%s1222] ss:$8 sm:$0xf]
  %v3738 = vperm.slane %v3736, 0
  %v3739 = vperm.slane %v3736, 1
  %v3740 = vperm.slane %v3736, 2
  %v3741 = vperm.slane %v3736, 3
  %v3746 = vmul.f32 %v3735, %v3738
  %v3747 = vmul.f32 %v3734, %v3739
  %v3748 = vmul.f32 %v3733, %v3740
  %v3749 = vmul.f32 %v3732, %v3741
  %v3750 = vpack.c.bf16 %v3721, %v3720
  %v3751 = vpack.c.bf16 %v3723, %v3722
  %v3752 = vpack.c.bf16 %v3747, %v3746
  %v3753 = vpack.c.bf16 %v3749, %v3748
  %3754 = vst [vmem:[#allocation2 + $0x20] sm:$0xff] %v3750
  %3755 = vst [vmem:[#allocation2 + $0x28] sm:$0xff] %v3751
  %3756 = vst [vmem:[#allocation2 + $0x30] sm:$0xff] %v3752
  %3757 = vst [vmem:[#allocation2 + $0x38] sm:$0xff] %v3753
  %v3758 = vld [vmem:[%s1245] ss:$8 sm:$0xf]
  %v3760 = vperm.slane %v3758, 0
  %v3761 = vperm.slane %v3758, 1
  %v3762 = vperm.slane %v3758, 2
  %v3763 = vperm.slane %v3758, 3
  %v3768 = vmul.f32 %v3634, %v3760
  %v3769 = vmul.f32 %v3635, %v3761
  %v3770 = vmul.f32 %v3636, %v3762
  %v3771 = vmul.f32 %v3637, %v3763
  %3772 = vrot.lane.b32.xlu0 %v3634, 127
  %v3773 = vpop.permute.xlu0 %3772
  %3774 = vrot.lane.b32.xlu0 %v3635, 127
  %v3775 = vpop.permute.xlu0 %3774
  %3776 = vrot.lane.b32.xlu0 %v3636, 127
  %v3777 = vpop.permute.xlu0 %3776
  %3778 = vrot.lane.b32.xlu0 %v3637, 127
  %v3779 = vpop.permute.xlu0 %3778
  %v3780 = vsel %vm594, %v3777, %v3779
  %v3781 = vsel %vm594, %v3775, %v3777
  %v3782 = vsel %vm594, %v3773, %v3775
  %v3783 = vsel %vm594, %v3779, %v3773
  %v3784 = vld [vmem:[%s1272] ss:$8 sm:$0xf]
  %v3786 = vperm.slane %v3784, 0
  %v3787 = vperm.slane %v3784, 1
  %v3788 = vperm.slane %v3784, 2
  %v3789 = vperm.slane %v3784, 3
  %v3794 = vmul.f32 %v3782, %v3786
  %v3795 = vmul.f32 %v3781, %v3787
  %v3796 = vmul.f32 %v3780, %v3788
  %v3797 = vmul.f32 %v3783, %v3789
  %v3798 = vpack.c.bf16 %v3769, %v3768
  %v3799 = vpack.c.bf16 %v3771, %v3770
  %v3800 = vpack.c.bf16 %v3795, %v3794
  %v3801 = vpack.c.bf16 %v3797, %v3796
  %3802 = vst [vmem:[#allocation2 + $0x40] sm:$0xff] %v3798
  %3803 = vst [vmem:[#allocation2 + $0x48] sm:$0xff] %v3799
  %3804 = vst [vmem:[#allocation2 + $0x50] sm:$0xff] %v3800
  %3805 = vst [vmem:[#allocation2 + $0x58] sm:$0xff] %v3801
  %3806 = vrot.lane.b32.xlu0 %v3634, 113
  %v3807 = vpop.permute.xlu0 %3806
  %3808 = vrot.lane.b32.xlu0 %v3635, 113
  %v3809 = vpop.permute.xlu0 %3808
  %3810 = vrot.lane.b32.xlu0 %v3636, 113
  %v3811 = vpop.permute.xlu0 %3810
  %3812 = vrot.lane.b32.xlu0 %v3637, 113
  %v3813 = vpop.permute.xlu0 %3812
  %v3814 = vsel %vm726, %v3811, %v3813
  %v3815 = vsel %vm726, %v3809, %v3811
  %v3816 = vsel %vm726, %v3807, %v3809
  %v3817 = vsel %vm726, %v3813, %v3807
  %v3818 = vld [vmem:[%s1307] ss:$8 sm:$0xf]
  %v3820 = vperm.slane %v3818, 0
  %v3821 = vperm.slane %v3818, 1
  %v3822 = vperm.slane %v3818, 2
  %v3823 = vperm.slane %v3818, 3
  %v3828 = vmul.f32 %v3816, %v3820
  %v3829 = vmul.f32 %v3815, %v3821
  %v3830 = vmul.f32 %v3814, %v3822
  %v3831 = vmul.f32 %v3817, %v3823
  %3832 = vrot.lane.b32.xlu0 %v3634, 112
  %v3833 = vpop.permute.xlu0 %3832
  %3834 = vrot.lane.b32.xlu0 %v3635, 112
  %v3835 = vpop.permute.xlu0 %3834
  %3836 = vrot.lane.b32.xlu0 %v3636, 112
  %v3837 = vpop.permute.xlu0 %3836
  %3838 = vrot.lane.b32.xlu0 %v3637, 112
  %v3839 = vpop.permute.xlu0 %3838
  %v3840 = vsel %vm770, %v3837, %v3839
  %v3841 = vsel %vm770, %v3835, %v3837
  %v3842 = vsel %vm770, %v3833, %v3835
  %v3843 = vsel %vm770, %v3839, %v3833
  %v3844 = vld [vmem:[%s1334] ss:$8 sm:$0xf]
  %v3846 = vperm.slane %v3844, 0
  %v3847 = vperm.slane %v3844, 1
  %v3848 = vperm.slane %v3844, 2
  %v3849 = vperm.slane %v3844, 3
  %v3854 = vmul.f32 %v3842, %v3846
  %v3855 = vmul.f32 %v3841, %v3847
  %v3856 = vmul.f32 %v3840, %v3848
  %v3857 = vmul.f32 %v3843, %v3849
  %v3858 = vpack.c.bf16 %v3829, %v3828
  %v3859 = vpack.c.bf16 %v3831, %v3830
  %v3860 = vpack.c.bf16 %v3855, %v3854
  %v3861 = vpack.c.bf16 %v3857, %v3856
  %3862 = vst [vmem:[#allocation2 + $0x60] sm:$0xff] %v3858
  %3863 = vst [vmem:[#allocation2 + $0x68] sm:$0xff] %v3859
  %3864 = vst [vmem:[#allocation2 + $0x70] sm:$0xff] %v3860
  %3865 = vst [vmem:[#allocation2 + $0x78] sm:$0xff] %v3861
  %3866 = vrot.lane.b32.xlu0 %v3634, 111
  %v3867 = vpop.permute.xlu0 %3866
  %3868 = vrot.lane.b32.xlu0 %v3635, 111
  %v3869 = vpop.permute.xlu0 %3868
  %3870 = vrot.lane.b32.xlu0 %v3636, 111
  %v3871 = vpop.permute.xlu0 %3870
  %3872 = vrot.lane.b32.xlu0 %v3637, 111
  %v3873 = vpop.permute.xlu0 %3872
  %v3874 = vsel %vm814, %v3871, %v3873
  %v3875 = vsel %vm814, %v3869, %v3871
  %v3876 = vsel %vm814, %v3867, %v3869
  %v3877 = vsel %vm814, %v3873, %v3867
  %v3878 = vld [vmem:[%s1369] ss:$8 sm:$0xf]
  %v3880 = vperm.slane %v3878, 0
  %v3881 = vperm.slane %v3878, 1
  %v3882 = vperm.slane %v3878, 2
  %v3883 = vperm.slane %v3878, 3
  %v3888 = vmul.f32 %v3876, %v3880
  %v3889 = vmul.f32 %v3875, %v3881
  %v3890 = vmul.f32 %v3874, %v3882
  %v3891 = vmul.f32 %v3877, %v3883
  %v3892 = vpack.c.bf16 %v3889, %v3888
  %v3893 = vpack.c.bf16 %v3891, %v3890
  %3894 = vst [vmem:[#allocation2 + $0x80] sm:$0xff] %v3892
  %3895 = vst [vmem:[#allocation2 + $0x88] sm:$0xff] %v3893
  %3896 = vst [vmem:[#allocation2 + $0x90] sm:$0xff] %v1386
  %3897 = vst [vmem:[#allocation2 + $0x98] sm:$0xff] %v1386
  %s3898 = scalar_lea.vmem %s3, 20
  %v3899 = vld [vmem:[%s3898] sm:$0xf]
  %v3900 = vld [vmem:[#allocation2] sm:$0xff]
  %v3901 = vld [vmem:[#allocation2 + $0x8] sm:$0xff]
  %v3902 = vld [vmem:[#allocation2 + $0x10] sm:$0xff]
  %v3903 = vld [vmem:[#allocation2 + $0x18] sm:$0xff]
  %v3904 = vld [vmem:[#allocation2 + $0x20] sm:$0xff]
  %v3905 = vld [vmem:[#allocation2 + $0x28] sm:$0xff]
  %v3906 = vld [vmem:[#allocation2 + $0x30] sm:$0xff]
  %v3907 = vld [vmem:[#allocation2 + $0x38] sm:$0xff]
  %v3908 = vld [vmem:[#allocation2 + $0x40] sm:$0xff]
  %v3909 = vld [vmem:[#allocation2 + $0x48] sm:$0xff]
  %v3910 = vld [vmem:[#allocation2 + $0x50] sm:$0xff]
  %v3911 = vld [vmem:[#allocation2 + $0x58] sm:$0xff]
  %v3912 = vld [vmem:[#allocation2 + $0x60] sm:$0xff]
  %v3913 = vld [vmem:[#allocation2 + $0x68] sm:$0xff]
  %v3914 = vld [vmem:[#allocation2 + $0x70] sm:$0xff]
  %v3915 = vld [vmem:[#allocation2 + $0x78] sm:$0xff]
  %v3916 = vld [vmem:[#allocation2 + $0x80] sm:$0xff]
  %v3917 = vld [vmem:[#allocation2 + $0x88] sm:$0xff]
  %v3918 = vld [vmem:[#allocation2 + $0x90] sm:$0xff]
  %v3919 = vld [vmem:[#allocation2 + $0x98] sm:$0xff]
  %v3940 = vunpack.c.l.b16 %v3900
  %v3941 = vunpack.c.h.b16 %v3900
  %v3942 = vunpack.c.l.b16 %v3901
  %v3943 = vunpack.c.h.b16 %v3901
  %v3944 = vunpack.c.l.b16 %v3902
  %v3945 = vunpack.c.h.b16 %v3902
  %v3946 = vunpack.c.l.b16 %v3903
  %v3947 = vunpack.c.h.b16 %v3903
  %v3948 = vunpack.c.l.b16 %v3904
  %v3949 = vunpack.c.h.b16 %v3904
  %v3950 = vunpack.c.l.b16 %v3905
  %v3951 = vunpack.c.h.b16 %v3905
  %v3952 = vunpack.c.l.b16 %v3906
  %v3953 = vunpack.c.h.b16 %v3906
  %v3954 = vunpack.c.l.b16 %v3907
  %v3955 = vunpack.c.h.b16 %v3907
  %v3956 = vunpack.c.l.b16 %v3908
  %v3957 = vunpack.c.h.b16 %v3908
  %v3958 = vunpack.c.l.b16 %v3909
  %v3959 = vunpack.c.h.b16 %v3909
  %v3960 = vunpack.c.l.b16 %v3910
  %v3961 = vunpack.c.h.b16 %v3910
  %v3962 = vunpack.c.l.b16 %v3911
  %v3963 = vunpack.c.h.b16 %v3911
  %v3964 = vunpack.c.l.b16 %v3912
  %v3965 = vunpack.c.h.b16 %v3912
  %v3966 = vunpack.c.l.b16 %v3913
  %v3967 = vunpack.c.h.b16 %v3913
  %v3968 = vunpack.c.l.b16 %v3914
  %v3969 = vunpack.c.h.b16 %v3914
  %v3970 = vunpack.c.l.b16 %v3915
  %v3971 = vunpack.c.h.b16 %v3915
  %v3972 = vunpack.c.l.b16 %v3916
  %v3973 = vunpack.c.h.b16 %v3916
  %v3974 = vunpack.c.l.b16 %v3917
  %v3975 = vunpack.c.h.b16 %v3917
  %v3976 = vunpack.c.l.b16 %v3918
  %v3977 = vunpack.c.h.b16 %v3918
  %v3978 = vunpack.c.l.b16 %v3919
  %v3979 = vunpack.c.h.b16 %v3919
  %v3980 = vpack.c.b16 %v3944, %v3940
  %v3981 = vpack.c.b16 %v3945, %v3941
  %v3982 = vpack.c.b16 %v3946, %v3942
  %v3983 = vpack.c.b16 %v3947, %v3943
  %v3984 = vpack.c.b16 %v3952, %v3948
  %v3985 = vpack.c.b16 %v3953, %v3949
  %v3986 = vpack.c.b16 %v3954, %v3950
  %v3987 = vpack.c.b16 %v3955, %v3951
  %v3988 = vpack.c.b16 %v3960, %v3956
  %v3989 = vpack.c.b16 %v3961, %v3957
  %v3990 = vpack.c.b16 %v3962, %v3958
  %v3991 = vpack.c.b16 %v3963, %v3959
  %v3992 = vpack.c.b16 %v3968, %v3964
  %v3993 = vpack.c.b16 %v3969, %v3965
  %v3994 = vpack.c.b16 %v3970, %v3966
  %v3995 = vpack.c.b16 %v3971, %v3967
  %v3996 = vpack.c.b16 %v3976, %v3972
  %v3997 = vpack.c.b16 %v3977, %v3973
  %v3998 = vpack.c.b16 %v3978, %v3974
  %v3999 = vpack.c.b16 %v3979, %v3975
  %v4021 = vsel %vm1512, %v3899, 0
  %4023 = vmatpush.bf16.msra.mxu0 0
  %4024 = vmatpush.bf16.msra.mxu0 0
  %4025 = vmatpush.bf16.msra.mxu0 0
  %4026 = vmatpush.bf16.msra.mxu0 %v3996
  %4027 = vmatpush.bf16.msra.mxu0 %v3992
  %4028 = vmatpush.bf16.msra.mxu0 %v3988
  %4029 = vmatpush.bf16.msra.mxu0 %v3984
  %4030 = vmatpush.bf16.msra.mxu0 %v3980
  %4031 = vmatmul.bf16.gmra.mxu0 %v4021
  %v4032 = vpop.f32.mrf.mxu0
  %v4033 = vadd.f32 0.0, %v4032
  %v4034 = vpop.f32.mrf.mxu0
  %4035 = vdwg.mxu0
  %4036 = vmatpush.bf16.msra.mxu0 0
  %4037 = vmatpush.bf16.msra.mxu0 0
  %4038 = vmatpush.bf16.msra.mxu0 0
  %4039 = vmatpush.bf16.msra.mxu0 %v3997
  %4040 = vmatpush.bf16.msra.mxu0 %v3993
  %4041 = vmatpush.bf16.msra.mxu0 %v3989
  %4042 = vmatpush.bf16.msra.mxu0 %v3985
  %4043 = vmatpush.bf16.msra.mxu0 %v3981
  %4044 = vmatmul.bf16.gmra.mxu0 %v4021
  %v4045 = vpop.f32.mrf.mxu0
  %v4046 = vadd.f32 0.0, %v4045
  %v4047 = vpop.f32.mrf.mxu0
  %4048 = vdwg.mxu0
  %4049 = vmatpush.bf16.msra.mxu0 0
  %4050 = vmatpush.bf16.msra.mxu0 0
  %4051 = vmatpush.bf16.msra.mxu0 0
  %4052 = vmatpush.bf16.msra.mxu0 %v3998
  %4053 = vmatpush.bf16.msra.mxu0 %v3994
  %4054 = vmatpush.bf16.msra.mxu0 %v3990
  %4055 = vmatpush.bf16.msra.mxu0 %v3986
  %4056 = vmatpush.bf16.msra.mxu0 %v3982
  %4057 = vmatmul.bf16.gmra.mxu0 %v4021
  %v4058 = vpop.f32.mrf.mxu0
  %v4059 = vadd.f32 0.0, %v4058
  %v4060 = vpop.f32.mrf.mxu0
  %4061 = vdwg.mxu0
  %4062 = vmatpush.bf16.msra.mxu0 0
  %4063 = vmatpush.bf16.msra.mxu0 0
  %4064 = vmatpush.bf16.msra.mxu0 0
  %4065 = vmatpush.bf16.msra.mxu0 %v3999
  %4066 = vmatpush.bf16.msra.mxu0 %v3995
  %4067 = vmatpush.bf16.msra.mxu0 %v3991
  %4068 = vmatpush.bf16.msra.mxu0 %v3987
  %4069 = vmatpush.bf16.msra.mxu0 %v3983
  %4070 = vmatmul.bf16.gmra.mxu0 %v4021
  %v4071 = vpop.f32.mrf.mxu0
  %v4072 = vadd.f32 0.0, %v4071
  %v4073 = vpop.f32.mrf.mxu0
  %4074 = vdwg.mxu0
  %v4075 = vadd.f32 %v4033, %v4046
  %v4076 = vadd.f32 %v4075, %v4059
  %v4077 = vadd.f32 %v4076, %v4072
  %4078 = vadd.xlane.f32.xlu0 %v4077
  %v4079 = vpop.xlane.xlu0 %4078
  %v4080 = vmul.f32 %v4079, %v1579
  %v4081 = vmul.f32 %v4033, %v4033
  %v4082 = vmul.f32 %v4046, %v4046
  %v4083 = vmul.f32 %v4059, %v4059
  %v4084 = vmul.f32 %v4072, %v4072
  %v4085 = vadd.f32 %v4081, %v4082
  %v4086 = vadd.f32 %v4085, %v4083
  %v4087 = vadd.f32 %v4086, %v4084
  %4088 = vadd.xlane.f32.xlu0 %v4087
  %v4089 = vpop.xlane.xlu0 %4088
  %v4090 = vmul.f32 %v4089, %v1579
  %v4091 = vmul.f32 %v4080, %v4080
  %v4092 = vsub.f32 %v4090, %v4091
  %v4093 = vadd.f32 %v4092, 1e-05
  %v4094 = vrsqrt.pop %v4093
  %v4095 = vmul.f32 %v4094, %v4093
  %v4096 = vmul.f32 %v4095, %v4094
  %v4097 = vmul.f32 0.5, %v4096
  %v4098 = vsub.f32 1.5, %v4097
  %v4099 = vmul.f32 %v4094, %v4098
  %vm4100 = vweird.f32 %v4093
  %vm4101 = vweird.f32 %v4094
  %vm4102 = vmor %vm4100, %vm4101
  %v4103 = vsel %vm4102, %v4094, %v4099
  %v4104 = vsub.f32 %v4033, %v4080
  %v4105 = vsub.f32 %v4046, %v4080
  %v4106 = vsub.f32 %v4059, %v4080
  %v4107 = vsub.f32 %v4072, %v4080
  %v4108 = vmul.f32 %v4103, %v3132
  %4110 = vset.pattern.permute.xlu0 14
  %4111 = vperm.xlu0 %4110, %v4108
  %v4112 = vpop.permute.xlu0 %4111
  %v4114 = vmul.f32 %v4104, %v4112
  %v4115 = vmul.f32 %v4105, %v4112
  %v4116 = vmul.f32 %v4106, %v4112
  %v4117 = vmul.f32 %v4107, %v4112
  %4118 = vset.pattern.permute.xlu0 15
  %4119 = vperm.xlu0 %4118, %v3132
  %v4120 = vpop.permute.xlu0 %4119
  %v4122 = vadd.f32 %v4114, %v4120
  %v4123 = vadd.f32 %v4115, %v4120
  %v4124 = vadd.f32 %v4116, %v4120
  %v4125 = vadd.f32 %v4117, %v4120
  %v4126 = vadd.f32 %v3128, %v4122
  %v4127 = vadd.f32 %v3129, %v4123
  %v4128 = vadd.f32 %v3130, %v4124
  %v4129 = vadd.f32 %v3131, %v4125
  %v4130 = vld [vmem:[%s4] sm:$0xff]
  %4131 = vrot.lane.b32.xlu0 %v4126, 17
  %v4132 = vpop.permute.xlu0 %4131
  %4133 = vrot.lane.b32.xlu0 %v4127, 17
  %v4134 = vpop.permute.xlu0 %4133
  %4135 = vrot.lane.b32.xlu0 %v4128, 17
  %v4136 = vpop.permute.xlu0 %4135
  %4137 = vrot.lane.b32.xlu0 %v4129, 17
  %v4138 = vpop.permute.xlu0 %4137
  %v4139 = vsel %vm306, %v4136, %v4138
  %v4140 = vsel %vm306, %v4134, %v4136
  %v4141 = vsel %vm306, %v4132, %v4134
  %v4142 = vsel %vm306, %v4138, %v4132
  %v4143 = vld [vmem:[%s2] ss:$8 sm:$0xf]
  %v4145 = vperm.slane %v4143, 0
  %v4146 = vperm.slane %v4143, 1
  %v4147 = vperm.slane %v4143, 2
  %v4148 = vperm.slane %v4143, 3
  %v4153 = vmul.f32 %v4142, %v4145
  %v4154 = vmul.f32 %v4141, %v4146
  %v4155 = vmul.f32 %v4140, %v4147
  %v4156 = vmul.f32 %v4139, %v4148
  %4157 = vrot.lane.b32.xlu0 %v4126, 16
  %v4158 = vpop.permute.xlu0 %4157
  %4159 = vrot.lane.b32.xlu0 %v4127, 16
  %v4160 = vpop.permute.xlu0 %4159
  %4161 = vrot.lane.b32.xlu0 %v4128, 16
  %v4162 = vpop.permute.xlu0 %4161
  %4163 = vrot.lane.b32.xlu0 %v4129, 16
  %v4164 = vpop.permute.xlu0 %4163
  %v4165 = vsel %vm350, %v4162, %v4164
  %v4166 = vsel %vm350, %v4160, %v4162
  %v4167 = vsel %vm350, %v4158, %v4160
  %v4168 = vsel %vm350, %v4164, %v4158
  %v4169 = vld [vmem:[%s1160] ss:$8 sm:$0xf]
  %v4171 = vperm.slane %v4169, 0
  %v4172 = vperm.slane %v4169, 1
  %v4173 = vperm.slane %v4169, 2
  %v4174 = vperm.slane %v4169, 3
  %v4179 = vmul.f32 %v4168, %v4171
  %v4180 = vmul.f32 %v4167, %v4172
  %v4181 = vmul.f32 %v4166, %v4173
  %v4182 = vmul.f32 %v4165, %v4174
  %v4183 = vpack.c.bf16 %v4154, %v4153
  %v4184 = vpack.c.bf16 %v4156, %v4155
  %v4185 = vpack.c.bf16 %v4180, %v4179
  %v4186 = vpack.c.bf16 %v4182, %v4181
  %4187 = vst [vmem:[#allocation2] sm:$0xff] %v4183
  %4188 = vst [vmem:[#allocation2 + $0x8] sm:$0xff] %v4184
  %4189 = vst [vmem:[#allocation2 + $0x10] sm:$0xff] %v4185
  %4190 = vst [vmem:[#allocation2 + $0x18] sm:$0xff] %v4186
  %4191 = vrot.lane.b32.xlu0 %v4126, 15
  %v4192 = vpop.permute.xlu0 %4191
  %4193 = vrot.lane.b32.xlu0 %v4127, 15
  %v4194 = vpop.permute.xlu0 %4193
  %4195 = vrot.lane.b32.xlu0 %v4128, 15
  %v4196 = vpop.permute.xlu0 %4195
  %4197 = vrot.lane.b32.xlu0 %v4129, 15
  %v4198 = vpop.permute.xlu0 %4197
  %v4199 = vsel %vm394, %v4196, %v4198
  %v4200 = vsel %vm394, %v4194, %v4196
  %v4201 = vsel %vm394, %v4192, %v4194
  %v4202 = vsel %vm394, %v4198, %v4192
  %v4203 = vld [vmem:[%s1195] ss:$8 sm:$0xf]
  %v4205 = vperm.slane %v4203, 0
  %v4206 = vperm.slane %v4203, 1
  %v4207 = vperm.slane %v4203, 2
  %v4208 = vperm.slane %v4203, 3
  %v4213 = vmul.f32 %v4202, %v4205
  %v4214 = vmul.f32 %v4201, %v4206
  %v4215 = vmul.f32 %v4200, %v4207
  %v4216 = vmul.f32 %v4199, %v4208
  %4217 = vrot.lane.b32.xlu0 %v4126, 1
  %v4218 = vpop.permute.xlu0 %4217
  %4219 = vrot.lane.b32.xlu0 %v4127, 1
  %v4220 = vpop.permute.xlu0 %4219
  %4221 = vrot.lane.b32.xlu0 %v4128, 1
  %v4222 = vpop.permute.xlu0 %4221
  %4223 = vrot.lane.b32.xlu0 %v4129, 1
  %v4224 = vpop.permute.xlu0 %4223
  %v4225 = vsel %vm526, %v4222, %v4224
  %v4226 = vsel %vm526, %v4220, %v4222
  %v4227 = vsel %vm526, %v4218, %v4220
  %v4228 = vsel %vm526, %v4224, %v4218
  %v4229 = vld [vmem:[%s1222] ss:$8 sm:$0xf]
  %v4231 = vperm.slane %v4229, 0
  %v4232 = vperm.slane %v4229, 1
  %v4233 = vperm.slane %v4229, 2
  %v4234 = vperm.slane %v4229, 3
  %v4239 = vmul.f32 %v4228, %v4231
  %v4240 = vmul.f32 %v4227, %v4232
  %v4241 = vmul.f32 %v4226, %v4233
  %v4242 = vmul.f32 %v4225, %v4234
  %v4243 = vpack.c.bf16 %v4214, %v4213
  %v4244 = vpack.c.bf16 %v4216, %v4215
  %v4245 = vpack.c.bf16 %v4240, %v4239
  %v4246 = vpack.c.bf16 %v4242, %v4241
  %4247 = vst [vmem:[#allocation2 + $0x20] sm:$0xff] %v4243
  %4248 = vst [vmem:[#allocation2 + $0x28] sm:$0xff] %v4244
  %4249 = vst [vmem:[#allocation2 + $0x30] sm:$0xff] %v4245
  %4250 = vst [vmem:[#allocation2 + $0x38] sm:$0xff] %v4246
  %v4251 = vld [vmem:[%s1245] ss:$8 sm:$0xf]
  %v4253 = vperm.slane %v4251, 0
  %v4254 = vperm.slane %v4251, 1
  %v4255 = vperm.slane %v4251, 2
  %v4256 = vperm.slane %v4251, 3
  %v4261 = vmul.f32 %v4126, %v4253
  %v4262 = vmul.f32 %v4127, %v4254
  %v4263 = vmul.f32 %v4128, %v4255
  %v4264 = vmul.f32 %v4129, %v4256
  %4265 = vrot.lane.b32.xlu0 %v4126, 127
  %v4266 = vpop.permute.xlu0 %4265
  %4267 = vrot.lane.b32.xlu0 %v4127, 127
  %v4268 = vpop.permute.xlu0 %4267
  %4269 = vrot.lane.b32.xlu0 %v4128, 127
  %v4270 = vpop.permute.xlu0 %4269
  %4271 = vrot.lane.b32.xlu0 %v4129, 127
  %v4272 = vpop.permute.xlu0 %4271
  %v4273 = vsel %vm594, %v4270, %v4272
  %v4274 = vsel %vm594, %v4268, %v4270
  %v4275 = vsel %vm594, %v4266, %v4268
  %v4276 = vsel %vm594, %v4272, %v4266
  %v4277 = vld [vmem:[%s1272] ss:$8 sm:$0xf]
  %v4279 = vperm.slane %v4277, 0
  %v4280 = vperm.slane %v4277, 1
  %v4281 = vperm.slane %v4277, 2
  %v4282 = vperm.slane %v4277, 3
  %v4287 = vmul.f32 %v4275, %v4279
  %v4288 = vmul.f32 %v4274, %v4280
  %v4289 = vmul.f32 %v4273, %v4281
  %v4290 = vmul.f32 %v4276, %v4282
  %v4291 = vpack.c.bf16 %v4262, %v4261
  %v4292 = vpack.c.bf16 %v4264, %v4263
  %v4293 = vpack.c.bf16 %v4288, %v4287
  %v4294 = vpack.c.bf16 %v4290, %v4289
  %4295 = vst [vmem:[#allocation2 + $0x40] sm:$0xff] %v4291
  %4296 = vst [vmem:[#allocation2 + $0x48] sm:$0xff] %v4292
  %4297 = vst [vmem:[#allocation2 + $0x50] sm:$0xff] %v4293
  %4298 = vst [vmem:[#allocation2 + $0x58] sm:$0xff] %v4294
  %4299 = vrot.lane.b32.xlu0 %v4126, 113
  %v4300 = vpop.permute.xlu0 %4299
  %4301 = vrot.lane.b32.xlu0 %v4127, 113
  %v4302 = vpop.permute.xlu0 %4301
  %4303 = vrot.lane.b32.xlu0 %v4128, 113
  %v4304 = vpop.permute.xlu0 %4303
  %4305 = vrot.lane.b32.xlu0 %v4129, 113
  %v4306 = vpop.permute.xlu0 %4305
  %v4307 = vsel %vm726, %v4304, %v4306
  %v4308 = vsel %vm726, %v4302, %v4304
  %v4309 = vsel %vm726, %v4300, %v4302
  %v4310 = vsel %vm726, %v4306, %v4300
  %v4311 = vld [vmem:[%s1307] ss:$8 sm:$0xf]
  %v4313 = vperm.slane %v4311, 0
  %v4314 = vperm.slane %v4311, 1
  %v4315 = vperm.slane %v4311, 2
  %v4316 = vperm.slane %v4311, 3
  %v4321 = vmul.f32 %v4309, %v4313
  %v4322 = vmul.f32 %v4308, %v4314
  %v4323 = vmul.f32 %v4307, %v4315
  %v4324 = vmul.f32 %v4310, %v4316
  %4325 = vrot.lane.b32.xlu0 %v4126, 112
  %v4326 = vpop.permute.xlu0 %4325
  %4327 = vrot.lane.b32.xlu0 %v4127, 112
  %v4328 = vpop.permute.xlu0 %4327
  %4329 = vrot.lane.b32.xlu0 %v4128, 112
  %v4330 = vpop.permute.xlu0 %4329
  %4331 = vrot.lane.b32.xlu0 %v4129, 112
  %v4332 = vpop.permute.xlu0 %4331
  %v4333 = vsel %vm770, %v4330, %v4332
  %v4334 = vsel %vm770, %v4328, %v4330
  %v4335 = vsel %vm770, %v4326, %v4328
  %v4336 = vsel %vm770, %v4332, %v4326
  %v4337 = vld [vmem:[%s1334] ss:$8 sm:$0xf]
  %v4339 = vperm.slane %v4337, 0
  %v4340 = vperm.slane %v4337, 1
  %v4341 = vperm.slane %v4337, 2
  %v4342 = vperm.slane %v4337, 3
  %v4347 = vmul.f32 %v4335, %v4339
  %v4348 = vmul.f32 %v4334, %v4340
  %v4349 = vmul.f32 %v4333, %v4341
  %v4350 = vmul.f32 %v4336, %v4342
  %v4351 = vpack.c.bf16 %v4322, %v4321
  %v4352 = vpack.c.bf16 %v4324, %v4323
  %v4353 = vpack.c.bf16 %v4348, %v4347
  %v4354 = vpack.c.bf16 %v4350, %v4349
  %4355 = vst [vmem:[#allocation2 + $0x60] sm:$0xff] %v4351
  %4356 = vst [vmem:[#allocation2 + $0x68] sm:$0xff] %v4352
  %4357 = vst [vmem:[#allocation2 + $0x70] sm:$0xff] %v4353
  %4358 = vst [vmem:[#allocation2 + $0x78] sm:$0xff] %v4354
  %4359 = vrot.lane.b32.xlu0 %v4126, 111
  %v4360 = vpop.permute.xlu0 %4359
  %4361 = vrot.lane.b32.xlu0 %v4127, 111
  %v4362 = vpop.permute.xlu0 %4361
  %4363 = vrot.lane.b32.xlu0 %v4128, 111
  %v4364 = vpop.permute.xlu0 %4363
  %4365 = vrot.lane.b32.xlu0 %v4129, 111
  %v4366 = vpop.permute.xlu0 %4365
  %v4367 = vsel %vm814, %v4364, %v4366
  %v4368 = vsel %vm814, %v4362, %v4364
  %v4369 = vsel %vm814, %v4360, %v4362
  %v4370 = vsel %vm814, %v4366, %v4360
  %v4371 = vld [vmem:[%s1369] ss:$8 sm:$0xf]
  %v4373 = vperm.slane %v4371, 0
  %v4374 = vperm.slane %v4371, 1
  %v4375 = vperm.slane %v4371, 2
  %v4376 = vperm.slane %v4371, 3
  %v4381 = vmul.f32 %v4369, %v4373
  %v4382 = vmul.f32 %v4368, %v4374
  %v4383 = vmul.f32 %v4367, %v4375
  %v4384 = vmul.f32 %v4370, %v4376
  %v4385 = vpack.c.bf16 %v4382, %v4381
  %v4386 = vpack.c.bf16 %v4384, %v4383
  %4387 = vst [vmem:[#allocation2 + $0x80] sm:$0xff] %v4385
  %4388 = vst [vmem:[#allocation2 + $0x88] sm:$0xff] %v4386
  %4389 = vst [vmem:[#allocation2 + $0x90] sm:$0xff] %v1386
  %4390 = vst [vmem:[#allocation2 + $0x98] sm:$0xff] %v1386
  %s4391 = scalar_lea.vmem %s3, 24
  %v4392 = vld [vmem:[%s4391] sm:$0xf]
  %v4393 = vld [vmem:[#allocation2] sm:$0xff]
  %v4394 = vld [vmem:[#allocation2 + $0x8] sm:$0xff]
  %v4395 = vld [vmem:[#allocation2 + $0x10] sm:$0xff]
  %v4396 = vld [vmem:[#allocation2 + $0x18] sm:$0xff]
  %v4397 = vld [vmem:[#allocation2 + $0x20] sm:$0xff]
  %v4398 = vld [vmem:[#allocation2 + $0x28] sm:$0xff]
  %v4399 = vld [vmem:[#allocation2 + $0x30] sm:$0xff]
  %v4400 = vld [vmem:[#allocation2 + $0x38] sm:$0xff]
  %v4401 = vld [vmem:[#allocation2 + $0x40] sm:$0xff]
  %v4402 = vld [vmem:[#allocation2 + $0x48] sm:$0xff]
  %v4403 = vld [vmem:[#allocation2 + $0x50] sm:$0xff]
  %v4404 = vld [vmem:[#allocation2 + $0x58] sm:$0xff]
  %v4405 = vld [vmem:[#allocation2 + $0x60] sm:$0xff]
  %v4406 = vld [vmem:[#allocation2 + $0x68] sm:$0xff]
  %v4407 = vld [vmem:[#allocation2 + $0x70] sm:$0xff]
  %v4408 = vld [vmem:[#allocation2 + $0x78] sm:$0xff]
  %v4409 = vld [vmem:[#allocation2 + $0x80] sm:$0xff]
  %v4410 = vld [vmem:[#allocation2 + $0x88] sm:$0xff]
  %v4411 = vld [vmem:[#allocation2 + $0x90] sm:$0xff]
  %v4412 = vld [vmem:[#allocation2 + $0x98] sm:$0xff]
  %v4433 = vunpack.c.l.b16 %v4393
  %v4434 = vunpack.c.h.b16 %v4393
  %v4435 = vunpack.c.l.b16 %v4394
  %v4436 = vunpack.c.h.b16 %v4394
  %v4437 = vunpack.c.l.b16 %v4395
  %v4438 = vunpack.c.h.b16 %v4395
  %v4439 = vunpack.c.l.b16 %v4396
  %v4440 = vunpack.c.h.b16 %v4396
  %v4441 = vunpack.c.l.b16 %v4397
  %v4442 = vunpack.c.h.b16 %v4397
  %v4443 = vunpack.c.l.b16 %v4398
  %v4444 = vunpack.c.h.b16 %v4398
  %v4445 = vunpack.c.l.b16 %v4399
  %v4446 = vunpack.c.h.b16 %v4399
  %v4447 = vunpack.c.l.b16 %v4400
  %v4448 = vunpack.c.h.b16 %v4400
  %v4449 = vunpack.c.l.b16 %v4401
  %v4450 = vunpack.c.h.b16 %v4401
  %v4451 = vunpack.c.l.b16 %v4402
  %v4452 = vunpack.c.h.b16 %v4402
  %v4453 = vunpack.c.l.b16 %v4403
  %v4454 = vunpack.c.h.b16 %v4403
  %v4455 = vunpack.c.l.b16 %v4404
  %v4456 = vunpack.c.h.b16 %v4404
  %v4457 = vunpack.c.l.b16 %v4405
  %v4458 = vunpack.c.h.b16 %v4405
  %v4459 = vunpack.c.l.b16 %v4406
  %v4460 = vunpack.c.h.b16 %v4406
  %v4461 = vunpack.c.l.b16 %v4407
  %v4462 = vunpack.c.h.b16 %v4407
  %v4463 = vunpack.c.l.b16 %v4408
  %v4464 = vunpack.c.h.b16 %v4408
  %v4465 = vunpack.c.l.b16 %v4409
  %v4466 = vunpack.c.h.b16 %v4409
  %v4467 = vunpack.c.l.b16 %v4410
  %v4468 = vunpack.c.h.b16 %v4410
  %v4469 = vunpack.c.l.b16 %v4411
  %v4470 = vunpack.c.h.b16 %v4411
  %v4471 = vunpack.c.l.b16 %v4412
  %v4472 = vunpack.c.h.b16 %v4412
  %v4473 = vpack.c.b16 %v4437, %v4433
  %v4474 = vpack.c.b16 %v4438, %v4434
  %v4475 = vpack.c.b16 %v4439, %v4435
  %v4476 = vpack.c.b16 %v4440, %v4436
  %v4477 = vpack.c.b16 %v4445, %v4441
  %v4478 = vpack.c.b16 %v4446, %v4442
  %v4479 = vpack.c.b16 %v4447, %v4443
  %v4480 = vpack.c.b16 %v4448, %v4444
  %v4481 = vpack.c.b16 %v4453, %v4449
  %v4482 = vpack.c.b16 %v4454, %v4450
  %v4483 = vpack.c.b16 %v4455, %v4451
  %v4484 = vpack.c.b16 %v4456, %v4452
  %v4485 = vpack.c.b16 %v4461, %v4457
  %v4486 = vpack.c.b16 %v4462, %v4458
  %v4487 = vpack.c.b16 %v4463, %v4459
  %v4488 = vpack.c.b16 %v4464, %v4460
  %v4489 = vpack.c.b16 %v4469, %v4465
  %v4490 = vpack.c.b16 %v4470, %v4466
  %v4491 = vpack.c.b16 %v4471, %v4467
  %v4492 = vpack.c.b16 %v4472, %v4468
  %v4514 = vsel %vm1512, %v4392, 0
  %4516 = vmatpush.bf16.msra.mxu0 0
  %4517 = vmatpush.bf16.msra.mxu0 0
  %4518 = vmatpush.bf16.msra.mxu0 0
  %4519 = vmatpush.bf16.msra.mxu0 %v4489
  %4520 = vmatpush.bf16.msra.mxu0 %v4485
  %4521 = vmatpush.bf16.msra.mxu0 %v4481
  %4522 = vmatpush.bf16.msra.mxu0 %v4477
  %4523 = vmatpush.bf16.msra.mxu0 %v4473
  %4524 = vmatmul.bf16.gmra.mxu0 %v4514
  %v4525 = vpop.f32.mrf.mxu0
  %v4526 = vadd.f32 0.0, %v4525
  %v4527 = vpop.f32.mrf.mxu0
  %4528 = vdwg.mxu0
  %4529 = vmatpush.bf16.msra.mxu0 0
  %4530 = vmatpush.bf16.msra.mxu0 0
  %4531 = vmatpush.bf16.msra.mxu0 0
  %4532 = vmatpush.bf16.msra.mxu0 %v4490
  %4533 = vmatpush.bf16.msra.mxu0 %v4486
  %4534 = vmatpush.bf16.msra.mxu0 %v4482
  %4535 = vmatpush.bf16.msra.mxu0 %v4478
  %4536 = vmatpush.bf16.msra.mxu0 %v4474
  %4537 = vmatmul.bf16.gmra.mxu0 %v4514
  %v4538 = vpop.f32.mrf.mxu0
  %v4539 = vadd.f32 0.0, %v4538
  %v4540 = vpop.f32.mrf.mxu0
  %4541 = vdwg.mxu0
  %4542 = vmatpush.bf16.msra.mxu0 0
  %4543 = vmatpush.bf16.msra.mxu0 0
  %4544 = vmatpush.bf16.msra.mxu0 0
  %4545 = vmatpush.bf16.msra.mxu0 %v4491
  %4546 = vmatpush.bf16.msra.mxu0 %v4487
  %4547 = vmatpush.bf16.msra.mxu0 %v4483
  %4548 = vmatpush.bf16.msra.mxu0 %v4479
  %4549 = vmatpush.bf16.msra.mxu0 %v4475
  %4550 = vmatmul.bf16.gmra.mxu0 %v4514
  %v4551 = vpop.f32.mrf.mxu0
  %v4552 = vadd.f32 0.0, %v4551
  %v4553 = vpop.f32.mrf.mxu0
  %4554 = vdwg.mxu0
  %4555 = vmatpush.bf16.msra.mxu0 0
  %4556 = vmatpush.bf16.msra.mxu0 0
  %4557 = vmatpush.bf16.msra.mxu0 0
  %4558 = vmatpush.bf16.msra.mxu0 %v4492
  %4559 = vmatpush.bf16.msra.mxu0 %v4488
  %4560 = vmatpush.bf16.msra.mxu0 %v4484
  %4561 = vmatpush.bf16.msra.mxu0 %v4480
  %4562 = vmatpush.bf16.msra.mxu0 %v4476
  %4563 = vmatmul.bf16.gmra.mxu0 %v4514
  %v4564 = vpop.f32.mrf.mxu0
  %v4565 = vadd.f32 0.0, %v4564
  %v4566 = vpop.f32.mrf.mxu0
  %4567 = vdwg.mxu0
  %v4568 = vadd.f32 %v4526, %v4539
  %v4569 = vadd.f32 %v4568, %v4552
  %v4570 = vadd.f32 %v4569, %v4565
  %4571 = vadd.xlane.f32.xlu0 %v4570
  %v4572 = vpop.xlane.xlu0 %4571
  %v4573 = vmul.f32 %v4572, %v1579
  %v4574 = vmul.f32 %v4526, %v4526
  %v4575 = vmul.f32 %v4539, %v4539
  %v4576 = vmul.f32 %v4552, %v4552
  %v4577 = vmul.f32 %v4565, %v4565
  %v4578 = vadd.f32 %v4574, %v4575
  %v4579 = vadd.f32 %v4578, %v4576
  %v4580 = vadd.f32 %v4579, %v4577
  %4581 = vadd.xlane.f32.xlu0 %v4580
  %v4582 = vpop.xlane.xlu0 %4581
  %v4583 = vmul.f32 %v4582, %v1579
  %v4584 = vmul.f32 %v4573, %v4573
  %v4585 = vsub.f32 %v4583, %v4584
  %v4586 = vadd.f32 %v4585, 1e-05
  %v4587 = vrsqrt.pop %v4586
  %v4588 = vmul.f32 %v4587, %v4586
  %v4589 = vmul.f32 %v4588, %v4587
  %v4590 = vmul.f32 0.5, %v4589
  %v4591 = vsub.f32 1.5, %v4590
  %v4592 = vmul.f32 %v4587, %v4591
  %vm4593 = vweird.f32 %v4586
  %vm4594 = vweird.f32 %v4587
  %vm4595 = vmor %vm4593, %vm4594
  %v4596 = vsel %vm4595, %v4587, %v4592
  %v4597 = vsub.f32 %v4526, %v4573
  %v4598 = vsub.f32 %v4539, %v4573
  %v4599 = vsub.f32 %v4552, %v4573
  %v4600 = vsub.f32 %v4565, %v4573
  %v4601 = vmul.f32 %v4596, %v4130
  %4603 = vset.pattern.permute.xlu0 16
  %4604 = vperm.xlu0 %4603, %v4601
  %v4605 = vpop.permute.xlu0 %4604
  %v4607 = vmul.f32 %v4597, %v4605
  %v4608 = vmul.f32 %v4598, %v4605
  %v4609 = vmul.f32 %v4599, %v4605
  %v4610 = vmul.f32 %v4600, %v4605
  %4612 = vset.pattern.permute.xlu0 17
  %4613 = vperm.xlu0 %4612, %v4130
  %v4614 = vpop.permute.xlu0 %4613
  %v4616 = vadd.f32 %v4607, %v4614
  %v4617 = vadd.f32 %v4608, %v4614
  %v4618 = vadd.f32 %v4609, %v4614
  %v4619 = vadd.f32 %v4610, %v4614
  %vm4620 = vcmp.gt.f32.partialorder %v4616, 0.0
  %vm4621 = vcmp.gt.f32.partialorder %v4617, 0.0
  %vm4622 = vcmp.gt.f32.partialorder %v4618, 0.0
  %vm4623 = vcmp.gt.f32.partialorder %v4619, 0.0
  %4624 = vset.pattern.permute.xlu0 18
  %4625 = vperm.xlu0 %4624, %v4130
  %v4626 = vpop.permute.xlu0 %4625
  %v4628 = vmul.f32 %v4626, %v4616
  %v4629 = vmul.f32 %v4626, %v4617
  %v4630 = vmul.f32 %v4626, %v4618
  %v4631 = vmul.f32 %v4626, %v4619
  %v4632 = vsel %vm4620, %v4616, %v4628
  %v4633 = vsel %vm4621, %v4617, %v4629
  %v4634 = vsel %vm4622, %v4618, %v4630
  %v4635 = vsel %vm4623, %v4619, %v4631
  %4636 = vrot.lane.b32.xlu0 %v4632, 17
  %v4637 = vpop.permute.xlu0 %4636
  %4638 = vrot.lane.b32.xlu0 %v4633, 17
  %v4639 = vpop.permute.xlu0 %4638
  %4640 = vrot.lane.b32.xlu0 %v4634, 17
  %v4641 = vpop.permute.xlu0 %4640
  %4642 = vrot.lane.b32.xlu0 %v4635, 17
  %v4643 = vpop.permute.xlu0 %4642
  %v4644 = vsel %vm306, %v4641, %v4643
  %v4645 = vsel %vm306, %v4639, %v4641
  %v4646 = vsel %vm306, %v4637, %v4639
  %v4647 = vsel %vm306, %v4643, %v4637
  %v4648 = vld [vmem:[%s2] ss:$8 sm:$0xf]
  %v4650 = vperm.slane %v4648, 0
  %v4651 = vperm.slane %v4648, 1
  %v4652 = vperm.slane %v4648, 2
  %v4653 = vperm.slane %v4648, 3
  %v4658 = vmul.f32 %v4647, %v4650
  %v4659 = vmul.f32 %v4646, %v4651
  %v4660 = vmul.f32 %v4645, %v4652
  %v4661 = vmul.f32 %v4644, %v4653
  %4662 = vrot.lane.b32.xlu0 %v4632, 16
  %v4663 = vpop.permute.xlu0 %4662
  %4664 = vrot.lane.b32.xlu0 %v4633, 16
  %v4665 = vpop.permute.xlu0 %4664
  %4666 = vrot.lane.b32.xlu0 %v4634, 16
  %v4667 = vpop.permute.xlu0 %4666
  %4668 = vrot.lane.b32.xlu0 %v4635, 16
  %v4669 = vpop.permute.xlu0 %4668
  %v4670 = vsel %vm350, %v4667, %v4669
  %v4671 = vsel %vm350, %v4665, %v4667
  %v4672 = vsel %vm350, %v4663, %v4665
  %v4673 = vsel %vm350, %v4669, %v4663
  %v4674 = vld [vmem:[%s1160] ss:$8 sm:$0xf]
  %v4676 = vperm.slane %v4674, 0
  %v4677 = vperm.slane %v4674, 1
  %v4678 = vperm.slane %v4674, 2
  %v4679 = vperm.slane %v4674, 3
  %v4684 = vmul.f32 %v4673, %v4676
  %v4685 = vmul.f32 %v4672, %v4677
  %v4686 = vmul.f32 %v4671, %v4678
  %v4687 = vmul.f32 %v4670, %v4679
  %v4688 = vpack.c.bf16 %v4659, %v4658
  %v4689 = vpack.c.bf16 %v4661, %v4660
  %v4690 = vpack.c.bf16 %v4685, %v4684
  %v4691 = vpack.c.bf16 %v4687, %v4686
  %4692 = vst [vmem:[#allocation2] sm:$0xff] %v4688
  %4693 = vst [vmem:[#allocation2 + $0x8] sm:$0xff] %v4689
  %4694 = vst [vmem:[#allocation2 + $0x10] sm:$0xff] %v4690
  %4695 = vst [vmem:[#allocation2 + $0x18] sm:$0xff] %v4691
  %4696 = vrot.lane.b32.xlu0 %v4632, 15
  %v4697 = vpop.permute.xlu0 %4696
  %4698 = vrot.lane.b32.xlu0 %v4633, 15
  %v4699 = vpop.permute.xlu0 %4698
  %4700 = vrot.lane.b32.xlu0 %v4634, 15
  %v4701 = vpop.permute.xlu0 %4700
  %4702 = vrot.lane.b32.xlu0 %v4635, 15
  %v4703 = vpop.permute.xlu0 %4702
  %v4704 = vsel %vm394, %v4701, %v4703
  %v4705 = vsel %vm394, %v4699, %v4701
  %v4706 = vsel %vm394, %v4697, %v4699
  %v4707 = vsel %vm394, %v4703, %v4697
  %v4708 = vld [vmem:[%s1195] ss:$8 sm:$0xf]
  %v4710 = vperm.slane %v4708, 0
  %v4711 = vperm.slane %v4708, 1
  %v4712 = vperm.slane %v4708, 2
  %v4713 = vperm.slane %v4708, 3
  %v4718 = vmul.f32 %v4707, %v4710
  %v4719 = vmul.f32 %v4706, %v4711
  %v4720 = vmul.f32 %v4705, %v4712
  %v4721 = vmul.f32 %v4704, %v4713
  %4722 = vrot.lane.b32.xlu0 %v4632, 1
  %v4723 = vpop.permute.xlu0 %4722
  %4724 = vrot.lane.b32.xlu0 %v4633, 1
  %v4725 = vpop.permute.xlu0 %4724
  %4726 = vrot.lane.b32.xlu0 %v4634, 1
  %v4727 = vpop.permute.xlu0 %4726
  %4728 = vrot.lane.b32.xlu0 %v4635, 1
  %v4729 = vpop.permute.xlu0 %4728
  %v4730 = vsel %vm526, %v4727, %v4729
  %v4731 = vsel %vm526, %v4725, %v4727
  %v4732 = vsel %vm526, %v4723, %v4725
  %v4733 = vsel %vm526, %v4729, %v4723
  %v4734 = vld [vmem:[%s1222] ss:$8 sm:$0xf]
  %v4736 = vperm.slane %v4734, 0
  %v4737 = vperm.slane %v4734, 1
  %v4738 = vperm.slane %v4734, 2
  %v4739 = vperm.slane %v4734, 3
  %v4744 = vmul.f32 %v4733, %v4736
  %v4745 = vmul.f32 %v4732, %v4737
  %v4746 = vmul.f32 %v4731, %v4738
  %v4747 = vmul.f32 %v4730, %v4739
  %v4748 = vpack.c.bf16 %v4719, %v4718
  %v4749 = vpack.c.bf16 %v4721, %v4720
  %v4750 = vpack.c.bf16 %v4745, %v4744
  %v4751 = vpack.c.bf16 %v4747, %v4746
  %4752 = vst [vmem:[#allocation2 + $0x20] sm:$0xff] %v4748
  %4753 = vst [vmem:[#allocation2 + $0x28] sm:$0xff] %v4749
  %4754 = vst [vmem:[#allocation2 + $0x30] sm:$0xff] %v4750
  %4755 = vst [vmem:[#allocation2 + $0x38] sm:$0xff] %v4751
  %v4756 = vld [vmem:[%s1245] ss:$8 sm:$0xf]
  %v4758 = vperm.slane %v4756, 0
  %v4759 = vperm.slane %v4756, 1
  %v4760 = vperm.slane %v4756, 2
  %v4761 = vperm.slane %v4756, 3
  %v4766 = vmul.f32 %v4632, %v4758
  %v4767 = vmul.f32 %v4633, %v4759
  %v4768 = vmul.f32 %v4634, %v4760
  %v4769 = vmul.f32 %v4635, %v4761
  %4770 = vrot.lane.b32.xlu0 %v4632, 127
  %v4771 = vpop.permute.xlu0 %4770
  %4772 = vrot.lane.b32.xlu0 %v4633, 127
  %v4773 = vpop.permute.xlu0 %4772
  %4774 = vrot.lane.b32.xlu0 %v4634, 127
  %v4775 = vpop.permute.xlu0 %4774
  %4776 = vrot.lane.b32.xlu0 %v4635, 127
  %v4777 = vpop.permute.xlu0 %4776
  %v4778 = vsel %vm594, %v4775, %v4777
  %v4779 = vsel %vm594, %v4773, %v4775
  %v4780 = vsel %vm594, %v4771, %v4773
  %v4781 = vsel %vm594, %v4777, %v4771
  %v4782 = vld [vmem:[%s1272] ss:$8 sm:$0xf]
  %v4784 = vperm.slane %v4782, 0
  %v4785 = vperm.slane %v4782, 1
  %v4786 = vperm.slane %v4782, 2
  %v4787 = vperm.slane %v4782, 3
  %v4792 = vmul.f32 %v4780, %v4784
  %v4793 = vmul.f32 %v4779, %v4785
  %v4794 = vmul.f32 %v4778, %v4786
  %v4795 = vmul.f32 %v4781, %v4787
  %v4796 = vpack.c.bf16 %v4767, %v4766
  %v4797 = vpack.c.bf16 %v4769, %v4768
  %v4798 = vpack.c.bf16 %v4793, %v4792
  %v4799 = vpack.c.bf16 %v4795, %v4794
  %4800 = vst [vmem:[#allocation2 + $0x40] sm:$0xff] %v4796
  %4801 = vst [vmem:[#allocation2 + $0x48] sm:$0xff] %v4797
  %4802 = vst [vmem:[#allocation2 + $0x50] sm:$0xff] %v4798
  %4803 = vst [vmem:[#allocation2 + $0x58] sm:$0xff] %v4799
  %4804 = vrot.lane.b32.xlu0 %v4632, 113
  %v4805 = vpop.permute.xlu0 %4804
  %4806 = vrot.lane.b32.xlu0 %v4633, 113
  %v4807 = vpop.permute.xlu0 %4806
  %4808 = vrot.lane.b32.xlu0 %v4634, 113
  %v4809 = vpop.permute.xlu0 %4808
  %4810 = vrot.lane.b32.xlu0 %v4635, 113
  %v4811 = vpop.permute.xlu0 %4810
  %v4812 = vsel %vm726, %v4809, %v4811
  %v4813 = vsel %vm726, %v4807, %v4809
  %v4814 = vsel %vm726, %v4805, %v4807
  %v4815 = vsel %vm726, %v4811, %v4805
  %v4816 = vld [vmem:[%s1307] ss:$8 sm:$0xf]
  %v4818 = vperm.slane %v4816, 0
  %v4819 = vperm.slane %v4816, 1
  %v4820 = vperm.slane %v4816, 2
  %v4821 = vperm.slane %v4816, 3
  %v4826 = vmul.f32 %v4814, %v4818
  %v4827 = vmul.f32 %v4813, %v4819
  %v4828 = vmul.f32 %v4812, %v4820
  %v4829 = vmul.f32 %v4815, %v4821
  %4830 = vrot.lane.b32.xlu0 %v4632, 112
  %v4831 = vpop.permute.xlu0 %4830
  %4832 = vrot.lane.b32.xlu0 %v4633, 112
  %v4833 = vpop.permute.xlu0 %4832
  %4834 = vrot.lane.b32.xlu0 %v4634, 112
  %v4835 = vpop.permute.xlu0 %4834
  %4836 = vrot.lane.b32.xlu0 %v4635, 112
  %v4837 = vpop.permute.xlu0 %4836
  %v4838 = vsel %vm770, %v4835, %v4837
  %v4839 = vsel %vm770, %v4833, %v4835
  %v4840 = vsel %vm770, %v4831, %v4833
  %v4841 = vsel %vm770, %v4837, %v4831
  %v4842 = vld [vmem:[%s1334] ss:$8 sm:$0xf]
  %v4844 = vperm.slane %v4842, 0
  %v4845 = vperm.slane %v4842, 1
  %v4846 = vperm.slane %v4842, 2
  %v4847 = vperm.slane %v4842, 3
  %v4852 = vmul.f32 %v4840, %v4844
  %v4853 = vmul.f32 %v4839, %v4845
  %v4854 = vmul.f32 %v4838, %v4846
  %v4855 = vmul.f32 %v4841, %v4847
  %v4856 = vpack.c.bf16 %v4827, %v4826
  %v4857 = vpack.c.bf16 %v4829, %v4828
  %v4858 = vpack.c.bf16 %v4853, %v4852
  %v4859 = vpack.c.bf16 %v4855, %v4854
  %4860 = vst [vmem:[#allocation2 + $0x60] sm:$0xff] %v4856
  %4861 = vst [vmem:[#allocation2 + $0x68] sm:$0xff] %v4857
  %4862 = vst [vmem:[#allocation2 + $0x70] sm:$0xff] %v4858
  %4863 = vst [vmem:[#allocation2 + $0x78] sm:$0xff] %v4859
  %4864 = vrot.lane.b32.xlu0 %v4632, 111
  %v4865 = vpop.permute.xlu0 %4864
  %4866 = vrot.lane.b32.xlu0 %v4633, 111
  %v4867 = vpop.permute.xlu0 %4866
  %4868 = vrot.lane.b32.xlu0 %v4634, 111
  %v4869 = vpop.permute.xlu0 %4868
  %4870 = vrot.lane.b32.xlu0 %v4635, 111
  %v4871 = vpop.permute.xlu0 %4870
  %v4872 = vsel %vm814, %v4869, %v4871
  %v4873 = vsel %vm814, %v4867, %v4869
  %v4874 = vsel %vm814, %v4865, %v4867
  %v4875 = vsel %vm814, %v4871, %v4865
  %v4876 = vld [vmem:[%s1369] ss:$8 sm:$0xf]
  %v4878 = vperm.slane %v4876, 0
  %v4879 = vperm.slane %v4876, 1
  %v4880 = vperm.slane %v4876, 2
  %v4881 = vperm.slane %v4876, 3
  %v4886 = vmul.f32 %v4874, %v4878
  %v4887 = vmul.f32 %v4873, %v4879
  %v4888 = vmul.f32 %v4872, %v4880
  %v4889 = vmul.f32 %v4875, %v4881
  %v4890 = vpack.c.bf16 %v4887, %v4886
  %v4891 = vpack.c.bf16 %v4889, %v4888
  %4892 = vst [vmem:[#allocation2 + $0x80] sm:$0xff] %v4890
  %4893 = vst [vmem:[#allocation2 + $0x88] sm:$0xff] %v4891
  %4894 = vst [vmem:[#allocation2 + $0x90] sm:$0xff] %v1386
  %4895 = vst [vmem:[#allocation2 + $0x98] sm:$0xff] %v1386
  %s4896 = scalar_lea.vmem %s3, 28
  %v4897 = vld [vmem:[%s4896] sm:$0xf]
  %v4898 = vld [vmem:[#allocation2] sm:$0xff]
  %v4899 = vld [vmem:[#allocation2 + $0x8] sm:$0xff]
  %v4900 = vld [vmem:[#allocation2 + $0x10] sm:$0xff]
  %v4901 = vld [vmem:[#allocation2 + $0x18] sm:$0xff]
  %v4902 = vld [vmem:[#allocation2 + $0x20] sm:$0xff]
  %v4903 = vld [vmem:[#allocation2 + $0x28] sm:$0xff]
  %v4904 = vld [vmem:[#allocation2 + $0x30] sm:$0xff]
  %v4905 = vld [vmem:[#allocation2 + $0x38] sm:$0xff]
  %v4906 = vld [vmem:[#allocation2 + $0x40] sm:$0xff]
  %v4907 = vld [vmem:[#allocation2 + $0x48] sm:$0xff]
  %v4908 = vld [vmem:[#allocation2 + $0x50] sm:$0xff]
  %v4909 = vld [vmem:[#allocation2 + $0x58] sm:$0xff]
  %v4910 = vld [vmem:[#allocation2 + $0x60] sm:$0xff]
  %v4911 = vld [vmem:[#allocation2 + $0x68] sm:$0xff]
  %v4912 = vld [vmem:[#allocation2 + $0x70] sm:$0xff]
  %v4913 = vld [vmem:[#allocation2 + $0x78] sm:$0xff]
  %v4914 = vld [vmem:[#allocation2 + $0x80] sm:$0xff]
  %v4915 = vld [vmem:[#allocation2 + $0x88] sm:$0xff]
  %v4916 = vld [vmem:[#allocation2 + $0x90] sm:$0xff]
  %v4917 = vld [vmem:[#allocation2 + $0x98] sm:$0xff]
  %v4938 = vunpack.c.l.b16 %v4898
  %v4939 = vunpack.c.h.b16 %v4898
  %v4940 = vunpack.c.l.b16 %v4899
  %v4941 = vunpack.c.h.b16 %v4899
  %v4942 = vunpack.c.l.b16 %v4900
  %v4943 = vunpack.c.h.b16 %v4900
  %v4944 = vunpack.c.l.b16 %v4901
  %v4945 = vunpack.c.h.b16 %v4901
  %v4946 = vunpack.c.l.b16 %v4902
  %v4947 = vunpack.c.h.b16 %v4902
  %v4948 = vunpack.c.l.b16 %v4903
  %v4949 = vunpack.c.h.b16 %v4903
  %v4950 = vunpack.c.l.b16 %v4904
  %v4951 = vunpack.c.h.b16 %v4904
  %v4952 = vunpack.c.l.b16 %v4905
  %v4953 = vunpack.c.h.b16 %v4905
  %v4954 = vunpack.c.l.b16 %v4906
  %v4955 = vunpack.c.h.b16 %v4906
  %v4956 = vunpack.c.l.b16 %v4907
  %v4957 = vunpack.c.h.b16 %v4907
  %v4958 = vunpack.c.l.b16 %v4908
  %v4959 = vunpack.c.h.b16 %v4908
  %v4960 = vunpack.c.l.b16 %v4909
  %v4961 = vunpack.c.h.b16 %v4909
  %v4962 = vunpack.c.l.b16 %v4910
  %v4963 = vunpack.c.h.b16 %v4910
  %v4964 = vunpack.c.l.b16 %v4911
  %v4965 = vunpack.c.h.b16 %v4911
  %v4966 = vunpack.c.l.b16 %v4912
  %v4967 = vunpack.c.h.b16 %v4912
  %v4968 = vunpack.c.l.b16 %v4913
  %v4969 = vunpack.c.h.b16 %v4913
  %v4970 = vunpack.c.l.b16 %v4914
  %v4971 = vunpack.c.h.b16 %v4914
  %v4972 = vunpack.c.l.b16 %v4915
  %v4973 = vunpack.c.h.b16 %v4915
  %v4974 = vunpack.c.l.b16 %v4916
  %v4975 = vunpack.c.h.b16 %v4916
  %v4976 = vunpack.c.l.b16 %v4917
  %v4977 = vunpack.c.h.b16 %v4917
  %v4978 = vpack.c.b16 %v4942, %v4938
  %v4979 = vpack.c.b16 %v4943, %v4939
  %v4980 = vpack.c.b16 %v4944, %v4940
  %v4981 = vpack.c.b16 %v4945, %v4941
  %v4982 = vpack.c.b16 %v4950, %v4946
  %v4983 = vpack.c.b16 %v4951, %v4947
  %v4984 = vpack.c.b16 %v4952, %v4948
  %v4985 = vpack.c.b16 %v4953, %v4949
  %v4986 = vpack.c.b16 %v4958, %v4954
  %v4987 = vpack.c.b16 %v4959, %v4955
  %v4988 = vpack.c.b16 %v4960, %v4956
  %v4989 = vpack.c.b16 %v4961, %v4957
  %v4990 = vpack.c.b16 %v4966, %v4962
  %v4991 = vpack.c.b16 %v4967, %v4963
  %v4992 = vpack.c.b16 %v4968, %v4964
  %v4993 = vpack.c.b16 %v4969, %v4965
  %v4994 = vpack.c.b16 %v4974, %v4970
  %v4995 = vpack.c.b16 %v4975, %v4971
  %v4996 = vpack.c.b16 %v4976, %v4972
  %v4997 = vpack.c.b16 %v4977, %v4973
  %v5019 = vsel %vm1512, %v4897, 0
  %5021 = vmatpush.bf16.msra.mxu0 0
  %5022 = vmatpush.bf16.msra.mxu0 0
  %5023 = vmatpush.bf16.msra.mxu0 0
  %5024 = vmatpush.bf16.msra.mxu0 %v4994
  %5025 = vmatpush.bf16.msra.mxu0 %v4990
  %5026 = vmatpush.bf16.msra.mxu0 %v4986
  %5027 = vmatpush.bf16.msra.mxu0 %v4982
  %5028 = vmatpush.bf16.msra.mxu0 %v4978
  %5029 = vmatmul.bf16.gmra.mxu0 %v5019
  %v5030 = vpop.f32.mrf.mxu0
  %v5031 = vadd.f32 0.0, %v5030
  %v5032 = vpop.f32.mrf.mxu0
  %5033 = vdwg.mxu0
  %5034 = vmatpush.bf16.msra.mxu0 0
  %5035 = vmatpush.bf16.msra.mxu0 0
  %5036 = vmatpush.bf16.msra.mxu0 0
  %5037 = vmatpush.bf16.msra.mxu0 %v4995
  %5038 = vmatpush.bf16.msra.mxu0 %v4991
  %5039 = vmatpush.bf16.msra.mxu0 %v4987
  %5040 = vmatpush.bf16.msra.mxu0 %v4983
  %5041 = vmatpush.bf16.msra.mxu0 %v4979
  %5042 = vmatmul.bf16.gmra.mxu0 %v5019
  %v5043 = vpop.f32.mrf.mxu0
  %v5044 = vadd.f32 0.0, %v5043
  %v5045 = vpop.f32.mrf.mxu0
  %5046 = vdwg.mxu0
  %5047 = vmatpush.bf16.msra.mxu0 0
  %5048 = vmatpush.bf16.msra.mxu0 0
  %5049 = vmatpush.bf16.msra.mxu0 0
  %5050 = vmatpush.bf16.msra.mxu0 %v4996
  %5051 = vmatpush.bf16.msra.mxu0 %v4992
  %5052 = vmatpush.bf16.msra.mxu0 %v4988
  %5053 = vmatpush.bf16.msra.mxu0 %v4984
  %5054 = vmatpush.bf16.msra.mxu0 %v4980
  %5055 = vmatmul.bf16.gmra.mxu0 %v5019
  %v5056 = vpop.f32.mrf.mxu0
  %v5057 = vadd.f32 0.0, %v5056
  %v5058 = vpop.f32.mrf.mxu0
  %5059 = vdwg.mxu0
  %5060 = vmatpush.bf16.msra.mxu0 0
  %5061 = vmatpush.bf16.msra.mxu0 0
  %5062 = vmatpush.bf16.msra.mxu0 0
  %5063 = vmatpush.bf16.msra.mxu0 %v4997
  %5064 = vmatpush.bf16.msra.mxu0 %v4993
  %5065 = vmatpush.bf16.msra.mxu0 %v4989
  %5066 = vmatpush.bf16.msra.mxu0 %v4985
  %5067 = vmatpush.bf16.msra.mxu0 %v4981
  %5068 = vmatmul.bf16.gmra.mxu0 %v5019
  %v5069 = vpop.f32.mrf.mxu0
  %v5070 = vadd.f32 0.0, %v5069
  %v5071 = vpop.f32.mrf.mxu0
  %5072 = vdwg.mxu0
  %v5073 = vadd.f32 %v5031, %v5044
  %v5074 = vadd.f32 %v5073, %v5057
  %v5075 = vadd.f32 %v5074, %v5070
  %5076 = vadd.xlane.f32.xlu0 %v5075
  %v5077 = vpop.xlane.xlu0 %5076
  %v5078 = vmul.f32 %v5077, %v1579
  %v5079 = vmul.f32 %v5031, %v5031
  %v5080 = vmul.f32 %v5044, %v5044
  %v5081 = vmul.f32 %v5057, %v5057
  %v5082 = vmul.f32 %v5070, %v5070
  %v5083 = vadd.f32 %v5079, %v5080
  %v5084 = vadd.f32 %v5083, %v5081
  %v5085 = vadd.f32 %v5084, %v5082
  %5086 = vadd.xlane.f32.xlu0 %v5085
  %v5087 = vpop.xlane.xlu0 %5086
  %v5088 = vmul.f32 %v5087, %v1579
  %v5089 = vmul.f32 %v5078, %v5078
  %v5090 = vsub.f32 %v5088, %v5089
  %v5091 = vadd.f32 %v5090, 1e-05
  %v5092 = vrsqrt.pop %v5091
  %v5093 = vmul.f32 %v5092, %v5091
  %v5094 = vmul.f32 %v5093, %v5092
  %v5095 = vmul.f32 0.5, %v5094
  %v5096 = vsub.f32 1.5, %v5095
  %v5097 = vmul.f32 %v5092, %v5096
  %vm5098 = vweird.f32 %v5091
  %vm5099 = vweird.f32 %v5092
  %vm5100 = vmor %vm5098, %vm5099
  %v5101 = vsel %vm5100, %v5092, %v5097
  %v5102 = vsub.f32 %v5031, %v5078
  %v5103 = vsub.f32 %v5044, %v5078
  %v5104 = vsub.f32 %v5057, %v5078
  %v5105 = vsub.f32 %v5070, %v5078
  %v5106 = vmul.f32 %v5101, %v4130
  %5108 = vset.pattern.permute.xlu0 19
  %5109 = vperm.xlu0 %5108, %v5106
  %v5110 = vpop.permute.xlu0 %5109
  %v5112 = vmul.f32 %v5102, %v5110
  %v5113 = vmul.f32 %v5103, %v5110
  %v5114 = vmul.f32 %v5104, %v5110
  %v5115 = vmul.f32 %v5105, %v5110
  %5116 = vset.pattern.permute.xlu0 20
  %5117 = vperm.xlu0 %5116, %v4130
  %v5118 = vpop.permute.xlu0 %5117
  %v5120 = vadd.f32 %v5112, %v5118
  %v5121 = vadd.f32 %v5113, %v5118
  %v5122 = vadd.f32 %v5114, %v5118
  %v5123 = vadd.f32 %v5115, %v5118
  %v5124 = vadd.f32 %v4126, %v5120
  %v5125 = vadd.f32 %v4127, %v5121
  %v5126 = vadd.f32 %v4128, %v5122
  %v5127 = vadd.f32 %v4129, %v5123
  %5128 = vrot.lane.b32.xlu0 %v5124, 17
  %v5129 = vpop.permute.xlu0 %5128
  %5130 = vrot.lane.b32.xlu0 %v5125, 17
  %v5131 = vpop.permute.xlu0 %5130
  %5132 = vrot.lane.b32.xlu0 %v5126, 17
  %v5133 = vpop.permute.xlu0 %5132
  %5134 = vrot.lane.b32.xlu0 %v5127, 17
  %v5135 = vpop.permute.xlu0 %5134
  %v5136 = vsel %vm306, %v5133, %v5135
  %v5137 = vsel %vm306, %v5131, %v5133
  %v5138 = vsel %vm306, %v5129, %v5131
  %v5139 = vsel %vm306, %v5135, %v5129
  %v5140 = vld [vmem:[%s2] ss:$8 sm:$0xf]
  %v5142 = vperm.slane %v5140, 0
  %v5143 = vperm.slane %v5140, 1
  %v5144 = vperm.slane %v5140, 2
  %v5145 = vperm.slane %v5140, 3
  %v5150 = vmul.f32 %v5139, %v5142
  %v5151 = vmul.f32 %v5138, %v5143
  %v5152 = vmul.f32 %v5137, %v5144
  %v5153 = vmul.f32 %v5136, %v5145
  %5154 = vrot.lane.b32.xlu0 %v5124, 16
  %v5155 = vpop.permute.xlu0 %5154
  %5156 = vrot.lane.b32.xlu0 %v5125, 16
  %v5157 = vpop.permute.xlu0 %5156
  %5158 = vrot.lane.b32.xlu0 %v5126, 16
  %v5159 = vpop.permute.xlu0 %5158
  %5160 = vrot.lane.b32.xlu0 %v5127, 16
  %v5161 = vpop.permute.xlu0 %5160
  %v5162 = vsel %vm350, %v5159, %v5161
  %v5163 = vsel %vm350, %v5157, %v5159
  %v5164 = vsel %vm350, %v5155, %v5157
  %v5165 = vsel %vm350, %v5161, %v5155
  %v5166 = vld [vmem:[%s1160] ss:$8 sm:$0xf]
  %v5168 = vperm.slane %v5166, 0
  %v5169 = vperm.slane %v5166, 1
  %v5170 = vperm.slane %v5166, 2
  %v5171 = vperm.slane %v5166, 3
  %v5176 = vmul.f32 %v5165, %v5168
  %v5177 = vmul.f32 %v5164, %v5169
  %v5178 = vmul.f32 %v5163, %v5170
  %v5179 = vmul.f32 %v5162, %v5171
  %v5180 = vpack.c.bf16 %v5151, %v5150
  %v5181 = vpack.c.bf16 %v5153, %v5152
  %v5182 = vpack.c.bf16 %v5177, %v5176
  %v5183 = vpack.c.bf16 %v5179, %v5178
  %5184 = vst [vmem:[#allocation2] sm:$0xff] %v5180
  %5185 = vst [vmem:[#allocation2 + $0x8] sm:$0xff] %v5181
  %5186 = vst [vmem:[#allocation2 + $0x10] sm:$0xff] %v5182
  %5187 = vst [vmem:[#allocation2 + $0x18] sm:$0xff] %v5183
  %5188 = vrot.lane.b32.xlu0 %v5124, 15
  %v5189 = vpop.permute.xlu0 %5188
  %5190 = vrot.lane.b32.xlu0 %v5125, 15
  %v5191 = vpop.permute.xlu0 %5190
  %5192 = vrot.lane.b32.xlu0 %v5126, 15
  %v5193 = vpop.permute.xlu0 %5192
  %5194 = vrot.lane.b32.xlu0 %v5127, 15
  %v5195 = vpop.permute.xlu0 %5194
  %v5196 = vsel %vm394, %v5193, %v5195
  %v5197 = vsel %vm394, %v5191, %v5193
  %v5198 = vsel %vm394, %v5189, %v5191
  %v5199 = vsel %vm394, %v5195, %v5189
  %v5200 = vld [vmem:[%s1195] ss:$8 sm:$0xf]
  %v5202 = vperm.slane %v5200, 0
  %v5203 = vperm.slane %v5200, 1
  %v5204 = vperm.slane %v5200, 2
  %v5205 = vperm.slane %v5200, 3
  %v5210 = vmul.f32 %v5199, %v5202
  %v5211 = vmul.f32 %v5198, %v5203
  %v5212 = vmul.f32 %v5197, %v5204
  %v5213 = vmul.f32 %v5196, %v5205
  %5214 = vrot.lane.b32.xlu0 %v5124, 1
  %v5215 = vpop.permute.xlu0 %5214
  %5216 = vrot.lane.b32.xlu0 %v5125, 1
  %v5217 = vpop.permute.xlu0 %5216
  %5218 = vrot.lane.b32.xlu0 %v5126, 1
  %v5219 = vpop.permute.xlu0 %5218
  %5220 = vrot.lane.b32.xlu0 %v5127, 1
  %v5221 = vpop.permute.xlu0 %5220
  %v5222 = vsel %vm526, %v5219, %v5221
  %v5223 = vsel %vm526, %v5217, %v5219
  %v5224 = vsel %vm526, %v5215, %v5217
  %v5225 = vsel %vm526, %v5221, %v5215
  %v5226 = vld [vmem:[%s1222] ss:$8 sm:$0xf]
  %v5228 = vperm.slane %v5226, 0
  %v5229 = vperm.slane %v5226, 1
  %v5230 = vperm.slane %v5226, 2
  %v5231 = vperm.slane %v5226, 3
  %v5236 = vmul.f32 %v5225, %v5228
  %v5237 = vmul.f32 %v5224, %v5229
  %v5238 = vmul.f32 %v5223, %v5230
  %v5239 = vmul.f32 %v5222, %v5231
  %v5240 = vpack.c.bf16 %v5211, %v5210
  %v5241 = vpack.c.bf16 %v5213, %v5212
  %v5242 = vpack.c.bf16 %v5237, %v5236
  %v5243 = vpack.c.bf16 %v5239, %v5238
  %5244 = vst [vmem:[#allocation2 + $0x20] sm:$0xff] %v5240
  %5245 = vst [vmem:[#allocation2 + $0x28] sm:$0xff] %v5241
  %5246 = vst [vmem:[#allocation2 + $0x30] sm:$0xff] %v5242
  %5247 = vst [vmem:[#allocation2 + $0x38] sm:$0xff] %v5243
  %v5248 = vld [vmem:[%s1245] ss:$8 sm:$0xf]
  %v5250 = vperm.slane %v5248, 0
  %v5251 = vperm.slane %v5248, 1
  %v5252 = vperm.slane %v5248, 2
  %v5253 = vperm.slane %v5248, 3
  %v5258 = vmul.f32 %v5124, %v5250
  %v5259 = vmul.f32 %v5125, %v5251
  %v5260 = vmul.f32 %v5126, %v5252
  %v5261 = vmul.f32 %v5127, %v5253
  %5262 = vrot.lane.b32.xlu0 %v5124, 127
  %v5263 = vpop.permute.xlu0 %5262
  %5264 = vrot.lane.b32.xlu0 %v5125, 127
  %v5265 = vpop.permute.xlu0 %5264
  %5266 = vrot.lane.b32.xlu0 %v5126, 127
  %v5267 = vpop.permute.xlu0 %5266
  %5268 = vrot.lane.b32.xlu0 %v5127, 127
  %v5269 = vpop.permute.xlu0 %5268
  %v5270 = vsel %vm594, %v5267, %v5269
  %v5271 = vsel %vm594, %v5265, %v5267
  %v5272 = vsel %vm594, %v5263, %v5265
  %v5273 = vsel %vm594, %v5269, %v5263
  %v5274 = vld [vmem:[%s1272] ss:$8 sm:$0xf]
  %v5276 = vperm.slane %v5274, 0
  %v5277 = vperm.slane %v5274, 1
  %v5278 = vperm.slane %v5274, 2
  %v5279 = vperm.slane %v5274, 3
  %v5284 = vmul.f32 %v5272, %v5276
  %v5285 = vmul.f32 %v5271, %v5277
  %v5286 = vmul.f32 %v5270, %v5278
  %v5287 = vmul.f32 %v5273, %v5279
  %v5288 = vpack.c.bf16 %v5259, %v5258
  %v5289 = vpack.c.bf16 %v5261, %v5260
  %v5290 = vpack.c.bf16 %v5285, %v5284
  %v5291 = vpack.c.bf16 %v5287, %v5286
  %5292 = vst [vmem:[#allocation2 + $0x40] sm:$0xff] %v5288
  %5293 = vst [vmem:[#allocation2 + $0x48] sm:$0xff] %v5289
  %5294 = vst [vmem:[#allocation2 + $0x50] sm:$0xff] %v5290
  %5295 = vst [vmem:[#allocation2 + $0x58] sm:$0xff] %v5291
  %5296 = vrot.lane.b32.xlu0 %v5124, 113
  %v5297 = vpop.permute.xlu0 %5296
  %5298 = vrot.lane.b32.xlu0 %v5125, 113
  %v5299 = vpop.permute.xlu0 %5298
  %5300 = vrot.lane.b32.xlu0 %v5126, 113
  %v5301 = vpop.permute.xlu0 %5300
  %5302 = vrot.lane.b32.xlu0 %v5127, 113
  %v5303 = vpop.permute.xlu0 %5302
  %v5304 = vsel %vm726, %v5301, %v5303
  %v5305 = vsel %vm726, %v5299, %v5301
  %v5306 = vsel %vm726, %v5297, %v5299
  %v5307 = vsel %vm726, %v5303, %v5297
  %v5308 = vld [vmem:[%s1307] ss:$8 sm:$0xf]
  %v5310 = vperm.slane %v5308, 0
  %v5311 = vperm.slane %v5308, 1
  %v5312 = vperm.slane %v5308, 2
  %v5313 = vperm.slane %v5308, 3
  %v5318 = vmul.f32 %v5306, %v5310
  %v5319 = vmul.f32 %v5305, %v5311
  %v5320 = vmul.f32 %v5304, %v5312
  %v5321 = vmul.f32 %v5307, %v5313
  %5322 = vrot.lane.b32.xlu0 %v5124, 112
  %v5323 = vpop.permute.xlu0 %5322
  %5324 = vrot.lane.b32.xlu0 %v5125, 112
  %v5325 = vpop.permute.xlu0 %5324
  %5326 = vrot.lane.b32.xlu0 %v5126, 112
  %v5327 = vpop.permute.xlu0 %5326
  %5328 = vrot.lane.b32.xlu0 %v5127, 112
  %v5329 = vpop.permute.xlu0 %5328
  %v5330 = vsel %vm770, %v5327, %v5329
  %v5331 = vsel %vm770, %v5325, %v5327
  %v5332 = vsel %vm770, %v5323, %v5325
  %v5333 = vsel %vm770, %v5329, %v5323
  %v5334 = vld [vmem:[%s1334] ss:$8 sm:$0xf]
  %v5336 = vperm.slane %v5334, 0
  %v5337 = vperm.slane %v5334, 1
  %v5338 = vperm.slane %v5334, 2
  %v5339 = vperm.slane %v5334, 3
  %v5344 = vmul.f32 %v5332, %v5336
  %v5345 = vmul.f32 %v5331, %v5337
  %v5346 = vmul.f32 %v5330, %v5338
  %v5347 = vmul.f32 %v5333, %v5339
  %v5348 = vpack.c.bf16 %v5319, %v5318
  %v5349 = vpack.c.bf16 %v5321, %v5320
  %v5350 = vpack.c.bf16 %v5345, %v5344
  %v5351 = vpack.c.bf16 %v5347, %v5346
  %5352 = vst [vmem:[#allocation2 + $0x60] sm:$0xff] %v5348
  %5353 = vst [vmem:[#allocation2 + $0x68] sm:$0xff] %v5349
  %5354 = vst [vmem:[#allocation2 + $0x70] sm:$0xff] %v5350
  %5355 = vst [vmem:[#allocation2 + $0x78] sm:$0xff] %v5351
  %5356 = vrot.lane.b32.xlu0 %v5124, 111
  %v5357 = vpop.permute.xlu0 %5356
  %5358 = vrot.lane.b32.xlu0 %v5125, 111
  %v5359 = vpop.permute.xlu0 %5358
  %5360 = vrot.lane.b32.xlu0 %v5126, 111
  %v5361 = vpop.permute.xlu0 %5360
  %5362 = vrot.lane.b32.xlu0 %v5127, 111
  %v5363 = vpop.permute.xlu0 %5362
  %v5364 = vsel %vm814, %v5361, %v5363
  %v5365 = vsel %vm814, %v5359, %v5361
  %v5366 = vsel %vm814, %v5357, %v5359
  %v5367 = vsel %vm814, %v5363, %v5357
  %v5368 = vld [vmem:[%s1369] ss:$8 sm:$0xf]
  %v5370 = vperm.slane %v5368, 0
  %v5371 = vperm.slane %v5368, 1
  %v5372 = vperm.slane %v5368, 2
  %v5373 = vperm.slane %v5368, 3
  %v5378 = vmul.f32 %v5366, %v5370
  %v5379 = vmul.f32 %v5365, %v5371
  %v5380 = vmul.f32 %v5364, %v5372
  %v5381 = vmul.f32 %v5367, %v5373
  %v5382 = vpack.c.bf16 %v5379, %v5378
  %v5383 = vpack.c.bf16 %v5381, %v5380
  %5384 = vst [vmem:[#allocation2 + $0x80] sm:$0xff] %v5382
  %5385 = vst [vmem:[#allocation2 + $0x88] sm:$0xff] %v5383
  %5386 = vst [vmem:[#allocation2 + $0x90] sm:$0xff] %v1386
  %5387 = vst [vmem:[#allocation2 + $0x98] sm:$0xff] %v1386
  %s5388 = scalar_lea.vmem %s3, 32
  %v5389 = vld [vmem:[%s5388] sm:$0xf]
  %v5390 = vld [vmem:[#allocation2] sm:$0xff]
  %v5391 = vld [vmem:[#allocation2 + $0x8] sm:$0xff]
  %v5392 = vld [vmem:[#allocation2 + $0x10] sm:$0xff]
  %v5393 = vld [vmem:[#allocation2 + $0x18] sm:$0xff]
  %v5394 = vld [vmem:[#allocation2 + $0x20] sm:$0xff]
  %v5395 = vld [vmem:[#allocation2 + $0x28] sm:$0xff]
  %v5396 = vld [vmem:[#allocation2 + $0x30] sm:$0xff]
  %v5397 = vld [vmem:[#allocation2 + $0x38] sm:$0xff]
  %v5398 = vld [vmem:[#allocation2 + $0x40] sm:$0xff]
  %v5399 = vld [vmem:[#allocation2 + $0x48] sm:$0xff]
  %v5400 = vld [vmem:[#allocation2 + $0x50] sm:$0xff]
  %v5401 = vld [vmem:[#allocation2 + $0x58] sm:$0xff]
  %v5402 = vld [vmem:[#allocation2 + $0x60] sm:$0xff]
  %v5403 = vld [vmem:[#allocation2 + $0x68] sm:$0xff]
  %v5404 = vld [vmem:[#allocation2 + $0x70] sm:$0xff]
  %v5405 = vld [vmem:[#allocation2 + $0x78] sm:$0xff]
  %v5406 = vld [vmem:[#allocation2 + $0x80] sm:$0xff]
  %v5407 = vld [vmem:[#allocation2 + $0x88] sm:$0xff]
  %v5408 = vld [vmem:[#allocation2 + $0x90] sm:$0xff]
  %v5409 = vld [vmem:[#allocation2 + $0x98] sm:$0xff]
  %v5430 = vunpack.c.l.b16 %v5390
  %v5431 = vunpack.c.h.b16 %v5390
  %v5432 = vunpack.c.l.b16 %v5391
  %v5433 = vunpack.c.h.b16 %v5391
  %v5434 = vunpack.c.l.b16 %v5392
  %v5435 = vunpack.c.h.b16 %v5392
  %v5436 = vunpack.c.l.b16 %v5393
  %v5437 = vunpack.c.h.b16 %v5393
  %v5438 = vunpack.c.l.b16 %v5394
  %v5439 = vunpack.c.h.b16 %v5394
  %v5440 = vunpack.c.l.b16 %v5395
  %v5441 = vunpack.c.h.b16 %v5395
  %v5442 = vunpack.c.l.b16 %v5396
  %v5443 = vunpack.c.h.b16 %v5396
  %v5444 = vunpack.c.l.b16 %v5397
  %v5445 = vunpack.c.h.b16 %v5397
  %v5446 = vunpack.c.l.b16 %v5398
  %v5447 = vunpack.c.h.b16 %v5398
  %v5448 = vunpack.c.l.b16 %v5399
  %v5449 = vunpack.c.h.b16 %v5399
  %v5450 = vunpack.c.l.b16 %v5400
  %v5451 = vunpack.c.h.b16 %v5400
  %v5452 = vunpack.c.l.b16 %v5401
  %v5453 = vunpack.c.h.b16 %v5401
  %v5454 = vunpack.c.l.b16 %v5402
  %v5455 = vunpack.c.h.b16 %v5402
  %v5456 = vunpack.c.l.b16 %v5403
  %v5457 = vunpack.c.h.b16 %v5403
  %v5458 = vunpack.c.l.b16 %v5404
  %v5459 = vunpack.c.h.b16 %v5404
  %v5460 = vunpack.c.l.b16 %v5405
  %v5461 = vunpack.c.h.b16 %v5405
  %v5462 = vunpack.c.l.b16 %v5406
  %v5463 = vunpack.c.h.b16 %v5406
  %v5464 = vunpack.c.l.b16 %v5407
  %v5465 = vunpack.c.h.b16 %v5407
  %v5466 = vunpack.c.l.b16 %v5408
  %v5467 = vunpack.c.h.b16 %v5408
  %v5468 = vunpack.c.l.b16 %v5409
  %v5469 = vunpack.c.h.b16 %v5409
  %v5470 = vpack.c.b16 %v5434, %v5430
  %v5471 = vpack.c.b16 %v5435, %v5431
  %v5472 = vpack.c.b16 %v5436, %v5432
  %v5473 = vpack.c.b16 %v5437, %v5433
  %v5474 = vpack.c.b16 %v5442, %v5438
  %v5475 = vpack.c.b16 %v5443, %v5439
  %v5476 = vpack.c.b16 %v5444, %v5440
  %v5477 = vpack.c.b16 %v5445, %v5441
  %v5478 = vpack.c.b16 %v5450, %v5446
  %v5479 = vpack.c.b16 %v5451, %v5447
  %v5480 = vpack.c.b16 %v5452, %v5448
  %v5481 = vpack.c.b16 %v5453, %v5449
  %v5482 = vpack.c.b16 %v5458, %v5454
  %v5483 = vpack.c.b16 %v5459, %v5455
  %v5484 = vpack.c.b16 %v5460, %v5456
  %v5485 = vpack.c.b16 %v5461, %v5457
  %v5486 = vpack.c.b16 %v5466, %v5462
  %v5487 = vpack.c.b16 %v5467, %v5463
  %v5488 = vpack.c.b16 %v5468, %v5464
  %v5489 = vpack.c.b16 %v5469, %v5465
  %v5511 = vsel %vm1512, %v5389, 0
  %5513 = vmatpush.bf16.msra.mxu0 0
  %5514 = vmatpush.bf16.msra.mxu0 0
  %5515 = vmatpush.bf16.msra.mxu0 0
  %5516 = vmatpush.bf16.msra.mxu0 %v5486
  %5517 = vmatpush.bf16.msra.mxu0 %v5482
  %5518 = vmatpush.bf16.msra.mxu0 %v5478
  %5519 = vmatpush.bf16.msra.mxu0 %v5474
  %5520 = vmatpush.bf16.msra.mxu0 %v5470
  %5521 = vmatmul.bf16.gmra.mxu0 %v5511
  %v5522 = vpop.f32.mrf.mxu0
  %v5523 = vadd.f32 0.0, %v5522
  %v5524 = vpop.f32.mrf.mxu0
  %5525 = vdwg.mxu0
  %5526 = vmatpush.bf16.msra.mxu0 0
  %5527 = vmatpush.bf16.msra.mxu0 0
  %5528 = vmatpush.bf16.msra.mxu0 0
  %5529 = vmatpush.bf16.msra.mxu0 %v5487
  %5530 = vmatpush.bf16.msra.mxu0 %v5483
  %5531 = vmatpush.bf16.msra.mxu0 %v5479
  %5532 = vmatpush.bf16.msra.mxu0 %v5475
  %5533 = vmatpush.bf16.msra.mxu0 %v5471
  %5534 = vmatmul.bf16.gmra.mxu0 %v5511
  %v5535 = vpop.f32.mrf.mxu0
  %v5536 = vadd.f32 0.0, %v5535
  %v5537 = vpop.f32.mrf.mxu0
  %5538 = vdwg.mxu0
  %5539 = vmatpush.bf16.msra.mxu0 0
  %5540 = vmatpush.bf16.msra.mxu0 0
  %5541 = vmatpush.bf16.msra.mxu0 0
  %5542 = vmatpush.bf16.msra.mxu0 %v5488
  %5543 = vmatpush.bf16.msra.mxu0 %v5484
  %5544 = vmatpush.bf16.msra.mxu0 %v5480
  %5545 = vmatpush.bf16.msra.mxu0 %v5476
  %5546 = vmatpush.bf16.msra.mxu0 %v5472
  %5547 = vmatmul.bf16.gmra.mxu0 %v5511
  %v5548 = vpop.f32.mrf.mxu0
  %v5549 = vadd.f32 0.0, %v5548
  %v5550 = vpop.f32.mrf.mxu0
  %5551 = vdwg.mxu0
  %5552 = vmatpush.bf16.msra.mxu0 0
  %5553 = vmatpush.bf16.msra.mxu0 0
  %5554 = vmatpush.bf16.msra.mxu0 0
  %5555 = vmatpush.bf16.msra.mxu0 %v5489
  %5556 = vmatpush.bf16.msra.mxu0 %v5485
  %5557 = vmatpush.bf16.msra.mxu0 %v5481
  %5558 = vmatpush.bf16.msra.mxu0 %v5477
  %5559 = vmatpush.bf16.msra.mxu0 %v5473
  %5560 = vmatmul.bf16.gmra.mxu0 %v5511
  %v5561 = vpop.f32.mrf.mxu0
  %v5562 = vadd.f32 0.0, %v5561
  %v5563 = vpop.f32.mrf.mxu0
  %5564 = vdwg.mxu0
  %v5565 = vld [vmem:[%s4] sm:$0x1]
  %5567 = vset.pattern.permute.xlu0 21
  %5568 = vperm.xlu0 %5567, %v5565
  %v5569 = vpop.permute.xlu0 %5568
  %v5571 = vadd.f32 %v5523, %v5569
  %v5572 = vadd.f32 %v5536, %v5569
  %v5573 = vadd.f32 %v5549, %v5569
  %v5574 = vadd.f32 %v5562, %v5569
  %v5579 = vrot.slane %v5572, 7
  %v5580 = vrot.slane %v5573, 6
  %v5581 = vrot.slane %v5574, 5
  %vm5582 = vcmask 1040384
  %v5583 = vsel %vm5582, %v5571, %v5579
  %vm5584 = vcmask 1042434
  %v5585 = vsel %vm5584, %v5580, %v5581
  %vm5586 = vcmask 1041408
  %v5587 = vsel %vm5586, %v5583, %v5585
  %v5589 = vlaneseq
  %vm5590 = vcmp.ge.s32.totalorder %v5589, 0
  %vm5591 = vcmp.lt.s32.totalorder %v5589, 512
  %vm5592 = vmand %vm5590, %vm5591
  %5593 = vst.msk [vmem:[%s5] sm:$0xf] %vm5592, %v5587
  // Predicated region
  $region22: #{detection_resnet_bn.1} parent=0 // pred_check
    _
  $region23: #{detection_resnet_bn.1} parent=0 // pred_check_branch
    %5595 = sbr.rel (0) target = $region25
  $region24: #{detection_resnet_bn.1} parent=0 // pred_region
    _
  $region25: #{detection_resnet_bn.1} parent=0 // pred_fallthru
    _
  // Predicated region
  $region26: #{detection_resnet_bn.1} parent=0 // pred_check
    _
  $region27: #{detection_resnet_bn.1} parent=0 // pred_check_branch
    %5597 = sbr.rel (0) target = $region29
  $region28: #{detection_resnet_bn.1} parent=0 // pred_region
    _
  $region29: #{detection_resnet_bn.1} parent=0 // pred_fallthru
    _

</llo_original>
